<compile_context>
chip_gen: v5e
topology: v5e:2x2
jax: 0.10.0
libtpu: 0.0.40
codegen_flags: <defaults>
</compile_context>

<pallas_src>
import functools

import jax
import jax.numpy as jnp
from jax.experimental import pallas as pl
from jax.experimental.pallas import tpu as pltpu


def _pick_batch_block(B, cap=8):
    """Largest divisor of B that is <= cap (images per conv grid step)."""
    for bt in range(min(B, cap), 0, -1):
        if B % bt == 0:
            return bt
    return 1


# ----------------------------------------------------------------------------
# Kernel 1: fused conv3x3(1->16) + maxpool2 + ELU  (Bt images per grid step)
# ----------------------------------------------------------------------------
def _conv_pool_elu_kernel(p_ref, w_ref, b_ref, o_ref, *, bt):
    # p_ref: (Bt, 9, 4096) bf16  taps x (phase-major pooled spatial)
    # w_ref: (16, 9)       bf16  conv weight: out-channels x taps
    # b_ref: (16, 1)       f32   conv bias
    # o_ref: (Bt, 16, 1024) bf16 pooled+ELU activations (C-major flatten order)
    w = w_ref[...]                                   # (16, 9) bf16
    b = b_ref[...]                                   # (16, 1) f32

    for bi in range(bt):                             # static unroll
        # Per-phase matmuls with a running max keep the live set ~35 vregs
        # (vs. a register-file-sized (16,4096) f32 intermediate).
        m = jnp.dot(w, p_ref[bi, :, 0:1024],
                    preferred_element_type=jnp.float32)          # (16, 1024) f32
        for ph in range(1, 4):
            m = jnp.maximum(
                m,
                jnp.dot(w, p_ref[bi, :, ph * 1024:(ph + 1) * 1024],
                        preferred_element_type=jnp.float32))

        # Bias hoisted out of the max: max(c_i + b) == max(c_i) + b.
        m = m + b

        # ELU(alpha=1): x if x > 0 else exp(x) - 1  (exp(min(x,0)) is safe)
        elu = jnp.where(m > 0.0, m, jnp.exp(jnp.minimum(m, 0.0)) - 1.0)
        o_ref[bi] = elu.astype(o_ref.dtype)


def conv_pool_elu(patches, w_mat, bias):
    B = patches.shape[0]
    bt = _pick_batch_block(B)
    kernel = functools.partial(_conv_pool_elu_kernel, bt=bt)
    return pl.pallas_call(
        kernel,
        out_shape=jax.ShapeDtypeStruct((B, 16, 1024), jnp.bfloat16),
        grid_spec=pltpu.PrefetchScalarGridSpec(
            num_scalar_prefetch=0,
            grid=(B // bt,),
            in_specs=[
                pl.BlockSpec((bt, 9, 4096), lambda g: (g, 0, 0)),
                pl.BlockSpec((16, 9), lambda g: (0, 0)),
                pl.BlockSpec((16, 1), lambda g: (0, 0)),
            ],
            out_specs=pl.BlockSpec((bt, 16, 1024), lambda g: (g, 0, 0)),
        ),
        compiler_params=pltpu.CompilerParams(dimension_semantics=("parallel",)),
    )(patches, w_mat, bias.reshape(16, 1))


# ----------------------------------------------------------------------------
# Kernel 2: fc Linear (K-tiled, f32 VMEM accumulator) + fused classifier heads
#           heads = (ELU-features @ fc_w + fc_b) @ head_w + head_b
# ----------------------------------------------------------------------------
def fc_head_kernel(x_ref, w_ref, b_ref, hw_ref, hb_ref, heads_ref, acc_ref):
    k = pl.program_id(1)

    @pl.when(k == 0)
    def _():
        acc_ref[...] = jnp.zeros_like(acc_ref)

    acc_ref[...] += jnp.dot(x_ref[...], w_ref[...],
                            preferred_element_type=jnp.float32)

    @pl.when(k == pl.num_programs(1) - 1)
    def _():
        hidden = acc_ref[...] + b_ref[...]                       # (tm, 128) f32
        heads = jnp.dot(hidden.astype(jnp.bfloat16), hw_ref[...],
                        preferred_element_type=jnp.float32)
        heads_ref[...] = heads + hb_ref[...]                     # (tm, 1024) f32


def fc_with_heads(x, fc_w, fc_b, head_w, head_b, tk=8192):
    B, K = x.shape
    N_h = fc_w.shape[1]       # 128
    N_o = head_w.shape[1]     # 1024 (30 + 964 logits, zero-padded)
    tk = min(tk, K)
    assert K % tk == 0, "K must be divisible by the K tile size"
    # M tiling: full batch when small; 128-row tiles when B is a large multiple.
    tm = 128 if (B >= 128 and B % 128 == 0) else B
    return pl.pallas_call(
        fc_head_kernel,
        out_shape=jax.ShapeDtypeStruct((B, N_o), jnp.float32),
        grid_spec=pltpu.PrefetchScalarGridSpec(
            num_scalar_prefetch=0,
            grid=(B // tm, K // tk),
            in_specs=[
                pl.BlockSpec((tm, tk), lambda m, k: (m, k)),
                pl.BlockSpec((tk, N_h), lambda m, k: (k, 0)),
                pl.BlockSpec((1, N_h), lambda m, k: (0, 0)),
                pl.BlockSpec((N_h, N_o), lambda m, k: (0, 0)),
                pl.BlockSpec((1, N_o), lambda m, k: (0, 0)),
            ],
            out_specs=pl.BlockSpec((tm, N_o), lambda m, k: (m, 0)),
            scratch_shapes=[pltpu.VMEM((tm, N_h), jnp.float32)],
        ),
        compiler_params=pltpu.CompilerParams(
            dimension_semantics=("parallel", "arbitrary")),
    )(x, fc_w, fc_b.reshape(1, N_h), head_w, head_b.reshape(1, N_o))


# ----------------------------------------------------------------------------
# Glue: lane-dense im2col patch construction (pure data rearrangement, plain JAX)
# ----------------------------------------------------------------------------
def build_patches(x):
    # x: (B, 1, 64, 64) NCHW -> patches (B, 9, 4096) bf16
    #   patches[b, ky*3+kx, (dy*2+dx)*1024 + i*32 + j] = xpad[b, 2i+dy+ky, 2j+dx+kx]
    B = x.shape[0]
    xpad = jnp.pad(x[:, 0], ((0, 0), (1, 1), (1, 1)))        # (B, 66, 66), padding=1
    taps = []
    for ky in range(3):
        for kx in range(3):
            phases = []
            for dy in range(2):
                for dx in range(2):
                    a, c = dy + ky, dx + kx
                    phases.append(xpad[:, a:a + 64:2, c:c + 64:2].reshape(B, 1024))
            taps.append(jnp.stack(phases, axis=1).reshape(B, 4096))   # (B, 4096)
    return jnp.stack(taps, axis=1).astype(jnp.bfloat16)              # (B, 9, 4096)


# ----------------------------------------------------------------------------
# Full forward pass
# ----------------------------------------------------------------------------
def net_forward(x, params):
    B = x.shape[0]
    patches = build_patches(x)                                        # glue (bf16)
    feat = conv_pool_elu(patches, params["conv_w_mat"], params["conv_b"])
    # (B, 16, 1024) already equals PyTorch's C-major flatten order -> free reshape.
    x_flat = feat.reshape(B, 16 * 32 * 32)                            # bf16
    heads = fc_with_heads(x_flat, params["fc_w"], params["fc_b"],
                          params["head_w"], params["head_b"], tk=8192)  # (B,1024) f32
    out_alpha = heads[:, :30]
    out_char = heads[:, 30:994]
    return out_alpha, out_char


def init_params(key):
    ks = jax.random.split(key, 8)
    conv_w = jax.random.normal(ks[0], (16, 1, 3, 3), jnp.float32) * 0.1
    conv_b = jax.random.normal(ks[1], (16,), jnp.float32) * 0.01
    fc_w = jax.random.normal(ks[2], (16 * 32 * 32, 128), jnp.float32) * 0.01
    fc_b = jax.random.normal(ks[3], (128,), jnp.float32) * 0.01
    alpha_w = jax.random.normal(ks[4], (128, 30), jnp.float32) * 0.05
    alpha_b = jax.random.normal(ks[5], (30,), jnp.float32) * 0.01
    char_w = jax.random.normal(ks[6], (128, 964), jnp.float32) * 0.05
    char_b = jax.random.normal(ks[7], (964,), jnp.float32) * 0.01

    # Fuse the two heads into one lane-aligned (128, 1024) weight (zero-padded).
    head_w = jnp.pad(jnp.concatenate([alpha_w, char_w], axis=1), ((0, 0), (0, 30)))
    head_b = jnp.pad(jnp.concatenate([alpha_b, char_b]), (0, 30))

    return {
        # (Cout, Cin=1, kH, kW) -> (16 out-channels, 9 taps), bf16 for streaming.
        "conv_w_mat": conv_w.reshape(16, 9).astype(jnp.bfloat16),
        "conv_b": conv_b,
        "fc_w": fc_w.astype(jnp.bfloat16), "fc_b": fc_b,
        "head_w": head_w.astype(jnp.bfloat16), "head_b": head_b,
    }


if __name__ == "__main__":
    key = jax.random.PRNGKey(0)
    k_x, k_p = jax.random.split(key)
    # The module implies 1-channel 64x64 images (Linear(16*32*32) after pool2).
    x = jax.random.normal(k_x, (2, 1, 64, 64), jnp.float32)
    params = init_params(k_p)

    fwd = jax.jit(net_forward)
    out_alpha, out_char = fwd(x, params)
    jax.block_until_ready((out_alpha, out_char))
    assert out_alpha.shape == (2, 30) and out_char.shape == (2, 964)
    print("KERNEL_OK")
</pallas_src>

<mosaic_0001>
module attributes {stable_mosaic.version = 11 : i64} {
  func.func @_conv_pool_elu_kernel(%arg0: i32, %arg1: memref<2x9x4096xbf16, #tpu.memory_space<vmem>>, %arg2: memref<16x9xbf16, #tpu.memory_space<vmem>>, %arg3: memref<16x1xf32, #tpu.memory_space<vmem>>, %arg4: memref<2x16x1024xbf16, #tpu.memory_space<vmem>>) attributes {dimension_semantics = [#tpu.dimension_semantics<parallel>], iteration_bounds = array<i64: 1>, scalar_prefetch = 0 : i64, scratch_operands = 0 : i64, tpu.core_type = #tpu.core_type<tc>, window_params = [{transform_indices = @transform_0, window_bounds = array<i64: 2, 9, 4096>}, {pipeline_mode = #tpu.pipeline_mode<synchronous>, transform_indices = @transform_1, window_bounds = array<i64: 16, 9>}, {pipeline_mode = #tpu.pipeline_mode<synchronous>, transform_indices = @transform_2, window_bounds = array<i64: 16, 1>}, {transform_indices = @transform_3, window_bounds = array<i64: 2, 16, 1024>}]} {
    %c0 = arith.constant 0 : index
    %c0_0 = arith.constant 0 : index
    %0 = vector.load %arg2[%c0, %c0_0] : memref<16x9xbf16, #tpu.memory_space<vmem>>, vector<16x9xbf16>
    %c0_1 = arith.constant 0 : index
    %c0_2 = arith.constant 0 : index
    %1 = vector.load %arg3[%c0_1, %c0_2] : memref<16x1xf32, #tpu.memory_space<vmem>>, vector<16x1xf32>
    %c0_3 = arith.constant 0 : index
    %c0_4 = arith.constant 0 : index
    %c0_5 = arith.constant 0 : index
    %2 = vector.load %arg1[%c0_3, %c0_4, %c0_5] : memref<2x9x4096xbf16, #tpu.memory_space<vmem>>, vector<1x9x1024xbf16>
    %3 = vector.shape_cast %2 : vector<1x9x1024xbf16> to vector<9x1024xbf16>
    %cst = arith.constant dense<0.000000e+00> : vector<16x1024xf32>
    %4 = tpu.matmul %0, %3, %cst {dimension_numbers = #tpu.dot_dimension_numbers<[1], [0], [0], [1], [0, 0, 1, 1], [], []>} : vector<16x9xbf16>, vector<9x1024xbf16>, vector<16x1024xf32> -> vector<16x1024xf32>
    %c0_6 = arith.constant 0 : index
    %c0_7 = arith.constant 0 : index
    %c1024 = arith.constant 1024 : index
    %5 = vector.load %arg1[%c0_6, %c0_7, %c1024] : memref<2x9x4096xbf16, #tpu.memory_space<vmem>>, vector<1x9x1024xbf16>
    %6 = vector.shape_cast %5 : vector<1x9x1024xbf16> to vector<9x1024xbf16>
    %cst_8 = arith.constant dense<0.000000e+00> : vector<16x1024xf32>
    %7 = tpu.matmul %0, %6, %cst_8 {dimension_numbers = #tpu.dot_dimension_numbers<[1], [0], [0], [1], [0, 0, 1, 1], [], []>} : vector<16x9xbf16>, vector<9x1024xbf16>, vector<16x1024xf32> -> vector<16x1024xf32>
    %8 = arith.maximumf %4, %7 : vector<16x1024xf32>
    %c0_9 = arith.constant 0 : index
    %c0_10 = arith.constant 0 : index
    %c2048 = arith.constant 2048 : index
    %9 = vector.load %arg1[%c0_9, %c0_10, %c2048] : memref<2x9x4096xbf16, #tpu.memory_space<vmem>>, vector<1x9x1024xbf16>
    %10 = vector.shape_cast %9 : vector<1x9x1024xbf16> to vector<9x1024xbf16>
    %cst_11 = arith.constant dense<0.000000e+00> : vector<16x1024xf32>
    %11 = tpu.matmul %0, %10, %cst_11 {dimension_numbers = #tpu.dot_dimension_numbers<[1], [0], [0], [1], [0, 0, 1, 1], [], []>} : vector<16x9xbf16>, vector<9x1024xbf16>, vector<16x1024xf32> -> vector<16x1024xf32>
    %12 = arith.maximumf %8, %11 : vector<16x1024xf32>
    %c0_12 = arith.constant 0 : index
    %c0_13 = arith.constant 0 : index
    %c3072 = arith.constant 3072 : index
    %13 = vector.load %arg1[%c0_12, %c0_13, %c3072] : memref<2x9x4096xbf16, #tpu.memory_space<vmem>>, vector<1x9x1024xbf16>
    %14 = vector.shape_cast %13 : vector<1x9x1024xbf16> to vector<9x1024xbf16>
    %cst_14 = arith.constant dense<0.000000e+00> : vector<16x1024xf32>
    %15 = tpu.matmul %0, %14, %cst_14 {dimension_numbers = #tpu.dot_dimension_numbers<[1], [0], [0], [1], [0, 0, 1, 1], [], []>} : vector<16x9xbf16>, vector<9x1024xbf16>, vector<16x1024xf32> -> vector<16x1024xf32>
    %16 = arith.maximumf %12, %15 : vector<16x1024xf32>
    %17 = vector.broadcast %1 : vector<16x1xf32> to vector<16x1024xf32>
    %18 = arith.addf %16, %17 : vector<16x1024xf32>
    %cst_15 = arith.constant 0.000000e+00 : f32
    %19 = vector.broadcast %cst_15 : f32 to vector<16x1024xf32>
    %20 = arith.cmpf ogt, %18, %19 : vector<16x1024xf32>
    %cst_16 = arith.constant 0.000000e+00 : f32
    %21 = vector.broadcast %cst_16 : f32 to vector<16x1024xf32>
    %22 = arith.minimumf %18, %21 : vector<16x1024xf32>
    %23 = math.exp %22 : vector<16x1024xf32>
    %cst_17 = arith.constant 1.000000e+00 : f32
    %24 = vector.broadcast %cst_17 : f32 to vector<16x1024xf32>
    %25 = arith.subf %23, %24 : vector<16x1024xf32>
    %26 = arith.select %20, %18, %25 : vector<16x1024xi1>, vector<16x1024xf32>
    %27 = arith.truncf %26 : vector<16x1024xf32> to vector<16x1024xbf16>
    %c0_18 = arith.constant 0 : index
    %c0_19 = arith.constant 0 : index
    %c0_20 = arith.constant 0 : index
    %28 = vector.load %arg4[%c0_18, %c0_19, %c0_20] : memref<2x16x1024xbf16, #tpu.memory_space<vmem>>, vector<1x16x1024xbf16>
    %29 = vector.shape_cast %28 : vector<1x16x1024xbf16> to vector<16x1024xbf16>
    %30 = vector.shape_cast %27 : vector<16x1024xbf16> to vector<1x16x1024xbf16>
    tpu.vector_store %arg4[%c0_18, %c0_19, %c0_20], %30 {strides = array<i32>} : memref<2x16x1024xbf16, #tpu.memory_space<vmem>>, vector<1x16x1024xbf16>,
    %c1 = arith.constant 1 : index
    %c0_21 = arith.constant 0 : index
    %c0_22 = arith.constant 0 : index
    %31 = vector.load %arg1[%c1, %c0_21, %c0_22] : memref<2x9x4096xbf16, #tpu.memory_space<vmem>>, vector<1x9x1024xbf16>
    %32 = vector.shape_cast %31 : vector<1x9x1024xbf16> to vector<9x1024xbf16>
    %cst_23 = arith.constant dense<0.000000e+00> : vector<16x1024xf32>
    %33 = tpu.matmul %0, %32, %cst_23 {dimension_numbers = #tpu.dot_dimension_numbers<[1], [0], [0], [1], [0, 0, 1, 1], [], []>} : vector<16x9xbf16>, vector<9x1024xbf16>, vector<16x1024xf32> -> vector<16x1024xf32>
    %c1_24 = arith.constant 1 : index
    %c0_25 = arith.constant 0 : index
    %c1024_26 = arith.constant 1024 : index
    %34 = vector.load %arg1[%c1_24, %c0_25, %c1024_26] : memref<2x9x4096xbf16, #tpu.memory_space<vmem>>, vector<1x9x1024xbf16>
    %35 = vector.shape_cast %34 : vector<1x9x1024xbf16> to vector<9x1024xbf16>
    %cst_27 = arith.constant dense<0.000000e+00> : vector<16x1024xf32>
    %36 = tpu.matmul %0, %35, %cst_27 {dimension_numbers = #tpu.dot_dimension_numbers<[1], [0], [0], [1], [0, 0, 1, 1], [], []>} : vector<16x9xbf16>, vector<9x1024xbf16>, vector<16x1024xf32> -> vector<16x1024xf32>
    %37 = arith.maximumf %33, %36 : vector<16x1024xf32>
    %c1_28 = arith.constant 1 : index
    %c0_29 = arith.constant 0 : index
    %c2048_30 = arith.constant 2048 : index
    %38 = vector.load %arg1[%c1_28, %c0_29, %c2048_30] : memref<2x9x4096xbf16, #tpu.memory_space<vmem>>, vector<1x9x1024xbf16>
    %39 = vector.shape_cast %38 : vector<1x9x1024xbf16> to vector<9x1024xbf16>
    %cst_31 = arith.constant dense<0.000000e+00> : vector<16x1024xf32>
    %40 = tpu.matmul %0, %39, %cst_31 {dimension_numbers = #tpu.dot_dimension_numbers<[1], [0], [0], [1], [0, 0, 1, 1], [], []>} : vector<16x9xbf16>, vector<9x1024xbf16>, vector<16x1024xf32> -> vector<16x1024xf32>
    %41 = arith.maximumf %37, %40 : vector<16x1024xf32>
    %c1_32 = arith.constant 1 : index
    %c0_33 = arith.constant 0 : index
    %c3072_34 = arith.constant 3072 : index
    %42 = vector.load %arg1[%c1_32, %c0_33, %c3072_34] : memref<2x9x4096xbf16, #tpu.memory_space<vmem>>, vector<1x9x1024xbf16>
    %43 = vector.shape_cast %42 : vector<1x9x1024xbf16> to vector<9x1024xbf16>
    %cst_35 = arith.constant dense<0.000000e+00> : vector<16x1024xf32>
    %44 = tpu.matmul %0, %43, %cst_35 {dimension_numbers = #tpu.dot_dimension_numbers<[1], [0], [0], [1], [0, 0, 1, 1], [], []>} : vector<16x9xbf16>, vector<9x1024xbf16>, vector<16x1024xf32> -> vector<16x1024xf32>
    %45 = arith.maximumf %41, %44 : vector<16x1024xf32>
    %46 = vector.broadcast %1 : vector<16x1xf32> to vector<16x1024xf32>
    %47 = arith.addf %45, %46 : vector<16x1024xf32>
    %cst_36 = arith.constant 0.000000e+00 : f32
    %48 = vector.broadcast %cst_36 : f32 to vector<16x1024xf32>
    %49 = arith.cmpf ogt, %47, %48 : vector<16x1024xf32>
    %cst_37 = arith.constant 0.000000e+00 : f32
    %50 = vector.broadcast %cst_37 : f32 to vector<16x1024xf32>
    %51 = arith.minimumf %47, %50 : vector<16x1024xf32>
    %52 = math.exp %51 : vector<16x1024xf32>
    %cst_38 = arith.constant 1.000000e+00 : f32
    %53 = vector.broadcast %cst_38 : f32 to vector<16x1024xf32>
    %54 = arith.subf %52, %53 : vector<16x1024xf32>
    %55 = arith.select %49, %47, %54 : vector<16x1024xi1>, vector<16x1024xf32>
    %56 = arith.truncf %55 : vector<16x1024xf32> to vector<16x1024xbf16>
    %c1_39 = arith.constant 1 : index
    %c0_40 = arith.constant 0 : index
    %c0_41 = arith.constant 0 : index
    %57 = vector.load %arg4[%c1_39, %c0_40, %c0_41] : memref<2x16x1024xbf16, #tpu.memory_space<vmem>>, vector<1x16x1024xbf16>
    %58 = vector.shape_cast %57 : vector<1x16x1024xbf16> to vector<16x1024xbf16>
    %59 = vector.shape_cast %56 : vector<16x1024xbf16> to vector<1x16x1024xbf16>
    tpu.vector_store %arg4[%c1_39, %c0_40, %c0_41], %59 {strides = array<i32>} : memref<2x16x1024xbf16, #tpu.memory_space<vmem>>, vector<1x16x1024xbf16>,
    return
  }
  func.func @transform_0(%arg0: i32) -> (i32, i32, i32) {
    %c0_i32 = arith.constant 0 : i32
    %c0_i32_0 = arith.constant 0 : i32
    %c0_i32_1 = arith.constant 0 : i32
    return %arg0, %c0_i32, %c0_i32_0 : i32, i32, i32
  }
  func.func @transform_1(%arg0: i32) -> (i32, i32) {
    %c0_i32 = arith.constant 0 : i32
    %c0_i32_0 = arith.constant 0 : i32
    %c0_i32_1 = arith.constant 0 : i32
    return %c0_i32, %c0_i32_0 : i32, i32
  }
  func.func @transform_2(%arg0: i32) -> (i32, i32) {
    %c0_i32 = arith.constant 0 : i32
    %c0_i32_0 = arith.constant 0 : i32
    %c0_i32_1 = arith.constant 0 : i32
    return %c0_i32, %c0_i32_0 : i32, i32
  }
  func.func @transform_3(%arg0: i32) -> (i32, i32, i32) {
    %c0_i32 = arith.constant 0 : i32
    %c0_i32_0 = arith.constant 0 : i32
    %c0_i32_1 = arith.constant 0 : i32
    return %arg0, %c0_i32, %c0_i32_0 : i32, i32, i32
  }
}

module attributes {stable_mosaic.version = 11 : i64} {
  func.func @fc_head_kernel(%arg0: i32, %arg1: i32, %arg2: memref<2x8192xbf16, #tpu.memory_space<vmem>>, %arg3: memref<8192x128xbf16, #tpu.memory_space<vmem>>, %arg4: memref<1x128xf32, #tpu.memory_space<vmem>>, %arg5: memref<128x1024xbf16, #tpu.memory_space<vmem>>, %arg6: memref<1x1024xf32, #tpu.memory_space<vmem>>, %arg7: memref<2x1024xf32, #tpu.memory_space<vmem>>, %arg8: memref<2x128xf32, #tpu.memory_space<vmem>>) attributes {dimension_semantics = [#tpu.dimension_semantics<parallel>, #tpu.dimension_semantics<arbitrary>], iteration_bounds = array<i64: 1, 2>, scalar_prefetch = 0 : i64, scratch_operands = 1 : i64, tpu.core_type = #tpu.core_type<tc>, window_params = [{transform_indices = @transform_0, window_bounds = array<i64: 2, 8192>}, {transform_indices = @transform_1, window_bounds = array<i64: 8192, 128>}, {pipeline_mode = #tpu.pipeline_mode<synchronous>, transform_indices = @transform_2, window_bounds = array<i64: 1, 128>}, {pipeline_mode = #tpu.pipeline_mode<synchronous>, transform_indices = @transform_3, window_bounds = array<i64: 128, 1024>}, {pipeline_mode = #tpu.pipeline_mode<synchronous>, transform_indices = @transform_4, window_bounds = array<i64: 1, 1024>}, {transform_indices = @transform_5, window_bounds = array<i64: 2, 1024>}]} {
    %c0_i32 = arith.constant 0 : i32
    %0 = arith.cmpi eq, %arg1, %c0_i32 : i32
    %1 = arith.extui %0 : i1 to i32
    %c0_i32_0 = arith.constant 0 : i32
    %2 = arith.cmpi ne, %1, %c0_i32_0 : i32
    scf.if %2 {
      %cst_9 = arith.constant 0.000000e+00 : f32
      %12 = vector.broadcast %cst_9 : f32 to vector<2x128xf32>
      %c0_10 = arith.constant 0 : index
      %c0_11 = arith.constant 0 : index
      %13 = vector.load %arg8[%c0_10, %c0_11] : memref<2x128xf32, #tpu.memory_space<vmem>>, vector<2x128xf32>
      tpu.vector_store %arg8[%c0_10, %c0_11], %12 {strides = array<i32>} : memref<2x128xf32, #tpu.memory_space<vmem>>, vector<2x128xf32>,
    } else {
    }
    %c0 = arith.constant 0 : index
    %c0_1 = arith.constant 0 : index
    %3 = vector.load %arg8[%c0, %c0_1] : memref<2x128xf32, #tpu.memory_space<vmem>>, vector<2x128xf32>
    %c0_2 = arith.constant 0 : index
    %c0_3 = arith.constant 0 : index
    %4 = vector.load %arg2[%c0_2, %c0_3] : memref<2x8192xbf16, #tpu.memory_space<vmem>>, vector<2x8192xbf16>
    %c0_4 = arith.constant 0 : index
    %c0_5 = arith.constant 0 : index
    %5 = vector.load %arg3[%c0_4, %c0_5] : memref<8192x128xbf16, #tpu.memory_space<vmem>>, vector<8192x128xbf16>
    %cst = arith.constant dense<0.000000e+00> : vector<2x128xf32>
    %6 = tpu.matmul %4, %5, %cst {dimension_numbers = #tpu.dot_dimension_numbers<[1], [0], [0], [1], [0, 0, 1, 1], [], []>} : vector<2x8192xbf16>, vector<8192x128xbf16>, vector<2x128xf32> -> vector<2x128xf32>
    %7 = arith.addf %3, %6 : vector<2x128xf32>
    %c0_6 = arith.constant 0 : index
    %c0_7 = arith.constant 0 : index
    %8 = vector.load %arg8[%c0_6, %c0_7] : memref<2x128xf32, #tpu.memory_space<vmem>>, vector<2x128xf32>
    tpu.vector_store %arg8[%c0_6, %c0_7], %7 {strides = array<i32>} : memref<2x128xf32, #tpu.memory_space<vmem>>, vector<2x128xf32>,
    %c1_i32 = arith.constant 1 : i32
    %9 = arith.cmpi eq, %arg1, %c1_i32 : i32
    %10 = arith.extui %9 : i1 to i32
    %c0_i32_8 = arith.constant 0 : i32
    %11 = arith.cmpi ne, %10, %c0_i32_8 : i32
    scf.if %11 {
      %c0_9 = arith.constant 0 : index
      %c0_10 = arith.constant 0 : index
      %12 = vector.load %arg8[%c0_9, %c0_10] : memref<2x128xf32, #tpu.memory_space<vmem>>, vector<2x128xf32>
      %c0_11 = arith.constant 0 : index
      %c0_12 = arith.constant 0 : index
      %13 = vector.load %arg4[%c0_11, %c0_12] : memref<1x128xf32, #tpu.memory_space<vmem>>, vector<1x128xf32>
      %14 = vector.broadcast %13 : vector<1x128xf32> to vector<2x128xf32>
      %15 = arith.addf %12, %14 : vector<2x128xf32>
      %16 = arith.truncf %15 : vector<2x128xf32> to vector<2x128xbf16>
      %c0_13 = arith.constant 0 : index
      %c0_14 = arith.constant 0 : index
      %17 = vector.load %arg5[%c0_13, %c0_14] : memref<128x1024xbf16, #tpu.memory_space<vmem>>, vector<128x1024xbf16>
      %cst_15 = arith.constant dense<0.000000e+00> : vector<2x1024xf32>
      %18 = tpu.matmul %16, %17, %cst_15 {dimension_numbers = #tpu.dot_dimension_numbers<[1], [0], [0], [1], [0, 0, 1, 1], [], []>} : vector<2x128xbf16>, vector<128x1024xbf16>, vector<2x1024xf32> -> vector<2x1024xf32>
      %c0_16 = arith.constant 0 : index
      %c0_17 = arith.constant 0 : index
      %19 = vector.load %arg6[%c0_16, %c0_17] : memref<1x1024xf32, #tpu.memory_space<vmem>>, vector<1x1024xf32>
      %20 = vector.broadcast %19 : vector<1x1024xf32> to vector<2x1024xf32>
      %21 = arith.addf %18, %20 : vector<2x1024xf32>
      %c0_18 = arith.constant 0 : index
      %c0_19 = arith.constant 0 : index
      %22 = vector.load %arg7[%c0_18, %c0_19] : memref<2x1024xf32, #tpu.memory_space<vmem>>, vector<2x1024xf32>
      tpu.vector_store %arg7[%c0_18, %c0_19], %21 {strides = array<i32>} : memref<2x1024xf32, #tpu.memory_space<vmem>>, vector<2x1024xf32>,
    } else {
    }
    return
  }
  func.func @transform_0(%arg0: i32, %arg1: i32) -> (i32, i32) {
    %c0_i32 = arith.constant 0 : i32
    return %arg0, %arg1 : i32, i32
  }
  func.func @transform_1(%arg0: i32, %arg1: i32) -> (i32, i32) {
    %c0_i32 = arith.constant 0 : i32
    %c0_i32_0 = arith.constant 0 : i32
    return %arg1, %c0_i32 : i32, i32
  }
  func.func @transform_2(%arg0: i32, %arg1: i32) -> (i32, i32) {
    %c0_i32 = arith.constant 0 : i32
    %c0_i32_0 = arith.constant 0 : i32
    %c0_i32_1 = arith.constant 0 : i32
    return %c0_i32, %c0_i32_0 : i32, i32
  }
  func.func @transform_3(%arg0: i32, %arg1: i32) -> (i32, i32) {
    %c0_i32 = arith.constant 0 : i32
    %c0_i32_0 = arith.constant 0 : i32
    %c0_i32_1 = arith.constant 0 : i32
    return %c0_i32, %c0_i32_0 : i32, i32
  }
  func.func @transform_4(%arg0: i32, %arg1: i32) -> (i32, i32) {
    %c0_i32 = arith.constant 0 : i32
    %c0_i32_0 = arith.constant 0 : i32
    %c0_i32_1 = arith.constant 0 : i32
    return %c0_i32, %c0_i32_0 : i32, i32
  }
  func.func @transform_5(%arg0: i32, %arg1: i32) -> (i32, i32) {
    %c0_i32 = arith.constant 0 : i32
    %c0_i32_0 = arith.constant 0 : i32
    return %arg0, %c0_i32 : i32, i32
  }
}

</mosaic_0001>

<llo_original>
// kernel: net_forward.2
$region0: #{net_forward.2}
  #allocation0 [shape = 'u32[]', space=smem, size = 0x4, offset = 0x4, fixed_abs, tag = 'smem constant byte address 0x4 - core index']
  #allocation1 [shape = 'u32[72,128]{1,0:T(1,128)}', space=vmem, size = 0x9000, scoped, tag = 'internal scratch']
  %s0 = inlined_call_operand.vmem [shape: bf16[2,9,4096], index: 0, kind: input, shape index: {}]
  %s1 = inlined_call_operand.hbm [shape: bf16[16,9], index: 1, kind: input, shape index: {}]
  %s2 = inlined_call_operand.vmem [shape: f32[16,1], index: 2, kind: input, shape index: {}]
  %s3 = inlined_call_operand.vmem [shape: bf16[2,16,1024], index: 3, kind: output, shape index: {}]
  %s4 = sld [smem:[#allocation0]]
  $region26: #{net_forward.2} parent=0
    _
  %s6 = ssub.s32 1, %s4
  %s7 = scalar_select 0, %s6, %s4
  $region1: #{net_forward.2} parent=0
    #allocation2 [shape = 'u8[4096]{0}', space=vmem, size = 0x1000, scoped, tag = 'input window, operand 1, single buffered']
    #allocation3 [shape = 's32[1]{0}', space=sflag, size = 0x4, scoped, tag = 'scoped memory for net_forward.2']
    %8 = vsyncpa [#allocation3], 0
    // Predicated region
    $region2: #{net_forward.2} parent=1 // pred_check
      _
    $region3: #{net_forward.2} parent=1 // pred_check_branch
      %10 = sbr.rel (0) target = $region5
    $region4: #{net_forward.2} parent=1 // pred_region
      _
    $region5: #{net_forward.2} parent=1 // pred_fallthru
      _
    // Predicated region
    $region6: #{net_forward.2} parent=1 // pred_check
      _
    $region7: #{net_forward.2} parent=1 // pred_check_branch
      %12 = sbr.rel (0) target = $region9
    $region8: #{net_forward.2} parent=1 // pred_region
      %14 = vsyncadd [#allocation3], 0
      %s15 = sshll.u32 %s1, 4
      %s16 = int_to_ptr.hbm [resolvable:$true] %s15
      %s17 = sshll.u32 [#allocation2], 4
      %s18 = int_to_ptr.vmem [resolvable:$true] %s17
      %23 = dma.hbm_to_vmem [thread:$0]  %s16, 128, %s18, [#allocation3], 64, 64, 4
    $region9: #{net_forward.2} parent=1 // pred_fallthru
      _
    // Predicated region
    $region10: #{net_forward.2} parent=1 // pred_check
      _
    $region11: #{net_forward.2} parent=1 // pred_check_branch
      %25 = sbr.rel (0) target = $region13
    $region12: #{net_forward.2} parent=1 // pred_region
      _
    $region13: #{net_forward.2} parent=1 // pred_fallthru
      _
    // Predicated region
    $region14: #{net_forward.2} parent=1 // pred_check
      _
    $region15: #{net_forward.2} parent=1 // pred_check_branch
      %27 = sbr.rel (0) target = $region17
    $region16: #{net_forward.2} parent=1 // pred_region
      %29 = dma.done [#allocation3], 128
    $region17: #{net_forward.2} parent=1 // pred_fallthru
      _
    %v31 = vld [vmem:[#allocation2] sm:$0xf]
    %v32 = vld [vmem:[#allocation2 + $0x4] sm:$0xf]
    %v33 = vld [vmem:[%s2] sm:$0xff]
    %v34 = vld [vmem:[%s2 + $0x8] sm:$0xff]
    %v35 = vld [vmem:[%s0] sm:$0xff]
    %v36 = vld [vmem:[%s0 + $0x8] sm:$0xff]
    %v37 = vld [vmem:[%s0 + $0x10] sm:$0xff]
    %v38 = vld [vmem:[%s0 + $0x18] sm:$0xff]
    %v39 = vld [vmem:[%s0 + $0x80] sm:$0x11]
    %v40 = vld [vmem:[%s0 + $0x88] sm:$0x11]
    %v41 = vld [vmem:[%s0 + $0x90] sm:$0x11]
    %v42 = vld [vmem:[%s0 + $0x98] sm:$0x11]
    %v45 = vunpack.c.l.b16 %v31
    %v46 = vunpack.c.l.b16 %v32
    %v47 = vpack.c.b16 %v46, %v45
    %v56 = vunpack.c.l.b16 %v35
    %v57 = vunpack.c.h.b16 %v35
    %v58 = vunpack.c.l.b16 %v36
    %v59 = vunpack.c.h.b16 %v36
    %v60 = vunpack.c.l.b16 %v37
    %v61 = vunpack.c.h.b16 %v37
    %v62 = vunpack.c.l.b16 %v38
    %v63 = vunpack.c.h.b16 %v38
    %v64 = vunpack.c.l.b16 %v39
    %v65 = vunpack.c.h.b16 %v39
    %v66 = vunpack.c.l.b16 %v40
    %v67 = vunpack.c.h.b16 %v40
    %v68 = vunpack.c.l.b16 %v41
    %v69 = vunpack.c.h.b16 %v41
    %v70 = vunpack.c.l.b16 %v42
    %v71 = vunpack.c.h.b16 %v42
    %v72 = vpack.c.b16 %v64, %v56
    %v73 = vpack.c.b16 %v65, %v57
    %v74 = vpack.c.b16 %v66, %v58
    %v75 = vpack.c.b16 %v67, %v59
    %v76 = vpack.c.b16 %v68, %v60
    %v77 = vpack.c.b16 %v69, %v61
    %v78 = vpack.c.b16 %v70, %v62
    %v79 = vpack.c.b16 %v71, %v63
    %vm80 = vcmask 72704
    %v82 = vsel %vm80, %v47, 0
    %vm84 = vcmask 1043456
    %vm85 = vcmask 1044480
    %v86 = vsel %vm84, 4294967295, 65535
    %v87 = vsel %vm85, %v86, 0
    %v89 = vand.u32 %v72, %v87
    %v92 = vand.u32 %v73, %v87
    %v95 = vand.u32 %v74, %v87
    %v98 = vand.u32 %v75, %v87
    %v101 = vand.u32 %v76, %v87
    %v104 = vand.u32 %v77, %v87
    %v107 = vand.u32 %v78, %v87
    %v110 = vand.u32 %v79, %v87
    %112 = vmatpush.bf16.msra.mxu0 0
    %113 = vmatpush.bf16.msra.mxu0 0
    %114 = vmatpush.bf16.msra.mxu0 0
    %115 = vmatpush.bf16.msra.mxu0 0
    %116 = vmatpush.bf16.msra.mxu0 0
    %117 = vmatpush.bf16.msra.mxu0 0
    %118 = vmatpush.bf16.msra.mxu0 0
    %119 = vmatpush.bf16.msra.mxu0 %v89
    %120 = vmatmul.bf16.gmra.mxu0 %v82
    %v121 = vpop.f32.mrf.mxu0
    %v122 = vadd.f32 0.0, %v121
    %v123 = vpop.f32.mrf.mxu0
    %v124 = vadd.f32 0.0, %v123
    %125 = vdwg.mxu0
    %126 = vmatpush.bf16.msra.mxu0 0
    %127 = vmatpush.bf16.msra.mxu0 0
    %128 = vmatpush.bf16.msra.mxu0 0
    %129 = vmatpush.bf16.msra.mxu0 0
    %130 = vmatpush.bf16.msra.mxu0 0
    %131 = vmatpush.bf16.msra.mxu0 0
    %132 = vmatpush.bf16.msra.mxu0 0
    %133 = vmatpush.bf16.msra.mxu0 %v92
    %134 = vmatmul.bf16.gmra.mxu0 %v82
    %v135 = vpop.f32.mrf.mxu0
    %v136 = vadd.f32 0.0, %v135
    %v137 = vpop.f32.mrf.mxu0
    %v138 = vadd.f32 0.0, %v137
    %139 = vdwg.mxu0
    %140 = vmatpush.bf16.msra.mxu0 0
    %141 = vmatpush.bf16.msra.mxu0 0
    %142 = vmatpush.bf16.msra.mxu0 0
    %143 = vmatpush.bf16.msra.mxu0 0
    %144 = vmatpush.bf16.msra.mxu0 0
    %145 = vmatpush.bf16.msra.mxu0 0
    %146 = vmatpush.bf16.msra.mxu0 0
    %147 = vmatpush.bf16.msra.mxu0 %v95
    %148 = vmatmul.bf16.gmra.mxu0 %v82
    %v149 = vpop.f32.mrf.mxu0
    %v150 = vadd.f32 0.0, %v149
    %v151 = vpop.f32.mrf.mxu0
    %v152 = vadd.f32 0.0, %v151
    %153 = vdwg.mxu0
    %154 = vmatpush.bf16.msra.mxu0 0
    %155 = vmatpush.bf16.msra.mxu0 0
    %156 = vmatpush.bf16.msra.mxu0 0
    %157 = vmatpush.bf16.msra.mxu0 0
    %158 = vmatpush.bf16.msra.mxu0 0
    %159 = vmatpush.bf16.msra.mxu0 0
    %160 = vmatpush.bf16.msra.mxu0 0
    %161 = vmatpush.bf16.msra.mxu0 %v98
    %162 = vmatmul.bf16.gmra.mxu0 %v82
    %v163 = vpop.f32.mrf.mxu0
    %v164 = vadd.f32 0.0, %v163
    %v165 = vpop.f32.mrf.mxu0
    %v166 = vadd.f32 0.0, %v165
    %167 = vdwg.mxu0
    %168 = vmatpush.bf16.msra.mxu0 0
    %169 = vmatpush.bf16.msra.mxu0 0
    %170 = vmatpush.bf16.msra.mxu0 0
    %171 = vmatpush.bf16.msra.mxu0 0
    %172 = vmatpush.bf16.msra.mxu0 0
    %173 = vmatpush.bf16.msra.mxu0 0
    %174 = vmatpush.bf16.msra.mxu0 0
    %175 = vmatpush.bf16.msra.mxu0 %v101
    %176 = vmatmul.bf16.gmra.mxu0 %v82
    %v177 = vpop.f32.mrf.mxu0
    %v178 = vadd.f32 0.0, %v177
    %v179 = vpop.f32.mrf.mxu0
    %v180 = vadd.f32 0.0, %v179
    %181 = vdwg.mxu0
    %182 = vmatpush.bf16.msra.mxu0 0
    %183 = vmatpush.bf16.msra.mxu0 0
    %184 = vmatpush.bf16.msra.mxu0 0
    %185 = vmatpush.bf16.msra.mxu0 0
    %186 = vmatpush.bf16.msra.mxu0 0
    %187 = vmatpush.bf16.msra.mxu0 0
    %188 = vmatpush.bf16.msra.mxu0 0
    %189 = vmatpush.bf16.msra.mxu0 %v104
    %190 = vmatmul.bf16.gmra.mxu0 %v82
    %v191 = vpop.f32.mrf.mxu0
    %v192 = vadd.f32 0.0, %v191
    %v193 = vpop.f32.mrf.mxu0
    %v194 = vadd.f32 0.0, %v193
    %195 = vdwg.mxu0
    %196 = vmatpush.bf16.msra.mxu0 0
    %197 = vmatpush.bf16.msra.mxu0 0
    %198 = vmatpush.bf16.msra.mxu0 0
    %199 = vmatpush.bf16.msra.mxu0 0
    %200 = vmatpush.bf16.msra.mxu0 0
    %201 = vmatpush.bf16.msra.mxu0 0
    %202 = vmatpush.bf16.msra.mxu0 0
    %203 = vmatpush.bf16.msra.mxu0 %v107
    %204 = vmatmul.bf16.gmra.mxu0 %v82
    %v205 = vpop.f32.mrf.mxu0
    %v206 = vadd.f32 0.0, %v205
    %v207 = vpop.f32.mrf.mxu0
    %v208 = vadd.f32 0.0, %v207
    %209 = vdwg.mxu0
    %210 = vmatpush.bf16.msra.mxu0 0
    %211 = vmatpush.bf16.msra.mxu0 0
    %212 = vmatpush.bf16.msra.mxu0 0
    %213 = vmatpush.bf16.msra.mxu0 0
    %214 = vmatpush.bf16.msra.mxu0 0
    %215 = vmatpush.bf16.msra.mxu0 0
    %216 = vmatpush.bf16.msra.mxu0 0
    %217 = vmatpush.bf16.msra.mxu0 %v110
    %218 = vmatmul.bf16.gmra.mxu0 %v82
    %v219 = vpop.f32.mrf.mxu0
    %v220 = vadd.f32 0.0, %v219
    %v221 = vpop.f32.mrf.mxu0
    %v222 = vadd.f32 0.0, %v221
    %223 = vdwg.mxu0
    %v224 = vld [vmem:[%s0 + $0x20] sm:$0xff]
    %v225 = vld [vmem:[%s0 + $0x28] sm:$0xff]
    %v226 = vld [vmem:[%s0 + $0x30] sm:$0xff]
    %v227 = vld [vmem:[%s0 + $0x38] sm:$0xff]
    %v228 = vld [vmem:[%s0 + $0xa0] sm:$0x11]
    %v229 = vld [vmem:[%s0 + $0xa8] sm:$0x11]
    %v230 = vld [vmem:[%s0 + $0xb0] sm:$0x11]
    %v231 = vld [vmem:[%s0 + $0xb8] sm:$0x11]
    %v240 = vunpack.c.l.b16 %v224
    %v241 = vunpack.c.h.b16 %v224
    %v242 = vunpack.c.l.b16 %v225
    %v243 = vunpack.c.h.b16 %v225
    %v244 = vunpack.c.l.b16 %v226
    %v245 = vunpack.c.h.b16 %v226
    %v246 = vunpack.c.l.b16 %v227
    %v247 = vunpack.c.h.b16 %v227
    %v248 = vunpack.c.l.b16 %v228
    %v249 = vunpack.c.h.b16 %v228
    %v250 = vunpack.c.l.b16 %v229
    %v251 = vunpack.c.h.b16 %v229
    %v252 = vunpack.c.l.b16 %v230
    %v253 = vunpack.c.h.b16 %v230
    %v254 = vunpack.c.l.b16 %v231
    %v255 = vunpack.c.h.b16 %v231
    %v256 = vpack.c.b16 %v248, %v240
    %v257 = vpack.c.b16 %v249, %v241
    %v258 = vpack.c.b16 %v250, %v242
    %v259 = vpack.c.b16 %v251, %v243
    %v260 = vpack.c.b16 %v252, %v244
    %v261 = vpack.c.b16 %v253, %v245
    %v262 = vpack.c.b16 %v254, %v246
    %v263 = vpack.c.b16 %v255, %v247
    %v265 = vand.u32 %v256, %v87
    %v268 = vand.u32 %v257, %v87
    %v271 = vand.u32 %v258, %v87
    %v274 = vand.u32 %v259, %v87
    %v277 = vand.u32 %v260, %v87
    %v280 = vand.u32 %v261, %v87
    %v283 = vand.u32 %v262, %v87
    %v286 = vand.u32 %v263, %v87
    %288 = vmatpush.bf16.msra.mxu0 0
    %289 = vmatpush.bf16.msra.mxu0 0
    %290 = vmatpush.bf16.msra.mxu0 0
    %291 = vmatpush.bf16.msra.mxu0 0
    %292 = vmatpush.bf16.msra.mxu0 0
    %293 = vmatpush.bf16.msra.mxu0 0
    %294 = vmatpush.bf16.msra.mxu0 0
    %295 = vmatpush.bf16.msra.mxu0 %v265
    %296 = vmatmul.bf16.gmra.mxu0 %v82
    %v297 = vpop.f32.mrf.mxu0
    %v298 = vadd.f32 0.0, %v297
    %v299 = vpop.f32.mrf.mxu0
    %v300 = vadd.f32 0.0, %v299
    %301 = vdwg.mxu0
    %302 = vmatpush.bf16.msra.mxu0 0
    %303 = vmatpush.bf16.msra.mxu0 0
    %304 = vmatpush.bf16.msra.mxu0 0
    %305 = vmatpush.bf16.msra.mxu0 0
    %306 = vmatpush.bf16.msra.mxu0 0
    %307 = vmatpush.bf16.msra.mxu0 0
    %308 = vmatpush.bf16.msra.mxu0 0
    %309 = vmatpush.bf16.msra.mxu0 %v268
    %310 = vmatmul.bf16.gmra.mxu0 %v82
    %v311 = vpop.f32.mrf.mxu0
    %v312 = vadd.f32 0.0, %v311
    %v313 = vpop.f32.mrf.mxu0
    %v314 = vadd.f32 0.0, %v313
    %315 = vdwg.mxu0
    %316 = vmatpush.bf16.msra.mxu0 0
    %317 = vmatpush.bf16.msra.mxu0 0
    %318 = vmatpush.bf16.msra.mxu0 0
    %319 = vmatpush.bf16.msra.mxu0 0
    %320 = vmatpush.bf16.msra.mxu0 0
    %321 = vmatpush.bf16.msra.mxu0 0
    %322 = vmatpush.bf16.msra.mxu0 0
    %323 = vmatpush.bf16.msra.mxu0 %v271
    %324 = vmatmul.bf16.gmra.mxu0 %v82
    %v325 = vpop.f32.mrf.mxu0
    %v326 = vadd.f32 0.0, %v325
    %v327 = vpop.f32.mrf.mxu0
    %v328 = vadd.f32 0.0, %v327
    %329 = vdwg.mxu0
    %330 = vmatpush.bf16.msra.mxu0 0
    %331 = vmatpush.bf16.msra.mxu0 0
    %332 = vmatpush.bf16.msra.mxu0 0
    %333 = vmatpush.bf16.msra.mxu0 0
    %334 = vmatpush.bf16.msra.mxu0 0
    %335 = vmatpush.bf16.msra.mxu0 0
    %336 = vmatpush.bf16.msra.mxu0 0
    %337 = vmatpush.bf16.msra.mxu0 %v274
    %338 = vmatmul.bf16.gmra.mxu0 %v82
    %v339 = vpop.f32.mrf.mxu0
    %v340 = vadd.f32 0.0, %v339
    %v341 = vpop.f32.mrf.mxu0
    %v342 = vadd.f32 0.0, %v341
    %343 = vdwg.mxu0
    %344 = vmatpush.bf16.msra.mxu0 0
    %345 = vmatpush.bf16.msra.mxu0 0
    %346 = vmatpush.bf16.msra.mxu0 0
    %347 = vmatpush.bf16.msra.mxu0 0
    %348 = vmatpush.bf16.msra.mxu0 0
    %349 = vmatpush.bf16.msra.mxu0 0
    %350 = vmatpush.bf16.msra.mxu0 0
    %351 = vmatpush.bf16.msra.mxu0 %v277
    %352 = vmatmul.bf16.gmra.mxu0 %v82
    %v353 = vpop.f32.mrf.mxu0
    %v354 = vadd.f32 0.0, %v353
    %v355 = vpop.f32.mrf.mxu0
    %v356 = vadd.f32 0.0, %v355
    %357 = vdwg.mxu0
    %358 = vmatpush.bf16.msra.mxu0 0
    %359 = vmatpush.bf16.msra.mxu0 0
    %360 = vmatpush.bf16.msra.mxu0 0
    %361 = vmatpush.bf16.msra.mxu0 0
    %362 = vmatpush.bf16.msra.mxu0 0
    %363 = vmatpush.bf16.msra.mxu0 0
    %364 = vmatpush.bf16.msra.mxu0 0
    %365 = vmatpush.bf16.msra.mxu0 %v280
    %366 = vmatmul.bf16.gmra.mxu0 %v82
    %v367 = vpop.f32.mrf.mxu0
    %v368 = vadd.f32 0.0, %v367
    %v369 = vpop.f32.mrf.mxu0
    %v370 = vadd.f32 0.0, %v369
    %371 = vdwg.mxu0
    %372 = vmatpush.bf16.msra.mxu0 0
    %373 = vmatpush.bf16.msra.mxu0 0
    %374 = vmatpush.bf16.msra.mxu0 0
    %375 = vmatpush.bf16.msra.mxu0 0
    %376 = vmatpush.bf16.msra.mxu0 0
    %377 = vmatpush.bf16.msra.mxu0 0
    %378 = vmatpush.bf16.msra.mxu0 0
    %379 = vmatpush.bf16.msra.mxu0 %v283
    %380 = vmatmul.bf16.gmra.mxu0 %v82
    %v381 = vpop.f32.mrf.mxu0
    %v382 = vadd.f32 0.0, %v381
    %v383 = vpop.f32.mrf.mxu0
    %v384 = vadd.f32 0.0, %v383
    %385 = vdwg.mxu0
    %386 = vmatpush.bf16.msra.mxu0 0
    %387 = vmatpush.bf16.msra.mxu0 0
    %388 = vmatpush.bf16.msra.mxu0 0
    %389 = vmatpush.bf16.msra.mxu0 0
    %390 = vmatpush.bf16.msra.mxu0 0
    %391 = vmatpush.bf16.msra.mxu0 0
    %392 = vmatpush.bf16.msra.mxu0 0
    %393 = vmatpush.bf16.msra.mxu0 %v286
    %394 = vmatmul.bf16.gmra.mxu0 %v82
    %v395 = vpop.f32.mrf.mxu0
    %v396 = vadd.f32 0.0, %v395
    %v397 = vpop.f32.mrf.mxu0
    %v398 = vadd.f32 0.0, %v397
    %399 = vdwg.mxu0
    %v400 = vmax.f32 %v122, %v298
    %v401 = vmax.f32 %v136, %v312
    %v402 = vmax.f32 %v150, %v326
    %v403 = vmax.f32 %v164, %v340
    %v404 = vmax.f32 %v178, %v354
    %v405 = vmax.f32 %v192, %v368
    %v406 = vmax.f32 %v206, %v382
    %v407 = vmax.f32 %v220, %v396
    %v408 = vmax.f32 %v124, %v300
    %v409 = vmax.f32 %v138, %v314
    %v410 = vmax.f32 %v152, %v328
    %v411 = vmax.f32 %v166, %v342
    %v412 = vmax.f32 %v180, %v356
    %v413 = vmax.f32 %v194, %v370
    %v414 = vmax.f32 %v208, %v384
    %v415 = vmax.f32 %v222, %v398
    %v416 = vld [vmem:[%s0 + $0x40] sm:$0xff]
    %v417 = vld [vmem:[%s0 + $0x48] sm:$0xff]
    %v418 = vld [vmem:[%s0 + $0x50] sm:$0xff]
    %v419 = vld [vmem:[%s0 + $0x58] sm:$0xff]
    %v420 = vld [vmem:[%s0 + $0xc0] sm:$0x11]
    %v421 = vld [vmem:[%s0 + $0xc8] sm:$0x11]
    %v422 = vld [vmem:[%s0 + $0xd0] sm:$0x11]
    %v423 = vld [vmem:[%s0 + $0xd8] sm:$0x11]
    %v432 = vunpack.c.l.b16 %v416
    %v433 = vunpack.c.h.b16 %v416
    %v434 = vunpack.c.l.b16 %v417
    %v435 = vunpack.c.h.b16 %v417
    %v436 = vunpack.c.l.b16 %v418
    %v437 = vunpack.c.h.b16 %v418
    %v438 = vunpack.c.l.b16 %v419
    %v439 = vunpack.c.h.b16 %v419
    %v440 = vunpack.c.l.b16 %v420
    %v441 = vunpack.c.h.b16 %v420
    %v442 = vunpack.c.l.b16 %v421
    %v443 = vunpack.c.h.b16 %v421
    %v444 = vunpack.c.l.b16 %v422
    %v445 = vunpack.c.h.b16 %v422
    %v446 = vunpack.c.l.b16 %v423
    %v447 = vunpack.c.h.b16 %v423
    %v448 = vpack.c.b16 %v440, %v432
    %v449 = vpack.c.b16 %v441, %v433
    %v450 = vpack.c.b16 %v442, %v434
    %v451 = vpack.c.b16 %v443, %v435
    %v452 = vpack.c.b16 %v444, %v436
    %v453 = vpack.c.b16 %v445, %v437
    %v454 = vpack.c.b16 %v446, %v438
    %v455 = vpack.c.b16 %v447, %v439
    %v457 = vand.u32 %v448, %v87
    %v460 = vand.u32 %v449, %v87
    %v463 = vand.u32 %v450, %v87
    %v466 = vand.u32 %v451, %v87
    %v469 = vand.u32 %v452, %v87
    %v472 = vand.u32 %v453, %v87
    %v475 = vand.u32 %v454, %v87
    %v478 = vand.u32 %v455, %v87
    %480 = vmatpush.bf16.msra.mxu0 0
    %481 = vmatpush.bf16.msra.mxu0 0
    %482 = vmatpush.bf16.msra.mxu0 0
    %483 = vmatpush.bf16.msra.mxu0 0
    %484 = vmatpush.bf16.msra.mxu0 0
    %485 = vmatpush.bf16.msra.mxu0 0
    %486 = vmatpush.bf16.msra.mxu0 0
    %487 = vmatpush.bf16.msra.mxu0 %v457
    %488 = vmatmul.bf16.gmra.mxu0 %v82
    %v489 = vpop.f32.mrf.mxu0
    %v490 = vadd.f32 0.0, %v489
    %v491 = vpop.f32.mrf.mxu0
    %v492 = vadd.f32 0.0, %v491
    %493 = vdwg.mxu0
    %494 = vmatpush.bf16.msra.mxu0 0
    %495 = vmatpush.bf16.msra.mxu0 0
    %496 = vmatpush.bf16.msra.mxu0 0
    %497 = vmatpush.bf16.msra.mxu0 0
    %498 = vmatpush.bf16.msra.mxu0 0
    %499 = vmatpush.bf16.msra.mxu0 0
    %500 = vmatpush.bf16.msra.mxu0 0
    %501 = vmatpush.bf16.msra.mxu0 %v460
    %502 = vmatmul.bf16.gmra.mxu0 %v82
    %v503 = vpop.f32.mrf.mxu0
    %v504 = vadd.f32 0.0, %v503
    %v505 = vpop.f32.mrf.mxu0
    %v506 = vadd.f32 0.0, %v505
    %507 = vdwg.mxu0
    %508 = vmatpush.bf16.msra.mxu0 0
    %509 = vmatpush.bf16.msra.mxu0 0
    %510 = vmatpush.bf16.msra.mxu0 0
    %511 = vmatpush.bf16.msra.mxu0 0
    %512 = vmatpush.bf16.msra.mxu0 0
    %513 = vmatpush.bf16.msra.mxu0 0
    %514 = vmatpush.bf16.msra.mxu0 0
    %515 = vmatpush.bf16.msra.mxu0 %v463
    %516 = vmatmul.bf16.gmra.mxu0 %v82
    %v517 = vpop.f32.mrf.mxu0
    %v518 = vadd.f32 0.0, %v517
    %v519 = vpop.f32.mrf.mxu0
    %v520 = vadd.f32 0.0, %v519
    %521 = vdwg.mxu0
    %522 = vmatpush.bf16.msra.mxu0 0
    %523 = vmatpush.bf16.msra.mxu0 0
    %524 = vmatpush.bf16.msra.mxu0 0
    %525 = vmatpush.bf16.msra.mxu0 0
    %526 = vmatpush.bf16.msra.mxu0 0
    %527 = vmatpush.bf16.msra.mxu0 0
    %528 = vmatpush.bf16.msra.mxu0 0
    %529 = vmatpush.bf16.msra.mxu0 %v466
    %530 = vmatmul.bf16.gmra.mxu0 %v82
    %v531 = vpop.f32.mrf.mxu0
    %v532 = vadd.f32 0.0, %v531
    %v533 = vpop.f32.mrf.mxu0
    %v534 = vadd.f32 0.0, %v533
    %535 = vdwg.mxu0
    %536 = vmatpush.bf16.msra.mxu0 0
    %537 = vmatpush.bf16.msra.mxu0 0
    %538 = vmatpush.bf16.msra.mxu0 0
    %539 = vmatpush.bf16.msra.mxu0 0
    %540 = vmatpush.bf16.msra.mxu0 0
    %541 = vmatpush.bf16.msra.mxu0 0
    %542 = vmatpush.bf16.msra.mxu0 0
    %543 = vmatpush.bf16.msra.mxu0 %v469
    %544 = vmatmul.bf16.gmra.mxu0 %v82
    %v545 = vpop.f32.mrf.mxu0
    %v546 = vadd.f32 0.0, %v545
    %v547 = vpop.f32.mrf.mxu0
    %v548 = vadd.f32 0.0, %v547
    %549 = vdwg.mxu0
    %550 = vmatpush.bf16.msra.mxu0 0
    %551 = vmatpush.bf16.msra.mxu0 0
    %552 = vmatpush.bf16.msra.mxu0 0
    %553 = vmatpush.bf16.msra.mxu0 0
    %554 = vmatpush.bf16.msra.mxu0 0
    %555 = vmatpush.bf16.msra.mxu0 0
    %556 = vmatpush.bf16.msra.mxu0 0
    %557 = vmatpush.bf16.msra.mxu0 %v472
    %558 = vmatmul.bf16.gmra.mxu0 %v82
    %v559 = vpop.f32.mrf.mxu0
    %v560 = vadd.f32 0.0, %v559
    %v561 = vpop.f32.mrf.mxu0
    %v562 = vadd.f32 0.0, %v561
    %563 = vdwg.mxu0
    %564 = vmatpush.bf16.msra.mxu0 0
    %565 = vmatpush.bf16.msra.mxu0 0
    %566 = vmatpush.bf16.msra.mxu0 0
    %567 = vmatpush.bf16.msra.mxu0 0
    %568 = vmatpush.bf16.msra.mxu0 0
    %569 = vmatpush.bf16.msra.mxu0 0
    %570 = vmatpush.bf16.msra.mxu0 0
    %571 = vmatpush.bf16.msra.mxu0 %v475
    %572 = vmatmul.bf16.gmra.mxu0 %v82
    %v573 = vpop.f32.mrf.mxu0
    %v574 = vadd.f32 0.0, %v573
    %v575 = vpop.f32.mrf.mxu0
    %v576 = vadd.f32 0.0, %v575
    %577 = vdwg.mxu0
    %578 = vmatpush.bf16.msra.mxu0 0
    %579 = vmatpush.bf16.msra.mxu0 0
    %580 = vmatpush.bf16.msra.mxu0 0
    %581 = vmatpush.bf16.msra.mxu0 0
    %582 = vmatpush.bf16.msra.mxu0 0
    %583 = vmatpush.bf16.msra.mxu0 0
    %584 = vmatpush.bf16.msra.mxu0 0
    %585 = vmatpush.bf16.msra.mxu0 %v478
    %586 = vmatmul.bf16.gmra.mxu0 %v82
    %v587 = vpop.f32.mrf.mxu0
    %v588 = vadd.f32 0.0, %v587
    %v589 = vpop.f32.mrf.mxu0
    %v590 = vadd.f32 0.0, %v589
    %591 = vdwg.mxu0
    %v592 = vmax.f32 %v400, %v490
    %v593 = vmax.f32 %v401, %v504
    %v594 = vmax.f32 %v402, %v518
    %v595 = vmax.f32 %v403, %v532
    %v596 = vmax.f32 %v404, %v546
    %v597 = vmax.f32 %v405, %v560
    %v598 = vmax.f32 %v406, %v574
    %v599 = vmax.f32 %v407, %v588
    %v600 = vmax.f32 %v408, %v492
    %v601 = vmax.f32 %v409, %v506
    %v602 = vmax.f32 %v410, %v520
    %v603 = vmax.f32 %v411, %v534
    %v604 = vmax.f32 %v412, %v548
    %v605 = vmax.f32 %v413, %v562
    %v606 = vmax.f32 %v414, %v576
    %v607 = vmax.f32 %v415, %v590
    %v608 = vld [vmem:[%s0 + $0x60] sm:$0xff]
    %v609 = vld [vmem:[%s0 + $0x68] sm:$0xff]
    %v610 = vld [vmem:[%s0 + $0x70] sm:$0xff]
    %v611 = vld [vmem:[%s0 + $0x78] sm:$0xff]
    %v612 = vld [vmem:[%s0 + $0xe0] sm:$0x11]
    %v613 = vld [vmem:[%s0 + $0xe8] sm:$0x11]
    %v614 = vld [vmem:[%s0 + $0xf0] sm:$0x11]
    %v615 = vld [vmem:[%s0 + $0xf8] sm:$0x11]
    %v624 = vunpack.c.l.b16 %v608
    %v625 = vunpack.c.h.b16 %v608
    %v626 = vunpack.c.l.b16 %v609
    %v627 = vunpack.c.h.b16 %v609
    %v628 = vunpack.c.l.b16 %v610
    %v629 = vunpack.c.h.b16 %v610
    %v630 = vunpack.c.l.b16 %v611
    %v631 = vunpack.c.h.b16 %v611
    %v632 = vunpack.c.l.b16 %v612
    %v633 = vunpack.c.h.b16 %v612
    %v634 = vunpack.c.l.b16 %v613
    %v635 = vunpack.c.h.b16 %v613
    %v636 = vunpack.c.l.b16 %v614
    %v637 = vunpack.c.h.b16 %v614
    %v638 = vunpack.c.l.b16 %v615
    %v639 = vunpack.c.h.b16 %v615
    %v640 = vpack.c.b16 %v632, %v624
    %v641 = vpack.c.b16 %v633, %v625
    %v642 = vpack.c.b16 %v634, %v626
    %v643 = vpack.c.b16 %v635, %v627
    %v644 = vpack.c.b16 %v636, %v628
    %v645 = vpack.c.b16 %v637, %v629
    %v646 = vpack.c.b16 %v638, %v630
    %v647 = vpack.c.b16 %v639, %v631
    %v649 = vand.u32 %v640, %v87
    %v652 = vand.u32 %v641, %v87
    %v655 = vand.u32 %v642, %v87
    %v658 = vand.u32 %v643, %v87
    %v661 = vand.u32 %v644, %v87
    %v664 = vand.u32 %v645, %v87
    %v667 = vand.u32 %v646, %v87
    %v670 = vand.u32 %v647, %v87
    %672 = vmatpush.bf16.msra.mxu0 0
    %673 = vmatpush.bf16.msra.mxu0 0
    %674 = vmatpush.bf16.msra.mxu0 0
    %675 = vmatpush.bf16.msra.mxu0 0
    %676 = vmatpush.bf16.msra.mxu0 0
    %677 = vmatpush.bf16.msra.mxu0 0
    %678 = vmatpush.bf16.msra.mxu0 0
    %679 = vmatpush.bf16.msra.mxu0 %v649
    %680 = vmatmul.bf16.gmra.mxu0 %v82
    %v681 = vpop.f32.mrf.mxu0
    %v682 = vadd.f32 0.0, %v681
    %v683 = vpop.f32.mrf.mxu0
    %v684 = vadd.f32 0.0, %v683
    %685 = vdwg.mxu0
    %686 = vmatpush.bf16.msra.mxu0 0
    %687 = vmatpush.bf16.msra.mxu0 0
    %688 = vmatpush.bf16.msra.mxu0 0
    %689 = vmatpush.bf16.msra.mxu0 0
    %690 = vmatpush.bf16.msra.mxu0 0
    %691 = vmatpush.bf16.msra.mxu0 0
    %692 = vmatpush.bf16.msra.mxu0 0
    %693 = vmatpush.bf16.msra.mxu0 %v652
    %694 = vmatmul.bf16.gmra.mxu0 %v82
    %v695 = vpop.f32.mrf.mxu0
    %v696 = vadd.f32 0.0, %v695
    %v697 = vpop.f32.mrf.mxu0
    %v698 = vadd.f32 0.0, %v697
    %699 = vdwg.mxu0
    %700 = vmatpush.bf16.msra.mxu0 0
    %701 = vmatpush.bf16.msra.mxu0 0
    %702 = vmatpush.bf16.msra.mxu0 0
    %703 = vmatpush.bf16.msra.mxu0 0
    %704 = vmatpush.bf16.msra.mxu0 0
    %705 = vmatpush.bf16.msra.mxu0 0
    %706 = vmatpush.bf16.msra.mxu0 0
    %707 = vmatpush.bf16.msra.mxu0 %v655
    %708 = vmatmul.bf16.gmra.mxu0 %v82
    %v709 = vpop.f32.mrf.mxu0
    %v710 = vadd.f32 0.0, %v709
    %v711 = vpop.f32.mrf.mxu0
    %v712 = vadd.f32 0.0, %v711
    %713 = vdwg.mxu0
    %714 = vmatpush.bf16.msra.mxu0 0
    %715 = vmatpush.bf16.msra.mxu0 0
    %716 = vmatpush.bf16.msra.mxu0 0
    %717 = vmatpush.bf16.msra.mxu0 0
    %718 = vmatpush.bf16.msra.mxu0 0
    %719 = vmatpush.bf16.msra.mxu0 0
    %720 = vmatpush.bf16.msra.mxu0 0
    %721 = vmatpush.bf16.msra.mxu0 %v658
    %722 = vmatmul.bf16.gmra.mxu0 %v82
    %v723 = vpop.f32.mrf.mxu0
    %v724 = vadd.f32 0.0, %v723
    %v725 = vpop.f32.mrf.mxu0
    %v726 = vadd.f32 0.0, %v725
    %727 = vdwg.mxu0
    %728 = vmatpush.bf16.msra.mxu0 0
    %729 = vmatpush.bf16.msra.mxu0 0
    %730 = vmatpush.bf16.msra.mxu0 0
    %731 = vmatpush.bf16.msra.mxu0 0
    %732 = vmatpush.bf16.msra.mxu0 0
    %733 = vmatpush.bf16.msra.mxu0 0
    %734 = vmatpush.bf16.msra.mxu0 0
    %735 = vmatpush.bf16.msra.mxu0 %v661
    %736 = vmatmul.bf16.gmra.mxu0 %v82
    %v737 = vpop.f32.mrf.mxu0
    %v738 = vadd.f32 0.0, %v737
    %v739 = vpop.f32.mrf.mxu0
    %v740 = vadd.f32 0.0, %v739
    %741 = vdwg.mxu0
    %742 = vmatpush.bf16.msra.mxu0 0
    %743 = vmatpush.bf16.msra.mxu0 0
    %744 = vmatpush.bf16.msra.mxu0 0
    %745 = vmatpush.bf16.msra.mxu0 0
    %746 = vmatpush.bf16.msra.mxu0 0
    %747 = vmatpush.bf16.msra.mxu0 0
    %748 = vmatpush.bf16.msra.mxu0 0
    %749 = vmatpush.bf16.msra.mxu0 %v664
    %750 = vmatmul.bf16.gmra.mxu0 %v82
    %v751 = vpop.f32.mrf.mxu0
    %v752 = vadd.f32 0.0, %v751
    %v753 = vpop.f32.mrf.mxu0
    %v754 = vadd.f32 0.0, %v753
    %755 = vdwg.mxu0
    %756 = vmatpush.bf16.msra.mxu0 0
    %757 = vmatpush.bf16.msra.mxu0 0
    %758 = vmatpush.bf16.msra.mxu0 0
    %759 = vmatpush.bf16.msra.mxu0 0
    %760 = vmatpush.bf16.msra.mxu0 0
    %761 = vmatpush.bf16.msra.mxu0 0
    %762 = vmatpush.bf16.msra.mxu0 0
    %763 = vmatpush.bf16.msra.mxu0 %v667
    %764 = vmatmul.bf16.gmra.mxu0 %v82
    %v765 = vpop.f32.mrf.mxu0
    %v766 = vadd.f32 0.0, %v765
    %v767 = vpop.f32.mrf.mxu0
    %v768 = vadd.f32 0.0, %v767
    %769 = vdwg.mxu0
    %770 = vmatpush.bf16.msra.mxu0 0
    %771 = vmatpush.bf16.msra.mxu0 0
    %772 = vmatpush.bf16.msra.mxu0 0
    %773 = vmatpush.bf16.msra.mxu0 0
    %774 = vmatpush.bf16.msra.mxu0 0
    %775 = vmatpush.bf16.msra.mxu0 0
    %776 = vmatpush.bf16.msra.mxu0 0
    %777 = vmatpush.bf16.msra.mxu0 %v670
    %778 = vmatmul.bf16.gmra.mxu0 %v82
    %v779 = vpop.f32.mrf.mxu0
    %v780 = vadd.f32 0.0, %v779
    %v781 = vpop.f32.mrf.mxu0
    %v782 = vadd.f32 0.0, %v781
    %783 = vdwg.mxu0
    %v784 = vmax.f32 %v592, %v682
    %v785 = vmax.f32 %v593, %v696
    %v786 = vmax.f32 %v594, %v710
    %v787 = vmax.f32 %v595, %v724
    %v788 = vmax.f32 %v596, %v738
    %v789 = vmax.f32 %v597, %v752
    %v790 = vmax.f32 %v598, %v766
    %v791 = vmax.f32 %v599, %v780
    %v792 = vmax.f32 %v600, %v684
    %v793 = vmax.f32 %v601, %v698
    %v794 = vmax.f32 %v602, %v712
    %v795 = vmax.f32 %v603, %v726
    %v796 = vmax.f32 %v604, %v740
    %v797 = vmax.f32 %v605, %v754
    %v798 = vmax.f32 %v606, %v768
    %v799 = vmax.f32 %v607, %v782
    %801 = vset.pattern.permute.xlu0 0
    %802 = vperm.xlu0 %801, %v33
    %v803 = vpop.permute.xlu0 %802
    %806 = vset.pattern.permute.xlu0 0
    %807 = vperm.xlu0 %806, %v34
    %v808 = vpop.permute.xlu0 %807
    %v810 = vadd.f32 %v784, %v803
    %v811 = vadd.f32 %v785, %v803
    %v812 = vadd.f32 %v786, %v803
    %v813 = vadd.f32 %v787, %v803
    %v814 = vadd.f32 %v788, %v803
    %v815 = vadd.f32 %v789, %v803
    %v816 = vadd.f32 %v790, %v803
    %v817 = vadd.f32 %v791, %v803
    %v818 = vadd.f32 %v792, %v808
    %v819 = vadd.f32 %v793, %v808
    %v820 = vadd.f32 %v794, %v808
    %v821 = vadd.f32 %v795, %v808
    %v822 = vadd.f32 %v796, %v808
    %v823 = vadd.f32 %v797, %v808
    %v824 = vadd.f32 %v798, %v808
    %v825 = vadd.f32 %v799, %v808
    %vm826 = vcmp.gt.f32.partialorder %v810, 0.0
    %vm827 = vcmp.gt.f32.partialorder %v811, 0.0
    %vm828 = vcmp.gt.f32.partialorder %v812, 0.0
    %vm829 = vcmp.gt.f32.partialorder %v813, 0.0
    %vm830 = vcmp.gt.f32.partialorder %v814, 0.0
    %vm831 = vcmp.gt.f32.partialorder %v815, 0.0
    %vm832 = vcmp.gt.f32.partialorder %v816, 0.0
    %vm833 = vcmp.gt.f32.partialorder %v817, 0.0
    %vm834 = vcmp.gt.f32.partialorder %v818, 0.0
    %vm835 = vcmp.gt.f32.partialorder %v819, 0.0
    %vm836 = vcmp.gt.f32.partialorder %v820, 0.0
    %vm837 = vcmp.gt.f32.partialorder %v821, 0.0
    %vm838 = vcmp.gt.f32.partialorder %v822, 0.0
    %vm839 = vcmp.gt.f32.partialorder %v823, 0.0
    %vm840 = vcmp.gt.f32.partialorder %v824, 0.0
    %vm841 = vcmp.gt.f32.partialorder %v825, 0.0
    %v842 = vmin.f32 %v810, 0.0
    %v843 = vmin.f32 %v811, 0.0
    %v844 = vmin.f32 %v812, 0.0
    %v845 = vmin.f32 %v813, 0.0
    %v846 = vmin.f32 %v814, 0.0
    %v847 = vmin.f32 %v815, 0.0
    %v848 = vmin.f32 %v816, 0.0
    %v849 = vmin.f32 %v817, 0.0
    %v850 = vmin.f32 %v818, 0.0
    %v851 = vmin.f32 %v819, 0.0
    %v852 = vmin.f32 %v820, 0.0
    %v853 = vmin.f32 %v821, 0.0
    %v854 = vmin.f32 %v822, 0.0
    %v855 = vmin.f32 %v823, 0.0
    %v856 = vmin.f32 %v824, 0.0
    %v857 = vmin.f32 %v825, 0.0
    %v858 = vmul.f32 %v842, 1.442695
    %v859 = vpow.pop %v858
    %v860 = vmul.f32 %v843, 1.442695
    %v861 = vpow.pop %v860
    %v862 = vmul.f32 %v844, 1.442695
    %v863 = vpow.pop %v862
    %v864 = vmul.f32 %v845, 1.442695
    %v865 = vpow.pop %v864
    %v866 = vmul.f32 %v846, 1.442695
    %v867 = vpow.pop %v866
    %v868 = vmul.f32 %v847, 1.442695
    %v869 = vpow.pop %v868
    %v870 = vmul.f32 %v848, 1.442695
    %v871 = vpow.pop %v870
    %v872 = vmul.f32 %v849, 1.442695
    %v873 = vpow.pop %v872
    %v874 = vmul.f32 %v850, 1.442695
    %v875 = vpow.pop %v874
    %v876 = vmul.f32 %v851, 1.442695
    %v877 = vpow.pop %v876
    %v878 = vmul.f32 %v852, 1.442695
    %v879 = vpow.pop %v878
    %v880 = vmul.f32 %v853, 1.442695
    %v881 = vpow.pop %v880
    %v882 = vmul.f32 %v854, 1.442695
    %v883 = vpow.pop %v882
    %v884 = vmul.f32 %v855, 1.442695
    %v885 = vpow.pop %v884
    %v886 = vmul.f32 %v856, 1.442695
    %v887 = vpow.pop %v886
    %v888 = vmul.f32 %v857, 1.442695
    %v889 = vpow.pop %v888
    %v890 = vsub.f32 %v859, 1.0
    %v891 = vsub.f32 %v861, 1.0
    %v892 = vsub.f32 %v863, 1.0
    %v893 = vsub.f32 %v865, 1.0
    %v894 = vsub.f32 %v867, 1.0
    %v895 = vsub.f32 %v869, 1.0
    %v896 = vsub.f32 %v871, 1.0
    %v897 = vsub.f32 %v873, 1.0
    %v898 = vsub.f32 %v875, 1.0
    %v899 = vsub.f32 %v877, 1.0
    %v900 = vsub.f32 %v879, 1.0
    %v901 = vsub.f32 %v881, 1.0
    %v902 = vsub.f32 %v883, 1.0
    %v903 = vsub.f32 %v885, 1.0
    %v904 = vsub.f32 %v887, 1.0
    %v905 = vsub.f32 %v889, 1.0
    %v906 = vsel %vm826, %v810, %v890
    %v907 = vsel %vm827, %v811, %v891
    %v908 = vsel %vm828, %v812, %v892
    %v909 = vsel %vm829, %v813, %v893
    %v910 = vsel %vm830, %v814, %v894
    %v911 = vsel %vm831, %v815, %v895
    %v912 = vsel %vm832, %v816, %v896
    %v913 = vsel %vm833, %v817, %v897
    %v914 = vsel %vm834, %v818, %v898
    %v915 = vsel %vm835, %v819, %v899
    %v916 = vsel %vm836, %v820, %v900
    %v917 = vsel %vm837, %v821, %v901
    %v918 = vsel %vm838, %v822, %v902
    %v919 = vsel %vm839, %v823, %v903
    %v920 = vsel %vm840, %v824, %v904
    %v921 = vsel %vm841, %v825, %v905
    %v922 = vpack.c.bf16 %v907, %v906
    %v923 = vpack.c.bf16 %v909, %v908
    %v924 = vpack.c.bf16 %v911, %v910
    %v925 = vpack.c.bf16 %v913, %v912
    %v926 = vpack.c.bf16 %v915, %v914
    %v927 = vpack.c.bf16 %v917, %v916
    %v928 = vpack.c.bf16 %v919, %v918
    %v929 = vpack.c.bf16 %v921, %v920
    %930 = vst [vmem:[%s3] sm:$0xff] %v922
    %931 = vst [vmem:[%s3 + $0x8] sm:$0xff] %v923
    %932 = vst [vmem:[%s3 + $0x10] sm:$0xff] %v924
    %933 = vst [vmem:[%s3 + $0x18] sm:$0xff] %v925
    %934 = vst [vmem:[%s3 + $0x20] sm:$0xff] %v926
    %935 = vst [vmem:[%s3 + $0x28] sm:$0xff] %v927
    %936 = vst [vmem:[%s3 + $0x30] sm:$0xff] %v928
    %937 = vst [vmem:[%s3 + $0x38] sm:$0xff] %v929
    %s938 = scalar_lea.vmem %s0, 256
    %v939 = vld [vmem:[%s938] sm:$0xff]
    %v940 = vld [vmem:[%s938 + $0x8] sm:$0xff]
    %v941 = vld [vmem:[%s938 + $0x10] sm:$0xff]
    %v942 = vld [vmem:[%s938 + $0x18] sm:$0xff]
    %v943 = vld [vmem:[%s938 + $0x80] sm:$0x11]
    %v944 = vld [vmem:[%s938 + $0x88] sm:$0x11]
    %v945 = vld [vmem:[%s938 + $0x90] sm:$0x11]
    %v946 = vld [vmem:[%s938 + $0x98] sm:$0x11]
    %v955 = vunpack.c.l.b16 %v939
    %v956 = vunpack.c.h.b16 %v939
    %v957 = vunpack.c.l.b16 %v940
    %v958 = vunpack.c.h.b16 %v940
    %v959 = vunpack.c.l.b16 %v941
    %v960 = vunpack.c.h.b16 %v941
    %v961 = vunpack.c.l.b16 %v942
    %v962 = vunpack.c.h.b16 %v942
    %v963 = vunpack.c.l.b16 %v943
    %v964 = vunpack.c.h.b16 %v943
    %v965 = vunpack.c.l.b16 %v944
    %v966 = vunpack.c.h.b16 %v944
    %v967 = vunpack.c.l.b16 %v945
    %v968 = vunpack.c.h.b16 %v945
    %v969 = vunpack.c.l.b16 %v946
    %v970 = vunpack.c.h.b16 %v946
    %v971 = vpack.c.b16 %v963, %v955
    %v972 = vpack.c.b16 %v964, %v956
    %v973 = vpack.c.b16 %v965, %v957
    %v974 = vpack.c.b16 %v966, %v958
    %v975 = vpack.c.b16 %v967, %v959
    %v976 = vpack.c.b16 %v968, %v960
    %v977 = vpack.c.b16 %v969, %v961
    %v978 = vpack.c.b16 %v970, %v962
    %v980 = vand.u32 %v971, %v87
    %v983 = vand.u32 %v972, %v87
    %v986 = vand.u32 %v973, %v87
    %v989 = vand.u32 %v974, %v87
    %v992 = vand.u32 %v975, %v87
    %v995 = vand.u32 %v976, %v87
    %v998 = vand.u32 %v977, %v87
    %v1001 = vand.u32 %v978, %v87
    %1003 = vmatpush.bf16.msra.mxu0 0
    %1004 = vmatpush.bf16.msra.mxu0 0
    %1005 = vmatpush.bf16.msra.mxu0 0
    %1006 = vmatpush.bf16.msra.mxu0 0
    %1007 = vmatpush.bf16.msra.mxu0 0
    %1008 = vmatpush.bf16.msra.mxu0 0
    %1009 = vmatpush.bf16.msra.mxu0 0
    %1010 = vmatpush.bf16.msra.mxu0 %v980
    %1011 = vmatmul.bf16.gmra.mxu0 %v82
    %v1012 = vpop.f32.mrf.mxu0
    %v1013 = vadd.f32 0.0, %v1012
    %v1014 = vpop.f32.mrf.mxu0
    %v1015 = vadd.f32 0.0, %v1014
    %1016 = vdwg.mxu0
    %1017 = vmatpush.bf16.msra.mxu0 0
    %1018 = vmatpush.bf16.msra.mxu0 0
    %1019 = vmatpush.bf16.msra.mxu0 0
    %1020 = vmatpush.bf16.msra.mxu0 0
    %1021 = vmatpush.bf16.msra.mxu0 0
    %1022 = vmatpush.bf16.msra.mxu0 0
    %1023 = vmatpush.bf16.msra.mxu0 0
    %1024 = vmatpush.bf16.msra.mxu0 %v983
    %1025 = vmatmul.bf16.gmra.mxu0 %v82
    %v1026 = vpop.f32.mrf.mxu0
    %v1027 = vadd.f32 0.0, %v1026
    %v1028 = vpop.f32.mrf.mxu0
    %v1029 = vadd.f32 0.0, %v1028
    %1030 = vdwg.mxu0
    %1031 = vmatpush.bf16.msra.mxu0 0
    %1032 = vmatpush.bf16.msra.mxu0 0
    %1033 = vmatpush.bf16.msra.mxu0 0
    %1034 = vmatpush.bf16.msra.mxu0 0
    %1035 = vmatpush.bf16.msra.mxu0 0
    %1036 = vmatpush.bf16.msra.mxu0 0
    %1037 = vmatpush.bf16.msra.mxu0 0
    %1038 = vmatpush.bf16.msra.mxu0 %v986
    %1039 = vmatmul.bf16.gmra.mxu0 %v82
    %v1040 = vpop.f32.mrf.mxu0
    %v1041 = vadd.f32 0.0, %v1040
    %v1042 = vpop.f32.mrf.mxu0
    %v1043 = vadd.f32 0.0, %v1042
    %1044 = vdwg.mxu0
    %1045 = vmatpush.bf16.msra.mxu0 0
    %1046 = vmatpush.bf16.msra.mxu0 0
    %1047 = vmatpush.bf16.msra.mxu0 0
    %1048 = vmatpush.bf16.msra.mxu0 0
    %1049 = vmatpush.bf16.msra.mxu0 0
    %1050 = vmatpush.bf16.msra.mxu0 0
    %1051 = vmatpush.bf16.msra.mxu0 0
    %1052 = vmatpush.bf16.msra.mxu0 %v989
    %1053 = vmatmul.bf16.gmra.mxu0 %v82
    %v1054 = vpop.f32.mrf.mxu0
    %v1055 = vadd.f32 0.0, %v1054
    %v1056 = vpop.f32.mrf.mxu0
    %v1057 = vadd.f32 0.0, %v1056
    %1058 = vdwg.mxu0
    %1059 = vmatpush.bf16.msra.mxu0 0
    %1060 = vmatpush.bf16.msra.mxu0 0
    %1061 = vmatpush.bf16.msra.mxu0 0
    %1062 = vmatpush.bf16.msra.mxu0 0
    %1063 = vmatpush.bf16.msra.mxu0 0
    %1064 = vmatpush.bf16.msra.mxu0 0
    %1065 = vmatpush.bf16.msra.mxu0 0
    %1066 = vmatpush.bf16.msra.mxu0 %v992
    %1067 = vmatmul.bf16.gmra.mxu0 %v82
    %v1068 = vpop.f32.mrf.mxu0
    %v1069 = vadd.f32 0.0, %v1068
    %v1070 = vpop.f32.mrf.mxu0
    %v1071 = vadd.f32 0.0, %v1070
    %1072 = vdwg.mxu0
    %1073 = vmatpush.bf16.msra.mxu0 0
    %1074 = vmatpush.bf16.msra.mxu0 0
    %1075 = vmatpush.bf16.msra.mxu0 0
    %1076 = vmatpush.bf16.msra.mxu0 0
    %1077 = vmatpush.bf16.msra.mxu0 0
    %1078 = vmatpush.bf16.msra.mxu0 0
    %1079 = vmatpush.bf16.msra.mxu0 0
    %1080 = vmatpush.bf16.msra.mxu0 %v995
    %1081 = vmatmul.bf16.gmra.mxu0 %v82
    %v1082 = vpop.f32.mrf.mxu0
    %v1083 = vadd.f32 0.0, %v1082
    %v1084 = vpop.f32.mrf.mxu0
    %v1085 = vadd.f32 0.0, %v1084
    %1086 = vdwg.mxu0
    %1087 = vmatpush.bf16.msra.mxu0 0
    %1088 = vmatpush.bf16.msra.mxu0 0
    %1089 = vmatpush.bf16.msra.mxu0 0
    %1090 = vmatpush.bf16.msra.mxu0 0
    %1091 = vmatpush.bf16.msra.mxu0 0
    %1092 = vmatpush.bf16.msra.mxu0 0
    %1093 = vmatpush.bf16.msra.mxu0 0
    %1094 = vmatpush.bf16.msra.mxu0 %v998
    %1095 = vmatmul.bf16.gmra.mxu0 %v82
    %v1096 = vpop.f32.mrf.mxu0
    %v1097 = vadd.f32 0.0, %v1096
    %v1098 = vpop.f32.mrf.mxu0
    %v1099 = vadd.f32 0.0, %v1098
    %1100 = vdwg.mxu0
    %1101 = vmatpush.bf16.msra.mxu0 0
    %1102 = vmatpush.bf16.msra.mxu0 0
    %1103 = vmatpush.bf16.msra.mxu0 0
    %1104 = vmatpush.bf16.msra.mxu0 0
    %1105 = vmatpush.bf16.msra.mxu0 0
    %1106 = vmatpush.bf16.msra.mxu0 0
    %1107 = vmatpush.bf16.msra.mxu0 0
    %1108 = vmatpush.bf16.msra.mxu0 %v1001
    %1109 = vmatmul.bf16.gmra.mxu0 %v82
    %v1110 = vpop.f32.mrf.mxu0
    %v1111 = vadd.f32 0.0, %v1110
    %v1112 = vpop.f32.mrf.mxu0
    %v1113 = vadd.f32 0.0, %v1112
    %1114 = vdwg.mxu0
    %v1115 = vld [vmem:[%s938 + $0x20] sm:$0xff]
    %v1116 = vld [vmem:[%s938 + $0x28] sm:$0xff]
    %v1117 = vld [vmem:[%s938 + $0x30] sm:$0xff]
    %v1118 = vld [vmem:[%s938 + $0x38] sm:$0xff]
    %v1119 = vld [vmem:[%s938 + $0xa0] sm:$0x11]
    %v1120 = vld [vmem:[%s938 + $0xa8] sm:$0x11]
    %v1121 = vld [vmem:[%s938 + $0xb0] sm:$0x11]
    %v1122 = vld [vmem:[%s938 + $0xb8] sm:$0x11]
    %v1131 = vunpack.c.l.b16 %v1115
    %v1132 = vunpack.c.h.b16 %v1115
    %v1133 = vunpack.c.l.b16 %v1116
    %v1134 = vunpack.c.h.b16 %v1116
    %v1135 = vunpack.c.l.b16 %v1117
    %v1136 = vunpack.c.h.b16 %v1117
    %v1137 = vunpack.c.l.b16 %v1118
    %v1138 = vunpack.c.h.b16 %v1118
    %v1139 = vunpack.c.l.b16 %v1119
    %v1140 = vunpack.c.h.b16 %v1119
    %v1141 = vunpack.c.l.b16 %v1120
    %v1142 = vunpack.c.h.b16 %v1120
    %v1143 = vunpack.c.l.b16 %v1121
    %v1144 = vunpack.c.h.b16 %v1121
    %v1145 = vunpack.c.l.b16 %v1122
    %v1146 = vunpack.c.h.b16 %v1122
    %v1147 = vpack.c.b16 %v1139, %v1131
    %v1148 = vpack.c.b16 %v1140, %v1132
    %v1149 = vpack.c.b16 %v1141, %v1133
    %v1150 = vpack.c.b16 %v1142, %v1134
    %v1151 = vpack.c.b16 %v1143, %v1135
    %v1152 = vpack.c.b16 %v1144, %v1136
    %v1153 = vpack.c.b16 %v1145, %v1137
    %v1154 = vpack.c.b16 %v1146, %v1138
    %v1156 = vand.u32 %v1147, %v87
    %v1159 = vand.u32 %v1148, %v87
    %v1162 = vand.u32 %v1149, %v87
    %v1165 = vand.u32 %v1150, %v87
    %v1168 = vand.u32 %v1151, %v87
    %v1171 = vand.u32 %v1152, %v87
    %v1174 = vand.u32 %v1153, %v87
    %v1177 = vand.u32 %v1154, %v87
    %1179 = vmatpush.bf16.msra.mxu0 0
    %1180 = vmatpush.bf16.msra.mxu0 0
    %1181 = vmatpush.bf16.msra.mxu0 0
    %1182 = vmatpush.bf16.msra.mxu0 0
    %1183 = vmatpush.bf16.msra.mxu0 0
    %1184 = vmatpush.bf16.msra.mxu0 0
    %1185 = vmatpush.bf16.msra.mxu0 0
    %1186 = vmatpush.bf16.msra.mxu0 %v1156
    %1187 = vmatmul.bf16.gmra.mxu0 %v82
    %v1188 = vpop.f32.mrf.mxu0
    %v1189 = vadd.f32 0.0, %v1188
    %v1190 = vpop.f32.mrf.mxu0
    %v1191 = vadd.f32 0.0, %v1190
    %1192 = vdwg.mxu0
    %1193 = vmatpush.bf16.msra.mxu0 0
    %1194 = vmatpush.bf16.msra.mxu0 0
    %1195 = vmatpush.bf16.msra.mxu0 0
    %1196 = vmatpush.bf16.msra.mxu0 0
    %1197 = vmatpush.bf16.msra.mxu0 0
    %1198 = vmatpush.bf16.msra.mxu0 0
    %1199 = vmatpush.bf16.msra.mxu0 0
    %1200 = vmatpush.bf16.msra.mxu0 %v1159
    %1201 = vmatmul.bf16.gmra.mxu0 %v82
    %v1202 = vpop.f32.mrf.mxu0
    %v1203 = vadd.f32 0.0, %v1202
    %v1204 = vpop.f32.mrf.mxu0
    %v1205 = vadd.f32 0.0, %v1204
    %1206 = vdwg.mxu0
    %1207 = vmatpush.bf16.msra.mxu0 0
    %1208 = vmatpush.bf16.msra.mxu0 0
    %1209 = vmatpush.bf16.msra.mxu0 0
    %1210 = vmatpush.bf16.msra.mxu0 0
    %1211 = vmatpush.bf16.msra.mxu0 0
    %1212 = vmatpush.bf16.msra.mxu0 0
    %1213 = vmatpush.bf16.msra.mxu0 0
    %1214 = vmatpush.bf16.msra.mxu0 %v1162
    %1215 = vmatmul.bf16.gmra.mxu0 %v82
    %v1216 = vpop.f32.mrf.mxu0
    %v1217 = vadd.f32 0.0, %v1216
    %v1218 = vpop.f32.mrf.mxu0
    %v1219 = vadd.f32 0.0, %v1218
    %1220 = vdwg.mxu0
    %1221 = vmatpush.bf16.msra.mxu0 0
    %1222 = vmatpush.bf16.msra.mxu0 0
    %1223 = vmatpush.bf16.msra.mxu0 0
    %1224 = vmatpush.bf16.msra.mxu0 0
    %1225 = vmatpush.bf16.msra.mxu0 0
    %1226 = vmatpush.bf16.msra.mxu0 0
    %1227 = vmatpush.bf16.msra.mxu0 0
    %1228 = vmatpush.bf16.msra.mxu0 %v1165
    %1229 = vmatmul.bf16.gmra.mxu0 %v82
    %v1230 = vpop.f32.mrf.mxu0
    %v1231 = vadd.f32 0.0, %v1230
    %v1232 = vpop.f32.mrf.mxu0
    %v1233 = vadd.f32 0.0, %v1232
    %1234 = vdwg.mxu0
    %1235 = vmatpush.bf16.msra.mxu0 0
    %1236 = vmatpush.bf16.msra.mxu0 0
    %1237 = vmatpush.bf16.msra.mxu0 0
    %1238 = vmatpush.bf16.msra.mxu0 0
    %1239 = vmatpush.bf16.msra.mxu0 0
    %1240 = vmatpush.bf16.msra.mxu0 0
    %1241 = vmatpush.bf16.msra.mxu0 0
    %1242 = vmatpush.bf16.msra.mxu0 %v1168
    %1243 = vmatmul.bf16.gmra.mxu0 %v82
    %v1244 = vpop.f32.mrf.mxu0
    %v1245 = vadd.f32 0.0, %v1244
    %v1246 = vpop.f32.mrf.mxu0
    %v1247 = vadd.f32 0.0, %v1246
    %1248 = vdwg.mxu0
    %1249 = vmatpush.bf16.msra.mxu0 0
    %1250 = vmatpush.bf16.msra.mxu0 0
    %1251 = vmatpush.bf16.msra.mxu0 0
    %1252 = vmatpush.bf16.msra.mxu0 0
    %1253 = vmatpush.bf16.msra.mxu0 0
    %1254 = vmatpush.bf16.msra.mxu0 0
    %1255 = vmatpush.bf16.msra.mxu0 0
    %1256 = vmatpush.bf16.msra.mxu0 %v1171
    %1257 = vmatmul.bf16.gmra.mxu0 %v82
    %v1258 = vpop.f32.mrf.mxu0
    %v1259 = vadd.f32 0.0, %v1258
    %v1260 = vpop.f32.mrf.mxu0
    %v1261 = vadd.f32 0.0, %v1260
    %1262 = vdwg.mxu0
    %1263 = vmatpush.bf16.msra.mxu0 0
    %1264 = vmatpush.bf16.msra.mxu0 0
    %1265 = vmatpush.bf16.msra.mxu0 0
    %1266 = vmatpush.bf16.msra.mxu0 0
    %1267 = vmatpush.bf16.msra.mxu0 0
    %1268 = vmatpush.bf16.msra.mxu0 0
    %1269 = vmatpush.bf16.msra.mxu0 0
    %1270 = vmatpush.bf16.msra.mxu0 %v1174
    %1271 = vmatmul.bf16.gmra.mxu0 %v82
    %v1272 = vpop.f32.mrf.mxu0
    %v1273 = vadd.f32 0.0, %v1272
    %v1274 = vpop.f32.mrf.mxu0
    %v1275 = vadd.f32 0.0, %v1274
    %1276 = vdwg.mxu0
    %1277 = vmatpush.bf16.msra.mxu0 0
    %1278 = vmatpush.bf16.msra.mxu0 0
    %1279 = vmatpush.bf16.msra.mxu0 0
    %1280 = vmatpush.bf16.msra.mxu0 0
    %1281 = vmatpush.bf16.msra.mxu0 0
    %1282 = vmatpush.bf16.msra.mxu0 0
    %1283 = vmatpush.bf16.msra.mxu0 0
    %1284 = vmatpush.bf16.msra.mxu0 %v1177
    %1285 = vmatmul.bf16.gmra.mxu0 %v82
    %v1286 = vpop.f32.mrf.mxu0
    %v1287 = vadd.f32 0.0, %v1286
    %v1288 = vpop.f32.mrf.mxu0
    %v1289 = vadd.f32 0.0, %v1288
    %1290 = vdwg.mxu0
    %v1291 = vmax.f32 %v1013, %v1189
    %v1292 = vmax.f32 %v1027, %v1203
    %v1293 = vmax.f32 %v1041, %v1217
    %v1294 = vmax.f32 %v1055, %v1231
    %v1295 = vmax.f32 %v1069, %v1245
    %v1296 = vmax.f32 %v1083, %v1259
    %v1297 = vmax.f32 %v1097, %v1273
    %v1298 = vmax.f32 %v1111, %v1287
    %v1299 = vmax.f32 %v1015, %v1191
    %v1300 = vmax.f32 %v1029, %v1205
    %v1301 = vmax.f32 %v1043, %v1219
    %v1302 = vmax.f32 %v1057, %v1233
    %v1303 = vmax.f32 %v1071, %v1247
    %v1304 = vmax.f32 %v1085, %v1261
    %v1305 = vmax.f32 %v1099, %v1275
    %v1306 = vmax.f32 %v1113, %v1289
    %v1307 = vld [vmem:[%s938 + $0x40] sm:$0xff]
    %v1308 = vld [vmem:[%s938 + $0x48] sm:$0xff]
    %v1309 = vld [vmem:[%s938 + $0x50] sm:$0xff]
    %v1310 = vld [vmem:[%s938 + $0x58] sm:$0xff]
    %v1311 = vld [vmem:[%s938 + $0xc0] sm:$0x11]
    %v1312 = vld [vmem:[%s938 + $0xc8] sm:$0x11]
    %v1313 = vld [vmem:[%s938 + $0xd0] sm:$0x11]
    %v1314 = vld [vmem:[%s938 + $0xd8] sm:$0x11]
    %v1323 = vunpack.c.l.b16 %v1307
    %v1324 = vunpack.c.h.b16 %v1307
    %v1325 = vunpack.c.l.b16 %v1308
    %v1326 = vunpack.c.h.b16 %v1308
    %v1327 = vunpack.c.l.b16 %v1309
    %v1328 = vunpack.c.h.b16 %v1309
    %v1329 = vunpack.c.l.b16 %v1310
    %v1330 = vunpack.c.h.b16 %v1310
    %v1331 = vunpack.c.l.b16 %v1311
    %v1332 = vunpack.c.h.b16 %v1311
    %v1333 = vunpack.c.l.b16 %v1312
    %v1334 = vunpack.c.h.b16 %v1312
    %v1335 = vunpack.c.l.b16 %v1313
    %v1336 = vunpack.c.h.b16 %v1313
    %v1337 = vunpack.c.l.b16 %v1314
    %v1338 = vunpack.c.h.b16 %v1314
    %v1339 = vpack.c.b16 %v1331, %v1323
    %v1340 = vpack.c.b16 %v1332, %v1324
    %v1341 = vpack.c.b16 %v1333, %v1325
    %v1342 = vpack.c.b16 %v1334, %v1326
    %v1343 = vpack.c.b16 %v1335, %v1327
    %v1344 = vpack.c.b16 %v1336, %v1328
    %v1345 = vpack.c.b16 %v1337, %v1329
    %v1346 = vpack.c.b16 %v1338, %v1330
    %v1348 = vand.u32 %v1339, %v87
    %v1351 = vand.u32 %v1340, %v87
    %v1354 = vand.u32 %v1341, %v87
    %v1357 = vand.u32 %v1342, %v87
    %v1360 = vand.u32 %v1343, %v87
    %v1363 = vand.u32 %v1344, %v87
    %v1366 = vand.u32 %v1345, %v87
    %v1369 = vand.u32 %v1346, %v87
    %1371 = vmatpush.bf16.msra.mxu0 0
    %1372 = vmatpush.bf16.msra.mxu0 0
    %1373 = vmatpush.bf16.msra.mxu0 0
    %1374 = vmatpush.bf16.msra.mxu0 0
    %1375 = vmatpush.bf16.msra.mxu0 0
    %1376 = vmatpush.bf16.msra.mxu0 0
    %1377 = vmatpush.bf16.msra.mxu0 0
    %1378 = vmatpush.bf16.msra.mxu0 %v1348
    %1379 = vmatmul.bf16.gmra.mxu0 %v82
    %v1380 = vpop.f32.mrf.mxu0
    %v1381 = vadd.f32 0.0, %v1380
    %v1382 = vpop.f32.mrf.mxu0
    %v1383 = vadd.f32 0.0, %v1382
    %1384 = vdwg.mxu0
    %1385 = vmatpush.bf16.msra.mxu0 0
    %1386 = vmatpush.bf16.msra.mxu0 0
    %1387 = vmatpush.bf16.msra.mxu0 0
    %1388 = vmatpush.bf16.msra.mxu0 0
    %1389 = vmatpush.bf16.msra.mxu0 0
    %1390 = vmatpush.bf16.msra.mxu0 0
    %1391 = vmatpush.bf16.msra.mxu0 0
    %1392 = vmatpush.bf16.msra.mxu0 %v1351
    %1393 = vmatmul.bf16.gmra.mxu0 %v82
    %v1394 = vpop.f32.mrf.mxu0
    %v1395 = vadd.f32 0.0, %v1394
    %v1396 = vpop.f32.mrf.mxu0
    %v1397 = vadd.f32 0.0, %v1396
    %1398 = vdwg.mxu0
    %1399 = vmatpush.bf16.msra.mxu0 0
    %1400 = vmatpush.bf16.msra.mxu0 0
    %1401 = vmatpush.bf16.msra.mxu0 0
    %1402 = vmatpush.bf16.msra.mxu0 0
    %1403 = vmatpush.bf16.msra.mxu0 0
    %1404 = vmatpush.bf16.msra.mxu0 0
    %1405 = vmatpush.bf16.msra.mxu0 0
    %1406 = vmatpush.bf16.msra.mxu0 %v1354
    %1407 = vmatmul.bf16.gmra.mxu0 %v82
    %v1408 = vpop.f32.mrf.mxu0
    %v1409 = vadd.f32 0.0, %v1408
    %v1410 = vpop.f32.mrf.mxu0
    %v1411 = vadd.f32 0.0, %v1410
    %1412 = vdwg.mxu0
    %1413 = vmatpush.bf16.msra.mxu0 0
    %1414 = vmatpush.bf16.msra.mxu0 0
    %1415 = vmatpush.bf16.msra.mxu0 0
    %1416 = vmatpush.bf16.msra.mxu0 0
    %1417 = vmatpush.bf16.msra.mxu0 0
    %1418 = vmatpush.bf16.msra.mxu0 0
    %1419 = vmatpush.bf16.msra.mxu0 0
    %1420 = vmatpush.bf16.msra.mxu0 %v1357
    %1421 = vmatmul.bf16.gmra.mxu0 %v82
    %v1422 = vpop.f32.mrf.mxu0
    %v1423 = vadd.f32 0.0, %v1422
    %v1424 = vpop.f32.mrf.mxu0
    %v1425 = vadd.f32 0.0, %v1424
    %1426 = vdwg.mxu0
    %1427 = vmatpush.bf16.msra.mxu0 0
    %1428 = vmatpush.bf16.msra.mxu0 0
    %1429 = vmatpush.bf16.msra.mxu0 0
    %1430 = vmatpush.bf16.msra.mxu0 0
    %1431 = vmatpush.bf16.msra.mxu0 0
    %1432 = vmatpush.bf16.msra.mxu0 0
    %1433 = vmatpush.bf16.msra.mxu0 0
    %1434 = vmatpush.bf16.msra.mxu0 %v1360
    %1435 = vmatmul.bf16.gmra.mxu0 %v82
    %v1436 = vpop.f32.mrf.mxu0
    %v1437 = vadd.f32 0.0, %v1436
    %v1438 = vpop.f32.mrf.mxu0
    %v1439 = vadd.f32 0.0, %v1438
    %1440 = vdwg.mxu0
    %1441 = vmatpush.bf16.msra.mxu0 0
    %1442 = vmatpush.bf16.msra.mxu0 0
    %1443 = vmatpush.bf16.msra.mxu0 0
    %1444 = vmatpush.bf16.msra.mxu0 0
    %1445 = vmatpush.bf16.msra.mxu0 0
    %1446 = vmatpush.bf16.msra.mxu0 0
    %1447 = vmatpush.bf16.msra.mxu0 0
    %1448 = vmatpush.bf16.msra.mxu0 %v1363
    %1449 = vmatmul.bf16.gmra.mxu0 %v82
    %v1450 = vpop.f32.mrf.mxu0
    %v1451 = vadd.f32 0.0, %v1450
    %v1452 = vpop.f32.mrf.mxu0
    %v1453 = vadd.f32 0.0, %v1452
    %1454 = vdwg.mxu0
    %1455 = vmatpush.bf16.msra.mxu0 0
    %1456 = vmatpush.bf16.msra.mxu0 0
    %1457 = vmatpush.bf16.msra.mxu0 0
    %1458 = vmatpush.bf16.msra.mxu0 0
    %1459 = vmatpush.bf16.msra.mxu0 0
    %1460 = vmatpush.bf16.msra.mxu0 0
    %1461 = vmatpush.bf16.msra.mxu0 0
    %1462 = vmatpush.bf16.msra.mxu0 %v1366
    %1463 = vmatmul.bf16.gmra.mxu0 %v82
    %v1464 = vpop.f32.mrf.mxu0
    %v1465 = vadd.f32 0.0, %v1464
    %v1466 = vpop.f32.mrf.mxu0
    %v1467 = vadd.f32 0.0, %v1466
    %1468 = vdwg.mxu0
    %1469 = vmatpush.bf16.msra.mxu0 0
    %1470 = vmatpush.bf16.msra.mxu0 0
    %1471 = vmatpush.bf16.msra.mxu0 0
    %1472 = vmatpush.bf16.msra.mxu0 0
    %1473 = vmatpush.bf16.msra.mxu0 0
    %1474 = vmatpush.bf16.msra.mxu0 0
    %1475 = vmatpush.bf16.msra.mxu0 0
    %1476 = vmatpush.bf16.msra.mxu0 %v1369
    %1477 = vmatmul.bf16.gmra.mxu0 %v82
    %v1478 = vpop.f32.mrf.mxu0
    %v1479 = vadd.f32 0.0, %v1478
    %v1480 = vpop.f32.mrf.mxu0
    %v1481 = vadd.f32 0.0, %v1480
    %1482 = vdwg.mxu0
    %v1483 = vmax.f32 %v1291, %v1381
    %v1484 = vmax.f32 %v1292, %v1395
    %v1485 = vmax.f32 %v1293, %v1409
    %v1486 = vmax.f32 %v1294, %v1423
    %v1487 = vmax.f32 %v1295, %v1437
    %v1488 = vmax.f32 %v1296, %v1451
    %v1489 = vmax.f32 %v1297, %v1465
    %v1490 = vmax.f32 %v1298, %v1479
    %v1491 = vmax.f32 %v1299, %v1383
    %v1492 = vmax.f32 %v1300, %v1397
    %v1493 = vmax.f32 %v1301, %v1411
    %v1494 = vmax.f32 %v1302, %v1425
    %v1495 = vmax.f32 %v1303, %v1439
    %v1496 = vmax.f32 %v1304, %v1453
    %v1497 = vmax.f32 %v1305, %v1467
    %v1498 = vmax.f32 %v1306, %v1481
    %v1499 = vld [vmem:[%s938 + $0x60] sm:$0xff]
    %v1500 = vld [vmem:[%s938 + $0x68] sm:$0xff]
    %v1501 = vld [vmem:[%s938 + $0x70] sm:$0xff]
    %v1502 = vld [vmem:[%s938 + $0x78] sm:$0xff]
    %v1503 = vld [vmem:[%s938 + $0xe0] sm:$0x11]
    %v1504 = vld [vmem:[%s938 + $0xe8] sm:$0x11]
    %v1505 = vld [vmem:[%s938 + $0xf0] sm:$0x11]
    %v1506 = vld [vmem:[%s938 + $0xf8] sm:$0x11]
    %v1515 = vunpack.c.l.b16 %v1499
    %v1516 = vunpack.c.h.b16 %v1499
    %v1517 = vunpack.c.l.b16 %v1500
    %v1518 = vunpack.c.h.b16 %v1500
    %v1519 = vunpack.c.l.b16 %v1501
    %v1520 = vunpack.c.h.b16 %v1501
    %v1521 = vunpack.c.l.b16 %v1502
    %v1522 = vunpack.c.h.b16 %v1502
    %v1523 = vunpack.c.l.b16 %v1503
    %v1524 = vunpack.c.h.b16 %v1503
    %v1525 = vunpack.c.l.b16 %v1504
    %v1526 = vunpack.c.h.b16 %v1504
    %v1527 = vunpack.c.l.b16 %v1505
    %v1528 = vunpack.c.h.b16 %v1505
    %v1529 = vunpack.c.l.b16 %v1506
    %v1530 = vunpack.c.h.b16 %v1506
    %v1531 = vpack.c.b16 %v1523, %v1515
    %v1532 = vpack.c.b16 %v1524, %v1516
    %v1533 = vpack.c.b16 %v1525, %v1517
    %v1534 = vpack.c.b16 %v1526, %v1518
    %v1535 = vpack.c.b16 %v1527, %v1519
    %v1536 = vpack.c.b16 %v1528, %v1520
    %v1537 = vpack.c.b16 %v1529, %v1521
    %v1538 = vpack.c.b16 %v1530, %v1522
    %v1540 = vand.u32 %v1531, %v87
    %v1543 = vand.u32 %v1532, %v87
    %v1546 = vand.u32 %v1533, %v87
    %v1549 = vand.u32 %v1534, %v87
    %v1552 = vand.u32 %v1535, %v87
    %v1555 = vand.u32 %v1536, %v87
    %v1558 = vand.u32 %v1537, %v87
    %v1561 = vand.u32 %v1538, %v87
    %1563 = vmatpush.bf16.msra.mxu0 0
    %1564 = vmatpush.bf16.msra.mxu0 0
    %1565 = vmatpush.bf16.msra.mxu0 0
    %1566 = vmatpush.bf16.msra.mxu0 0
    %1567 = vmatpush.bf16.msra.mxu0 0
    %1568 = vmatpush.bf16.msra.mxu0 0
    %1569 = vmatpush.bf16.msra.mxu0 0
    %1570 = vmatpush.bf16.msra.mxu0 %v1540
    %1571 = vmatmul.bf16.gmra.mxu0 %v82
    %v1572 = vpop.f32.mrf.mxu0
    %v1573 = vadd.f32 0.0, %v1572
    %v1574 = vpop.f32.mrf.mxu0
    %v1575 = vadd.f32 0.0, %v1574
    %1576 = vdwg.mxu0
    %1577 = vmatpush.bf16.msra.mxu0 0
    %1578 = vmatpush.bf16.msra.mxu0 0
    %1579 = vmatpush.bf16.msra.mxu0 0
    %1580 = vmatpush.bf16.msra.mxu0 0
    %1581 = vmatpush.bf16.msra.mxu0 0
    %1582 = vmatpush.bf16.msra.mxu0 0
    %1583 = vmatpush.bf16.msra.mxu0 0
    %1584 = vmatpush.bf16.msra.mxu0 %v1543
    %1585 = vmatmul.bf16.gmra.mxu0 %v82
    %v1586 = vpop.f32.mrf.mxu0
    %v1587 = vadd.f32 0.0, %v1586
    %v1588 = vpop.f32.mrf.mxu0
    %v1589 = vadd.f32 0.0, %v1588
    %1590 = vdwg.mxu0
    %1591 = vmatpush.bf16.msra.mxu0 0
    %1592 = vmatpush.bf16.msra.mxu0 0
    %1593 = vmatpush.bf16.msra.mxu0 0
    %1594 = vmatpush.bf16.msra.mxu0 0
    %1595 = vmatpush.bf16.msra.mxu0 0
    %1596 = vmatpush.bf16.msra.mxu0 0
    %1597 = vmatpush.bf16.msra.mxu0 0
    %1598 = vmatpush.bf16.msra.mxu0 %v1546
    %1599 = vmatmul.bf16.gmra.mxu0 %v82
    %v1600 = vpop.f32.mrf.mxu0
    %v1601 = vadd.f32 0.0, %v1600
    %v1602 = vpop.f32.mrf.mxu0
    %v1603 = vadd.f32 0.0, %v1602
    %1604 = vdwg.mxu0
    %1605 = vmatpush.bf16.msra.mxu0 0
    %1606 = vmatpush.bf16.msra.mxu0 0
    %1607 = vmatpush.bf16.msra.mxu0 0
    %1608 = vmatpush.bf16.msra.mxu0 0
    %1609 = vmatpush.bf16.msra.mxu0 0
    %1610 = vmatpush.bf16.msra.mxu0 0
    %1611 = vmatpush.bf16.msra.mxu0 0
    %1612 = vmatpush.bf16.msra.mxu0 %v1549
    %1613 = vmatmul.bf16.gmra.mxu0 %v82
    %v1614 = vpop.f32.mrf.mxu0
    %v1615 = vadd.f32 0.0, %v1614
    %v1616 = vpop.f32.mrf.mxu0
    %v1617 = vadd.f32 0.0, %v1616
    %1618 = vdwg.mxu0
    %1619 = vmatpush.bf16.msra.mxu0 0
    %1620 = vmatpush.bf16.msra.mxu0 0
    %1621 = vmatpush.bf16.msra.mxu0 0
    %1622 = vmatpush.bf16.msra.mxu0 0
    %1623 = vmatpush.bf16.msra.mxu0 0
    %1624 = vmatpush.bf16.msra.mxu0 0
    %1625 = vmatpush.bf16.msra.mxu0 0
    %1626 = vmatpush.bf16.msra.mxu0 %v1552
    %1627 = vmatmul.bf16.gmra.mxu0 %v82
    %v1628 = vpop.f32.mrf.mxu0
    %v1629 = vadd.f32 0.0, %v1628
    %v1630 = vpop.f32.mrf.mxu0
    %v1631 = vadd.f32 0.0, %v1630
    %1632 = vdwg.mxu0
    %1633 = vmatpush.bf16.msra.mxu0 0
    %1634 = vmatpush.bf16.msra.mxu0 0
    %1635 = vmatpush.bf16.msra.mxu0 0
    %1636 = vmatpush.bf16.msra.mxu0 0
    %1637 = vmatpush.bf16.msra.mxu0 0
    %1638 = vmatpush.bf16.msra.mxu0 0
    %1639 = vmatpush.bf16.msra.mxu0 0
    %1640 = vmatpush.bf16.msra.mxu0 %v1555
    %1641 = vmatmul.bf16.gmra.mxu0 %v82
    %v1642 = vpop.f32.mrf.mxu0
    %v1643 = vadd.f32 0.0, %v1642
    %v1644 = vpop.f32.mrf.mxu0
    %v1645 = vadd.f32 0.0, %v1644
    %1646 = vdwg.mxu0
    %1647 = vmatpush.bf16.msra.mxu0 0
    %1648 = vmatpush.bf16.msra.mxu0 0
    %1649 = vmatpush.bf16.msra.mxu0 0
    %1650 = vmatpush.bf16.msra.mxu0 0
    %1651 = vmatpush.bf16.msra.mxu0 0
    %1652 = vmatpush.bf16.msra.mxu0 0
    %1653 = vmatpush.bf16.msra.mxu0 0
    %1654 = vmatpush.bf16.msra.mxu0 %v1558
    %1655 = vmatmul.bf16.gmra.mxu0 %v82
    %v1656 = vpop.f32.mrf.mxu0
    %v1657 = vadd.f32 0.0, %v1656
    %v1658 = vpop.f32.mrf.mxu0
    %v1659 = vadd.f32 0.0, %v1658
    %1660 = vdwg.mxu0
    %1661 = vmatpush.bf16.msra.mxu0 0
    %1662 = vmatpush.bf16.msra.mxu0 0
    %1663 = vmatpush.bf16.msra.mxu0 0
    %1664 = vmatpush.bf16.msra.mxu0 0
    %1665 = vmatpush.bf16.msra.mxu0 0
    %1666 = vmatpush.bf16.msra.mxu0 0
    %1667 = vmatpush.bf16.msra.mxu0 0
    %1668 = vmatpush.bf16.msra.mxu0 %v1561
    %1669 = vmatmul.bf16.gmra.mxu0 %v82
    %v1670 = vpop.f32.mrf.mxu0
    %v1671 = vadd.f32 0.0, %v1670
    %v1672 = vpop.f32.mrf.mxu0
    %v1673 = vadd.f32 0.0, %v1672
    %1674 = vdwg.mxu0
    %v1675 = vmax.f32 %v1483, %v1573
    %v1676 = vmax.f32 %v1484, %v1587
    %v1677 = vmax.f32 %v1485, %v1601
    %v1678 = vmax.f32 %v1486, %v1615
    %v1679 = vmax.f32 %v1487, %v1629
    %v1680 = vmax.f32 %v1488, %v1643
    %v1681 = vmax.f32 %v1489, %v1657
    %v1682 = vmax.f32 %v1490, %v1671
    %v1683 = vmax.f32 %v1491, %v1575
    %v1684 = vmax.f32 %v1492, %v1589
    %v1685 = vmax.f32 %v1493, %v1603
    %v1686 = vmax.f32 %v1494, %v1617
    %v1687 = vmax.f32 %v1495, %v1631
    %v1688 = vmax.f32 %v1496, %v1645
    %v1689 = vmax.f32 %v1497, %v1659
    %v1690 = vmax.f32 %v1498, %v1673
    %v1691 = vadd.f32 %v1675, %v803
    %v1692 = vadd.f32 %v1676, %v803
    %v1693 = vadd.f32 %v1677, %v803
    %v1694 = vadd.f32 %v1678, %v803
    %v1695 = vadd.f32 %v1679, %v803
    %v1696 = vadd.f32 %v1680, %v803
    %v1697 = vadd.f32 %v1681, %v803
    %v1698 = vadd.f32 %v1682, %v803
    %v1699 = vadd.f32 %v1683, %v808
    %v1700 = vadd.f32 %v1684, %v808
    %v1701 = vadd.f32 %v1685, %v808
    %v1702 = vadd.f32 %v1686, %v808
    %v1703 = vadd.f32 %v1687, %v808
    %v1704 = vadd.f32 %v1688, %v808
    %v1705 = vadd.f32 %v1689, %v808
    %v1706 = vadd.f32 %v1690, %v808
    %vm1707 = vcmp.gt.f32.partialorder %v1691, 0.0
    %vm1708 = vcmp.gt.f32.partialorder %v1692, 0.0
    %vm1709 = vcmp.gt.f32.partialorder %v1693, 0.0
    %vm1710 = vcmp.gt.f32.partialorder %v1694, 0.0
    %vm1711 = vcmp.gt.f32.partialorder %v1695, 0.0
    %vm1712 = vcmp.gt.f32.partialorder %v1696, 0.0
    %vm1713 = vcmp.gt.f32.partialorder %v1697, 0.0
    %vm1714 = vcmp.gt.f32.partialorder %v1698, 0.0
    %vm1715 = vcmp.gt.f32.partialorder %v1699, 0.0
    %vm1716 = vcmp.gt.f32.partialorder %v1700, 0.0
    %vm1717 = vcmp.gt.f32.partialorder %v1701, 0.0
    %vm1718 = vcmp.gt.f32.partialorder %v1702, 0.0
    %vm1719 = vcmp.gt.f32.partialorder %v1703, 0.0
    %vm1720 = vcmp.gt.f32.partialorder %v1704, 0.0
    %vm1721 = vcmp.gt.f32.partialorder %v1705, 0.0
    %vm1722 = vcmp.gt.f32.partialorder %v1706, 0.0
    %v1723 = vmin.f32 %v1691, 0.0
    %v1724 = vmin.f32 %v1692, 0.0
    %v1725 = vmin.f32 %v1693, 0.0
    %v1726 = vmin.f32 %v1694, 0.0
    %v1727 = vmin.f32 %v1695, 0.0
    %v1728 = vmin.f32 %v1696, 0.0
    %v1729 = vmin.f32 %v1697, 0.0
    %v1730 = vmin.f32 %v1698, 0.0
    %v1731 = vmin.f32 %v1699, 0.0
    %v1732 = vmin.f32 %v1700, 0.0
    %v1733 = vmin.f32 %v1701, 0.0
    %v1734 = vmin.f32 %v1702, 0.0
    %v1735 = vmin.f32 %v1703, 0.0
    %v1736 = vmin.f32 %v1704, 0.0
    %v1737 = vmin.f32 %v1705, 0.0
    %v1738 = vmin.f32 %v1706, 0.0
    %v1739 = vmul.f32 %v1723, 1.442695
    %v1740 = vpow.pop %v1739
    %v1741 = vmul.f32 %v1724, 1.442695
    %v1742 = vpow.pop %v1741
    %v1743 = vmul.f32 %v1725, 1.442695
    %v1744 = vpow.pop %v1743
    %v1745 = vmul.f32 %v1726, 1.442695
    %v1746 = vpow.pop %v1745
    %v1747 = vmul.f32 %v1727, 1.442695
    %v1748 = vpow.pop %v1747
    %v1749 = vmul.f32 %v1728, 1.442695
    %v1750 = vpow.pop %v1749
    %v1751 = vmul.f32 %v1729, 1.442695
    %v1752 = vpow.pop %v1751
    %v1753 = vmul.f32 %v1730, 1.442695
    %v1754 = vpow.pop %v1753
    %v1755 = vmul.f32 %v1731, 1.442695
    %v1756 = vpow.pop %v1755
    %v1757 = vmul.f32 %v1732, 1.442695
    %v1758 = vpow.pop %v1757
    %v1759 = vmul.f32 %v1733, 1.442695
    %v1760 = vpow.pop %v1759
    %v1761 = vmul.f32 %v1734, 1.442695
    %v1762 = vpow.pop %v1761
    %v1763 = vmul.f32 %v1735, 1.442695
    %v1764 = vpow.pop %v1763
    %v1765 = vmul.f32 %v1736, 1.442695
    %v1766 = vpow.pop %v1765
    %v1767 = vmul.f32 %v1737, 1.442695
    %v1768 = vpow.pop %v1767
    %v1769 = vmul.f32 %v1738, 1.442695
    %v1770 = vpow.pop %v1769
    %v1771 = vsub.f32 %v1740, 1.0
    %v1772 = vsub.f32 %v1742, 1.0
    %v1773 = vsub.f32 %v1744, 1.0
    %v1774 = vsub.f32 %v1746, 1.0
    %v1775 = vsub.f32 %v1748, 1.0
    %v1776 = vsub.f32 %v1750, 1.0
    %v1777 = vsub.f32 %v1752, 1.0
    %v1778 = vsub.f32 %v1754, 1.0
    %v1779 = vsub.f32 %v1756, 1.0
    %v1780 = vsub.f32 %v1758, 1.0
    %v1781 = vsub.f32 %v1760, 1.0
    %v1782 = vsub.f32 %v1762, 1.0
    %v1783 = vsub.f32 %v1764, 1.0
    %v1784 = vsub.f32 %v1766, 1.0
    %v1785 = vsub.f32 %v1768, 1.0
    %v1786 = vsub.f32 %v1770, 1.0
    %v1787 = vsel %vm1707, %v1691, %v1771
    %v1788 = vsel %vm1708, %v1692, %v1772
    %v1789 = vsel %vm1709, %v1693, %v1773
    %v1790 = vsel %vm1710, %v1694, %v1774
    %v1791 = vsel %vm1711, %v1695, %v1775
    %v1792 = vsel %vm1712, %v1696, %v1776
    %v1793 = vsel %vm1713, %v1697, %v1777
    %v1794 = vsel %vm1714, %v1698, %v1778
    %v1795 = vsel %vm1715, %v1699, %v1779
    %v1796 = vsel %vm1716, %v1700, %v1780
    %v1797 = vsel %vm1717, %v1701, %v1781
    %v1798 = vsel %vm1718, %v1702, %v1782
    %v1799 = vsel %vm1719, %v1703, %v1783
    %v1800 = vsel %vm1720, %v1704, %v1784
    %v1801 = vsel %vm1721, %v1705, %v1785
    %v1802 = vsel %vm1722, %v1706, %v1786
    %v1803 = vpack.c.bf16 %v1788, %v1787
    %v1804 = vpack.c.bf16 %v1790, %v1789
    %v1805 = vpack.c.bf16 %v1792, %v1791
    %v1806 = vpack.c.bf16 %v1794, %v1793
    %v1807 = vpack.c.bf16 %v1796, %v1795
    %v1808 = vpack.c.bf16 %v1798, %v1797
    %v1809 = vpack.c.bf16 %v1800, %v1799
    %v1810 = vpack.c.bf16 %v1802, %v1801
    %s1811 = scalar_lea.vmem %s3, 64
    %1812 = vst [vmem:[%s1811] sm:$0xff] %v1803
    %1813 = vst [vmem:[%s1811 + $0x8] sm:$0xff] %v1804
    %1814 = vst [vmem:[%s1811 + $0x10] sm:$0xff] %v1805
    %1815 = vst [vmem:[%s1811 + $0x18] sm:$0xff] %v1806
    %1816 = vst [vmem:[%s1811 + $0x20] sm:$0xff] %v1807
    %1817 = vst [vmem:[%s1811 + $0x28] sm:$0xff] %v1808
    %1818 = vst [vmem:[%s1811 + $0x30] sm:$0xff] %v1809
    %1819 = vst [vmem:[%s1811 + $0x38] sm:$0xff] %v1810
    // Predicated region
    $region18: #{net_forward.2} parent=1 // pred_check
      _
    $region19: #{net_forward.2} parent=1 // pred_check_branch
      %1821 = sbr.rel (0) target = $region21
    $region20: #{net_forward.2} parent=1 // pred_region
      _
    $region21: #{net_forward.2} parent=1 // pred_fallthru
      _
    // Predicated region
    $region22: #{net_forward.2} parent=1 // pred_check
      _
    $region23: #{net_forward.2} parent=1 // pred_check_branch
      %1823 = sbr.rel (0) target = $region25
    $region24: #{net_forward.2} parent=1 // pred_region
      _
    $region25: #{net_forward.2} parent=1 // pred_fallthru
      _
    %1824 = vsyncpa [#allocation3], 1

// kernel: net_forward.3
$region0: #{net_forward.3}
  #allocation0 [shape = 'u32[]', space=smem, size = 0x4, offset = 0x4, fixed_abs, tag = 'smem constant byte address 0x4 - core index']
  #allocation1 [shape = 'u32[72,128]{1,0:T(1,128)}', space=vmem, size = 0x9000, scoped, tag = 'internal scratch']
  #allocation2 [shape = 'f32[2,128]{1,0:T(2,128)}', space=vmem, size = 0x400, scoped, tag = 'scratch operand']
  %s0 = inlined_call_operand.vmem [shape: bf16[2,16384], index: 0, kind: input, shape index: {}]
  %s1 = inlined_call_operand.hbm [shape: bf16[16384,128], index: 1, kind: input, shape index: {}]
  %s2 = inlined_call_operand.hbm [shape: f32[1,128], index: 2, kind: input, shape index: {}]
  %s3 = inlined_call_operand.hbm [shape: bf16[128,1024], index: 3, kind: input, shape index: {}]
  %s4 = inlined_call_operand.hbm [shape: f32[1,1024], index: 4, kind: input, shape index: {}]
  %s5 = inlined_call_operand.vmem [shape: f32[2,1024], index: 5, kind: output, shape index: {}]
  %s6 = sld [smem:[#allocation0]]
  $region77: #{net_forward.3} parent=0
    _
  %s8 = ssub.s32 1, %s6
  %s9 = scalar_select 0, %s8, %s6
  $region1: #{net_forward.3} parent=0
    #allocation3 [shape = 'u8[4194304]{0}', space=vmem, size = 0x400000, scoped, tag = 'input window, operand 1']
    #allocation4 [shape = 's32[2]{0}', space=sflag, size = 0x8, scoped, tag = 'scoped memory for net_forward.3']
    #allocation5 [shape = 'u8[512]{0}', space=vmem, size = 0x400, scoped, tag = 'input window, operand 2, single buffered']
    #allocation6 [shape = 's32[1]{0}', space=sflag, size = 0x4, scoped, tag = 'scoped memory for net_forward.3']
    #allocation7 [shape = 'u8[262144]{0}', space=vmem, size = 0x40000, scoped, tag = 'input window, operand 3, single buffered']
    #allocation8 [shape = 'u8[4096]{0}', space=vmem, size = 0x1000, scoped, tag = 'input window, operand 4, single buffered']
    #allocation9 [shape = 's32[1]{0}', space=sflag, size = 0x4, scoped, tag = 'scoped memory for net_forward.3']
    %10 = vsyncpa [#allocation4], 0
    %s11 = scalar_lea.sflag [#allocation4], 1
    %12 = vsyncpa %s11, 0
    %13 = vsyncpa [#allocation6], 0
    %14 = vsyncpa [#allocation9], 0
    loop: start=0, step=1, limit=4
    $region2: #{net_forward.3} parent=1 // loop_pre_header
      _
    $region3: #{net_forward.3} parent=1 // loop_header
      %s16 = sphi 0, %s20
      %p17 = scmp.ge.s32.totalorder %s16, 4
      %s23 = sphi 0, %s35
      %s24 = sphi 0, %s31
      %s25 = sphi 0, %s23
      %s26 = sphi 0, %s24
      %s27 = sphi 0, %s25
      %s28 = sphi 0, %s26
      %s40 = sphi 0, %s42
      %s43 = sphi 0, %s40
      %s44 = sphi 0, %s43
      %s60 = sphi 0, %s44
      %s66 = sphi 0, %s68
      %s69 = sphi 0, %s66
      %s70 = sphi 0, %s69
      %s86 = sphi 0, %s70
      %s90 = sphi 0, %s90
      %s92 = sphi 0, %s90
      %s93 = sphi 0, %s92
      %s107 = sphi 0, %s93
      %s111 = sphi 0, %s111
      %s113 = sphi 0, %s111
      %s114 = sphi 0, %s113
      %s128 = sphi 0, %s114
      %s132 = sphi 0, %s132
      %s134 = sphi 0, %s132
      %s135 = sphi 0, %s134
      %s149 = sphi 0, %s135
      %s155 = sphi 0, %s157
      %s158 = sphi 0, %s155
      %s159 = sphi 0, %s158
      %s175 = sphi 0, %s159
    $region4: #{net_forward.3} parent=1 // loop_header_branch
      %19 = sbr.rel (%p17) target = $region8
    $region5: #{net_forward.3} parent=1 // loop_body
      %s21 = ssub.s32 %s16, 1
      %s22 = ssub.s32 %s16, 2
      %s29 = sadd.s32 1, %s24
      %p30 = scmp.ge.s32.totalorder %s29, 2
      %s31 = scalar_select %p30, 0, %s29
      %s32 = sadd.s32 1, %s23
      %s33 = scalar_select %p30, %s32, %s23
      %p34 = scmp.ge.s32.totalorder %s33, 1
      %s35 = scalar_select %p34, 0, %s33
      %s36 = ssub.s32 %s23, %s35
      %s37 = ssub.s32 %s24, %s31
      %s38 = sor.u32 %s36, %s37
      %p39 = scmp.eq.s32.totalorder %s38, 0
      %s41 = sadd.s32 %s40, 1
      %s42 = scalar_select %p39, %s40, %s41
      %p45 = pneg %p39
      %p46 = scmp.eq.s32.totalorder %s16, 1
      %p47 = por %p45, %p46
      %p48 = scmp.ne.s32.totalorder %s40, %s43
      %p49 = scmp.eq.s32.totalorder %s16, 0
      %p50 = por %p48, %p49
      %p51 = scmp.ne.s32.totalorder %s40, %s43
      %p52 = scmp.eq.s32.totalorder %s21, 1
      %p53 = por %p51, %p52
      %p54 = scmp.ne.s32.totalorder %s43, %s44
      %p55 = scmp.eq.s32.totalorder %s21, 0
      %p56 = por %p54, %p55
      %p57 = scmp.ne.s32.totalorder %s43, %s44
      %p58 = scmp.eq.s32.totalorder %s22, 1
      %p59 = por %p57, %p58
      %p61 = scmp.ne.s32.totalorder %s44, %s60
      %p62 = scmp.eq.s32.totalorder %s22, 0
      %p63 = por %p61, %p62
      %s64 = ssub.s32 %s24, %s31
      %p65 = scmp.eq.s32.totalorder %s64, 0
      %s67 = sadd.s32 %s66, 1
      %s68 = scalar_select %p65, %s66, %s67
      %p71 = pneg %p65
      %p72 = scmp.eq.s32.totalorder %s16, 1
      %p73 = por %p71, %p72
      %p74 = scmp.ne.s32.totalorder %s66, %s69
      %p75 = scmp.eq.s32.totalorder %s16, 0
      %p76 = por %p74, %p75
      %p77 = scmp.ne.s32.totalorder %s66, %s69
      %p78 = scmp.eq.s32.totalorder %s21, 1
      %p79 = por %p77, %p78
      %p80 = scmp.ne.s32.totalorder %s69, %s70
      %p81 = scmp.eq.s32.totalorder %s21, 0
      %p82 = por %p80, %p81
      %p83 = scmp.ne.s32.totalorder %s69, %s70
      %p84 = scmp.eq.s32.totalorder %s22, 1
      %p85 = por %p83, %p84
      %p87 = scmp.ne.s32.totalorder %s70, %s86
      %p88 = scmp.eq.s32.totalorder %s22, 0
      %p89 = por %p87, %p88
      %s91 = sadd.s32 %s90, 1
      %p94 = scmp.eq.s32.totalorder %s16, 1
      %p95 = scmp.ne.s32.totalorder %s90, %s92
      %p96 = scmp.eq.s32.totalorder %s16, 0
      %p97 = por %p95, %p96
      %p98 = scmp.ne.s32.totalorder %s90, %s92
      %p99 = scmp.eq.s32.totalorder %s21, 1
      %p100 = por %p98, %p99
      %p101 = scmp.ne.s32.totalorder %s92, %s93
      %p102 = scmp.eq.s32.totalorder %s21, 0
      %p103 = por %p101, %p102
      %p104 = scmp.ne.s32.totalorder %s92, %s93
      %p105 = scmp.eq.s32.totalorder %s22, 1
      %p106 = por %p104, %p105
      %p108 = scmp.ne.s32.totalorder %s93, %s107
      %p109 = scmp.eq.s32.totalorder %s22, 0
      %p110 = por %p108, %p109
      %s112 = sadd.s32 %s111, 1
      %p115 = scmp.eq.s32.totalorder %s16, 1
      %p116 = scmp.ne.s32.totalorder %s111, %s113
      %p117 = scmp.eq.s32.totalorder %s16, 0
      %p118 = por %p116, %p117
      %p119 = scmp.ne.s32.totalorder %s111, %s113
      %p120 = scmp.eq.s32.totalorder %s21, 1
      %p121 = por %p119, %p120
      %p122 = scmp.ne.s32.totalorder %s113, %s114
      %p123 = scmp.eq.s32.totalorder %s21, 0
      %p124 = por %p122, %p123
      %p125 = scmp.ne.s32.totalorder %s113, %s114
      %p126 = scmp.eq.s32.totalorder %s22, 1
      %p127 = por %p125, %p126
      %p129 = scmp.ne.s32.totalorder %s114, %s128
      %p130 = scmp.eq.s32.totalorder %s22, 0
      %p131 = por %p129, %p130
      %s133 = sadd.s32 %s132, 1
      %p136 = scmp.eq.s32.totalorder %s16, 1
      %p137 = scmp.ne.s32.totalorder %s132, %s134
      %p138 = scmp.eq.s32.totalorder %s16, 0
      %p139 = por %p137, %p138
      %p140 = scmp.ne.s32.totalorder %s132, %s134
      %p141 = scmp.eq.s32.totalorder %s21, 1
      %p142 = por %p140, %p141
      %p143 = scmp.ne.s32.totalorder %s134, %s135
      %p144 = scmp.eq.s32.totalorder %s21, 0
      %p145 = por %p143, %p144
      %p146 = scmp.ne.s32.totalorder %s134, %s135
      %p147 = scmp.eq.s32.totalorder %s22, 1
      %p148 = por %p146, %p147
      %p150 = scmp.ne.s32.totalorder %s135, %s149
      %p151 = scmp.eq.s32.totalorder %s22, 0
      %p152 = por %p150, %p151
      %s153 = ssub.s32 %s23, %s35
      %p154 = scmp.eq.s32.totalorder %s153, 0
      %s156 = sadd.s32 %s155, 1
      %s157 = scalar_select %p154, %s155, %s156
      %p160 = pneg %p154
      %p161 = scmp.eq.s32.totalorder %s16, 1
      %p162 = por %p160, %p161
      %p163 = scmp.ne.s32.totalorder %s155, %s158
      %p164 = scmp.eq.s32.totalorder %s16, 0
      %p165 = por %p163, %p164
      %p166 = scmp.ne.s32.totalorder %s155, %s158
      %p167 = scmp.eq.s32.totalorder %s21, 1
      %p168 = por %p166, %p167
      %p169 = scmp.ne.s32.totalorder %s158, %s159
      %p170 = scmp.eq.s32.totalorder %s21, 0
      %p171 = por %p169, %p170
      %p172 = scmp.ne.s32.totalorder %s158, %s159
      %p173 = scmp.eq.s32.totalorder %s22, 1
      %p174 = por %p172, %p173
      %p176 = scmp.ne.s32.totalorder %s159, %s175
      %p177 = scmp.eq.s32.totalorder %s22, 0
      %p178 = por %p176, %p177
      %p179 = scmp.le.s32.totalorder 1, %s16
      %p180 = scmp.lt.s32.totalorder %s16, 3
      %p181 = pnand %p179, %p180
      %p182 = pneg %p181
      // Predicated region
      $region9: #{net_forward.3} parent=5 // pred_check
        _
      $region10: #{net_forward.3} parent=5 // pred_check_branch
        %184 = sbr.rel (%p181) target = $region12
      $region11: #{net_forward.3} parent=5 // pred_region
        %s185 = ssub.s32 %s16, 1
        // Predicated region
        $region13: #{net_forward.3} parent=11 // pred_check
          %p186 = pneg %p103
        $region14: #{net_forward.3} parent=11 // pred_check_branch
          %188 = sbr.rel (%p186) target = $region16
        $region15: #{net_forward.3} parent=11 // pred_region
          %190 = vsyncadd [#allocation6], 0
          %s192 = sshll.u32 %s2, 4
          %s193 = int_to_ptr.hbm [resolvable:$true] %s192
          %s194 = sshll.u32 [#allocation5], 4
          %s195 = int_to_ptr.vmem [resolvable:$true] %s194
          %197 = dma.hbm_to_vmem [thread:$0]  %s193, 16, %s195, [#allocation6]
        $region16: #{net_forward.3} parent=11 // pred_fallthru
          _
        // Predicated region
        $region17: #{net_forward.3} parent=11 // pred_check
          %p198 = pneg %p124
        $region18: #{net_forward.3} parent=11 // pred_check_branch
          %200 = sbr.rel (%p198) target = $region20
        $region19: #{net_forward.3} parent=11 // pred_region
          %202 = vsyncadd [#allocation6], 0
          %s203 = sshll.u32 %s3, 4
          %s204 = int_to_ptr.hbm [resolvable:$true] %s203
          %s205 = sshll.u32 [#allocation7], 4
          %s206 = int_to_ptr.vmem [resolvable:$true] %s205
          %211 = dma.hbm_to_vmem [thread:$0]  %s204, 8192, %s206, [#allocation6], 512, 512, 32
        $region20: #{net_forward.3} parent=11 // pred_fallthru
          _
        // Predicated region
        $region21: #{net_forward.3} parent=11 // pred_check
          %p212 = pneg %p145
        $region22: #{net_forward.3} parent=11 // pred_check_branch
          %214 = sbr.rel (%p212) target = $region24
        $region23: #{net_forward.3} parent=11 // pred_region
          %216 = vsyncadd [#allocation9], 0
          %s218 = sshll.u32 %s4, 4
          %s219 = int_to_ptr.hbm [resolvable:$true] %s218
          %s220 = sshll.u32 [#allocation8], 4
          %s221 = int_to_ptr.vmem [resolvable:$true] %s220
          %223 = dma.hbm_to_vmem [thread:$0]  %s219, 128, %s221, [#allocation9]
        $region24: #{net_forward.3} parent=11 // pred_fallthru
          _
      $region12: #{net_forward.3} parent=5 // pred_fallthru
        _
      %p224 = scmp.lt.s32.totalorder %s16, 2
      // Predicated region
      $region25: #{net_forward.3} parent=5 // pred_check
        %p225 = pneg %p224
      $region26: #{net_forward.3} parent=5 // pred_check_branch
        %227 = sbr.rel (%p225) target = $region28
      $region27: #{net_forward.3} parent=5 // pred_region
        // Predicated region
        $region29: #{net_forward.3} parent=27 // pred_check
          %p228 = pneg %p50
        $region30: #{net_forward.3} parent=27 // pred_check_branch
          %230 = sbr.rel (%p228) target = $region32
        $region31: #{net_forward.3} parent=27 // pred_region
          %s231 = smul.u32 64, %s24
          %p232 = scmp.lt.s32.totalorder %s23, 0
          %s233 = scalar_select %p232, %s23, 0
          %p234 = scmp.lt.s32.totalorder %s231, 127
          %s235 = scalar_select %p234, %s231, 127
          %s236 = smul.addr %s233, 128
          %s237 = sadd.s32 %s235, %s236
          %s238 = scalar_lea.vmem %s0, %s237
          %s239 = smul.u32 64, %s24
        $region32: #{net_forward.3} parent=27 // pred_fallthru
          _
        // Predicated region
        $region33: #{net_forward.3} parent=27 // pred_check
          %p240 = pneg %p76
        $region34: #{net_forward.3} parent=27 // pred_check_branch
          %242 = sbr.rel (%p240) target = $region36
        $region35: #{net_forward.3} parent=27 // pred_region
          %s243 = sand.u32 %s66, 1
          %s244 = scalar_lea.sflag [#allocation4], %s243
          %s245 = sand.u32 %s66, 1
          %s246 = smul.addr %s245, 4096
          %s247 = scalar_lea.vmem [#allocation3], %s246
          %s248 = smul.u32 1024, %s24
          %250 = vsyncadd %s244, 0
          %s251 = smul.addr %s248, 4
          %s252 = scalar_lea.hbm %s1, %s251
          %s253 = sshll.u32 %s252, 4
          %s254 = int_to_ptr.hbm [resolvable:$true] %s253
          %s255 = sshll.u32 %s247, 4
          %s256 = int_to_ptr.vmem [resolvable:$true] %s255
          %261 = dma.hbm_to_vmem [thread:$0]  %s254, 65536, %s256, %s244, 64, 64, 4
        $region36: #{net_forward.3} parent=27 // pred_fallthru
          _
      $region28: #{net_forward.3} parent=5 // pred_fallthru
        _
      %p262 = scmp.le.s32.totalorder 1, %s16
      %p263 = scmp.lt.s32.totalorder %s16, 3
      %p264 = pnand %p262, %p263
      %p265 = pneg %p264
      // Predicated region
      $region37: #{net_forward.3} parent=5 // pred_check
        _
      $region38: #{net_forward.3} parent=5 // pred_check_branch
        %267 = sbr.rel (%p264) target = $region40
      $region39: #{net_forward.3} parent=5 // pred_region
        %s268 = ssub.s32 %s16, 1
        %s269 = sand.u32 %s69, 1
        %s270 = scalar_lea.sflag [#allocation4], %s269
        %s271 = sand.u32 %s69, 1
        %s272 = smul.addr %s271, 4096
        %s273 = scalar_lea.vmem [#allocation3], %s272
        // Predicated region
        $region41: #{net_forward.3} parent=39 // pred_check
          %p274 = pneg %p82
        $region42: #{net_forward.3} parent=39 // pred_check_branch
          %276 = sbr.rel (%p274) target = $region44
        $region43: #{net_forward.3} parent=39 // pred_region
          %278 = dma.done %s270, 65536
        $region44: #{net_forward.3} parent=39 // pred_fallthru
          _
        // Predicated region
        $region45: #{net_forward.3} parent=39 // pred_check
          %p279 = pneg %p103
        $region46: #{net_forward.3} parent=39 // pred_check_branch
          %281 = sbr.rel (%p279) target = $region48
        $region47: #{net_forward.3} parent=39 // pred_region
          %283 = dma.done [#allocation6], 16
        $region48: #{net_forward.3} parent=39 // pred_fallthru
          _
        // Predicated region
        $region49: #{net_forward.3} parent=39 // pred_check
          %p284 = pneg %p124
        $region50: #{net_forward.3} parent=39 // pred_check_branch
          %286 = sbr.rel (%p284) target = $region52
        $region51: #{net_forward.3} parent=39 // pred_region
          %288 = dma.done [#allocation6], 8192
        $region52: #{net_forward.3} parent=39 // pred_fallthru
          _
        // Predicated region
        $region53: #{net_forward.3} parent=39 // pred_check
          %p289 = pneg %p145
        $region54: #{net_forward.3} parent=39 // pred_check_branch
          %291 = sbr.rel (%p289) target = $region56
        $region55: #{net_forward.3} parent=39 // pred_region
          %293 = dma.done [#allocation9], 128
        $region56: #{net_forward.3} parent=39 // pred_fallthru
          _
        %s294 = smul.u32 64, %s26
        %p295 = scmp.lt.s32.totalorder %s25, 0
        %s296 = scalar_select %p295, %s25, 0
        %p297 = scmp.lt.s32.totalorder %s294, 127
        %s298 = scalar_select %p297, %s294, 127
        %s299 = smul.addr %s296, 128
        %s300 = sadd.s32 %s298, %s299
        %s301 = scalar_lea.vmem %s0, %s300
        %p302 = pneg %p56
        %p303 = pneg %p53
        %s304 = sand.u32 %s69, 1
        %s305 = scalar_lea.sflag [#allocation4], %s304
        %s306 = sand.u32 %s69, 1
        %s307 = smul.addr %s306, 4096
        %s308 = scalar_lea.vmem [#allocation3], %s307
        %p309 = pneg %p82
        %p310 = pneg %p79
        %p311 = pneg %p103
        %p312 = pneg %p100
        %p313 = pneg %p124
        %p314 = pneg %p121
        %p315 = pneg %p145
        %p316 = pneg %p142
        %p317 = pneg %p171
        %p318 = pneg %p168
        %p319 = scmp.lt.s32.totalorder %s25, 0
        %s320 = scalar_select %p319, %s25, 0
        %s321 = smul.addr %s320, 8
        %s322 = smul.addr %s321, 2
        %s323 = scalar_lea.vmem %s5, %s322
        %s324 = smul.u32 64, %s26
        %p325 = scmp.lt.s32.totalorder %s25, 0
        %s326 = scalar_select %p325, %s25, 0
        %p327 = scmp.lt.s32.totalorder %s324, 127
        %s328 = scalar_select %p327, %s324, 127
        %s329 = smul.addr %s326, 128
        %s330 = sadd.s32 %s328, %s329
        %s331 = scalar_lea.vmem %s0, %s330
        %s332 = smul.u32 64, %s26
        %s333 = smul.u32 1024, %s26
        %p334 = scmp.lt.s32.totalorder %s25, 0
        %s335 = scalar_select %p334, %s25, 0
        %s336 = smul.addr %s335, 8
        %s337 = smul.addr %s336, 2
        %s338 = scalar_lea.vmem %s5, %s337
        %p339 = scmp.eq.s32.totalorder %s26, 0
        // Predicated region
        $region57: #{net_forward.3} parent=39 // pred_check
          %p340 = pneg %p339
        $region58: #{net_forward.3} parent=39 // pred_check_branch
          %342 = sbr.rel (%p340) target = $region60
        $region59: #{net_forward.3} parent=39 // pred_region
          %343 = vst [vmem:[#allocation2] sm:$0x3] 0.0
        $region60: #{net_forward.3} parent=39 // pred_fallthru
          _
        %v344 = vld [vmem:[#allocation2] sm:$0x3]
        %v345 = vld [vmem:[%s331] sm:$0xff]
        %v346 = vld [vmem:[%s331 + $0x8] sm:$0xff]
        %v347 = vld [vmem:[%s331 + $0x10] sm:$0xff]
        %v348 = vld [vmem:[%s331 + $0x18] sm:$0xff]
        %v349 = vld [vmem:[%s331 + $0x20] sm:$0xff]
        %v350 = vld [vmem:[%s331 + $0x28] sm:$0xff]
        %v351 = vld [vmem:[%s331 + $0x30] sm:$0xff]
        %v352 = vld [vmem:[%s331 + $0x38] sm:$0xff]
        %v353 = vld [vmem:[%s273] sm:$0xf]
        %v354 = vld [vmem:[%s273 + $0x4] sm:$0xf]
        %v355 = vld [vmem:[%s273 + $0x8] sm:$0xf]
        %v356 = vld [vmem:[%s273 + $0xc] sm:$0xf]
        %v357 = vld [vmem:[%s273 + $0x10] sm:$0xf]
        %v358 = vld [vmem:[%s273 + $0x14] sm:$0xf]
        %v359 = vld [vmem:[%s273 + $0x18] sm:$0xf]
        %v360 = vld [vmem:[%s273 + $0x1c] sm:$0xf]
        %v361 = vld [vmem:[%s273 + $0x20] sm:$0xf]
        %v362 = vld [vmem:[%s273 + $0x24] sm:$0xf]
        %v363 = vld [vmem:[%s273 + $0x28] sm:$0xf]
        %v364 = vld [vmem:[%s273 + $0x2c] sm:$0xf]
        %v365 = vld [vmem:[%s273 + $0x30] sm:$0xf]
        %v366 = vld [vmem:[%s273 + $0x34] sm:$0xf]
        %v367 = vld [vmem:[%s273 + $0x38] sm:$0xf]
        %v368 = vld [vmem:[%s273 + $0x3c] sm:$0xf]
        %v369 = vld [vmem:[%s273 + $0x40] sm:$0xf]
        %v370 = vld [vmem:[%s273 + $0x44] sm:$0xf]
        %v371 = vld [vmem:[%s273 + $0x48] sm:$0xf]
        %v372 = vld [vmem:[%s273 + $0x4c] sm:$0xf]
        %v373 = vld [vmem:[%s273 + $0x50] sm:$0xf]
        %v374 = vld [vmem:[%s273 + $0x54] sm:$0xf]
        %v375 = vld [vmem:[%s273 + $0x58] sm:$0xf]
        %v376 = vld [vmem:[%s273 + $0x5c] sm:$0xf]
        %v377 = vld [vmem:[%s273 + $0x60] sm:$0xf]
        %v378 = vld [vmem:[%s273 + $0x64] sm:$0xf]
        %v379 = vld [vmem:[%s273 + $0x68] sm:$0xf]
        %v380 = vld [vmem:[%s273 + $0x6c] sm:$0xf]
        %v381 = vld [vmem:[%s273 + $0x70] sm:$0xf]
        %v382 = vld [vmem:[%s273 + $0x74] sm:$0xf]
        %v383 = vld [vmem:[%s273 + $0x78] sm:$0xf]
        %v384 = vld [vmem:[%s273 + $0x7c] sm:$0xf]
        %v385 = vld [vmem:[%s273 + $0x80] sm:$0xf]
        %v386 = vld [vmem:[%s273 + $0x84] sm:$0xf]
        %v387 = vld [vmem:[%s273 + $0x88] sm:$0xf]
        %v388 = vld [vmem:[%s273 + $0x8c] sm:$0xf]
        %v389 = vld [vmem:[%s273 + $0x90] sm:$0xf]
        %v390 = vld [vmem:[%s273 + $0x94] sm:$0xf]
        %v391 = vld [vmem:[%s273 + $0x98] sm:$0xf]
        %v392 = vld [vmem:[%s273 + $0x9c] sm:$0xf]
        %v393 = vld [vmem:[%s273 + $0xa0] sm:$0xf]
        %v394 = vld [vmem:[%s273 + $0xa4] sm:$0xf]
        %v395 = vld [vmem:[%s273 + $0xa8] sm:$0xf]
        %v396 = vld [vmem:[%s273 + $0xac] sm:$0xf]
        %v397 = vld [vmem:[%s273 + $0xb0] sm:$0xf]
        %v398 = vld [vmem:[%s273 + $0xb4] sm:$0xf]
        %v399 = vld [vmem:[%s273 + $0xb8] sm:$0xf]
        %v400 = vld [vmem:[%s273 + $0xbc] sm:$0xf]
        %v401 = vld [vmem:[%s273 + $0xc0] sm:$0xf]
        %v402 = vld [vmem:[%s273 + $0xc4] sm:$0xf]
        %v403 = vld [vmem:[%s273 + $0xc8] sm:$0xf]
        %v404 = vld [vmem:[%s273 + $0xcc] sm:$0xf]
        %v405 = vld [vmem:[%s273 + $0xd0] sm:$0xf]
        %v406 = vld [vmem:[%s273 + $0xd4] sm:$0xf]
        %v407 = vld [vmem:[%s273 + $0xd8] sm:$0xf]
        %v408 = vld [vmem:[%s273 + $0xdc] sm:$0xf]
        %v409 = vld [vmem:[%s273 + $0xe0] sm:$0xf]
        %v410 = vld [vmem:[%s273 + $0xe4] sm:$0xf]
        %v411 = vld [vmem:[%s273 + $0xe8] sm:$0xf]
        %v412 = vld [vmem:[%s273 + $0xec] sm:$0xf]
        %v413 = vld [vmem:[%s273 + $0xf0] sm:$0xf]
        %v414 = vld [vmem:[%s273 + $0xf4] sm:$0xf]
        %v415 = vld [vmem:[%s273 + $0xf8] sm:$0xf]
        %v416 = vld [vmem:[%s273 + $0xfc] sm:$0xf]
        %v417 = vld [vmem:[%s273 + $0x100] sm:$0xf]
        %v418 = vld [vmem:[%s273 + $0x104] sm:$0xf]
        %v419 = vld [vmem:[%s273 + $0x108] sm:$0xf]
        %v420 = vld [vmem:[%s273 + $0x10c] sm:$0xf]
        %v421 = vld [vmem:[%s273 + $0x110] sm:$0xf]
        %v422 = vld [vmem:[%s273 + $0x114] sm:$0xf]
        %v423 = vld [vmem:[%s273 + $0x118] sm:$0xf]
        %v424 = vld [vmem:[%s273 + $0x11c] sm:$0xf]
        %v425 = vld [vmem:[%s273 + $0x120] sm:$0xf]
        %v426 = vld [vmem:[%s273 + $0x124] sm:$0xf]
        %v427 = vld [vmem:[%s273 + $0x128] sm:$0xf]
        %v428 = vld [vmem:[%s273 + $0x12c] sm:$0xf]
        %v429 = vld [vmem:[%s273 + $0x130] sm:$0xf]
        %v430 = vld [vmem:[%s273 + $0x134] sm:$0xf]
        %v431 = vld [vmem:[%s273 + $0x138] sm:$0xf]
        %v432 = vld [vmem:[%s273 + $0x13c] sm:$0xf]
        %v433 = vld [vmem:[%s273 + $0x140] sm:$0xf]
        %v434 = vld [vmem:[%s273 + $0x144] sm:$0xf]
        %v435 = vld [vmem:[%s273 + $0x148] sm:$0xf]
        %v436 = vld [vmem:[%s273 + $0x14c] sm:$0xf]
        %v437 = vld [vmem:[%s273 + $0x150] sm:$0xf]
        %v438 = vld [vmem:[%s273 + $0x154] sm:$0xf]
        %v439 = vld [vmem:[%s273 + $0x158] sm:$0xf]
        %v440 = vld [vmem:[%s273 + $0x15c] sm:$0xf]
        %v441 = vld [vmem:[%s273 + $0x160] sm:$0xf]
        %v442 = vld [vmem:[%s273 + $0x164] sm:$0xf]
        %v443 = vld [vmem:[%s273 + $0x168] sm:$0xf]
        %v444 = vld [vmem:[%s273 + $0x16c] sm:$0xf]
        %v445 = vld [vmem:[%s273 + $0x170] sm:$0xf]
        %v446 = vld [vmem:[%s273 + $0x174] sm:$0xf]
        %v447 = vld [vmem:[%s273 + $0x178] sm:$0xf]
        %v448 = vld [vmem:[%s273 + $0x17c] sm:$0xf]
        %v449 = vld [vmem:[%s273 + $0x180] sm:$0xf]
        %v450 = vld [vmem:[%s273 + $0x184] sm:$0xf]
        %v451 = vld [vmem:[%s273 + $0x188] sm:$0xf]
        %v452 = vld [vmem:[%s273 + $0x18c] sm:$0xf]
        %v453 = vld [vmem:[%s273 + $0x190] sm:$0xf]
        %v454 = vld [vmem:[%s273 + $0x194] sm:$0xf]
        %v455 = vld [vmem:[%s273 + $0x198] sm:$0xf]
        %v456 = vld [vmem:[%s273 + $0x19c] sm:$0xf]
        %v457 = vld [vmem:[%s273 + $0x1a0] sm:$0xf]
        %v458 = vld [vmem:[%s273 + $0x1a4] sm:$0xf]
        %v459 = vld [vmem:[%s273 + $0x1a8] sm:$0xf]
        %v460 = vld [vmem:[%s273 + $0x1ac] sm:$0xf]
        %v461 = vld [vmem:[%s273 + $0x1b0] sm:$0xf]
        %v462 = vld [vmem:[%s273 + $0x1b4] sm:$0xf]
        %v463 = vld [vmem:[%s273 + $0x1b8] sm:$0xf]
        %v464 = vld [vmem:[%s273 + $0x1bc] sm:$0xf]
        %v465 = vld [vmem:[%s273 + $0x1c0] sm:$0xf]
        %v466 = vld [vmem:[%s273 + $0x1c4] sm:$0xf]
        %v467 = vld [vmem:[%s273 + $0x1c8] sm:$0xf]
        %v468 = vld [vmem:[%s273 + $0x1cc] sm:$0xf]
        %v469 = vld [vmem:[%s273 + $0x1d0] sm:$0xf]
        %v470 = vld [vmem:[%s273 + $0x1d4] sm:$0xf]
        %v471 = vld [vmem:[%s273 + $0x1d8] sm:$0xf]
        %v472 = vld [vmem:[%s273 + $0x1dc] sm:$0xf]
        %v473 = vld [vmem:[%s273 + $0x1e0] sm:$0xf]
        %v474 = vld [vmem:[%s273 + $0x1e4] sm:$0xf]
        %v475 = vld [vmem:[%s273 + $0x1e8] sm:$0xf]
        %v476 = vld [vmem:[%s273 + $0x1ec] sm:$0xf]
        %v477 = vld [vmem:[%s273 + $0x1f0] sm:$0xf]
        %v478 = vld [vmem:[%s273 + $0x1f4] sm:$0xf]
        %v479 = vld [vmem:[%s273 + $0x1f8] sm:$0xf]
        %v480 = vld [vmem:[%s273 + $0x1fc] sm:$0xf]
        %v481 = vld [vmem:[%s273 + $0x200] sm:$0xf]
        %v482 = vld [vmem:[%s273 + $0x204] sm:$0xf]
        %v483 = vld [vmem:[%s273 + $0x208] sm:$0xf]
        %v484 = vld [vmem:[%s273 + $0x20c] sm:$0xf]
        %v485 = vld [vmem:[%s273 + $0x210] sm:$0xf]
        %v486 = vld [vmem:[%s273 + $0x214] sm:$0xf]
        %v487 = vld [vmem:[%s273 + $0x218] sm:$0xf]
        %v488 = vld [vmem:[%s273 + $0x21c] sm:$0xf]
        %v489 = vld [vmem:[%s273 + $0x220] sm:$0xf]
        %v490 = vld [vmem:[%s273 + $0x224] sm:$0xf]
        %v491 = vld [vmem:[%s273 + $0x228] sm:$0xf]
        %v492 = vld [vmem:[%s273 + $0x22c] sm:$0xf]
        %v493 = vld [vmem:[%s273 + $0x230] sm:$0xf]
        %v494 = vld [vmem:[%s273 + $0x234] sm:$0xf]
        %v495 = vld [vmem:[%s273 + $0x238] sm:$0xf]
        %v496 = vld [vmem:[%s273 + $0x23c] sm:$0xf]
        %v497 = vld [vmem:[%s273 + $0x240] sm:$0xf]
        %v498 = vld [vmem:[%s273 + $0x244] sm:$0xf]
        %v499 = vld [vmem:[%s273 + $0x248] sm:$0xf]
        %v500 = vld [vmem:[%s273 + $0x24c] sm:$0xf]
        %v501 = vld [vmem:[%s273 + $0x250] sm:$0xf]
        %v502 = vld [vmem:[%s273 + $0x254] sm:$0xf]
        %v503 = vld [vmem:[%s273 + $0x258] sm:$0xf]
        %v504 = vld [vmem:[%s273 + $0x25c] sm:$0xf]
        %v505 = vld [vmem:[%s273 + $0x260] sm:$0xf]
        %v506 = vld [vmem:[%s273 + $0x264] sm:$0xf]
        %v507 = vld [vmem:[%s273 + $0x268] sm:$0xf]
        %v508 = vld [vmem:[%s273 + $0x26c] sm:$0xf]
        %v509 = vld [vmem:[%s273 + $0x270] sm:$0xf]
        %v510 = vld [vmem:[%s273 + $0x274] sm:$0xf]
        %v511 = vld [vmem:[%s273 + $0x278] sm:$0xf]
        %v512 = vld [vmem:[%s273 + $0x27c] sm:$0xf]
        %v513 = vld [vmem:[%s273 + $0x280] sm:$0xf]
        %v514 = vld [vmem:[%s273 + $0x284] sm:$0xf]
        %v515 = vld [vmem:[%s273 + $0x288] sm:$0xf]
        %v516 = vld [vmem:[%s273 + $0x28c] sm:$0xf]
        %v517 = vld [vmem:[%s273 + $0x290] sm:$0xf]
        %v518 = vld [vmem:[%s273 + $0x294] sm:$0xf]
        %v519 = vld [vmem:[%s273 + $0x298] sm:$0xf]
        %v520 = vld [vmem:[%s273 + $0x29c] sm:$0xf]
        %v521 = vld [vmem:[%s273 + $0x2a0] sm:$0xf]
        %v522 = vld [vmem:[%s273 + $0x2a4] sm:$0xf]
        %v523 = vld [vmem:[%s273 + $0x2a8] sm:$0xf]
        %v524 = vld [vmem:[%s273 + $0x2ac] sm:$0xf]
        %v525 = vld [vmem:[%s273 + $0x2b0] sm:$0xf]
        %v526 = vld [vmem:[%s273 + $0x2b4] sm:$0xf]
        %v527 = vld [vmem:[%s273 + $0x2b8] sm:$0xf]
        %v528 = vld [vmem:[%s273 + $0x2bc] sm:$0xf]
        %v529 = vld [vmem:[%s273 + $0x2c0] sm:$0xf]
        %v530 = vld [vmem:[%s273 + $0x2c4] sm:$0xf]
        %v531 = vld [vmem:[%s273 + $0x2c8] sm:$0xf]
        %v532 = vld [vmem:[%s273 + $0x2cc] sm:$0xf]
        %v533 = vld [vmem:[%s273 + $0x2d0] sm:$0xf]
        %v534 = vld [vmem:[%s273 + $0x2d4] sm:$0xf]
        %v535 = vld [vmem:[%s273 + $0x2d8] sm:$0xf]
        %v536 = vld [vmem:[%s273 + $0x2dc] sm:$0xf]
        %v537 = vld [vmem:[%s273 + $0x2e0] sm:$0xf]
        %v538 = vld [vmem:[%s273 + $0x2e4] sm:$0xf]
        %v539 = vld [vmem:[%s273 + $0x2e8] sm:$0xf]
        %v540 = vld [vmem:[%s273 + $0x2ec] sm:$0xf]
        %v541 = vld [vmem:[%s273 + $0x2f0] sm:$0xf]
        %v542 = vld [vmem:[%s273 + $0x2f4] sm:$0xf]
        %v543 = vld [vmem:[%s273 + $0x2f8] sm:$0xf]
        %v544 = vld [vmem:[%s273 + $0x2fc] sm:$0xf]
        %v545 = vld [vmem:[%s273 + $0x300] sm:$0xf]
        %v546 = vld [vmem:[%s273 + $0x304] sm:$0xf]
        %v547 = vld [vmem:[%s273 + $0x308] sm:$0xf]
        %v548 = vld [vmem:[%s273 + $0x30c] sm:$0xf]
        %v549 = vld [vmem:[%s273 + $0x310] sm:$0xf]
        %v550 = vld [vmem:[%s273 + $0x314] sm:$0xf]
        %v551 = vld [vmem:[%s273 + $0x318] sm:$0xf]
        %v552 = vld [vmem:[%s273 + $0x31c] sm:$0xf]
        %v553 = vld [vmem:[%s273 + $0x320] sm:$0xf]
        %v554 = vld [vmem:[%s273 + $0x324] sm:$0xf]
        %v555 = vld [vmem:[%s273 + $0x328] sm:$0xf]
        %v556 = vld [vmem:[%s273 + $0x32c] sm:$0xf]
        %v557 = vld [vmem:[%s273 + $0x330] sm:$0xf]
        %v558 = vld [vmem:[%s273 + $0x334] sm:$0xf]
        %v559 = vld [vmem:[%s273 + $0x338] sm:$0xf]
        %v560 = vld [vmem:[%s273 + $0x33c] sm:$0xf]
        %v561 = vld [vmem:[%s273 + $0x340] sm:$0xf]
        %v562 = vld [vmem:[%s273 + $0x344] sm:$0xf]
        %v563 = vld [vmem:[%s273 + $0x348] sm:$0xf]
        %v564 = vld [vmem:[%s273 + $0x34c] sm:$0xf]
        %v565 = vld [vmem:[%s273 + $0x350] sm:$0xf]
        %v566 = vld [vmem:[%s273 + $0x354] sm:$0xf]
        %v567 = vld [vmem:[%s273 + $0x358] sm:$0xf]
        %v568 = vld [vmem:[%s273 + $0x35c] sm:$0xf]
        %v569 = vld [vmem:[%s273 + $0x360] sm:$0xf]
        %v570 = vld [vmem:[%s273 + $0x364] sm:$0xf]
        %v571 = vld [vmem:[%s273 + $0x368] sm:$0xf]
        %v572 = vld [vmem:[%s273 + $0x36c] sm:$0xf]
        %v573 = vld [vmem:[%s273 + $0x370] sm:$0xf]
        %v574 = vld [vmem:[%s273 + $0x374] sm:$0xf]
        %v575 = vld [vmem:[%s273 + $0x378] sm:$0xf]
        %v576 = vld [vmem:[%s273 + $0x37c] sm:$0xf]
        %v577 = vld [vmem:[%s273 + $0x380] sm:$0xf]
        %v578 = vld [vmem:[%s273 + $0x384] sm:$0xf]
        %v579 = vld [vmem:[%s273 + $0x388] sm:$0xf]
        %v580 = vld [vmem:[%s273 + $0x38c] sm:$0xf]
        %v581 = vld [vmem:[%s273 + $0x390] sm:$0xf]
        %v582 = vld [vmem:[%s273 + $0x394] sm:$0xf]
        %v583 = vld [vmem:[%s273 + $0x398] sm:$0xf]
        %v584 = vld [vmem:[%s273 + $0x39c] sm:$0xf]
        %v585 = vld [vmem:[%s273 + $0x3a0] sm:$0xf]
        %v586 = vld [vmem:[%s273 + $0x3a4] sm:$0xf]
        %v587 = vld [vmem:[%s273 + $0x3a8] sm:$0xf]
        %v588 = vld [vmem:[%s273 + $0x3ac] sm:$0xf]
        %v589 = vld [vmem:[%s273 + $0x3b0] sm:$0xf]
        %v590 = vld [vmem:[%s273 + $0x3b4] sm:$0xf]
        %v591 = vld [vmem:[%s273 + $0x3b8] sm:$0xf]
        %v592 = vld [vmem:[%s273 + $0x3bc] sm:$0xf]
        %v593 = vld [vmem:[%s273 + $0x3c0] sm:$0xf]
        %v594 = vld [vmem:[%s273 + $0x3c4] sm:$0xf]
        %v595 = vld [vmem:[%s273 + $0x3c8] sm:$0xf]
        %v596 = vld [vmem:[%s273 + $0x3cc] sm:$0xf]
        %v597 = vld [vmem:[%s273 + $0x3d0] sm:$0xf]
        %v598 = vld [vmem:[%s273 + $0x3d4] sm:$0xf]
        %v599 = vld [vmem:[%s273 + $0x3d8] sm:$0xf]
        %v600 = vld [vmem:[%s273 + $0x3dc] sm:$0xf]
        %v601 = vld [vmem:[%s273 + $0x3e0] sm:$0xf]
        %v602 = vld [vmem:[%s273 + $0x3e4] sm:$0xf]
        %v603 = vld [vmem:[%s273 + $0x3e8] sm:$0xf]
        %v604 = vld [vmem:[%s273 + $0x3ec] sm:$0xf]
        %v605 = vld [vmem:[%s273 + $0x3f0] sm:$0xf]
        %v606 = vld [vmem:[%s273 + $0x3f4] sm:$0xf]
        %v607 = vld [vmem:[%s273 + $0x3f8] sm:$0xf]
        %v608 = vld [vmem:[%s273 + $0x3fc] sm:$0xf]
        %v609 = vld [vmem:[%s273 + $0x400] sm:$0xf]
        %v610 = vld [vmem:[%s273 + $0x404] sm:$0xf]
        %v611 = vld [vmem:[%s273 + $0x408] sm:$0xf]
        %v612 = vld [vmem:[%s273 + $0x40c] sm:$0xf]
        %v613 = vld [vmem:[%s273 + $0x410] sm:$0xf]
        %v614 = vld [vmem:[%s273 + $0x414] sm:$0xf]
        %v615 = vld [vmem:[%s273 + $0x418] sm:$0xf]
        %v616 = vld [vmem:[%s273 + $0x41c] sm:$0xf]
        %v617 = vld [vmem:[%s273 + $0x420] sm:$0xf]
        %v618 = vld [vmem:[%s273 + $0x424] sm:$0xf]
        %v619 = vld [vmem:[%s273 + $0x428] sm:$0xf]
        %v620 = vld [vmem:[%s273 + $0x42c] sm:$0xf]
        %v621 = vld [vmem:[%s273 + $0x430] sm:$0xf]
        %v622 = vld [vmem:[%s273 + $0x434] sm:$0xf]
        %v623 = vld [vmem:[%s273 + $0x438] sm:$0xf]
        %v624 = vld [vmem:[%s273 + $0x43c] sm:$0xf]
        %v625 = vld [vmem:[%s273 + $0x440] sm:$0xf]
        %v626 = vld [vmem:[%s273 + $0x444] sm:$0xf]
        %v627 = vld [vmem:[%s273 + $0x448] sm:$0xf]
        %v628 = vld [vmem:[%s273 + $0x44c] sm:$0xf]
        %v629 = vld [vmem:[%s273 + $0x450] sm:$0xf]
        %v630 = vld [vmem:[%s273 + $0x454] sm:$0xf]
        %v631 = vld [vmem:[%s273 + $0x458] sm:$0xf]
        %v632 = vld [vmem:[%s273 + $0x45c] sm:$0xf]
        %v633 = vld [vmem:[%s273 + $0x460] sm:$0xf]
        %v634 = vld [vmem:[%s273 + $0x464] sm:$0xf]
        %v635 = vld [vmem:[%s273 + $0x468] sm:$0xf]
        %v636 = vld [vmem:[%s273 + $0x46c] sm:$0xf]
        %v637 = vld [vmem:[%s273 + $0x470] sm:$0xf]
        %v638 = vld [vmem:[%s273 + $0x474] sm:$0xf]
        %v639 = vld [vmem:[%s273 + $0x478] sm:$0xf]
        %v640 = vld [vmem:[%s273 + $0x47c] sm:$0xf]
        %v641 = vld [vmem:[%s273 + $0x480] sm:$0xf]
        %v642 = vld [vmem:[%s273 + $0x484] sm:$0xf]
        %v643 = vld [vmem:[%s273 + $0x488] sm:$0xf]
        %v644 = vld [vmem:[%s273 + $0x48c] sm:$0xf]
        %v645 = vld [vmem:[%s273 + $0x490] sm:$0xf]
        %v646 = vld [vmem:[%s273 + $0x494] sm:$0xf]
        %v647 = vld [vmem:[%s273 + $0x498] sm:$0xf]
        %v648 = vld [vmem:[%s273 + $0x49c] sm:$0xf]
        %v649 = vld [vmem:[%s273 + $0x4a0] sm:$0xf]
        %v650 = vld [vmem:[%s273 + $0x4a4] sm:$0xf]
        %v651 = vld [vmem:[%s273 + $0x4a8] sm:$0xf]
        %v652 = vld [vmem:[%s273 + $0x4ac] sm:$0xf]
        %v653 = vld [vmem:[%s273 + $0x4b0] sm:$0xf]
        %v654 = vld [vmem:[%s273 + $0x4b4] sm:$0xf]
        %v655 = vld [vmem:[%s273 + $0x4b8] sm:$0xf]
        %v656 = vld [vmem:[%s273 + $0x4bc] sm:$0xf]
        %v657 = vld [vmem:[%s273 + $0x4c0] sm:$0xf]
        %v658 = vld [vmem:[%s273 + $0x4c4] sm:$0xf]
        %v659 = vld [vmem:[%s273 + $0x4c8] sm:$0xf]
        %v660 = vld [vmem:[%s273 + $0x4cc] sm:$0xf]
        %v661 = vld [vmem:[%s273 + $0x4d0] sm:$0xf]
        %v662 = vld [vmem:[%s273 + $0x4d4] sm:$0xf]
        %v663 = vld [vmem:[%s273 + $0x4d8] sm:$0xf]
        %v664 = vld [vmem:[%s273 + $0x4dc] sm:$0xf]
        %v665 = vld [vmem:[%s273 + $0x4e0] sm:$0xf]
        %v666 = vld [vmem:[%s273 + $0x4e4] sm:$0xf]
        %v667 = vld [vmem:[%s273 + $0x4e8] sm:$0xf]
        %v668 = vld [vmem:[%s273 + $0x4ec] sm:$0xf]
        %v669 = vld [vmem:[%s273 + $0x4f0] sm:$0xf]
        %v670 = vld [vmem:[%s273 + $0x4f4] sm:$0xf]
        %v671 = vld [vmem:[%s273 + $0x4f8] sm:$0xf]
        %v672 = vld [vmem:[%s273 + $0x4fc] sm:$0xf]
        %v673 = vld [vmem:[%s273 + $0x500] sm:$0xf]
        %v674 = vld [vmem:[%s273 + $0x504] sm:$0xf]
        %v675 = vld [vmem:[%s273 + $0x508] sm:$0xf]
        %v676 = vld [vmem:[%s273 + $0x50c] sm:$0xf]
        %v677 = vld [vmem:[%s273 + $0x510] sm:$0xf]
        %v678 = vld [vmem:[%s273 + $0x514] sm:$0xf]
        %v679 = vld [vmem:[%s273 + $0x518] sm:$0xf]
        %v680 = vld [vmem:[%s273 + $0x51c] sm:$0xf]
        %v681 = vld [vmem:[%s273 + $0x520] sm:$0xf]
        %v682 = vld [vmem:[%s273 + $0x524] sm:$0xf]
        %v683 = vld [vmem:[%s273 + $0x528] sm:$0xf]
        %v684 = vld [vmem:[%s273 + $0x52c] sm:$0xf]
        %v685 = vld [vmem:[%s273 + $0x530] sm:$0xf]
        %v686 = vld [vmem:[%s273 + $0x534] sm:$0xf]
        %v687 = vld [vmem:[%s273 + $0x538] sm:$0xf]
        %v688 = vld [vmem:[%s273 + $0x53c] sm:$0xf]
        %v689 = vld [vmem:[%s273 + $0x540] sm:$0xf]
        %v690 = vld [vmem:[%s273 + $0x544] sm:$0xf]
        %v691 = vld [vmem:[%s273 + $0x548] sm:$0xf]
        %v692 = vld [vmem:[%s273 + $0x54c] sm:$0xf]
        %v693 = vld [vmem:[%s273 + $0x550] sm:$0xf]
        %v694 = vld [vmem:[%s273 + $0x554] sm:$0xf]
        %v695 = vld [vmem:[%s273 + $0x558] sm:$0xf]
        %v696 = vld [vmem:[%s273 + $0x55c] sm:$0xf]
        %v697 = vld [vmem:[%s273 + $0x560] sm:$0xf]
        %v698 = vld [vmem:[%s273 + $0x564] sm:$0xf]
        %v699 = vld [vmem:[%s273 + $0x568] sm:$0xf]
        %v700 = vld [vmem:[%s273 + $0x56c] sm:$0xf]
        %v701 = vld [vmem:[%s273 + $0x570] sm:$0xf]
        %v702 = vld [vmem:[%s273 + $0x574] sm:$0xf]
        %v703 = vld [vmem:[%s273 + $0x578] sm:$0xf]
        %v704 = vld [vmem:[%s273 + $0x57c] sm:$0xf]
        %v705 = vld [vmem:[%s273 + $0x580] sm:$0xf]
        %v706 = vld [vmem:[%s273 + $0x584] sm:$0xf]
        %v707 = vld [vmem:[%s273 + $0x588] sm:$0xf]
        %v708 = vld [vmem:[%s273 + $0x58c] sm:$0xf]
        %v709 = vld [vmem:[%s273 + $0x590] sm:$0xf]
        %v710 = vld [vmem:[%s273 + $0x594] sm:$0xf]
        %v711 = vld [vmem:[%s273 + $0x598] sm:$0xf]
        %v712 = vld [vmem:[%s273 + $0x59c] sm:$0xf]
        %v713 = vld [vmem:[%s273 + $0x5a0] sm:$0xf]
        %v714 = vld [vmem:[%s273 + $0x5a4] sm:$0xf]
        %v715 = vld [vmem:[%s273 + $0x5a8] sm:$0xf]
        %v716 = vld [vmem:[%s273 + $0x5ac] sm:$0xf]
        %v717 = vld [vmem:[%s273 + $0x5b0] sm:$0xf]
        %v718 = vld [vmem:[%s273 + $0x5b4] sm:$0xf]
        %v719 = vld [vmem:[%s273 + $0x5b8] sm:$0xf]
        %v720 = vld [vmem:[%s273 + $0x5bc] sm:$0xf]
        %v721 = vld [vmem:[%s273 + $0x5c0] sm:$0xf]
        %v722 = vld [vmem:[%s273 + $0x5c4] sm:$0xf]
        %v723 = vld [vmem:[%s273 + $0x5c8] sm:$0xf]
        %v724 = vld [vmem:[%s273 + $0x5cc] sm:$0xf]
        %v725 = vld [vmem:[%s273 + $0x5d0] sm:$0xf]
        %v726 = vld [vmem:[%s273 + $0x5d4] sm:$0xf]
        %v727 = vld [vmem:[%s273 + $0x5d8] sm:$0xf]
        %v728 = vld [vmem:[%s273 + $0x5dc] sm:$0xf]
        %v729 = vld [vmem:[%s273 + $0x5e0] sm:$0xf]
        %v730 = vld [vmem:[%s273 + $0x5e4] sm:$0xf]
        %v731 = vld [vmem:[%s273 + $0x5e8] sm:$0xf]
        %v732 = vld [vmem:[%s273 + $0x5ec] sm:$0xf]
        %v733 = vld [vmem:[%s273 + $0x5f0] sm:$0xf]
        %v734 = vld [vmem:[%s273 + $0x5f4] sm:$0xf]
        %v735 = vld [vmem:[%s273 + $0x5f8] sm:$0xf]
        %v736 = vld [vmem:[%s273 + $0x5fc] sm:$0xf]
        %v737 = vld [vmem:[%s273 + $0x600] sm:$0xf]
        %v738 = vld [vmem:[%s273 + $0x604] sm:$0xf]
        %v739 = vld [vmem:[%s273 + $0x608] sm:$0xf]
        %v740 = vld [vmem:[%s273 + $0x60c] sm:$0xf]
        %v741 = vld [vmem:[%s273 + $0x610] sm:$0xf]
        %v742 = vld [vmem:[%s273 + $0x614] sm:$0xf]
        %v743 = vld [vmem:[%s273 + $0x618] sm:$0xf]
        %v744 = vld [vmem:[%s273 + $0x61c] sm:$0xf]
        %v745 = vld [vmem:[%s273 + $0x620] sm:$0xf]
        %v746 = vld [vmem:[%s273 + $0x624] sm:$0xf]
        %v747 = vld [vmem:[%s273 + $0x628] sm:$0xf]
        %v748 = vld [vmem:[%s273 + $0x62c] sm:$0xf]
        %v749 = vld [vmem:[%s273 + $0x630] sm:$0xf]
        %v750 = vld [vmem:[%s273 + $0x634] sm:$0xf]
        %v751 = vld [vmem:[%s273 + $0x638] sm:$0xf]
        %v752 = vld [vmem:[%s273 + $0x63c] sm:$0xf]
        %v753 = vld [vmem:[%s273 + $0x640] sm:$0xf]
        %v754 = vld [vmem:[%s273 + $0x644] sm:$0xf]
        %v755 = vld [vmem:[%s273 + $0x648] sm:$0xf]
        %v756 = vld [vmem:[%s273 + $0x64c] sm:$0xf]
        %v757 = vld [vmem:[%s273 + $0x650] sm:$0xf]
        %v758 = vld [vmem:[%s273 + $0x654] sm:$0xf]
        %v759 = vld [vmem:[%s273 + $0x658] sm:$0xf]
        %v760 = vld [vmem:[%s273 + $0x65c] sm:$0xf]
        %v761 = vld [vmem:[%s273 + $0x660] sm:$0xf]
        %v762 = vld [vmem:[%s273 + $0x664] sm:$0xf]
        %v763 = vld [vmem:[%s273 + $0x668] sm:$0xf]
        %v764 = vld [vmem:[%s273 + $0x66c] sm:$0xf]
        %v765 = vld [vmem:[%s273 + $0x670] sm:$0xf]
        %v766 = vld [vmem:[%s273 + $0x674] sm:$0xf]
        %v767 = vld [vmem:[%s273 + $0x678] sm:$0xf]
        %v768 = vld [vmem:[%s273 + $0x67c] sm:$0xf]
        %v769 = vld [vmem:[%s273 + $0x680] sm:$0xf]
        %v770 = vld [vmem:[%s273 + $0x684] sm:$0xf]
        %v771 = vld [vmem:[%s273 + $0x688] sm:$0xf]
        %v772 = vld [vmem:[%s273 + $0x68c] sm:$0xf]
        %v773 = vld [vmem:[%s273 + $0x690] sm:$0xf]
        %v774 = vld [vmem:[%s273 + $0x694] sm:$0xf]
        %v775 = vld [vmem:[%s273 + $0x698] sm:$0xf]
        %v776 = vld [vmem:[%s273 + $0x69c] sm:$0xf]
        %v777 = vld [vmem:[%s273 + $0x6a0] sm:$0xf]
        %v778 = vld [vmem:[%s273 + $0x6a4] sm:$0xf]
        %v779 = vld [vmem:[%s273 + $0x6a8] sm:$0xf]
        %v780 = vld [vmem:[%s273 + $0x6ac] sm:$0xf]
        %v781 = vld [vmem:[%s273 + $0x6b0] sm:$0xf]
        %v782 = vld [vmem:[%s273 + $0x6b4] sm:$0xf]
        %v783 = vld [vmem:[%s273 + $0x6b8] sm:$0xf]
        %v784 = vld [vmem:[%s273 + $0x6bc] sm:$0xf]
        %v785 = vld [vmem:[%s273 + $0x6c0] sm:$0xf]
        %v786 = vld [vmem:[%s273 + $0x6c4] sm:$0xf]
        %v787 = vld [vmem:[%s273 + $0x6c8] sm:$0xf]
        %v788 = vld [vmem:[%s273 + $0x6cc] sm:$0xf]
        %v789 = vld [vmem:[%s273 + $0x6d0] sm:$0xf]
        %v790 = vld [vmem:[%s273 + $0x6d4] sm:$0xf]
        %v791 = vld [vmem:[%s273 + $0x6d8] sm:$0xf]
        %v792 = vld [vmem:[%s273 + $0x6dc] sm:$0xf]
        %v793 = vld [vmem:[%s273 + $0x6e0] sm:$0xf]
        %v794 = vld [vmem:[%s273 + $0x6e4] sm:$0xf]
        %v795 = vld [vmem:[%s273 + $0x6e8] sm:$0xf]
        %v796 = vld [vmem:[%s273 + $0x6ec] sm:$0xf]
        %v797 = vld [vmem:[%s273 + $0x6f0] sm:$0xf]
        %v798 = vld [vmem:[%s273 + $0x6f4] sm:$0xf]
        %v799 = vld [vmem:[%s273 + $0x6f8] sm:$0xf]
        %v800 = vld [vmem:[%s273 + $0x6fc] sm:$0xf]
        %v801 = vld [vmem:[%s273 + $0x700] sm:$0xf]
        %v802 = vld [vmem:[%s273 + $0x704] sm:$0xf]
        %v803 = vld [vmem:[%s273 + $0x708] sm:$0xf]
        %v804 = vld [vmem:[%s273 + $0x70c] sm:$0xf]
        %v805 = vld [vmem:[%s273 + $0x710] sm:$0xf]
        %v806 = vld [vmem:[%s273 + $0x714] sm:$0xf]
        %v807 = vld [vmem:[%s273 + $0x718] sm:$0xf]
        %v808 = vld [vmem:[%s273 + $0x71c] sm:$0xf]
        %v809 = vld [vmem:[%s273 + $0x720] sm:$0xf]
        %v810 = vld [vmem:[%s273 + $0x724] sm:$0xf]
        %v811 = vld [vmem:[%s273 + $0x728] sm:$0xf]
        %v812 = vld [vmem:[%s273 + $0x72c] sm:$0xf]
        %v813 = vld [vmem:[%s273 + $0x730] sm:$0xf]
        %v814 = vld [vmem:[%s273 + $0x734] sm:$0xf]
        %v815 = vld [vmem:[%s273 + $0x738] sm:$0xf]
        %v816 = vld [vmem:[%s273 + $0x73c] sm:$0xf]
        %v817 = vld [vmem:[%s273 + $0x740] sm:$0xf]
        %v818 = vld [vmem:[%s273 + $0x744] sm:$0xf]
        %v819 = vld [vmem:[%s273 + $0x748] sm:$0xf]
        %v820 = vld [vmem:[%s273 + $0x74c] sm:$0xf]
        %v821 = vld [vmem:[%s273 + $0x750] sm:$0xf]
        %v822 = vld [vmem:[%s273 + $0x754] sm:$0xf]
        %v823 = vld [vmem:[%s273 + $0x758] sm:$0xf]
        %v824 = vld [vmem:[%s273 + $0x75c] sm:$0xf]
        %v825 = vld [vmem:[%s273 + $0x760] sm:$0xf]
        %v826 = vld [vmem:[%s273 + $0x764] sm:$0xf]
        %v827 = vld [vmem:[%s273 + $0x768] sm:$0xf]
        %v828 = vld [vmem:[%s273 + $0x76c] sm:$0xf]
        %v829 = vld [vmem:[%s273 + $0x770] sm:$0xf]
        %v830 = vld [vmem:[%s273 + $0x774] sm:$0xf]
        %v831 = vld [vmem:[%s273 + $0x778] sm:$0xf]
        %v832 = vld [vmem:[%s273 + $0x77c] sm:$0xf]
        %v833 = vld [vmem:[%s273 + $0x780] sm:$0xf]
        %v834 = vld [vmem:[%s273 + $0x784] sm:$0xf]
        %v835 = vld [vmem:[%s273 + $0x788] sm:$0xf]
        %v836 = vld [vmem:[%s273 + $0x78c] sm:$0xf]
        %v837 = vld [vmem:[%s273 + $0x790] sm:$0xf]
        %v838 = vld [vmem:[%s273 + $0x794] sm:$0xf]
        %v839 = vld [vmem:[%s273 + $0x798] sm:$0xf]
        %v840 = vld [vmem:[%s273 + $0x79c] sm:$0xf]
        %v841 = vld [vmem:[%s273 + $0x7a0] sm:$0xf]
        %v842 = vld [vmem:[%s273 + $0x7a4] sm:$0xf]
        %v843 = vld [vmem:[%s273 + $0x7a8] sm:$0xf]
        %v844 = vld [vmem:[%s273 + $0x7ac] sm:$0xf]
        %v845 = vld [vmem:[%s273 + $0x7b0] sm:$0xf]
        %v846 = vld [vmem:[%s273 + $0x7b4] sm:$0xf]
        %v847 = vld [vmem:[%s273 + $0x7b8] sm:$0xf]
        %v848 = vld [vmem:[%s273 + $0x7bc] sm:$0xf]
        %v849 = vld [vmem:[%s273 + $0x7c0] sm:$0xf]
        %v850 = vld [vmem:[%s273 + $0x7c4] sm:$0xf]
        %v851 = vld [vmem:[%s273 + $0x7c8] sm:$0xf]
        %v852 = vld [vmem:[%s273 + $0x7cc] sm:$0xf]
        %v853 = vld [vmem:[%s273 + $0x7d0] sm:$0xf]
        %v854 = vld [vmem:[%s273 + $0x7d4] sm:$0xf]
        %v855 = vld [vmem:[%s273 + $0x7d8] sm:$0xf]
        %v856 = vld [vmem:[%s273 + $0x7dc] sm:$0xf]
        %v857 = vld [vmem:[%s273 + $0x7e0] sm:$0xf]
        %v858 = vld [vmem:[%s273 + $0x7e4] sm:$0xf]
        %v859 = vld [vmem:[%s273 + $0x7e8] sm:$0xf]
        %v860 = vld [vmem:[%s273 + $0x7ec] sm:$0xf]
        %v861 = vld [vmem:[%s273 + $0x7f0] sm:$0xf]
        %v862 = vld [vmem:[%s273 + $0x7f4] sm:$0xf]
        %v863 = vld [vmem:[%s273 + $0x7f8] sm:$0xf]
        %v864 = vld [vmem:[%s273 + $0x7fc] sm:$0xf]
        %v865 = vld [vmem:[%s273 + $0x800] sm:$0xf]
        %v866 = vld [vmem:[%s273 + $0x804] sm:$0xf]
        %v867 = vld [vmem:[%s273 + $0x808] sm:$0xf]
        %v868 = vld [vmem:[%s273 + $0x80c] sm:$0xf]
        %v869 = vld [vmem:[%s273 + $0x810] sm:$0xf]
        %v870 = vld [vmem:[%s273 + $0x814] sm:$0xf]
        %v871 = vld [vmem:[%s273 + $0x818] sm:$0xf]
        %v872 = vld [vmem:[%s273 + $0x81c] sm:$0xf]
        %v873 = vld [vmem:[%s273 + $0x820] sm:$0xf]
        %v874 = vld [vmem:[%s273 + $0x824] sm:$0xf]
        %v875 = vld [vmem:[%s273 + $0x828] sm:$0xf]
        %v876 = vld [vmem:[%s273 + $0x82c] sm:$0xf]
        %v877 = vld [vmem:[%s273 + $0x830] sm:$0xf]
        %v878 = vld [vmem:[%s273 + $0x834] sm:$0xf]
        %v879 = vld [vmem:[%s273 + $0x838] sm:$0xf]
        %v880 = vld [vmem:[%s273 + $0x83c] sm:$0xf]
        %v881 = vld [vmem:[%s273 + $0x840] sm:$0xf]
        %v882 = vld [vmem:[%s273 + $0x844] sm:$0xf]
        %v883 = vld [vmem:[%s273 + $0x848] sm:$0xf]
        %v884 = vld [vmem:[%s273 + $0x84c] sm:$0xf]
        %v885 = vld [vmem:[%s273 + $0x850] sm:$0xf]
        %v886 = vld [vmem:[%s273 + $0x854] sm:$0xf]
        %v887 = vld [vmem:[%s273 + $0x858] sm:$0xf]
        %v888 = vld [vmem:[%s273 + $0x85c] sm:$0xf]
        %v889 = vld [vmem:[%s273 + $0x860] sm:$0xf]
        %v890 = vld [vmem:[%s273 + $0x864] sm:$0xf]
        %v891 = vld [vmem:[%s273 + $0x868] sm:$0xf]
        %v892 = vld [vmem:[%s273 + $0x86c] sm:$0xf]
        %v893 = vld [vmem:[%s273 + $0x870] sm:$0xf]
        %v894 = vld [vmem:[%s273 + $0x874] sm:$0xf]
        %v895 = vld [vmem:[%s273 + $0x878] sm:$0xf]
        %v896 = vld [vmem:[%s273 + $0x87c] sm:$0xf]
        %v897 = vld [vmem:[%s273 + $0x880] sm:$0xf]
        %v898 = vld [vmem:[%s273 + $0x884] sm:$0xf]
        %v899 = vld [vmem:[%s273 + $0x888] sm:$0xf]
        %v900 = vld [vmem:[%s273 + $0x88c] sm:$0xf]
        %v901 = vld [vmem:[%s273 + $0x890] sm:$0xf]
        %v902 = vld [vmem:[%s273 + $0x894] sm:$0xf]
        %v903 = vld [vmem:[%s273 + $0x898] sm:$0xf]
        %v904 = vld [vmem:[%s273 + $0x89c] sm:$0xf]
        %v905 = vld [vmem:[%s273 + $0x8a0] sm:$0xf]
        %v906 = vld [vmem:[%s273 + $0x8a4] sm:$0xf]
        %v907 = vld [vmem:[%s273 + $0x8a8] sm:$0xf]
        %v908 = vld [vmem:[%s273 + $0x8ac] sm:$0xf]
        %v909 = vld [vmem:[%s273 + $0x8b0] sm:$0xf]
        %v910 = vld [vmem:[%s273 + $0x8b4] sm:$0xf]
        %v911 = vld [vmem:[%s273 + $0x8b8] sm:$0xf]
        %v912 = vld [vmem:[%s273 + $0x8bc] sm:$0xf]
        %v913 = vld [vmem:[%s273 + $0x8c0] sm:$0xf]
        %v914 = vld [vmem:[%s273 + $0x8c4] sm:$0xf]
        %v915 = vld [vmem:[%s273 + $0x8c8] sm:$0xf]
        %v916 = vld [vmem:[%s273 + $0x8cc] sm:$0xf]
        %v917 = vld [vmem:[%s273 + $0x8d0] sm:$0xf]
        %v918 = vld [vmem:[%s273 + $0x8d4] sm:$0xf]
        %v919 = vld [vmem:[%s273 + $0x8d8] sm:$0xf]
        %v920 = vld [vmem:[%s273 + $0x8dc] sm:$0xf]
        %v921 = vld [vmem:[%s273 + $0x8e0] sm:$0xf]
        %v922 = vld [vmem:[%s273 + $0x8e4] sm:$0xf]
        %v923 = vld [vmem:[%s273 + $0x8e8] sm:$0xf]
        %v924 = vld [vmem:[%s273 + $0x8ec] sm:$0xf]
        %v925 = vld [vmem:[%s273 + $0x8f0] sm:$0xf]
        %v926 = vld [vmem:[%s273 + $0x8f4] sm:$0xf]
        %v927 = vld [vmem:[%s273 + $0x8f8] sm:$0xf]
        %v928 = vld [vmem:[%s273 + $0x8fc] sm:$0xf]
        %v929 = vld [vmem:[%s273 + $0x900] sm:$0xf]
        %v930 = vld [vmem:[%s273 + $0x904] sm:$0xf]
        %v931 = vld [vmem:[%s273 + $0x908] sm:$0xf]
        %v932 = vld [vmem:[%s273 + $0x90c] sm:$0xf]
        %v933 = vld [vmem:[%s273 + $0x910] sm:$0xf]
        %v934 = vld [vmem:[%s273 + $0x914] sm:$0xf]
        %v935 = vld [vmem:[%s273 + $0x918] sm:$0xf]
        %v936 = vld [vmem:[%s273 + $0x91c] sm:$0xf]
        %v937 = vld [vmem:[%s273 + $0x920] sm:$0xf]
        %v938 = vld [vmem:[%s273 + $0x924] sm:$0xf]
        %v939 = vld [vmem:[%s273 + $0x928] sm:$0xf]
        %v940 = vld [vmem:[%s273 + $0x92c] sm:$0xf]
        %v941 = vld [vmem:[%s273 + $0x930] sm:$0xf]
        %v942 = vld [vmem:[%s273 + $0x934] sm:$0xf]
        %v943 = vld [vmem:[%s273 + $0x938] sm:$0xf]
        %v944 = vld [vmem:[%s273 + $0x93c] sm:$0xf]
        %v945 = vld [vmem:[%s273 + $0x940] sm:$0xf]
        %v946 = vld [vmem:[%s273 + $0x944] sm:$0xf]
        %v947 = vld [vmem:[%s273 + $0x948] sm:$0xf]
        %v948 = vld [vmem:[%s273 + $0x94c] sm:$0xf]
        %v949 = vld [vmem:[%s273 + $0x950] sm:$0xf]
        %v950 = vld [vmem:[%s273 + $0x954] sm:$0xf]
        %v951 = vld [vmem:[%s273 + $0x958] sm:$0xf]
        %v952 = vld [vmem:[%s273 + $0x95c] sm:$0xf]
        %v953 = vld [vmem:[%s273 + $0x960] sm:$0xf]
        %v954 = vld [vmem:[%s273 + $0x964] sm:$0xf]
        %v955 = vld [vmem:[%s273 + $0x968] sm:$0xf]
        %v956 = vld [vmem:[%s273 + $0x96c] sm:$0xf]
        %v957 = vld [vmem:[%s273 + $0x970] sm:$0xf]
        %v958 = vld [vmem:[%s273 + $0x974] sm:$0xf]
        %v959 = vld [vmem:[%s273 + $0x978] sm:$0xf]
        %v960 = vld [vmem:[%s273 + $0x97c] sm:$0xf]
        %v961 = vld [vmem:[%s273 + $0x980] sm:$0xf]
        %v962 = vld [vmem:[%s273 + $0x984] sm:$0xf]
        %v963 = vld [vmem:[%s273 + $0x988] sm:$0xf]
        %v964 = vld [vmem:[%s273 + $0x98c] sm:$0xf]
        %v965 = vld [vmem:[%s273 + $0x990] sm:$0xf]
        %v966 = vld [vmem:[%s273 + $0x994] sm:$0xf]
        %v967 = vld [vmem:[%s273 + $0x998] sm:$0xf]
        %v968 = vld [vmem:[%s273 + $0x99c] sm:$0xf]
        %v969 = vld [vmem:[%s273 + $0x9a0] sm:$0xf]
        %v970 = vld [vmem:[%s273 + $0x9a4] sm:$0xf]
        %v971 = vld [vmem:[%s273 + $0x9a8] sm:$0xf]
        %v972 = vld [vmem:[%s273 + $0x9ac] sm:$0xf]
        %v973 = vld [vmem:[%s273 + $0x9b0] sm:$0xf]
        %v974 = vld [vmem:[%s273 + $0x9b4] sm:$0xf]
        %v975 = vld [vmem:[%s273 + $0x9b8] sm:$0xf]
        %v976 = vld [vmem:[%s273 + $0x9bc] sm:$0xf]
        %v977 = vld [vmem:[%s273 + $0x9c0] sm:$0xf]
        %v978 = vld [vmem:[%s273 + $0x9c4] sm:$0xf]
        %v979 = vld [vmem:[%s273 + $0x9c8] sm:$0xf]
        %v980 = vld [vmem:[%s273 + $0x9cc] sm:$0xf]
        %v981 = vld [vmem:[%s273 + $0x9d0] sm:$0xf]
        %v982 = vld [vmem:[%s273 + $0x9d4] sm:$0xf]
        %v983 = vld [vmem:[%s273 + $0x9d8] sm:$0xf]
        %v984 = vld [vmem:[%s273 + $0x9dc] sm:$0xf]
        %v985 = vld [vmem:[%s273 + $0x9e0] sm:$0xf]
        %v986 = vld [vmem:[%s273 + $0x9e4] sm:$0xf]
        %v987 = vld [vmem:[%s273 + $0x9e8] sm:$0xf]
        %v988 = vld [vmem:[%s273 + $0x9ec] sm:$0xf]
        %v989 = vld [vmem:[%s273 + $0x9f0] sm:$0xf]
        %v990 = vld [vmem:[%s273 + $0x9f4] sm:$0xf]
        %v991 = vld [vmem:[%s273 + $0x9f8] sm:$0xf]
        %v992 = vld [vmem:[%s273 + $0x9fc] sm:$0xf]
        %v993 = vld [vmem:[%s273 + $0xa00] sm:$0xf]
        %v994 = vld [vmem:[%s273 + $0xa04] sm:$0xf]
        %v995 = vld [vmem:[%s273 + $0xa08] sm:$0xf]
        %v996 = vld [vmem:[%s273 + $0xa0c] sm:$0xf]
        %v997 = vld [vmem:[%s273 + $0xa10] sm:$0xf]
        %v998 = vld [vmem:[%s273 + $0xa14] sm:$0xf]
        %v999 = vld [vmem:[%s273 + $0xa18] sm:$0xf]
        %v1000 = vld [vmem:[%s273 + $0xa1c] sm:$0xf]
        %v1001 = vld [vmem:[%s273 + $0xa20] sm:$0xf]
        %v1002 = vld [vmem:[%s273 + $0xa24] sm:$0xf]
        %v1003 = vld [vmem:[%s273 + $0xa28] sm:$0xf]
        %v1004 = vld [vmem:[%s273 + $0xa2c] sm:$0xf]
        %v1005 = vld [vmem:[%s273 + $0xa30] sm:$0xf]
        %v1006 = vld [vmem:[%s273 + $0xa34] sm:$0xf]
        %v1007 = vld [vmem:[%s273 + $0xa38] sm:$0xf]
        %v1008 = vld [vmem:[%s273 + $0xa3c] sm:$0xf]
        %v1009 = vld [vmem:[%s273 + $0xa40] sm:$0xf]
        %v1010 = vld [vmem:[%s273 + $0xa44] sm:$0xf]
        %v1011 = vld [vmem:[%s273 + $0xa48] sm:$0xf]
        %v1012 = vld [vmem:[%s273 + $0xa4c] sm:$0xf]
        %v1013 = vld [vmem:[%s273 + $0xa50] sm:$0xf]
        %v1014 = vld [vmem:[%s273 + $0xa54] sm:$0xf]
        %v1015 = vld [vmem:[%s273 + $0xa58] sm:$0xf]
        %v1016 = vld [vmem:[%s273 + $0xa5c] sm:$0xf]
        %v1017 = vld [vmem:[%s273 + $0xa60] sm:$0xf]
        %v1018 = vld [vmem:[%s273 + $0xa64] sm:$0xf]
        %v1019 = vld [vmem:[%s273 + $0xa68] sm:$0xf]
        %v1020 = vld [vmem:[%s273 + $0xa6c] sm:$0xf]
        %v1021 = vld [vmem:[%s273 + $0xa70] sm:$0xf]
        %v1022 = vld [vmem:[%s273 + $0xa74] sm:$0xf]
        %v1023 = vld [vmem:[%s273 + $0xa78] sm:$0xf]
        %v1024 = vld [vmem:[%s273 + $0xa7c] sm:$0xf]
        %v1025 = vld [vmem:[%s273 + $0xa80] sm:$0xf]
        %v1026 = vld [vmem:[%s273 + $0xa84] sm:$0xf]
        %v1027 = vld [vmem:[%s273 + $0xa88] sm:$0xf]
        %v1028 = vld [vmem:[%s273 + $0xa8c] sm:$0xf]
        %v1029 = vld [vmem:[%s273 + $0xa90] sm:$0xf]
        %v1030 = vld [vmem:[%s273 + $0xa94] sm:$0xf]
        %v1031 = vld [vmem:[%s273 + $0xa98] sm:$0xf]
        %v1032 = vld [vmem:[%s273 + $0xa9c] sm:$0xf]
        %v1033 = vld [vmem:[%s273 + $0xaa0] sm:$0xf]
        %v1034 = vld [vmem:[%s273 + $0xaa4] sm:$0xf]
        %v1035 = vld [vmem:[%s273 + $0xaa8] sm:$0xf]
        %v1036 = vld [vmem:[%s273 + $0xaac] sm:$0xf]
        %v1037 = vld [vmem:[%s273 + $0xab0] sm:$0xf]
        %v1038 = vld [vmem:[%s273 + $0xab4] sm:$0xf]
        %v1039 = vld [vmem:[%s273 + $0xab8] sm:$0xf]
        %v1040 = vld [vmem:[%s273 + $0xabc] sm:$0xf]
        %v1041 = vld [vmem:[%s273 + $0xac0] sm:$0xf]
        %v1042 = vld [vmem:[%s273 + $0xac4] sm:$0xf]
        %v1043 = vld [vmem:[%s273 + $0xac8] sm:$0xf]
        %v1044 = vld [vmem:[%s273 + $0xacc] sm:$0xf]
        %v1045 = vld [vmem:[%s273 + $0xad0] sm:$0xf]
        %v1046 = vld [vmem:[%s273 + $0xad4] sm:$0xf]
        %v1047 = vld [vmem:[%s273 + $0xad8] sm:$0xf]
        %v1048 = vld [vmem:[%s273 + $0xadc] sm:$0xf]
        %v1049 = vld [vmem:[%s273 + $0xae0] sm:$0xf]
        %v1050 = vld [vmem:[%s273 + $0xae4] sm:$0xf]
        %v1051 = vld [vmem:[%s273 + $0xae8] sm:$0xf]
        %v1052 = vld [vmem:[%s273 + $0xaec] sm:$0xf]
        %v1053 = vld [vmem:[%s273 + $0xaf0] sm:$0xf]
        %v1054 = vld [vmem:[%s273 + $0xaf4] sm:$0xf]
        %v1055 = vld [vmem:[%s273 + $0xaf8] sm:$0xf]
        %v1056 = vld [vmem:[%s273 + $0xafc] sm:$0xf]
        %v1057 = vld [vmem:[%s273 + $0xb00] sm:$0xf]
        %v1058 = vld [vmem:[%s273 + $0xb04] sm:$0xf]
        %v1059 = vld [vmem:[%s273 + $0xb08] sm:$0xf]
        %v1060 = vld [vmem:[%s273 + $0xb0c] sm:$0xf]
        %v1061 = vld [vmem:[%s273 + $0xb10] sm:$0xf]
        %v1062 = vld [vmem:[%s273 + $0xb14] sm:$0xf]
        %v1063 = vld [vmem:[%s273 + $0xb18] sm:$0xf]
        %v1064 = vld [vmem:[%s273 + $0xb1c] sm:$0xf]
        %v1065 = vld [vmem:[%s273 + $0xb20] sm:$0xf]
        %v1066 = vld [vmem:[%s273 + $0xb24] sm:$0xf]
        %v1067 = vld [vmem:[%s273 + $0xb28] sm:$0xf]
        %v1068 = vld [vmem:[%s273 + $0xb2c] sm:$0xf]
        %v1069 = vld [vmem:[%s273 + $0xb30] sm:$0xf]
        %v1070 = vld [vmem:[%s273 + $0xb34] sm:$0xf]
        %v1071 = vld [vmem:[%s273 + $0xb38] sm:$0xf]
        %v1072 = vld [vmem:[%s273 + $0xb3c] sm:$0xf]
        %v1073 = vld [vmem:[%s273 + $0xb40] sm:$0xf]
        %v1074 = vld [vmem:[%s273 + $0xb44] sm:$0xf]
        %v1075 = vld [vmem:[%s273 + $0xb48] sm:$0xf]
        %v1076 = vld [vmem:[%s273 + $0xb4c] sm:$0xf]
        %v1077 = vld [vmem:[%s273 + $0xb50] sm:$0xf]
        %v1078 = vld [vmem:[%s273 + $0xb54] sm:$0xf]
        %v1079 = vld [vmem:[%s273 + $0xb58] sm:$0xf]
        %v1080 = vld [vmem:[%s273 + $0xb5c] sm:$0xf]
        %v1081 = vld [vmem:[%s273 + $0xb60] sm:$0xf]
        %v1082 = vld [vmem:[%s273 + $0xb64] sm:$0xf]
        %v1083 = vld [vmem:[%s273 + $0xb68] sm:$0xf]
        %v1084 = vld [vmem:[%s273 + $0xb6c] sm:$0xf]
        %v1085 = vld [vmem:[%s273 + $0xb70] sm:$0xf]
        %v1086 = vld [vmem:[%s273 + $0xb74] sm:$0xf]
        %v1087 = vld [vmem:[%s273 + $0xb78] sm:$0xf]
        %v1088 = vld [vmem:[%s273 + $0xb7c] sm:$0xf]
        %v1089 = vld [vmem:[%s273 + $0xb80] sm:$0xf]
        %v1090 = vld [vmem:[%s273 + $0xb84] sm:$0xf]
        %v1091 = vld [vmem:[%s273 + $0xb88] sm:$0xf]
        %v1092 = vld [vmem:[%s273 + $0xb8c] sm:$0xf]
        %v1093 = vld [vmem:[%s273 + $0xb90] sm:$0xf]
        %v1094 = vld [vmem:[%s273 + $0xb94] sm:$0xf]
        %v1095 = vld [vmem:[%s273 + $0xb98] sm:$0xf]
        %v1096 = vld [vmem:[%s273 + $0xb9c] sm:$0xf]
        %v1097 = vld [vmem:[%s273 + $0xba0] sm:$0xf]
        %v1098 = vld [vmem:[%s273 + $0xba4] sm:$0xf]
        %v1099 = vld [vmem:[%s273 + $0xba8] sm:$0xf]
        %v1100 = vld [vmem:[%s273 + $0xbac] sm:$0xf]
        %v1101 = vld [vmem:[%s273 + $0xbb0] sm:$0xf]
        %v1102 = vld [vmem:[%s273 + $0xbb4] sm:$0xf]
        %v1103 = vld [vmem:[%s273 + $0xbb8] sm:$0xf]
        %v1104 = vld [vmem:[%s273 + $0xbbc] sm:$0xf]
        %v1105 = vld [vmem:[%s273 + $0xbc0] sm:$0xf]
        %v1106 = vld [vmem:[%s273 + $0xbc4] sm:$0xf]
        %v1107 = vld [vmem:[%s273 + $0xbc8] sm:$0xf]
        %v1108 = vld [vmem:[%s273 + $0xbcc] sm:$0xf]
        %v1109 = vld [vmem:[%s273 + $0xbd0] sm:$0xf]
        %v1110 = vld [vmem:[%s273 + $0xbd4] sm:$0xf]
        %v1111 = vld [vmem:[%s273 + $0xbd8] sm:$0xf]
        %v1112 = vld [vmem:[%s273 + $0xbdc] sm:$0xf]
        %v1113 = vld [vmem:[%s273 + $0xbe0] sm:$0xf]
        %v1114 = vld [vmem:[%s273 + $0xbe4] sm:$0xf]
        %v1115 = vld [vmem:[%s273 + $0xbe8] sm:$0xf]
        %v1116 = vld [vmem:[%s273 + $0xbec] sm:$0xf]
        %v1117 = vld [vmem:[%s273 + $0xbf0] sm:$0xf]
        %v1118 = vld [vmem:[%s273 + $0xbf4] sm:$0xf]
        %v1119 = vld [vmem:[%s273 + $0xbf8] sm:$0xf]
        %v1120 = vld [vmem:[%s273 + $0xbfc] sm:$0xf]
        %v1121 = vld [vmem:[%s273 + $0xc00] sm:$0xf]
        %v1122 = vld [vmem:[%s273 + $0xc04] sm:$0xf]
        %v1123 = vld [vmem:[%s273 + $0xc08] sm:$0xf]
        %v1124 = vld [vmem:[%s273 + $0xc0c] sm:$0xf]
        %v1125 = vld [vmem:[%s273 + $0xc10] sm:$0xf]
        %v1126 = vld [vmem:[%s273 + $0xc14] sm:$0xf]
        %v1127 = vld [vmem:[%s273 + $0xc18] sm:$0xf]
        %v1128 = vld [vmem:[%s273 + $0xc1c] sm:$0xf]
        %v1129 = vld [vmem:[%s273 + $0xc20] sm:$0xf]
        %v1130 = vld [vmem:[%s273 + $0xc24] sm:$0xf]
        %v1131 = vld [vmem:[%s273 + $0xc28] sm:$0xf]
        %v1132 = vld [vmem:[%s273 + $0xc2c] sm:$0xf]
        %v1133 = vld [vmem:[%s273 + $0xc30] sm:$0xf]
        %v1134 = vld [vmem:[%s273 + $0xc34] sm:$0xf]
        %v1135 = vld [vmem:[%s273 + $0xc38] sm:$0xf]
        %v1136 = vld [vmem:[%s273 + $0xc3c] sm:$0xf]
        %v1137 = vld [vmem:[%s273 + $0xc40] sm:$0xf]
        %v1138 = vld [vmem:[%s273 + $0xc44] sm:$0xf]
        %v1139 = vld [vmem:[%s273 + $0xc48] sm:$0xf]
        %v1140 = vld [vmem:[%s273 + $0xc4c] sm:$0xf]
        %v1141 = vld [vmem:[%s273 + $0xc50] sm:$0xf]
        %v1142 = vld [vmem:[%s273 + $0xc54] sm:$0xf]
        %v1143 = vld [vmem:[%s273 + $0xc58] sm:$0xf]
        %v1144 = vld [vmem:[%s273 + $0xc5c] sm:$0xf]
        %v1145 = vld [vmem:[%s273 + $0xc60] sm:$0xf]
        %v1146 = vld [vmem:[%s273 + $0xc64] sm:$0xf]
        %v1147 = vld [vmem:[%s273 + $0xc68] sm:$0xf]
        %v1148 = vld [vmem:[%s273 + $0xc6c] sm:$0xf]
        %v1149 = vld [vmem:[%s273 + $0xc70] sm:$0xf]
        %v1150 = vld [vmem:[%s273 + $0xc74] sm:$0xf]
        %v1151 = vld [vmem:[%s273 + $0xc78] sm:$0xf]
        %v1152 = vld [vmem:[%s273 + $0xc7c] sm:$0xf]
        %v1153 = vld [vmem:[%s273 + $0xc80] sm:$0xf]
        %v1154 = vld [vmem:[%s273 + $0xc84] sm:$0xf]
        %v1155 = vld [vmem:[%s273 + $0xc88] sm:$0xf]
        %v1156 = vld [vmem:[%s273 + $0xc8c] sm:$0xf]
        %v1157 = vld [vmem:[%s273 + $0xc90] sm:$0xf]
        %v1158 = vld [vmem:[%s273 + $0xc94] sm:$0xf]
        %v1159 = vld [vmem:[%s273 + $0xc98] sm:$0xf]
        %v1160 = vld [vmem:[%s273 + $0xc9c] sm:$0xf]
        %v1161 = vld [vmem:[%s273 + $0xca0] sm:$0xf]
        %v1162 = vld [vmem:[%s273 + $0xca4] sm:$0xf]
        %v1163 = vld [vmem:[%s273 + $0xca8] sm:$0xf]
        %v1164 = vld [vmem:[%s273 + $0xcac] sm:$0xf]
        %v1165 = vld [vmem:[%s273 + $0xcb0] sm:$0xf]
        %v1166 = vld [vmem:[%s273 + $0xcb4] sm:$0xf]
        %v1167 = vld [vmem:[%s273 + $0xcb8] sm:$0xf]
        %v1168 = vld [vmem:[%s273 + $0xcbc] sm:$0xf]
        %v1169 = vld [vmem:[%s273 + $0xcc0] sm:$0xf]
        %v1170 = vld [vmem:[%s273 + $0xcc4] sm:$0xf]
        %v1171 = vld [vmem:[%s273 + $0xcc8] sm:$0xf]
        %v1172 = vld [vmem:[%s273 + $0xccc] sm:$0xf]
        %v1173 = vld [vmem:[%s273 + $0xcd0] sm:$0xf]
        %v1174 = vld [vmem:[%s273 + $0xcd4] sm:$0xf]
        %v1175 = vld [vmem:[%s273 + $0xcd8] sm:$0xf]
        %v1176 = vld [vmem:[%s273 + $0xcdc] sm:$0xf]
        %v1177 = vld [vmem:[%s273 + $0xce0] sm:$0xf]
        %v1178 = vld [vmem:[%s273 + $0xce4] sm:$0xf]
        %v1179 = vld [vmem:[%s273 + $0xce8] sm:$0xf]
        %v1180 = vld [vmem:[%s273 + $0xcec] sm:$0xf]
        %v1181 = vld [vmem:[%s273 + $0xcf0] sm:$0xf]
        %v1182 = vld [vmem:[%s273 + $0xcf4] sm:$0xf]
        %v1183 = vld [vmem:[%s273 + $0xcf8] sm:$0xf]
        %v1184 = vld [vmem:[%s273 + $0xcfc] sm:$0xf]
        %v1185 = vld [vmem:[%s273 + $0xd00] sm:$0xf]
        %v1186 = vld [vmem:[%s273 + $0xd04] sm:$0xf]
        %v1187 = vld [vmem:[%s273 + $0xd08] sm:$0xf]
        %v1188 = vld [vmem:[%s273 + $0xd0c] sm:$0xf]
        %v1189 = vld [vmem:[%s273 + $0xd10] sm:$0xf]
        %v1190 = vld [vmem:[%s273 + $0xd14] sm:$0xf]
        %v1191 = vld [vmem:[%s273 + $0xd18] sm:$0xf]
        %v1192 = vld [vmem:[%s273 + $0xd1c] sm:$0xf]
        %v1193 = vld [vmem:[%s273 + $0xd20] sm:$0xf]
        %v1194 = vld [vmem:[%s273 + $0xd24] sm:$0xf]
        %v1195 = vld [vmem:[%s273 + $0xd28] sm:$0xf]
        %v1196 = vld [vmem:[%s273 + $0xd2c] sm:$0xf]
        %v1197 = vld [vmem:[%s273 + $0xd30] sm:$0xf]
        %v1198 = vld [vmem:[%s273 + $0xd34] sm:$0xf]
        %v1199 = vld [vmem:[%s273 + $0xd38] sm:$0xf]
        %v1200 = vld [vmem:[%s273 + $0xd3c] sm:$0xf]
        %v1201 = vld [vmem:[%s273 + $0xd40] sm:$0xf]
        %v1202 = vld [vmem:[%s273 + $0xd44] sm:$0xf]
        %v1203 = vld [vmem:[%s273 + $0xd48] sm:$0xf]
        %v1204 = vld [vmem:[%s273 + $0xd4c] sm:$0xf]
        %v1205 = vld [vmem:[%s273 + $0xd50] sm:$0xf]
        %v1206 = vld [vmem:[%s273 + $0xd54] sm:$0xf]
        %v1207 = vld [vmem:[%s273 + $0xd58] sm:$0xf]
        %v1208 = vld [vmem:[%s273 + $0xd5c] sm:$0xf]
        %v1209 = vld [vmem:[%s273 + $0xd60] sm:$0xf]
        %v1210 = vld [vmem:[%s273 + $0xd64] sm:$0xf]
        %v1211 = vld [vmem:[%s273 + $0xd68] sm:$0xf]
        %v1212 = vld [vmem:[%s273 + $0xd6c] sm:$0xf]
        %v1213 = vld [vmem:[%s273 + $0xd70] sm:$0xf]
        %v1214 = vld [vmem:[%s273 + $0xd74] sm:$0xf]
        %v1215 = vld [vmem:[%s273 + $0xd78] sm:$0xf]
        %v1216 = vld [vmem:[%s273 + $0xd7c] sm:$0xf]
        %v1217 = vld [vmem:[%s273 + $0xd80] sm:$0xf]
        %v1218 = vld [vmem:[%s273 + $0xd84] sm:$0xf]
        %v1219 = vld [vmem:[%s273 + $0xd88] sm:$0xf]
        %v1220 = vld [vmem:[%s273 + $0xd8c] sm:$0xf]
        %v1221 = vld [vmem:[%s273 + $0xd90] sm:$0xf]
        %v1222 = vld [vmem:[%s273 + $0xd94] sm:$0xf]
        %v1223 = vld [vmem:[%s273 + $0xd98] sm:$0xf]
        %v1224 = vld [vmem:[%s273 + $0xd9c] sm:$0xf]
        %v1225 = vld [vmem:[%s273 + $0xda0] sm:$0xf]
        %v1226 = vld [vmem:[%s273 + $0xda4] sm:$0xf]
        %v1227 = vld [vmem:[%s273 + $0xda8] sm:$0xf]
        %v1228 = vld [vmem:[%s273 + $0xdac] sm:$0xf]
        %v1229 = vld [vmem:[%s273 + $0xdb0] sm:$0xf]
        %v1230 = vld [vmem:[%s273 + $0xdb4] sm:$0xf]
        %v1231 = vld [vmem:[%s273 + $0xdb8] sm:$0xf]
        %v1232 = vld [vmem:[%s273 + $0xdbc] sm:$0xf]
        %v1233 = vld [vmem:[%s273 + $0xdc0] sm:$0xf]
        %v1234 = vld [vmem:[%s273 + $0xdc4] sm:$0xf]
        %v1235 = vld [vmem:[%s273 + $0xdc8] sm:$0xf]
        %v1236 = vld [vmem:[%s273 + $0xdcc] sm:$0xf]
        %v1237 = vld [vmem:[%s273 + $0xdd0] sm:$0xf]
        %v1238 = vld [vmem:[%s273 + $0xdd4] sm:$0xf]
        %v1239 = vld [vmem:[%s273 + $0xdd8] sm:$0xf]
        %v1240 = vld [vmem:[%s273 + $0xddc] sm:$0xf]
        %v1241 = vld [vmem:[%s273 + $0xde0] sm:$0xf]
        %v1242 = vld [vmem:[%s273 + $0xde4] sm:$0xf]
        %v1243 = vld [vmem:[%s273 + $0xde8] sm:$0xf]
        %v1244 = vld [vmem:[%s273 + $0xdec] sm:$0xf]
        %v1245 = vld [vmem:[%s273 + $0xdf0] sm:$0xf]
        %v1246 = vld [vmem:[%s273 + $0xdf4] sm:$0xf]
        %v1247 = vld [vmem:[%s273 + $0xdf8] sm:$0xf]
        %v1248 = vld [vmem:[%s273 + $0xdfc] sm:$0xf]
        %v1249 = vld [vmem:[%s273 + $0xe00] sm:$0xf]
        %v1250 = vld [vmem:[%s273 + $0xe04] sm:$0xf]
        %v1251 = vld [vmem:[%s273 + $0xe08] sm:$0xf]
        %v1252 = vld [vmem:[%s273 + $0xe0c] sm:$0xf]
        %v1253 = vld [vmem:[%s273 + $0xe10] sm:$0xf]
        %v1254 = vld [vmem:[%s273 + $0xe14] sm:$0xf]
        %v1255 = vld [vmem:[%s273 + $0xe18] sm:$0xf]
        %v1256 = vld [vmem:[%s273 + $0xe1c] sm:$0xf]
        %v1257 = vld [vmem:[%s273 + $0xe20] sm:$0xf]
        %v1258 = vld [vmem:[%s273 + $0xe24] sm:$0xf]
        %v1259 = vld [vmem:[%s273 + $0xe28] sm:$0xf]
        %v1260 = vld [vmem:[%s273 + $0xe2c] sm:$0xf]
        %v1261 = vld [vmem:[%s273 + $0xe30] sm:$0xf]
        %v1262 = vld [vmem:[%s273 + $0xe34] sm:$0xf]
        %v1263 = vld [vmem:[%s273 + $0xe38] sm:$0xf]
        %v1264 = vld [vmem:[%s273 + $0xe3c] sm:$0xf]
        %v1265 = vld [vmem:[%s273 + $0xe40] sm:$0xf]
        %v1266 = vld [vmem:[%s273 + $0xe44] sm:$0xf]
        %v1267 = vld [vmem:[%s273 + $0xe48] sm:$0xf]
        %v1268 = vld [vmem:[%s273 + $0xe4c] sm:$0xf]
        %v1269 = vld [vmem:[%s273 + $0xe50] sm:$0xf]
        %v1270 = vld [vmem:[%s273 + $0xe54] sm:$0xf]
        %v1271 = vld [vmem:[%s273 + $0xe58] sm:$0xf]
        %v1272 = vld [vmem:[%s273 + $0xe5c] sm:$0xf]
        %v1273 = vld [vmem:[%s273 + $0xe60] sm:$0xf]
        %v1274 = vld [vmem:[%s273 + $0xe64] sm:$0xf]
        %v1275 = vld [vmem:[%s273 + $0xe68] sm:$0xf]
        %v1276 = vld [vmem:[%s273 + $0xe6c] sm:$0xf]
        %v1277 = vld [vmem:[%s273 + $0xe70] sm:$0xf]
        %v1278 = vld [vmem:[%s273 + $0xe74] sm:$0xf]
        %v1279 = vld [vmem:[%s273 + $0xe78] sm:$0xf]
        %v1280 = vld [vmem:[%s273 + $0xe7c] sm:$0xf]
        %v1281 = vld [vmem:[%s273 + $0xe80] sm:$0xf]
        %v1282 = vld [vmem:[%s273 + $0xe84] sm:$0xf]
        %v1283 = vld [vmem:[%s273 + $0xe88] sm:$0xf]
        %v1284 = vld [vmem:[%s273 + $0xe8c] sm:$0xf]
        %v1285 = vld [vmem:[%s273 + $0xe90] sm:$0xf]
        %v1286 = vld [vmem:[%s273 + $0xe94] sm:$0xf]
        %v1287 = vld [vmem:[%s273 + $0xe98] sm:$0xf]
        %v1288 = vld [vmem:[%s273 + $0xe9c] sm:$0xf]
        %v1289 = vld [vmem:[%s273 + $0xea0] sm:$0xf]
        %v1290 = vld [vmem:[%s273 + $0xea4] sm:$0xf]
        %v1291 = vld [vmem:[%s273 + $0xea8] sm:$0xf]
        %v1292 = vld [vmem:[%s273 + $0xeac] sm:$0xf]
        %v1293 = vld [vmem:[%s273 + $0xeb0] sm:$0xf]
        %v1294 = vld [vmem:[%s273 + $0xeb4] sm:$0xf]
        %v1295 = vld [vmem:[%s273 + $0xeb8] sm:$0xf]
        %v1296 = vld [vmem:[%s273 + $0xebc] sm:$0xf]
        %v1297 = vld [vmem:[%s273 + $0xec0] sm:$0xf]
        %v1298 = vld [vmem:[%s273 + $0xec4] sm:$0xf]
        %v1299 = vld [vmem:[%s273 + $0xec8] sm:$0xf]
        %v1300 = vld [vmem:[%s273 + $0xecc] sm:$0xf]
        %v1301 = vld [vmem:[%s273 + $0xed0] sm:$0xf]
        %v1302 = vld [vmem:[%s273 + $0xed4] sm:$0xf]
        %v1303 = vld [vmem:[%s273 + $0xed8] sm:$0xf]
        %v1304 = vld [vmem:[%s273 + $0xedc] sm:$0xf]
        %v1305 = vld [vmem:[%s273 + $0xee0] sm:$0xf]
        %v1306 = vld [vmem:[%s273 + $0xee4] sm:$0xf]
        %v1307 = vld [vmem:[%s273 + $0xee8] sm:$0xf]
        %v1308 = vld [vmem:[%s273 + $0xeec] sm:$0xf]
        %v1309 = vld [vmem:[%s273 + $0xef0] sm:$0xf]
        %v1310 = vld [vmem:[%s273 + $0xef4] sm:$0xf]
        %v1311 = vld [vmem:[%s273 + $0xef8] sm:$0xf]
        %v1312 = vld [vmem:[%s273 + $0xefc] sm:$0xf]
        %v1313 = vld [vmem:[%s273 + $0xf00] sm:$0xf]
        %v1314 = vld [vmem:[%s273 + $0xf04] sm:$0xf]
        %v1315 = vld [vmem:[%s273 + $0xf08] sm:$0xf]
        %v1316 = vld [vmem:[%s273 + $0xf0c] sm:$0xf]
        %v1317 = vld [vmem:[%s273 + $0xf10] sm:$0xf]
        %v1318 = vld [vmem:[%s273 + $0xf14] sm:$0xf]
        %v1319 = vld [vmem:[%s273 + $0xf18] sm:$0xf]
        %v1320 = vld [vmem:[%s273 + $0xf1c] sm:$0xf]
        %v1321 = vld [vmem:[%s273 + $0xf20] sm:$0xf]
        %v1322 = vld [vmem:[%s273 + $0xf24] sm:$0xf]
        %v1323 = vld [vmem:[%s273 + $0xf28] sm:$0xf]
        %v1324 = vld [vmem:[%s273 + $0xf2c] sm:$0xf]
        %v1325 = vld [vmem:[%s273 + $0xf30] sm:$0xf]
        %v1326 = vld [vmem:[%s273 + $0xf34] sm:$0xf]
        %v1327 = vld [vmem:[%s273 + $0xf38] sm:$0xf]
        %v1328 = vld [vmem:[%s273 + $0xf3c] sm:$0xf]
        %v1329 = vld [vmem:[%s273 + $0xf40] sm:$0xf]
        %v1330 = vld [vmem:[%s273 + $0xf44] sm:$0xf]
        %v1331 = vld [vmem:[%s273 + $0xf48] sm:$0xf]
        %v1332 = vld [vmem:[%s273 + $0xf4c] sm:$0xf]
        %v1333 = vld [vmem:[%s273 + $0xf50] sm:$0xf]
        %v1334 = vld [vmem:[%s273 + $0xf54] sm:$0xf]
        %v1335 = vld [vmem:[%s273 + $0xf58] sm:$0xf]
        %v1336 = vld [vmem:[%s273 + $0xf5c] sm:$0xf]
        %v1337 = vld [vmem:[%s273 + $0xf60] sm:$0xf]
        %v1338 = vld [vmem:[%s273 + $0xf64] sm:$0xf]
        %v1339 = vld [vmem:[%s273 + $0xf68] sm:$0xf]
        %v1340 = vld [vmem:[%s273 + $0xf6c] sm:$0xf]
        %v1341 = vld [vmem:[%s273 + $0xf70] sm:$0xf]
        %v1342 = vld [vmem:[%s273 + $0xf74] sm:$0xf]
        %v1343 = vld [vmem:[%s273 + $0xf78] sm:$0xf]
        %v1344 = vld [vmem:[%s273 + $0xf7c] sm:$0xf]
        %v1345 = vld [vmem:[%s273 + $0xf80] sm:$0xf]
        %v1346 = vld [vmem:[%s273 + $0xf84] sm:$0xf]
        %v1347 = vld [vmem:[%s273 + $0xf88] sm:$0xf]
        %v1348 = vld [vmem:[%s273 + $0xf8c] sm:$0xf]
        %v1349 = vld [vmem:[%s273 + $0xf90] sm:$0xf]
        %v1350 = vld [vmem:[%s273 + $0xf94] sm:$0xf]
        %v1351 = vld [vmem:[%s273 + $0xf98] sm:$0xf]
        %v1352 = vld [vmem:[%s273 + $0xf9c] sm:$0xf]
        %v1353 = vld [vmem:[%s273 + $0xfa0] sm:$0xf]
        %v1354 = vld [vmem:[%s273 + $0xfa4] sm:$0xf]
        %v1355 = vld [vmem:[%s273 + $0xfa8] sm:$0xf]
        %v1356 = vld [vmem:[%s273 + $0xfac] sm:$0xf]
        %v1357 = vld [vmem:[%s273 + $0xfb0] sm:$0xf]
        %v1358 = vld [vmem:[%s273 + $0xfb4] sm:$0xf]
        %v1359 = vld [vmem:[%s273 + $0xfb8] sm:$0xf]
        %v1360 = vld [vmem:[%s273 + $0xfbc] sm:$0xf]
        %v1361 = vld [vmem:[%s273 + $0xfc0] sm:$0xf]
        %v1362 = vld [vmem:[%s273 + $0xfc4] sm:$0xf]
        %v1363 = vld [vmem:[%s273 + $0xfc8] sm:$0xf]
        %v1364 = vld [vmem:[%s273 + $0xfcc] sm:$0xf]
        %v1365 = vld [vmem:[%s273 + $0xfd0] sm:$0xf]
        %v1366 = vld [vmem:[%s273 + $0xfd4] sm:$0xf]
        %v1367 = vld [vmem:[%s273 + $0xfd8] sm:$0xf]
        %v1368 = vld [vmem:[%s273 + $0xfdc] sm:$0xf]
        %v1369 = vld [vmem:[%s273 + $0xfe0] sm:$0xf]
        %v1370 = vld [vmem:[%s273 + $0xfe4] sm:$0xf]
        %v1371 = vld [vmem:[%s273 + $0xfe8] sm:$0xf]
        %v1372 = vld [vmem:[%s273 + $0xfec] sm:$0xf]
        %v1373 = vld [vmem:[%s273 + $0xff0] sm:$0xf]
        %v1374 = vld [vmem:[%s273 + $0xff4] sm:$0xf]
        %v1375 = vld [vmem:[%s273 + $0xff8] sm:$0xf]
        %v1376 = vld [vmem:[%s273 + $0xffc] sm:$0xf]
        %1378 = vst [vmem:[#allocation1] ss:$9 sm:$0xff] %v345
        %v1379 = vld [vmem:[#allocation1] sm:$0xff]
        %v1380 = vld [vmem:[#allocation1 + $0x9] sm:$0xff]
        %v1381 = vld [vmem:[#allocation1 + $0x12] sm:$0xff]
        %v1382 = vld [vmem:[#allocation1 + $0x1b] sm:$0xff]
        %v1383 = vld [vmem:[#allocation1 + $0x24] sm:$0xff]
        %v1384 = vld [vmem:[#allocation1 + $0x2d] sm:$0xff]
        %v1385 = vld [vmem:[#allocation1 + $0x36] sm:$0xff]
        %v1386 = vld [vmem:[#allocation1 + $0x3f] sm:$0xff]
        %1388 = vst [vmem:[#allocation1] ss:$9 sm:$0xff] %v346
        %v1389 = vld [vmem:[#allocation1] sm:$0xff]
        %v1390 = vld [vmem:[#allocation1 + $0x9] sm:$0xff]
        %v1391 = vld [vmem:[#allocation1 + $0x12] sm:$0xff]
        %v1392 = vld [vmem:[#allocation1 + $0x1b] sm:$0xff]
        %v1393 = vld [vmem:[#allocation1 + $0x24] sm:$0xff]
        %v1394 = vld [vmem:[#allocation1 + $0x2d] sm:$0xff]
        %v1395 = vld [vmem:[#allocation1 + $0x36] sm:$0xff]
        %v1396 = vld [vmem:[#allocation1 + $0x3f] sm:$0xff]
        %1398 = vst [vmem:[#allocation1] ss:$9 sm:$0xff] %v347
        %v1399 = vld [vmem:[#allocation1] sm:$0xff]
        %v1400 = vld [vmem:[#allocation1 + $0x9] sm:$0xff]
        %v1401 = vld [vmem:[#allocation1 + $0x12] sm:$0xff]
        %v1402 = vld [vmem:[#allocation1 + $0x1b] sm:$0xff]
        %v1403 = vld [vmem:[#allocation1 + $0x24] sm:$0xff]
        %v1404 = vld [vmem:[#allocation1 + $0x2d] sm:$0xff]
        %v1405 = vld [vmem:[#allocation1 + $0x36] sm:$0xff]
        %v1406 = vld [vmem:[#allocation1 + $0x3f] sm:$0xff]
        %1408 = vst [vmem:[#allocation1] ss:$9 sm:$0xff] %v348
        %v1409 = vld [vmem:[#allocation1] sm:$0xff]
        %v1410 = vld [vmem:[#allocation1 + $0x9] sm:$0xff]
        %v1411 = vld [vmem:[#allocation1 + $0x12] sm:$0xff]
        %v1412 = vld [vmem:[#allocation1 + $0x1b] sm:$0xff]
        %v1413 = vld [vmem:[#allocation1 + $0x24] sm:$0xff]
        %v1414 = vld [vmem:[#allocation1 + $0x2d] sm:$0xff]
        %v1415 = vld [vmem:[#allocation1 + $0x36] sm:$0xff]
        %v1416 = vld [vmem:[#allocation1 + $0x3f] sm:$0xff]
        %1418 = vst [vmem:[#allocation1] ss:$9 sm:$0xff] %v349
        %v1419 = vld [vmem:[#allocation1] sm:$0xff]
        %v1420 = vld [vmem:[#allocation1 + $0x9] sm:$0xff]
        %v1421 = vld [vmem:[#allocation1 + $0x12] sm:$0xff]
        %v1422 = vld [vmem:[#allocation1 + $0x1b] sm:$0xff]
        %v1423 = vld [vmem:[#allocation1 + $0x24] sm:$0xff]
        %v1424 = vld [vmem:[#allocation1 + $0x2d] sm:$0xff]
        %v1425 = vld [vmem:[#allocation1 + $0x36] sm:$0xff]
        %v1426 = vld [vmem:[#allocation1 + $0x3f] sm:$0xff]
        %1428 = vst [vmem:[#allocation1] ss:$9 sm:$0xff] %v350
        %v1429 = vld [vmem:[#allocation1] sm:$0xff]
        %v1430 = vld [vmem:[#allocation1 + $0x9] sm:$0xff]
        %v1431 = vld [vmem:[#allocation1 + $0x12] sm:$0xff]
        %v1432 = vld [vmem:[#allocation1 + $0x1b] sm:$0xff]
        %v1433 = vld [vmem:[#allocation1 + $0x24] sm:$0xff]
        %v1434 = vld [vmem:[#allocation1 + $0x2d] sm:$0xff]
        %v1435 = vld [vmem:[#allocation1 + $0x36] sm:$0xff]
        %v1436 = vld [vmem:[#allocation1 + $0x3f] sm:$0xff]
        %1438 = vst [vmem:[#allocation1] ss:$9 sm:$0xff] %v351
        %v1439 = vld [vmem:[#allocation1] sm:$0xff]
        %v1440 = vld [vmem:[#allocation1 + $0x9] sm:$0xff]
        %v1441 = vld [vmem:[#allocation1 + $0x12] sm:$0xff]
        %v1442 = vld [vmem:[#allocation1 + $0x1b] sm:$0xff]
        %v1443 = vld [vmem:[#allocation1 + $0x24] sm:$0xff]
        %v1444 = vld [vmem:[#allocation1 + $0x2d] sm:$0xff]
        %v1445 = vld [vmem:[#allocation1 + $0x36] sm:$0xff]
        %v1446 = vld [vmem:[#allocation1 + $0x3f] sm:$0xff]
        %1448 = vst [vmem:[#allocation1] ss:$9 sm:$0xff] %v352
        %v1449 = vld [vmem:[#allocation1] sm:$0xff]
        %v1450 = vld [vmem:[#allocation1 + $0x9] sm:$0xff]
        %v1451 = vld [vmem:[#allocation1 + $0x12] sm:$0xff]
        %v1452 = vld [vmem:[#allocation1 + $0x1b] sm:$0xff]
        %v1453 = vld [vmem:[#allocation1 + $0x24] sm:$0xff]
        %v1454 = vld [vmem:[#allocation1 + $0x2d] sm:$0xff]
        %v1455 = vld [vmem:[#allocation1 + $0x36] sm:$0xff]
        %v1456 = vld [vmem:[#allocation1 + $0x3f] sm:$0xff]
        %v2545 = vunpack.c.l.b16 %v353
        %v2546 = vunpack.c.l.b16 %v354
        %v2547 = vunpack.c.l.b16 %v355
        %v2548 = vunpack.c.l.b16 %v356
        %v2549 = vunpack.c.l.b16 %v357
        %v2550 = vunpack.c.l.b16 %v358
        %v2551 = vunpack.c.l.b16 %v359
        %v2552 = vunpack.c.l.b16 %v360
        %v2553 = vunpack.c.l.b16 %v361
        %v2554 = vunpack.c.l.b16 %v362
        %v2555 = vunpack.c.l.b16 %v363
        %v2556 = vunpack.c.l.b16 %v364
        %v2557 = vunpack.c.l.b16 %v365
        %v2558 = vunpack.c.l.b16 %v366
        %v2559 = vunpack.c.l.b16 %v367
        %v2560 = vunpack.c.l.b16 %v368
        %v2561 = vunpack.c.l.b16 %v369
        %v2562 = vunpack.c.l.b16 %v370
        %v2563 = vunpack.c.l.b16 %v371
        %v2564 = vunpack.c.l.b16 %v372
        %v2565 = vunpack.c.l.b16 %v373
        %v2566 = vunpack.c.l.b16 %v374
        %v2567 = vunpack.c.l.b16 %v375
        %v2568 = vunpack.c.l.b16 %v376
        %v2569 = vunpack.c.l.b16 %v377
        %v2570 = vunpack.c.l.b16 %v378
        %v2571 = vunpack.c.l.b16 %v379
        %v2572 = vunpack.c.l.b16 %v380
        %v2573 = vunpack.c.l.b16 %v381
        %v2574 = vunpack.c.l.b16 %v382
        %v2575 = vunpack.c.l.b16 %v383
        %v2576 = vunpack.c.l.b16 %v384
        %v2577 = vunpack.c.l.b16 %v385
        %v2578 = vunpack.c.l.b16 %v386
        %v2579 = vunpack.c.l.b16 %v387
        %v2580 = vunpack.c.l.b16 %v388
        %v2581 = vunpack.c.l.b16 %v389
        %v2582 = vunpack.c.l.b16 %v390
        %v2583 = vunpack.c.l.b16 %v391
        %v2584 = vunpack.c.l.b16 %v392
        %v2585 = vunpack.c.l.b16 %v393
        %v2586 = vunpack.c.l.b16 %v394
        %v2587 = vunpack.c.l.b16 %v395
        %v2588 = vunpack.c.l.b16 %v396
        %v2589 = vunpack.c.l.b16 %v397
        %v2590 = vunpack.c.l.b16 %v398
        %v2591 = vunpack.c.l.b16 %v399
        %v2592 = vunpack.c.l.b16 %v400
        %v2593 = vunpack.c.l.b16 %v401
        %v2594 = vunpack.c.l.b16 %v402
        %v2595 = vunpack.c.l.b16 %v403
        %v2596 = vunpack.c.l.b16 %v404
        %v2597 = vunpack.c.l.b16 %v405
        %v2598 = vunpack.c.l.b16 %v406
        %v2599 = vunpack.c.l.b16 %v407
        %v2600 = vunpack.c.l.b16 %v408
        %v2601 = vunpack.c.l.b16 %v409
        %v2602 = vunpack.c.l.b16 %v410
        %v2603 = vunpack.c.l.b16 %v411
        %v2604 = vunpack.c.l.b16 %v412
        %v2605 = vunpack.c.l.b16 %v413
        %v2606 = vunpack.c.l.b16 %v414
        %v2607 = vunpack.c.l.b16 %v415
        %v2608 = vunpack.c.l.b16 %v416
        %v2609 = vunpack.c.l.b16 %v417
        %v2610 = vunpack.c.l.b16 %v418
        %v2611 = vunpack.c.l.b16 %v419
        %v2612 = vunpack.c.l.b16 %v420
        %v2613 = vunpack.c.l.b16 %v421
        %v2614 = vunpack.c.l.b16 %v422
        %v2615 = vunpack.c.l.b16 %v423
        %v2616 = vunpack.c.l.b16 %v424
        %v2617 = vunpack.c.l.b16 %v425
        %v2618 = vunpack.c.l.b16 %v426
        %v2619 = vunpack.c.l.b16 %v427
        %v2620 = vunpack.c.l.b16 %v428
        %v2621 = vunpack.c.l.b16 %v429
        %v2622 = vunpack.c.l.b16 %v430
        %v2623 = vunpack.c.l.b16 %v431
        %v2624 = vunpack.c.l.b16 %v432
        %v2625 = vunpack.c.l.b16 %v433
        %v2626 = vunpack.c.l.b16 %v434
        %v2627 = vunpack.c.l.b16 %v435
        %v2628 = vunpack.c.l.b16 %v436
        %v2629 = vunpack.c.l.b16 %v437
        %v2630 = vunpack.c.l.b16 %v438
        %v2631 = vunpack.c.l.b16 %v439
        %v2632 = vunpack.c.l.b16 %v440
        %v2633 = vunpack.c.l.b16 %v441
        %v2634 = vunpack.c.l.b16 %v442
        %v2635 = vunpack.c.l.b16 %v443
        %v2636 = vunpack.c.l.b16 %v444
        %v2637 = vunpack.c.l.b16 %v445
        %v2638 = vunpack.c.l.b16 %v446
        %v2639 = vunpack.c.l.b16 %v447
        %v2640 = vunpack.c.l.b16 %v448
        %v2641 = vunpack.c.l.b16 %v449
        %v2642 = vunpack.c.l.b16 %v450
        %v2643 = vunpack.c.l.b16 %v451
        %v2644 = vunpack.c.l.b16 %v452
        %v2645 = vunpack.c.l.b16 %v453
        %v2646 = vunpack.c.l.b16 %v454
        %v2647 = vunpack.c.l.b16 %v455
        %v2648 = vunpack.c.l.b16 %v456
        %v2649 = vunpack.c.l.b16 %v457
        %v2650 = vunpack.c.l.b16 %v458
        %v2651 = vunpack.c.l.b16 %v459
        %v2652 = vunpack.c.l.b16 %v460
        %v2653 = vunpack.c.l.b16 %v461
        %v2654 = vunpack.c.l.b16 %v462
        %v2655 = vunpack.c.l.b16 %v463
        %v2656 = vunpack.c.l.b16 %v464
        %v2657 = vunpack.c.l.b16 %v465
        %v2658 = vunpack.c.l.b16 %v466
        %v2659 = vunpack.c.l.b16 %v467
        %v2660 = vunpack.c.l.b16 %v468
        %v2661 = vunpack.c.l.b16 %v469
        %v2662 = vunpack.c.l.b16 %v470
        %v2663 = vunpack.c.l.b16 %v471
        %v2664 = vunpack.c.l.b16 %v472
        %v2665 = vunpack.c.l.b16 %v473
        %v2666 = vunpack.c.l.b16 %v474
        %v2667 = vunpack.c.l.b16 %v475
        %v2668 = vunpack.c.l.b16 %v476
        %v2669 = vunpack.c.l.b16 %v477
        %v2670 = vunpack.c.l.b16 %v478
        %v2671 = vunpack.c.l.b16 %v479
        %v2672 = vunpack.c.l.b16 %v480
        %v2673 = vunpack.c.l.b16 %v481
        %v2674 = vunpack.c.l.b16 %v482
        %v2675 = vunpack.c.l.b16 %v483
        %v2676 = vunpack.c.l.b16 %v484
        %v2677 = vunpack.c.l.b16 %v485
        %v2678 = vunpack.c.l.b16 %v486
        %v2679 = vunpack.c.l.b16 %v487
        %v2680 = vunpack.c.l.b16 %v488
        %v2681 = vunpack.c.l.b16 %v489
        %v2682 = vunpack.c.l.b16 %v490
        %v2683 = vunpack.c.l.b16 %v491
        %v2684 = vunpack.c.l.b16 %v492
        %v2685 = vunpack.c.l.b16 %v493
        %v2686 = vunpack.c.l.b16 %v494
        %v2687 = vunpack.c.l.b16 %v495
        %v2688 = vunpack.c.l.b16 %v496
        %v2689 = vunpack.c.l.b16 %v497
        %v2690 = vunpack.c.l.b16 %v498
        %v2691 = vunpack.c.l.b16 %v499
        %v2692 = vunpack.c.l.b16 %v500
        %v2693 = vunpack.c.l.b16 %v501
        %v2694 = vunpack.c.l.b16 %v502
        %v2695 = vunpack.c.l.b16 %v503
        %v2696 = vunpack.c.l.b16 %v504
        %v2697 = vunpack.c.l.b16 %v505
        %v2698 = vunpack.c.l.b16 %v506
        %v2699 = vunpack.c.l.b16 %v507
        %v2700 = vunpack.c.l.b16 %v508
        %v2701 = vunpack.c.l.b16 %v509
        %v2702 = vunpack.c.l.b16 %v510
        %v2703 = vunpack.c.l.b16 %v511
        %v2704 = vunpack.c.l.b16 %v512
        %v2705 = vunpack.c.l.b16 %v513
        %v2706 = vunpack.c.l.b16 %v514
        %v2707 = vunpack.c.l.b16 %v515
        %v2708 = vunpack.c.l.b16 %v516
        %v2709 = vunpack.c.l.b16 %v517
        %v2710 = vunpack.c.l.b16 %v518
        %v2711 = vunpack.c.l.b16 %v519
        %v2712 = vunpack.c.l.b16 %v520
        %v2713 = vunpack.c.l.b16 %v521
        %v2714 = vunpack.c.l.b16 %v522
        %v2715 = vunpack.c.l.b16 %v523
        %v2716 = vunpack.c.l.b16 %v524
        %v2717 = vunpack.c.l.b16 %v525
        %v2718 = vunpack.c.l.b16 %v526
        %v2719 = vunpack.c.l.b16 %v527
        %v2720 = vunpack.c.l.b16 %v528
        %v2721 = vunpack.c.l.b16 %v529
        %v2722 = vunpack.c.l.b16 %v530
        %v2723 = vunpack.c.l.b16 %v531
        %v2724 = vunpack.c.l.b16 %v532
        %v2725 = vunpack.c.l.b16 %v533
        %v2726 = vunpack.c.l.b16 %v534
        %v2727 = vunpack.c.l.b16 %v535
        %v2728 = vunpack.c.l.b16 %v536
        %v2729 = vunpack.c.l.b16 %v537
        %v2730 = vunpack.c.l.b16 %v538
        %v2731 = vunpack.c.l.b16 %v539
        %v2732 = vunpack.c.l.b16 %v540
        %v2733 = vunpack.c.l.b16 %v541
        %v2734 = vunpack.c.l.b16 %v542
        %v2735 = vunpack.c.l.b16 %v543
        %v2736 = vunpack.c.l.b16 %v544
        %v2737 = vunpack.c.l.b16 %v545
        %v2738 = vunpack.c.l.b16 %v546
        %v2739 = vunpack.c.l.b16 %v547
        %v2740 = vunpack.c.l.b16 %v548
        %v2741 = vunpack.c.l.b16 %v549
        %v2742 = vunpack.c.l.b16 %v550
        %v2743 = vunpack.c.l.b16 %v551
        %v2744 = vunpack.c.l.b16 %v552
        %v2745 = vunpack.c.l.b16 %v553
        %v2746 = vunpack.c.l.b16 %v554
        %v2747 = vunpack.c.l.b16 %v555
        %v2748 = vunpack.c.l.b16 %v556
        %v2749 = vunpack.c.l.b16 %v557
        %v2750 = vunpack.c.l.b16 %v558
        %v2751 = vunpack.c.l.b16 %v559
        %v2752 = vunpack.c.l.b16 %v560
        %v2753 = vunpack.c.l.b16 %v561
        %v2754 = vunpack.c.l.b16 %v562
        %v2755 = vunpack.c.l.b16 %v563
        %v2756 = vunpack.c.l.b16 %v564
        %v2757 = vunpack.c.l.b16 %v565
        %v2758 = vunpack.c.l.b16 %v566
        %v2759 = vunpack.c.l.b16 %v567
        %v2760 = vunpack.c.l.b16 %v568
        %v2761 = vunpack.c.l.b16 %v569
        %v2762 = vunpack.c.l.b16 %v570
        %v2763 = vunpack.c.l.b16 %v571
        %v2764 = vunpack.c.l.b16 %v572
        %v2765 = vunpack.c.l.b16 %v573
        %v2766 = vunpack.c.l.b16 %v574
        %v2767 = vunpack.c.l.b16 %v575
        %v2768 = vunpack.c.l.b16 %v576
        %v2769 = vunpack.c.l.b16 %v577
        %v2770 = vunpack.c.l.b16 %v578
        %v2771 = vunpack.c.l.b16 %v579
        %v2772 = vunpack.c.l.b16 %v580
        %v2773 = vunpack.c.l.b16 %v581
        %v2774 = vunpack.c.l.b16 %v582
        %v2775 = vunpack.c.l.b16 %v583
        %v2776 = vunpack.c.l.b16 %v584
        %v2777 = vunpack.c.l.b16 %v585
        %v2778 = vunpack.c.l.b16 %v586
        %v2779 = vunpack.c.l.b16 %v587
        %v2780 = vunpack.c.l.b16 %v588
        %v2781 = vunpack.c.l.b16 %v589
        %v2782 = vunpack.c.l.b16 %v590
        %v2783 = vunpack.c.l.b16 %v591
        %v2784 = vunpack.c.l.b16 %v592
        %v2785 = vunpack.c.l.b16 %v593
        %v2786 = vunpack.c.l.b16 %v594
        %v2787 = vunpack.c.l.b16 %v595
        %v2788 = vunpack.c.l.b16 %v596
        %v2789 = vunpack.c.l.b16 %v597
        %v2790 = vunpack.c.l.b16 %v598
        %v2791 = vunpack.c.l.b16 %v599
        %v2792 = vunpack.c.l.b16 %v600
        %v2793 = vunpack.c.l.b16 %v601
        %v2794 = vunpack.c.l.b16 %v602
        %v2795 = vunpack.c.l.b16 %v603
        %v2796 = vunpack.c.l.b16 %v604
        %v2797 = vunpack.c.l.b16 %v605
        %v2798 = vunpack.c.l.b16 %v606
        %v2799 = vunpack.c.l.b16 %v607
        %v2800 = vunpack.c.l.b16 %v608
        %v2801 = vunpack.c.l.b16 %v609
        %v2802 = vunpack.c.l.b16 %v610
        %v2803 = vunpack.c.l.b16 %v611
        %v2804 = vunpack.c.l.b16 %v612
        %v2805 = vunpack.c.l.b16 %v613
        %v2806 = vunpack.c.l.b16 %v614
        %v2807 = vunpack.c.l.b16 %v615
        %v2808 = vunpack.c.l.b16 %v616
        %v2809 = vunpack.c.l.b16 %v617
        %v2810 = vunpack.c.l.b16 %v618
        %v2811 = vunpack.c.l.b16 %v619
        %v2812 = vunpack.c.l.b16 %v620
        %v2813 = vunpack.c.l.b16 %v621
        %v2814 = vunpack.c.l.b16 %v622
        %v2815 = vunpack.c.l.b16 %v623
        %v2816 = vunpack.c.l.b16 %v624
        %v2817 = vunpack.c.l.b16 %v625
        %v2818 = vunpack.c.l.b16 %v626
        %v2819 = vunpack.c.l.b16 %v627
        %v2820 = vunpack.c.l.b16 %v628
        %v2821 = vunpack.c.l.b16 %v629
        %v2822 = vunpack.c.l.b16 %v630
        %v2823 = vunpack.c.l.b16 %v631
        %v2824 = vunpack.c.l.b16 %v632
        %v2825 = vunpack.c.l.b16 %v633
        %v2826 = vunpack.c.l.b16 %v634
        %v2827 = vunpack.c.l.b16 %v635
        %v2828 = vunpack.c.l.b16 %v636
        %v2829 = vunpack.c.l.b16 %v637
        %v2830 = vunpack.c.l.b16 %v638
        %v2831 = vunpack.c.l.b16 %v639
        %v2832 = vunpack.c.l.b16 %v640
        %v2833 = vunpack.c.l.b16 %v641
        %v2834 = vunpack.c.l.b16 %v642
        %v2835 = vunpack.c.l.b16 %v643
        %v2836 = vunpack.c.l.b16 %v644
        %v2837 = vunpack.c.l.b16 %v645
        %v2838 = vunpack.c.l.b16 %v646
        %v2839 = vunpack.c.l.b16 %v647
        %v2840 = vunpack.c.l.b16 %v648
        %v2841 = vunpack.c.l.b16 %v649
        %v2842 = vunpack.c.l.b16 %v650
        %v2843 = vunpack.c.l.b16 %v651
        %v2844 = vunpack.c.l.b16 %v652
        %v2845 = vunpack.c.l.b16 %v653
        %v2846 = vunpack.c.l.b16 %v654
        %v2847 = vunpack.c.l.b16 %v655
        %v2848 = vunpack.c.l.b16 %v656
        %v2849 = vunpack.c.l.b16 %v657
        %v2850 = vunpack.c.l.b16 %v658
        %v2851 = vunpack.c.l.b16 %v659
        %v2852 = vunpack.c.l.b16 %v660
        %v2853 = vunpack.c.l.b16 %v661
        %v2854 = vunpack.c.l.b16 %v662
        %v2855 = vunpack.c.l.b16 %v663
        %v2856 = vunpack.c.l.b16 %v664
        %v2857 = vunpack.c.l.b16 %v665
        %v2858 = vunpack.c.l.b16 %v666
        %v2859 = vunpack.c.l.b16 %v667
        %v2860 = vunpack.c.l.b16 %v668
        %v2861 = vunpack.c.l.b16 %v669
        %v2862 = vunpack.c.l.b16 %v670
        %v2863 = vunpack.c.l.b16 %v671
        %v2864 = vunpack.c.l.b16 %v672
        %v2865 = vunpack.c.l.b16 %v673
        %v2866 = vunpack.c.l.b16 %v674
        %v2867 = vunpack.c.l.b16 %v675
        %v2868 = vunpack.c.l.b16 %v676
        %v2869 = vunpack.c.l.b16 %v677
        %v2870 = vunpack.c.l.b16 %v678
        %v2871 = vunpack.c.l.b16 %v679
        %v2872 = vunpack.c.l.b16 %v680
        %v2873 = vunpack.c.l.b16 %v681
        %v2874 = vunpack.c.l.b16 %v682
        %v2875 = vunpack.c.l.b16 %v683
        %v2876 = vunpack.c.l.b16 %v684
        %v2877 = vunpack.c.l.b16 %v685
        %v2878 = vunpack.c.l.b16 %v686
        %v2879 = vunpack.c.l.b16 %v687
        %v2880 = vunpack.c.l.b16 %v688
        %v2881 = vunpack.c.l.b16 %v689
        %v2882 = vunpack.c.l.b16 %v690
        %v2883 = vunpack.c.l.b16 %v691
        %v2884 = vunpack.c.l.b16 %v692
        %v2885 = vunpack.c.l.b16 %v693
        %v2886 = vunpack.c.l.b16 %v694
        %v2887 = vunpack.c.l.b16 %v695
        %v2888 = vunpack.c.l.b16 %v696
        %v2889 = vunpack.c.l.b16 %v697
        %v2890 = vunpack.c.l.b16 %v698
        %v2891 = vunpack.c.l.b16 %v699
        %v2892 = vunpack.c.l.b16 %v700
        %v2893 = vunpack.c.l.b16 %v701
        %v2894 = vunpack.c.l.b16 %v702
        %v2895 = vunpack.c.l.b16 %v703
        %v2896 = vunpack.c.l.b16 %v704
        %v2897 = vunpack.c.l.b16 %v705
        %v2898 = vunpack.c.l.b16 %v706
        %v2899 = vunpack.c.l.b16 %v707
        %v2900 = vunpack.c.l.b16 %v708
        %v2901 = vunpack.c.l.b16 %v709
        %v2902 = vunpack.c.l.b16 %v710
        %v2903 = vunpack.c.l.b16 %v711
        %v2904 = vunpack.c.l.b16 %v712
        %v2905 = vunpack.c.l.b16 %v713
        %v2906 = vunpack.c.l.b16 %v714
        %v2907 = vunpack.c.l.b16 %v715
        %v2908 = vunpack.c.l.b16 %v716
        %v2909 = vunpack.c.l.b16 %v717
        %v2910 = vunpack.c.l.b16 %v718
        %v2911 = vunpack.c.l.b16 %v719
        %v2912 = vunpack.c.l.b16 %v720
        %v2913 = vunpack.c.l.b16 %v721
        %v2914 = vunpack.c.l.b16 %v722
        %v2915 = vunpack.c.l.b16 %v723
        %v2916 = vunpack.c.l.b16 %v724
        %v2917 = vunpack.c.l.b16 %v725
        %v2918 = vunpack.c.l.b16 %v726
        %v2919 = vunpack.c.l.b16 %v727
        %v2920 = vunpack.c.l.b16 %v728
        %v2921 = vunpack.c.l.b16 %v729
        %v2922 = vunpack.c.l.b16 %v730
        %v2923 = vunpack.c.l.b16 %v731
        %v2924 = vunpack.c.l.b16 %v732
        %v2925 = vunpack.c.l.b16 %v733
        %v2926 = vunpack.c.l.b16 %v734
        %v2927 = vunpack.c.l.b16 %v735
        %v2928 = vunpack.c.l.b16 %v736
        %v2929 = vunpack.c.l.b16 %v737
        %v2930 = vunpack.c.l.b16 %v738
        %v2931 = vunpack.c.l.b16 %v739
        %v2932 = vunpack.c.l.b16 %v740
        %v2933 = vunpack.c.l.b16 %v741
        %v2934 = vunpack.c.l.b16 %v742
        %v2935 = vunpack.c.l.b16 %v743
        %v2936 = vunpack.c.l.b16 %v744
        %v2937 = vunpack.c.l.b16 %v745
        %v2938 = vunpack.c.l.b16 %v746
        %v2939 = vunpack.c.l.b16 %v747
        %v2940 = vunpack.c.l.b16 %v748
        %v2941 = vunpack.c.l.b16 %v749
        %v2942 = vunpack.c.l.b16 %v750
        %v2943 = vunpack.c.l.b16 %v751
        %v2944 = vunpack.c.l.b16 %v752
        %v2945 = vunpack.c.l.b16 %v753
        %v2946 = vunpack.c.l.b16 %v754
        %v2947 = vunpack.c.l.b16 %v755
        %v2948 = vunpack.c.l.b16 %v756
        %v2949 = vunpack.c.l.b16 %v757
        %v2950 = vunpack.c.l.b16 %v758
        %v2951 = vunpack.c.l.b16 %v759
        %v2952 = vunpack.c.l.b16 %v760
        %v2953 = vunpack.c.l.b16 %v761
        %v2954 = vunpack.c.l.b16 %v762
        %v2955 = vunpack.c.l.b16 %v763
        %v2956 = vunpack.c.l.b16 %v764
        %v2957 = vunpack.c.l.b16 %v765
        %v2958 = vunpack.c.l.b16 %v766
        %v2959 = vunpack.c.l.b16 %v767
        %v2960 = vunpack.c.l.b16 %v768
        %v2961 = vunpack.c.l.b16 %v769
        %v2962 = vunpack.c.l.b16 %v770
        %v2963 = vunpack.c.l.b16 %v771
        %v2964 = vunpack.c.l.b16 %v772
        %v2965 = vunpack.c.l.b16 %v773
        %v2966 = vunpack.c.l.b16 %v774
        %v2967 = vunpack.c.l.b16 %v775
        %v2968 = vunpack.c.l.b16 %v776
        %v2969 = vunpack.c.l.b16 %v777
        %v2970 = vunpack.c.l.b16 %v778
        %v2971 = vunpack.c.l.b16 %v779
        %v2972 = vunpack.c.l.b16 %v780
        %v2973 = vunpack.c.l.b16 %v781
        %v2974 = vunpack.c.l.b16 %v782
        %v2975 = vunpack.c.l.b16 %v783
        %v2976 = vunpack.c.l.b16 %v784
        %v2977 = vunpack.c.l.b16 %v785
        %v2978 = vunpack.c.l.b16 %v786
        %v2979 = vunpack.c.l.b16 %v787
        %v2980 = vunpack.c.l.b16 %v788
        %v2981 = vunpack.c.l.b16 %v789
        %v2982 = vunpack.c.l.b16 %v790
        %v2983 = vunpack.c.l.b16 %v791
        %v2984 = vunpack.c.l.b16 %v792
        %v2985 = vunpack.c.l.b16 %v793
        %v2986 = vunpack.c.l.b16 %v794
        %v2987 = vunpack.c.l.b16 %v795
        %v2988 = vunpack.c.l.b16 %v796
        %v2989 = vunpack.c.l.b16 %v797
        %v2990 = vunpack.c.l.b16 %v798
        %v2991 = vunpack.c.l.b16 %v799
        %v2992 = vunpack.c.l.b16 %v800
        %v2993 = vunpack.c.l.b16 %v801
        %v2994 = vunpack.c.l.b16 %v802
        %v2995 = vunpack.c.l.b16 %v803
        %v2996 = vunpack.c.l.b16 %v804
        %v2997 = vunpack.c.l.b16 %v805
        %v2998 = vunpack.c.l.b16 %v806
        %v2999 = vunpack.c.l.b16 %v807
        %v3000 = vunpack.c.l.b16 %v808
        %v3001 = vunpack.c.l.b16 %v809
        %v3002 = vunpack.c.l.b16 %v810
        %v3003 = vunpack.c.l.b16 %v811
        %v3004 = vunpack.c.l.b16 %v812
        %v3005 = vunpack.c.l.b16 %v813
        %v3006 = vunpack.c.l.b16 %v814
        %v3007 = vunpack.c.l.b16 %v815
        %v3008 = vunpack.c.l.b16 %v816
        %v3009 = vunpack.c.l.b16 %v817
        %v3010 = vunpack.c.l.b16 %v818
        %v3011 = vunpack.c.l.b16 %v819
        %v3012 = vunpack.c.l.b16 %v820
        %v3013 = vunpack.c.l.b16 %v821
        %v3014 = vunpack.c.l.b16 %v822
        %v3015 = vunpack.c.l.b16 %v823
        %v3016 = vunpack.c.l.b16 %v824
        %v3017 = vunpack.c.l.b16 %v825
        %v3018 = vunpack.c.l.b16 %v826
        %v3019 = vunpack.c.l.b16 %v827
        %v3020 = vunpack.c.l.b16 %v828
        %v3021 = vunpack.c.l.b16 %v829
        %v3022 = vunpack.c.l.b16 %v830
        %v3023 = vunpack.c.l.b16 %v831
        %v3024 = vunpack.c.l.b16 %v832
        %v3025 = vunpack.c.l.b16 %v833
        %v3026 = vunpack.c.l.b16 %v834
        %v3027 = vunpack.c.l.b16 %v835
        %v3028 = vunpack.c.l.b16 %v836
        %v3029 = vunpack.c.l.b16 %v837
        %v3030 = vunpack.c.l.b16 %v838
        %v3031 = vunpack.c.l.b16 %v839
        %v3032 = vunpack.c.l.b16 %v840
        %v3033 = vunpack.c.l.b16 %v841
        %v3034 = vunpack.c.l.b16 %v842
        %v3035 = vunpack.c.l.b16 %v843
        %v3036 = vunpack.c.l.b16 %v844
        %v3037 = vunpack.c.l.b16 %v845
        %v3038 = vunpack.c.l.b16 %v846
        %v3039 = vunpack.c.l.b16 %v847
        %v3040 = vunpack.c.l.b16 %v848
        %v3041 = vunpack.c.l.b16 %v849
        %v3042 = vunpack.c.l.b16 %v850
        %v3043 = vunpack.c.l.b16 %v851
        %v3044 = vunpack.c.l.b16 %v852
        %v3045 = vunpack.c.l.b16 %v853
        %v3046 = vunpack.c.l.b16 %v854
        %v3047 = vunpack.c.l.b16 %v855
        %v3048 = vunpack.c.l.b16 %v856
        %v3049 = vunpack.c.l.b16 %v857
        %v3050 = vunpack.c.l.b16 %v858
        %v3051 = vunpack.c.l.b16 %v859
        %v3052 = vunpack.c.l.b16 %v860
        %v3053 = vunpack.c.l.b16 %v861
        %v3054 = vunpack.c.l.b16 %v862
        %v3055 = vunpack.c.l.b16 %v863
        %v3056 = vunpack.c.l.b16 %v864
        %v3057 = vunpack.c.l.b16 %v865
        %v3058 = vunpack.c.l.b16 %v866
        %v3059 = vunpack.c.l.b16 %v867
        %v3060 = vunpack.c.l.b16 %v868
        %v3061 = vunpack.c.l.b16 %v869
        %v3062 = vunpack.c.l.b16 %v870
        %v3063 = vunpack.c.l.b16 %v871
        %v3064 = vunpack.c.l.b16 %v872
        %v3065 = vunpack.c.l.b16 %v873
        %v3066 = vunpack.c.l.b16 %v874
        %v3067 = vunpack.c.l.b16 %v875
        %v3068 = vunpack.c.l.b16 %v876
        %v3069 = vunpack.c.l.b16 %v877
        %v3070 = vunpack.c.l.b16 %v878
        %v3071 = vunpack.c.l.b16 %v879
        %v3072 = vunpack.c.l.b16 %v880
        %v3073 = vunpack.c.l.b16 %v881
        %v3074 = vunpack.c.l.b16 %v882
        %v3075 = vunpack.c.l.b16 %v883
        %v3076 = vunpack.c.l.b16 %v884
        %v3077 = vunpack.c.l.b16 %v885
        %v3078 = vunpack.c.l.b16 %v886
        %v3079 = vunpack.c.l.b16 %v887
        %v3080 = vunpack.c.l.b16 %v888
        %v3081 = vunpack.c.l.b16 %v889
        %v3082 = vunpack.c.l.b16 %v890
        %v3083 = vunpack.c.l.b16 %v891
        %v3084 = vunpack.c.l.b16 %v892
        %v3085 = vunpack.c.l.b16 %v893
        %v3086 = vunpack.c.l.b16 %v894
        %v3087 = vunpack.c.l.b16 %v895
        %v3088 = vunpack.c.l.b16 %v896
        %v3089 = vunpack.c.l.b16 %v897
        %v3090 = vunpack.c.l.b16 %v898
        %v3091 = vunpack.c.l.b16 %v899
        %v3092 = vunpack.c.l.b16 %v900
        %v3093 = vunpack.c.l.b16 %v901
        %v3094 = vunpack.c.l.b16 %v902
        %v3095 = vunpack.c.l.b16 %v903
        %v3096 = vunpack.c.l.b16 %v904
        %v3097 = vunpack.c.l.b16 %v905
        %v3098 = vunpack.c.l.b16 %v906
        %v3099 = vunpack.c.l.b16 %v907
        %v3100 = vunpack.c.l.b16 %v908
        %v3101 = vunpack.c.l.b16 %v909
        %v3102 = vunpack.c.l.b16 %v910
        %v3103 = vunpack.c.l.b16 %v911
        %v3104 = vunpack.c.l.b16 %v912
        %v3105 = vunpack.c.l.b16 %v913
        %v3106 = vunpack.c.l.b16 %v914
        %v3107 = vunpack.c.l.b16 %v915
        %v3108 = vunpack.c.l.b16 %v916
        %v3109 = vunpack.c.l.b16 %v917
        %v3110 = vunpack.c.l.b16 %v918
        %v3111 = vunpack.c.l.b16 %v919
        %v3112 = vunpack.c.l.b16 %v920
        %v3113 = vunpack.c.l.b16 %v921
        %v3114 = vunpack.c.l.b16 %v922
        %v3115 = vunpack.c.l.b16 %v923
        %v3116 = vunpack.c.l.b16 %v924
        %v3117 = vunpack.c.l.b16 %v925
        %v3118 = vunpack.c.l.b16 %v926
        %v3119 = vunpack.c.l.b16 %v927
        %v3120 = vunpack.c.l.b16 %v928
        %v3121 = vunpack.c.l.b16 %v929
        %v3122 = vunpack.c.l.b16 %v930
        %v3123 = vunpack.c.l.b16 %v931
        %v3124 = vunpack.c.l.b16 %v932
        %v3125 = vunpack.c.l.b16 %v933
        %v3126 = vunpack.c.l.b16 %v934
        %v3127 = vunpack.c.l.b16 %v935
        %v3128 = vunpack.c.l.b16 %v936
        %v3129 = vunpack.c.l.b16 %v937
        %v3130 = vunpack.c.l.b16 %v938
        %v3131 = vunpack.c.l.b16 %v939
        %v3132 = vunpack.c.l.b16 %v940
        %v3133 = vunpack.c.l.b16 %v941
        %v3134 = vunpack.c.l.b16 %v942
        %v3135 = vunpack.c.l.b16 %v943
        %v3136 = vunpack.c.l.b16 %v944
        %v3137 = vunpack.c.l.b16 %v945
        %v3138 = vunpack.c.l.b16 %v946
        %v3139 = vunpack.c.l.b16 %v947
        %v3140 = vunpack.c.l.b16 %v948
        %v3141 = vunpack.c.l.b16 %v949
        %v3142 = vunpack.c.l.b16 %v950
        %v3143 = vunpack.c.l.b16 %v951
        %v3144 = vunpack.c.l.b16 %v952
        %v3145 = vunpack.c.l.b16 %v953
        %v3146 = vunpack.c.l.b16 %v954
        %v3147 = vunpack.c.l.b16 %v955
        %v3148 = vunpack.c.l.b16 %v956
        %v3149 = vunpack.c.l.b16 %v957
        %v3150 = vunpack.c.l.b16 %v958
        %v3151 = vunpack.c.l.b16 %v959
        %v3152 = vunpack.c.l.b16 %v960
        %v3153 = vunpack.c.l.b16 %v961
        %v3154 = vunpack.c.l.b16 %v962
        %v3155 = vunpack.c.l.b16 %v963
        %v3156 = vunpack.c.l.b16 %v964
        %v3157 = vunpack.c.l.b16 %v965
        %v3158 = vunpack.c.l.b16 %v966
        %v3159 = vunpack.c.l.b16 %v967
        %v3160 = vunpack.c.l.b16 %v968
        %v3161 = vunpack.c.l.b16 %v969
        %v3162 = vunpack.c.l.b16 %v970
        %v3163 = vunpack.c.l.b16 %v971
        %v3164 = vunpack.c.l.b16 %v972
        %v3165 = vunpack.c.l.b16 %v973
        %v3166 = vunpack.c.l.b16 %v974
        %v3167 = vunpack.c.l.b16 %v975
        %v3168 = vunpack.c.l.b16 %v976
        %v3169 = vunpack.c.l.b16 %v977
        %v3170 = vunpack.c.l.b16 %v978
        %v3171 = vunpack.c.l.b16 %v979
        %v3172 = vunpack.c.l.b16 %v980
        %v3173 = vunpack.c.l.b16 %v981
        %v3174 = vunpack.c.l.b16 %v982
        %v3175 = vunpack.c.l.b16 %v983
        %v3176 = vunpack.c.l.b16 %v984
        %v3177 = vunpack.c.l.b16 %v985
        %v3178 = vunpack.c.l.b16 %v986
        %v3179 = vunpack.c.l.b16 %v987
        %v3180 = vunpack.c.l.b16 %v988
        %v3181 = vunpack.c.l.b16 %v989
        %v3182 = vunpack.c.l.b16 %v990
        %v3183 = vunpack.c.l.b16 %v991
        %v3184 = vunpack.c.l.b16 %v992
        %v3185 = vunpack.c.l.b16 %v993
        %v3186 = vunpack.c.l.b16 %v994
        %v3187 = vunpack.c.l.b16 %v995
        %v3188 = vunpack.c.l.b16 %v996
        %v3189 = vunpack.c.l.b16 %v997
        %v3190 = vunpack.c.l.b16 %v998
        %v3191 = vunpack.c.l.b16 %v999
        %v3192 = vunpack.c.l.b16 %v1000
        %v3193 = vunpack.c.l.b16 %v1001
        %v3194 = vunpack.c.l.b16 %v1002
        %v3195 = vunpack.c.l.b16 %v1003
        %v3196 = vunpack.c.l.b16 %v1004
        %v3197 = vunpack.c.l.b16 %v1005
        %v3198 = vunpack.c.l.b16 %v1006
        %v3199 = vunpack.c.l.b16 %v1007
        %v3200 = vunpack.c.l.b16 %v1008
        %v3201 = vunpack.c.l.b16 %v1009
        %v3202 = vunpack.c.l.b16 %v1010
        %v3203 = vunpack.c.l.b16 %v1011
        %v3204 = vunpack.c.l.b16 %v1012
        %v3205 = vunpack.c.l.b16 %v1013
        %v3206 = vunpack.c.l.b16 %v1014
        %v3207 = vunpack.c.l.b16 %v1015
        %v3208 = vunpack.c.l.b16 %v1016
        %v3209 = vunpack.c.l.b16 %v1017
        %v3210 = vunpack.c.l.b16 %v1018
        %v3211 = vunpack.c.l.b16 %v1019
        %v3212 = vunpack.c.l.b16 %v1020
        %v3213 = vunpack.c.l.b16 %v1021
        %v3214 = vunpack.c.l.b16 %v1022
        %v3215 = vunpack.c.l.b16 %v1023
        %v3216 = vunpack.c.l.b16 %v1024
        %v3217 = vunpack.c.l.b16 %v1025
        %v3218 = vunpack.c.l.b16 %v1026
        %v3219 = vunpack.c.l.b16 %v1027
        %v3220 = vunpack.c.l.b16 %v1028
        %v3221 = vunpack.c.l.b16 %v1029
        %v3222 = vunpack.c.l.b16 %v1030
        %v3223 = vunpack.c.l.b16 %v1031
        %v3224 = vunpack.c.l.b16 %v1032
        %v3225 = vunpack.c.l.b16 %v1033
        %v3226 = vunpack.c.l.b16 %v1034
        %v3227 = vunpack.c.l.b16 %v1035
        %v3228 = vunpack.c.l.b16 %v1036
        %v3229 = vunpack.c.l.b16 %v1037
        %v3230 = vunpack.c.l.b16 %v1038
        %v3231 = vunpack.c.l.b16 %v1039
        %v3232 = vunpack.c.l.b16 %v1040
        %v3233 = vunpack.c.l.b16 %v1041
        %v3234 = vunpack.c.l.b16 %v1042
        %v3235 = vunpack.c.l.b16 %v1043
        %v3236 = vunpack.c.l.b16 %v1044
        %v3237 = vunpack.c.l.b16 %v1045
        %v3238 = vunpack.c.l.b16 %v1046
        %v3239 = vunpack.c.l.b16 %v1047
        %v3240 = vunpack.c.l.b16 %v1048
        %v3241 = vunpack.c.l.b16 %v1049
        %v3242 = vunpack.c.l.b16 %v1050
        %v3243 = vunpack.c.l.b16 %v1051
        %v3244 = vunpack.c.l.b16 %v1052
        %v3245 = vunpack.c.l.b16 %v1053
        %v3246 = vunpack.c.l.b16 %v1054
        %v3247 = vunpack.c.l.b16 %v1055
        %v3248 = vunpack.c.l.b16 %v1056
        %v3249 = vunpack.c.l.b16 %v1057
        %v3250 = vunpack.c.l.b16 %v1058
        %v3251 = vunpack.c.l.b16 %v1059
        %v3252 = vunpack.c.l.b16 %v1060
        %v3253 = vunpack.c.l.b16 %v1061
        %v3254 = vunpack.c.l.b16 %v1062
        %v3255 = vunpack.c.l.b16 %v1063
        %v3256 = vunpack.c.l.b16 %v1064
        %v3257 = vunpack.c.l.b16 %v1065
        %v3258 = vunpack.c.l.b16 %v1066
        %v3259 = vunpack.c.l.b16 %v1067
        %v3260 = vunpack.c.l.b16 %v1068
        %v3261 = vunpack.c.l.b16 %v1069
        %v3262 = vunpack.c.l.b16 %v1070
        %v3263 = vunpack.c.l.b16 %v1071
        %v3264 = vunpack.c.l.b16 %v1072
        %v3265 = vunpack.c.l.b16 %v1073
        %v3266 = vunpack.c.l.b16 %v1074
        %v3267 = vunpack.c.l.b16 %v1075
        %v3268 = vunpack.c.l.b16 %v1076
        %v3269 = vunpack.c.l.b16 %v1077
        %v3270 = vunpack.c.l.b16 %v1078
        %v3271 = vunpack.c.l.b16 %v1079
        %v3272 = vunpack.c.l.b16 %v1080
        %v3273 = vunpack.c.l.b16 %v1081
        %v3274 = vunpack.c.l.b16 %v1082
        %v3275 = vunpack.c.l.b16 %v1083
        %v3276 = vunpack.c.l.b16 %v1084
        %v3277 = vunpack.c.l.b16 %v1085
        %v3278 = vunpack.c.l.b16 %v1086
        %v3279 = vunpack.c.l.b16 %v1087
        %v3280 = vunpack.c.l.b16 %v1088
        %v3281 = vunpack.c.l.b16 %v1089
        %v3282 = vunpack.c.l.b16 %v1090
        %v3283 = vunpack.c.l.b16 %v1091
        %v3284 = vunpack.c.l.b16 %v1092
        %v3285 = vunpack.c.l.b16 %v1093
        %v3286 = vunpack.c.l.b16 %v1094
        %v3287 = vunpack.c.l.b16 %v1095
        %v3288 = vunpack.c.l.b16 %v1096
        %v3289 = vunpack.c.l.b16 %v1097
        %v3290 = vunpack.c.l.b16 %v1098
        %v3291 = vunpack.c.l.b16 %v1099
        %v3292 = vunpack.c.l.b16 %v1100
        %v3293 = vunpack.c.l.b16 %v1101
        %v3294 = vunpack.c.l.b16 %v1102
        %v3295 = vunpack.c.l.b16 %v1103
        %v3296 = vunpack.c.l.b16 %v1104
        %v3297 = vunpack.c.l.b16 %v1105
        %v3298 = vunpack.c.l.b16 %v1106
        %v3299 = vunpack.c.l.b16 %v1107
        %v3300 = vunpack.c.l.b16 %v1108
        %v3301 = vunpack.c.l.b16 %v1109
        %v3302 = vunpack.c.l.b16 %v1110
        %v3303 = vunpack.c.l.b16 %v1111
        %v3304 = vunpack.c.l.b16 %v1112
        %v3305 = vunpack.c.l.b16 %v1113
        %v3306 = vunpack.c.l.b16 %v1114
        %v3307 = vunpack.c.l.b16 %v1115
        %v3308 = vunpack.c.l.b16 %v1116
        %v3309 = vunpack.c.l.b16 %v1117
        %v3310 = vunpack.c.l.b16 %v1118
        %v3311 = vunpack.c.l.b16 %v1119
        %v3312 = vunpack.c.l.b16 %v1120
        %v3313 = vunpack.c.l.b16 %v1121
        %v3314 = vunpack.c.l.b16 %v1122
        %v3315 = vunpack.c.l.b16 %v1123
        %v3316 = vunpack.c.l.b16 %v1124
        %v3317 = vunpack.c.l.b16 %v1125
        %v3318 = vunpack.c.l.b16 %v1126
        %v3319 = vunpack.c.l.b16 %v1127
        %v3320 = vunpack.c.l.b16 %v1128
        %v3321 = vunpack.c.l.b16 %v1129
        %v3322 = vunpack.c.l.b16 %v1130
        %v3323 = vunpack.c.l.b16 %v1131
        %v3324 = vunpack.c.l.b16 %v1132
        %v3325 = vunpack.c.l.b16 %v1133
        %v3326 = vunpack.c.l.b16 %v1134
        %v3327 = vunpack.c.l.b16 %v1135
        %v3328 = vunpack.c.l.b16 %v1136
        %v3329 = vunpack.c.l.b16 %v1137
        %v3330 = vunpack.c.l.b16 %v1138
        %v3331 = vunpack.c.l.b16 %v1139
        %v3332 = vunpack.c.l.b16 %v1140
        %v3333 = vunpack.c.l.b16 %v1141
        %v3334 = vunpack.c.l.b16 %v1142
        %v3335 = vunpack.c.l.b16 %v1143
        %v3336 = vunpack.c.l.b16 %v1144
        %v3337 = vunpack.c.l.b16 %v1145
        %v3338 = vunpack.c.l.b16 %v1146
        %v3339 = vunpack.c.l.b16 %v1147
        %v3340 = vunpack.c.l.b16 %v1148
        %v3341 = vunpack.c.l.b16 %v1149
        %v3342 = vunpack.c.l.b16 %v1150
        %v3343 = vunpack.c.l.b16 %v1151
        %v3344 = vunpack.c.l.b16 %v1152
        %v3345 = vunpack.c.l.b16 %v1153
        %v3346 = vunpack.c.l.b16 %v1154
        %v3347 = vunpack.c.l.b16 %v1155
        %v3348 = vunpack.c.l.b16 %v1156
        %v3349 = vunpack.c.l.b16 %v1157
        %v3350 = vunpack.c.l.b16 %v1158
        %v3351 = vunpack.c.l.b16 %v1159
        %v3352 = vunpack.c.l.b16 %v1160
        %v3353 = vunpack.c.l.b16 %v1161
        %v3354 = vunpack.c.l.b16 %v1162
        %v3355 = vunpack.c.l.b16 %v1163
        %v3356 = vunpack.c.l.b16 %v1164
        %v3357 = vunpack.c.l.b16 %v1165
        %v3358 = vunpack.c.l.b16 %v1166
        %v3359 = vunpack.c.l.b16 %v1167
        %v3360 = vunpack.c.l.b16 %v1168
        %v3361 = vunpack.c.l.b16 %v1169
        %v3362 = vunpack.c.l.b16 %v1170
        %v3363 = vunpack.c.l.b16 %v1171
        %v3364 = vunpack.c.l.b16 %v1172
        %v3365 = vunpack.c.l.b16 %v1173
        %v3366 = vunpack.c.l.b16 %v1174
        %v3367 = vunpack.c.l.b16 %v1175
        %v3368 = vunpack.c.l.b16 %v1176
        %v3369 = vunpack.c.l.b16 %v1177
        %v3370 = vunpack.c.l.b16 %v1178
        %v3371 = vunpack.c.l.b16 %v1179
        %v3372 = vunpack.c.l.b16 %v1180
        %v3373 = vunpack.c.l.b16 %v1181
        %v3374 = vunpack.c.l.b16 %v1182
        %v3375 = vunpack.c.l.b16 %v1183
        %v3376 = vunpack.c.l.b16 %v1184
        %v3377 = vunpack.c.l.b16 %v1185
        %v3378 = vunpack.c.l.b16 %v1186
        %v3379 = vunpack.c.l.b16 %v1187
        %v3380 = vunpack.c.l.b16 %v1188
        %v3381 = vunpack.c.l.b16 %v1189
        %v3382 = vunpack.c.l.b16 %v1190
        %v3383 = vunpack.c.l.b16 %v1191
        %v3384 = vunpack.c.l.b16 %v1192
        %v3385 = vunpack.c.l.b16 %v1193
        %v3386 = vunpack.c.l.b16 %v1194
        %v3387 = vunpack.c.l.b16 %v1195
        %v3388 = vunpack.c.l.b16 %v1196
        %v3389 = vunpack.c.l.b16 %v1197
        %v3390 = vunpack.c.l.b16 %v1198
        %v3391 = vunpack.c.l.b16 %v1199
        %v3392 = vunpack.c.l.b16 %v1200
        %v3393 = vunpack.c.l.b16 %v1201
        %v3394 = vunpack.c.l.b16 %v1202
        %v3395 = vunpack.c.l.b16 %v1203
        %v3396 = vunpack.c.l.b16 %v1204
        %v3397 = vunpack.c.l.b16 %v1205
        %v3398 = vunpack.c.l.b16 %v1206
        %v3399 = vunpack.c.l.b16 %v1207
        %v3400 = vunpack.c.l.b16 %v1208
        %v3401 = vunpack.c.l.b16 %v1209
        %v3402 = vunpack.c.l.b16 %v1210
        %v3403 = vunpack.c.l.b16 %v1211
        %v3404 = vunpack.c.l.b16 %v1212
        %v3405 = vunpack.c.l.b16 %v1213
        %v3406 = vunpack.c.l.b16 %v1214
        %v3407 = vunpack.c.l.b16 %v1215
        %v3408 = vunpack.c.l.b16 %v1216
        %v3409 = vunpack.c.l.b16 %v1217
        %v3410 = vunpack.c.l.b16 %v1218
        %v3411 = vunpack.c.l.b16 %v1219
        %v3412 = vunpack.c.l.b16 %v1220
        %v3413 = vunpack.c.l.b16 %v1221
        %v3414 = vunpack.c.l.b16 %v1222
        %v3415 = vunpack.c.l.b16 %v1223
        %v3416 = vunpack.c.l.b16 %v1224
        %v3417 = vunpack.c.l.b16 %v1225
        %v3418 = vunpack.c.l.b16 %v1226
        %v3419 = vunpack.c.l.b16 %v1227
        %v3420 = vunpack.c.l.b16 %v1228
        %v3421 = vunpack.c.l.b16 %v1229
        %v3422 = vunpack.c.l.b16 %v1230
        %v3423 = vunpack.c.l.b16 %v1231
        %v3424 = vunpack.c.l.b16 %v1232
        %v3425 = vunpack.c.l.b16 %v1233
        %v3426 = vunpack.c.l.b16 %v1234
        %v3427 = vunpack.c.l.b16 %v1235
        %v3428 = vunpack.c.l.b16 %v1236
        %v3429 = vunpack.c.l.b16 %v1237
        %v3430 = vunpack.c.l.b16 %v1238
        %v3431 = vunpack.c.l.b16 %v1239
        %v3432 = vunpack.c.l.b16 %v1240
        %v3433 = vunpack.c.l.b16 %v1241
        %v3434 = vunpack.c.l.b16 %v1242
        %v3435 = vunpack.c.l.b16 %v1243
        %v3436 = vunpack.c.l.b16 %v1244
        %v3437 = vunpack.c.l.b16 %v1245
        %v3438 = vunpack.c.l.b16 %v1246
        %v3439 = vunpack.c.l.b16 %v1247
        %v3440 = vunpack.c.l.b16 %v1248
        %v3441 = vunpack.c.l.b16 %v1249
        %v3442 = vunpack.c.l.b16 %v1250
        %v3443 = vunpack.c.l.b16 %v1251
        %v3444 = vunpack.c.l.b16 %v1252
        %v3445 = vunpack.c.l.b16 %v1253
        %v3446 = vunpack.c.l.b16 %v1254
        %v3447 = vunpack.c.l.b16 %v1255
        %v3448 = vunpack.c.l.b16 %v1256
        %v3449 = vunpack.c.l.b16 %v1257
        %v3450 = vunpack.c.l.b16 %v1258
        %v3451 = vunpack.c.l.b16 %v1259
        %v3452 = vunpack.c.l.b16 %v1260
        %v3453 = vunpack.c.l.b16 %v1261
        %v3454 = vunpack.c.l.b16 %v1262
        %v3455 = vunpack.c.l.b16 %v1263
        %v3456 = vunpack.c.l.b16 %v1264
        %v3457 = vunpack.c.l.b16 %v1265
        %v3458 = vunpack.c.l.b16 %v1266
        %v3459 = vunpack.c.l.b16 %v1267
        %v3460 = vunpack.c.l.b16 %v1268
        %v3461 = vunpack.c.l.b16 %v1269
        %v3462 = vunpack.c.l.b16 %v1270
        %v3463 = vunpack.c.l.b16 %v1271
        %v3464 = vunpack.c.l.b16 %v1272
        %v3465 = vunpack.c.l.b16 %v1273
        %v3466 = vunpack.c.l.b16 %v1274
        %v3467 = vunpack.c.l.b16 %v1275
        %v3468 = vunpack.c.l.b16 %v1276
        %v3469 = vunpack.c.l.b16 %v1277
        %v3470 = vunpack.c.l.b16 %v1278
        %v3471 = vunpack.c.l.b16 %v1279
        %v3472 = vunpack.c.l.b16 %v1280
        %v3473 = vunpack.c.l.b16 %v1281
        %v3474 = vunpack.c.l.b16 %v1282
        %v3475 = vunpack.c.l.b16 %v1283
        %v3476 = vunpack.c.l.b16 %v1284
        %v3477 = vunpack.c.l.b16 %v1285
        %v3478 = vunpack.c.l.b16 %v1286
        %v3479 = vunpack.c.l.b16 %v1287
        %v3480 = vunpack.c.l.b16 %v1288
        %v3481 = vunpack.c.l.b16 %v1289
        %v3482 = vunpack.c.l.b16 %v1290
        %v3483 = vunpack.c.l.b16 %v1291
        %v3484 = vunpack.c.l.b16 %v1292
        %v3485 = vunpack.c.l.b16 %v1293
        %v3486 = vunpack.c.l.b16 %v1294
        %v3487 = vunpack.c.l.b16 %v1295
        %v3488 = vunpack.c.l.b16 %v1296
        %v3489 = vunpack.c.l.b16 %v1297
        %v3490 = vunpack.c.l.b16 %v1298
        %v3491 = vunpack.c.l.b16 %v1299
        %v3492 = vunpack.c.l.b16 %v1300
        %v3493 = vunpack.c.l.b16 %v1301
        %v3494 = vunpack.c.l.b16 %v1302
        %v3495 = vunpack.c.l.b16 %v1303
        %v3496 = vunpack.c.l.b16 %v1304
        %v3497 = vunpack.c.l.b16 %v1305
        %v3498 = vunpack.c.l.b16 %v1306
        %v3499 = vunpack.c.l.b16 %v1307
        %v3500 = vunpack.c.l.b16 %v1308
        %v3501 = vunpack.c.l.b16 %v1309
        %v3502 = vunpack.c.l.b16 %v1310
        %v3503 = vunpack.c.l.b16 %v1311
        %v3504 = vunpack.c.l.b16 %v1312
        %v3505 = vunpack.c.l.b16 %v1313
        %v3506 = vunpack.c.l.b16 %v1314
        %v3507 = vunpack.c.l.b16 %v1315
        %v3508 = vunpack.c.l.b16 %v1316
        %v3509 = vunpack.c.l.b16 %v1317
        %v3510 = vunpack.c.l.b16 %v1318
        %v3511 = vunpack.c.l.b16 %v1319
        %v3512 = vunpack.c.l.b16 %v1320
        %v3513 = vunpack.c.l.b16 %v1321
        %v3514 = vunpack.c.l.b16 %v1322
        %v3515 = vunpack.c.l.b16 %v1323
        %v3516 = vunpack.c.l.b16 %v1324
        %v3517 = vunpack.c.l.b16 %v1325
        %v3518 = vunpack.c.l.b16 %v1326
        %v3519 = vunpack.c.l.b16 %v1327
        %v3520 = vunpack.c.l.b16 %v1328
        %v3521 = vunpack.c.l.b16 %v1329
        %v3522 = vunpack.c.l.b16 %v1330
        %v3523 = vunpack.c.l.b16 %v1331
        %v3524 = vunpack.c.l.b16 %v1332
        %v3525 = vunpack.c.l.b16 %v1333
        %v3526 = vunpack.c.l.b16 %v1334
        %v3527 = vunpack.c.l.b16 %v1335
        %v3528 = vunpack.c.l.b16 %v1336
        %v3529 = vunpack.c.l.b16 %v1337
        %v3530 = vunpack.c.l.b16 %v1338
        %v3531 = vunpack.c.l.b16 %v1339
        %v3532 = vunpack.c.l.b16 %v1340
        %v3533 = vunpack.c.l.b16 %v1341
        %v3534 = vunpack.c.l.b16 %v1342
        %v3535 = vunpack.c.l.b16 %v1343
        %v3536 = vunpack.c.l.b16 %v1344
        %v3537 = vunpack.c.l.b16 %v1345
        %v3538 = vunpack.c.l.b16 %v1346
        %v3539 = vunpack.c.l.b16 %v1347
        %v3540 = vunpack.c.l.b16 %v1348
        %v3541 = vunpack.c.l.b16 %v1349
        %v3542 = vunpack.c.l.b16 %v1350
        %v3543 = vunpack.c.l.b16 %v1351
        %v3544 = vunpack.c.l.b16 %v1352
        %v3545 = vunpack.c.l.b16 %v1353
        %v3546 = vunpack.c.l.b16 %v1354
        %v3547 = vunpack.c.l.b16 %v1355
        %v3548 = vunpack.c.l.b16 %v1356
        %v3549 = vunpack.c.l.b16 %v1357
        %v3550 = vunpack.c.l.b16 %v1358
        %v3551 = vunpack.c.l.b16 %v1359
        %v3552 = vunpack.c.l.b16 %v1360
        %v3553 = vunpack.c.l.b16 %v1361
        %v3554 = vunpack.c.l.b16 %v1362
        %v3555 = vunpack.c.l.b16 %v1363
        %v3556 = vunpack.c.l.b16 %v1364
        %v3557 = vunpack.c.l.b16 %v1365
        %v3558 = vunpack.c.l.b16 %v1366
        %v3559 = vunpack.c.l.b16 %v1367
        %v3560 = vunpack.c.l.b16 %v1368
        %v3561 = vunpack.c.l.b16 %v1369
        %v3562 = vunpack.c.l.b16 %v1370
        %v3563 = vunpack.c.l.b16 %v1371
        %v3564 = vunpack.c.l.b16 %v1372
        %v3565 = vunpack.c.l.b16 %v1373
        %v3566 = vunpack.c.l.b16 %v1374
        %v3567 = vunpack.c.l.b16 %v1375
        %v3568 = vunpack.c.l.b16 %v1376
        %v3569 = vpack.c.b16 %v2546, %v2545
        %v3570 = vpack.c.b16 %v2548, %v2547
        %v3571 = vpack.c.b16 %v2550, %v2549
        %v3572 = vpack.c.b16 %v2552, %v2551
        %v3573 = vpack.c.b16 %v2554, %v2553
        %v3574 = vpack.c.b16 %v2556, %v2555
        %v3575 = vpack.c.b16 %v2558, %v2557
        %v3576 = vpack.c.b16 %v2560, %v2559
        %v3577 = vpack.c.b16 %v2562, %v2561
        %v3578 = vpack.c.b16 %v2564, %v2563
        %v3579 = vpack.c.b16 %v2566, %v2565
        %v3580 = vpack.c.b16 %v2568, %v2567
        %v3581 = vpack.c.b16 %v2570, %v2569
        %v3582 = vpack.c.b16 %v2572, %v2571
        %v3583 = vpack.c.b16 %v2574, %v2573
        %v3584 = vpack.c.b16 %v2576, %v2575
        %v3585 = vpack.c.b16 %v2578, %v2577
        %v3586 = vpack.c.b16 %v2580, %v2579
        %v3587 = vpack.c.b16 %v2582, %v2581
        %v3588 = vpack.c.b16 %v2584, %v2583
        %v3589 = vpack.c.b16 %v2586, %v2585
        %v3590 = vpack.c.b16 %v2588, %v2587
        %v3591 = vpack.c.b16 %v2590, %v2589
        %v3592 = vpack.c.b16 %v2592, %v2591
        %v3593 = vpack.c.b16 %v2594, %v2593
        %v3594 = vpack.c.b16 %v2596, %v2595
        %v3595 = vpack.c.b16 %v2598, %v2597
        %v3596 = vpack.c.b16 %v2600, %v2599
        %v3597 = vpack.c.b16 %v2602, %v2601
        %v3598 = vpack.c.b16 %v2604, %v2603
        %v3599 = vpack.c.b16 %v2606, %v2605
        %v3600 = vpack.c.b16 %v2608, %v2607
        %v3601 = vpack.c.b16 %v2610, %v2609
        %v3602 = vpack.c.b16 %v2612, %v2611
        %v3603 = vpack.c.b16 %v2614, %v2613
        %v3604 = vpack.c.b16 %v2616, %v2615
        %v3605 = vpack.c.b16 %v2618, %v2617
        %v3606 = vpack.c.b16 %v2620, %v2619
        %v3607 = vpack.c.b16 %v2622, %v2621
        %v3608 = vpack.c.b16 %v2624, %v2623
        %v3609 = vpack.c.b16 %v2626, %v2625
        %v3610 = vpack.c.b16 %v2628, %v2627
        %v3611 = vpack.c.b16 %v2630, %v2629
        %v3612 = vpack.c.b16 %v2632, %v2631
        %v3613 = vpack.c.b16 %v2634, %v2633
        %v3614 = vpack.c.b16 %v2636, %v2635
        %v3615 = vpack.c.b16 %v2638, %v2637
        %v3616 = vpack.c.b16 %v2640, %v2639
        %v3617 = vpack.c.b16 %v2642, %v2641
        %v3618 = vpack.c.b16 %v2644, %v2643
        %v3619 = vpack.c.b16 %v2646, %v2645
        %v3620 = vpack.c.b16 %v2648, %v2647
        %v3621 = vpack.c.b16 %v2650, %v2649
        %v3622 = vpack.c.b16 %v2652, %v2651
        %v3623 = vpack.c.b16 %v2654, %v2653
        %v3624 = vpack.c.b16 %v2656, %v2655
        %v3625 = vpack.c.b16 %v2658, %v2657
        %v3626 = vpack.c.b16 %v2660, %v2659
        %v3627 = vpack.c.b16 %v2662, %v2661
        %v3628 = vpack.c.b16 %v2664, %v2663
        %v3629 = vpack.c.b16 %v2666, %v2665
        %v3630 = vpack.c.b16 %v2668, %v2667
        %v3631 = vpack.c.b16 %v2670, %v2669
        %v3632 = vpack.c.b16 %v2672, %v2671
        %v3633 = vpack.c.b16 %v2674, %v2673
        %v3634 = vpack.c.b16 %v2676, %v2675
        %v3635 = vpack.c.b16 %v2678, %v2677
        %v3636 = vpack.c.b16 %v2680, %v2679
        %v3637 = vpack.c.b16 %v2682, %v2681
        %v3638 = vpack.c.b16 %v2684, %v2683
        %v3639 = vpack.c.b16 %v2686, %v2685
        %v3640 = vpack.c.b16 %v2688, %v2687
        %v3641 = vpack.c.b16 %v2690, %v2689
        %v3642 = vpack.c.b16 %v2692, %v2691
        %v3643 = vpack.c.b16 %v2694, %v2693
        %v3644 = vpack.c.b16 %v2696, %v2695
        %v3645 = vpack.c.b16 %v2698, %v2697
        %v3646 = vpack.c.b16 %v2700, %v2699
        %v3647 = vpack.c.b16 %v2702, %v2701
        %v3648 = vpack.c.b16 %v2704, %v2703
        %v3649 = vpack.c.b16 %v2706, %v2705
        %v3650 = vpack.c.b16 %v2708, %v2707
        %v3651 = vpack.c.b16 %v2710, %v2709
        %v3652 = vpack.c.b16 %v2712, %v2711
        %v3653 = vpack.c.b16 %v2714, %v2713
        %v3654 = vpack.c.b16 %v2716, %v2715
        %v3655 = vpack.c.b16 %v2718, %v2717
        %v3656 = vpack.c.b16 %v2720, %v2719
        %v3657 = vpack.c.b16 %v2722, %v2721
        %v3658 = vpack.c.b16 %v2724, %v2723
        %v3659 = vpack.c.b16 %v2726, %v2725
        %v3660 = vpack.c.b16 %v2728, %v2727
        %v3661 = vpack.c.b16 %v2730, %v2729
        %v3662 = vpack.c.b16 %v2732, %v2731
        %v3663 = vpack.c.b16 %v2734, %v2733
        %v3664 = vpack.c.b16 %v2736, %v2735
        %v3665 = vpack.c.b16 %v2738, %v2737
        %v3666 = vpack.c.b16 %v2740, %v2739
        %v3667 = vpack.c.b16 %v2742, %v2741
        %v3668 = vpack.c.b16 %v2744, %v2743
        %v3669 = vpack.c.b16 %v2746, %v2745
        %v3670 = vpack.c.b16 %v2748, %v2747
        %v3671 = vpack.c.b16 %v2750, %v2749
        %v3672 = vpack.c.b16 %v2752, %v2751
        %v3673 = vpack.c.b16 %v2754, %v2753
        %v3674 = vpack.c.b16 %v2756, %v2755
        %v3675 = vpack.c.b16 %v2758, %v2757
        %v3676 = vpack.c.b16 %v2760, %v2759
        %v3677 = vpack.c.b16 %v2762, %v2761
        %v3678 = vpack.c.b16 %v2764, %v2763
        %v3679 = vpack.c.b16 %v2766, %v2765
        %v3680 = vpack.c.b16 %v2768, %v2767
        %v3681 = vpack.c.b16 %v2770, %v2769
        %v3682 = vpack.c.b16 %v2772, %v2771
        %v3683 = vpack.c.b16 %v2774, %v2773
        %v3684 = vpack.c.b16 %v2776, %v2775
        %v3685 = vpack.c.b16 %v2778, %v2777
        %v3686 = vpack.c.b16 %v2780, %v2779
        %v3687 = vpack.c.b16 %v2782, %v2781
        %v3688 = vpack.c.b16 %v2784, %v2783
        %v3689 = vpack.c.b16 %v2786, %v2785
        %v3690 = vpack.c.b16 %v2788, %v2787
        %v3691 = vpack.c.b16 %v2790, %v2789
        %v3692 = vpack.c.b16 %v2792, %v2791
        %v3693 = vpack.c.b16 %v2794, %v2793
        %v3694 = vpack.c.b16 %v2796, %v2795
        %v3695 = vpack.c.b16 %v2798, %v2797
        %v3696 = vpack.c.b16 %v2800, %v2799
        %v3697 = vpack.c.b16 %v2802, %v2801
        %v3698 = vpack.c.b16 %v2804, %v2803
        %v3699 = vpack.c.b16 %v2806, %v2805
        %v3700 = vpack.c.b16 %v2808, %v2807
        %v3701 = vpack.c.b16 %v2810, %v2809
        %v3702 = vpack.c.b16 %v2812, %v2811
        %v3703 = vpack.c.b16 %v2814, %v2813
        %v3704 = vpack.c.b16 %v2816, %v2815
        %v3705 = vpack.c.b16 %v2818, %v2817
        %v3706 = vpack.c.b16 %v2820, %v2819
        %v3707 = vpack.c.b16 %v2822, %v2821
        %v3708 = vpack.c.b16 %v2824, %v2823
        %v3709 = vpack.c.b16 %v2826, %v2825
        %v3710 = vpack.c.b16 %v2828, %v2827
        %v3711 = vpack.c.b16 %v2830, %v2829
        %v3712 = vpack.c.b16 %v2832, %v2831
        %v3713 = vpack.c.b16 %v2834, %v2833
        %v3714 = vpack.c.b16 %v2836, %v2835
        %v3715 = vpack.c.b16 %v2838, %v2837
        %v3716 = vpack.c.b16 %v2840, %v2839
        %v3717 = vpack.c.b16 %v2842, %v2841
        %v3718 = vpack.c.b16 %v2844, %v2843
        %v3719 = vpack.c.b16 %v2846, %v2845
        %v3720 = vpack.c.b16 %v2848, %v2847
        %v3721 = vpack.c.b16 %v2850, %v2849
        %v3722 = vpack.c.b16 %v2852, %v2851
        %v3723 = vpack.c.b16 %v2854, %v2853
        %v3724 = vpack.c.b16 %v2856, %v2855
        %v3725 = vpack.c.b16 %v2858, %v2857
        %v3726 = vpack.c.b16 %v2860, %v2859
        %v3727 = vpack.c.b16 %v2862, %v2861
        %v3728 = vpack.c.b16 %v2864, %v2863
        %v3729 = vpack.c.b16 %v2866, %v2865
        %v3730 = vpack.c.b16 %v2868, %v2867
        %v3731 = vpack.c.b16 %v2870, %v2869
        %v3732 = vpack.c.b16 %v2872, %v2871
        %v3733 = vpack.c.b16 %v2874, %v2873
        %v3734 = vpack.c.b16 %v2876, %v2875
        %v3735 = vpack.c.b16 %v2878, %v2877
        %v3736 = vpack.c.b16 %v2880, %v2879
        %v3737 = vpack.c.b16 %v2882, %v2881
        %v3738 = vpack.c.b16 %v2884, %v2883
        %v3739 = vpack.c.b16 %v2886, %v2885
        %v3740 = vpack.c.b16 %v2888, %v2887
        %v3741 = vpack.c.b16 %v2890, %v2889
        %v3742 = vpack.c.b16 %v2892, %v2891
        %v3743 = vpack.c.b16 %v2894, %v2893
        %v3744 = vpack.c.b16 %v2896, %v2895
        %v3745 = vpack.c.b16 %v2898, %v2897
        %v3746 = vpack.c.b16 %v2900, %v2899
        %v3747 = vpack.c.b16 %v2902, %v2901
        %v3748 = vpack.c.b16 %v2904, %v2903
        %v3749 = vpack.c.b16 %v2906, %v2905
        %v3750 = vpack.c.b16 %v2908, %v2907
        %v3751 = vpack.c.b16 %v2910, %v2909
        %v3752 = vpack.c.b16 %v2912, %v2911
        %v3753 = vpack.c.b16 %v2914, %v2913
        %v3754 = vpack.c.b16 %v2916, %v2915
        %v3755 = vpack.c.b16 %v2918, %v2917
        %v3756 = vpack.c.b16 %v2920, %v2919
        %v3757 = vpack.c.b16 %v2922, %v2921
        %v3758 = vpack.c.b16 %v2924, %v2923
        %v3759 = vpack.c.b16 %v2926, %v2925
        %v3760 = vpack.c.b16 %v2928, %v2927
        %v3761 = vpack.c.b16 %v2930, %v2929
        %v3762 = vpack.c.b16 %v2932, %v2931
        %v3763 = vpack.c.b16 %v2934, %v2933
        %v3764 = vpack.c.b16 %v2936, %v2935
        %v3765 = vpack.c.b16 %v2938, %v2937
        %v3766 = vpack.c.b16 %v2940, %v2939
        %v3767 = vpack.c.b16 %v2942, %v2941
        %v3768 = vpack.c.b16 %v2944, %v2943
        %v3769 = vpack.c.b16 %v2946, %v2945
        %v3770 = vpack.c.b16 %v2948, %v2947
        %v3771 = vpack.c.b16 %v2950, %v2949
        %v3772 = vpack.c.b16 %v2952, %v2951
        %v3773 = vpack.c.b16 %v2954, %v2953
        %v3774 = vpack.c.b16 %v2956, %v2955
        %v3775 = vpack.c.b16 %v2958, %v2957
        %v3776 = vpack.c.b16 %v2960, %v2959
        %v3777 = vpack.c.b16 %v2962, %v2961
        %v3778 = vpack.c.b16 %v2964, %v2963
        %v3779 = vpack.c.b16 %v2966, %v2965
        %v3780 = vpack.c.b16 %v2968, %v2967
        %v3781 = vpack.c.b16 %v2970, %v2969
        %v3782 = vpack.c.b16 %v2972, %v2971
        %v3783 = vpack.c.b16 %v2974, %v2973
        %v3784 = vpack.c.b16 %v2976, %v2975
        %v3785 = vpack.c.b16 %v2978, %v2977
        %v3786 = vpack.c.b16 %v2980, %v2979
        %v3787 = vpack.c.b16 %v2982, %v2981
        %v3788 = vpack.c.b16 %v2984, %v2983
        %v3789 = vpack.c.b16 %v2986, %v2985
        %v3790 = vpack.c.b16 %v2988, %v2987
        %v3791 = vpack.c.b16 %v2990, %v2989
        %v3792 = vpack.c.b16 %v2992, %v2991
        %v3793 = vpack.c.b16 %v2994, %v2993
        %v3794 = vpack.c.b16 %v2996, %v2995
        %v3795 = vpack.c.b16 %v2998, %v2997
        %v3796 = vpack.c.b16 %v3000, %v2999
        %v3797 = vpack.c.b16 %v3002, %v3001
        %v3798 = vpack.c.b16 %v3004, %v3003
        %v3799 = vpack.c.b16 %v3006, %v3005
        %v3800 = vpack.c.b16 %v3008, %v3007
        %v3801 = vpack.c.b16 %v3010, %v3009
        %v3802 = vpack.c.b16 %v3012, %v3011
        %v3803 = vpack.c.b16 %v3014, %v3013
        %v3804 = vpack.c.b16 %v3016, %v3015
        %v3805 = vpack.c.b16 %v3018, %v3017
        %v3806 = vpack.c.b16 %v3020, %v3019
        %v3807 = vpack.c.b16 %v3022, %v3021
        %v3808 = vpack.c.b16 %v3024, %v3023
        %v3809 = vpack.c.b16 %v3026, %v3025
        %v3810 = vpack.c.b16 %v3028, %v3027
        %v3811 = vpack.c.b16 %v3030, %v3029
        %v3812 = vpack.c.b16 %v3032, %v3031
        %v3813 = vpack.c.b16 %v3034, %v3033
        %v3814 = vpack.c.b16 %v3036, %v3035
        %v3815 = vpack.c.b16 %v3038, %v3037
        %v3816 = vpack.c.b16 %v3040, %v3039
        %v3817 = vpack.c.b16 %v3042, %v3041
        %v3818 = vpack.c.b16 %v3044, %v3043
        %v3819 = vpack.c.b16 %v3046, %v3045
        %v3820 = vpack.c.b16 %v3048, %v3047
        %v3821 = vpack.c.b16 %v3050, %v3049
        %v3822 = vpack.c.b16 %v3052, %v3051
        %v3823 = vpack.c.b16 %v3054, %v3053
        %v3824 = vpack.c.b16 %v3056, %v3055
        %v3825 = vpack.c.b16 %v3058, %v3057
        %v3826 = vpack.c.b16 %v3060, %v3059
        %v3827 = vpack.c.b16 %v3062, %v3061
        %v3828 = vpack.c.b16 %v3064, %v3063
        %v3829 = vpack.c.b16 %v3066, %v3065
        %v3830 = vpack.c.b16 %v3068, %v3067
        %v3831 = vpack.c.b16 %v3070, %v3069
        %v3832 = vpack.c.b16 %v3072, %v3071
        %v3833 = vpack.c.b16 %v3074, %v3073
        %v3834 = vpack.c.b16 %v3076, %v3075
        %v3835 = vpack.c.b16 %v3078, %v3077
        %v3836 = vpack.c.b16 %v3080, %v3079
        %v3837 = vpack.c.b16 %v3082, %v3081
        %v3838 = vpack.c.b16 %v3084, %v3083
        %v3839 = vpack.c.b16 %v3086, %v3085
        %v3840 = vpack.c.b16 %v3088, %v3087
        %v3841 = vpack.c.b16 %v3090, %v3089
        %v3842 = vpack.c.b16 %v3092, %v3091
        %v3843 = vpack.c.b16 %v3094, %v3093
        %v3844 = vpack.c.b16 %v3096, %v3095
        %v3845 = vpack.c.b16 %v3098, %v3097
        %v3846 = vpack.c.b16 %v3100, %v3099
        %v3847 = vpack.c.b16 %v3102, %v3101
        %v3848 = vpack.c.b16 %v3104, %v3103
        %v3849 = vpack.c.b16 %v3106, %v3105
        %v3850 = vpack.c.b16 %v3108, %v3107
        %v3851 = vpack.c.b16 %v3110, %v3109
        %v3852 = vpack.c.b16 %v3112, %v3111
        %v3853 = vpack.c.b16 %v3114, %v3113
        %v3854 = vpack.c.b16 %v3116, %v3115
        %v3855 = vpack.c.b16 %v3118, %v3117
        %v3856 = vpack.c.b16 %v3120, %v3119
        %v3857 = vpack.c.b16 %v3122, %v3121
        %v3858 = vpack.c.b16 %v3124, %v3123
        %v3859 = vpack.c.b16 %v3126, %v3125
        %v3860 = vpack.c.b16 %v3128, %v3127
        %v3861 = vpack.c.b16 %v3130, %v3129
        %v3862 = vpack.c.b16 %v3132, %v3131
        %v3863 = vpack.c.b16 %v3134, %v3133
        %v3864 = vpack.c.b16 %v3136, %v3135
        %v3865 = vpack.c.b16 %v3138, %v3137
        %v3866 = vpack.c.b16 %v3140, %v3139
        %v3867 = vpack.c.b16 %v3142, %v3141
        %v3868 = vpack.c.b16 %v3144, %v3143
        %v3869 = vpack.c.b16 %v3146, %v3145
        %v3870 = vpack.c.b16 %v3148, %v3147
        %v3871 = vpack.c.b16 %v3150, %v3149
        %v3872 = vpack.c.b16 %v3152, %v3151
        %v3873 = vpack.c.b16 %v3154, %v3153
        %v3874 = vpack.c.b16 %v3156, %v3155
        %v3875 = vpack.c.b16 %v3158, %v3157
        %v3876 = vpack.c.b16 %v3160, %v3159
        %v3877 = vpack.c.b16 %v3162, %v3161
        %v3878 = vpack.c.b16 %v3164, %v3163
        %v3879 = vpack.c.b16 %v3166, %v3165
        %v3880 = vpack.c.b16 %v3168, %v3167
        %v3881 = vpack.c.b16 %v3170, %v3169
        %v3882 = vpack.c.b16 %v3172, %v3171
        %v3883 = vpack.c.b16 %v3174, %v3173
        %v3884 = vpack.c.b16 %v3176, %v3175
        %v3885 = vpack.c.b16 %v3178, %v3177
        %v3886 = vpack.c.b16 %v3180, %v3179
        %v3887 = vpack.c.b16 %v3182, %v3181
        %v3888 = vpack.c.b16 %v3184, %v3183
        %v3889 = vpack.c.b16 %v3186, %v3185
        %v3890 = vpack.c.b16 %v3188, %v3187
        %v3891 = vpack.c.b16 %v3190, %v3189
        %v3892 = vpack.c.b16 %v3192, %v3191
        %v3893 = vpack.c.b16 %v3194, %v3193
        %v3894 = vpack.c.b16 %v3196, %v3195
        %v3895 = vpack.c.b16 %v3198, %v3197
        %v3896 = vpack.c.b16 %v3200, %v3199
        %v3897 = vpack.c.b16 %v3202, %v3201
        %v3898 = vpack.c.b16 %v3204, %v3203
        %v3899 = vpack.c.b16 %v3206, %v3205
        %v3900 = vpack.c.b16 %v3208, %v3207
        %v3901 = vpack.c.b16 %v3210, %v3209
        %v3902 = vpack.c.b16 %v3212, %v3211
        %v3903 = vpack.c.b16 %v3214, %v3213
        %v3904 = vpack.c.b16 %v3216, %v3215
        %v3905 = vpack.c.b16 %v3218, %v3217
        %v3906 = vpack.c.b16 %v3220, %v3219
        %v3907 = vpack.c.b16 %v3222, %v3221
        %v3908 = vpack.c.b16 %v3224, %v3223
        %v3909 = vpack.c.b16 %v3226, %v3225
        %v3910 = vpack.c.b16 %v3228, %v3227
        %v3911 = vpack.c.b16 %v3230, %v3229
        %v3912 = vpack.c.b16 %v3232, %v3231
        %v3913 = vpack.c.b16 %v3234, %v3233
        %v3914 = vpack.c.b16 %v3236, %v3235
        %v3915 = vpack.c.b16 %v3238, %v3237
        %v3916 = vpack.c.b16 %v3240, %v3239
        %v3917 = vpack.c.b16 %v3242, %v3241
        %v3918 = vpack.c.b16 %v3244, %v3243
        %v3919 = vpack.c.b16 %v3246, %v3245
        %v3920 = vpack.c.b16 %v3248, %v3247
        %v3921 = vpack.c.b16 %v3250, %v3249
        %v3922 = vpack.c.b16 %v3252, %v3251
        %v3923 = vpack.c.b16 %v3254, %v3253
        %v3924 = vpack.c.b16 %v3256, %v3255
        %v3925 = vpack.c.b16 %v3258, %v3257
        %v3926 = vpack.c.b16 %v3260, %v3259
        %v3927 = vpack.c.b16 %v3262, %v3261
        %v3928 = vpack.c.b16 %v3264, %v3263
        %v3929 = vpack.c.b16 %v3266, %v3265
        %v3930 = vpack.c.b16 %v3268, %v3267
        %v3931 = vpack.c.b16 %v3270, %v3269
        %v3932 = vpack.c.b16 %v3272, %v3271
        %v3933 = vpack.c.b16 %v3274, %v3273
        %v3934 = vpack.c.b16 %v3276, %v3275
        %v3935 = vpack.c.b16 %v3278, %v3277
        %v3936 = vpack.c.b16 %v3280, %v3279
        %v3937 = vpack.c.b16 %v3282, %v3281
        %v3938 = vpack.c.b16 %v3284, %v3283
        %v3939 = vpack.c.b16 %v3286, %v3285
        %v3940 = vpack.c.b16 %v3288, %v3287
        %v3941 = vpack.c.b16 %v3290, %v3289
        %v3942 = vpack.c.b16 %v3292, %v3291
        %v3943 = vpack.c.b16 %v3294, %v3293
        %v3944 = vpack.c.b16 %v3296, %v3295
        %v3945 = vpack.c.b16 %v3298, %v3297
        %v3946 = vpack.c.b16 %v3300, %v3299
        %v3947 = vpack.c.b16 %v3302, %v3301
        %v3948 = vpack.c.b16 %v3304, %v3303
        %v3949 = vpack.c.b16 %v3306, %v3305
        %v3950 = vpack.c.b16 %v3308, %v3307
        %v3951 = vpack.c.b16 %v3310, %v3309
        %v3952 = vpack.c.b16 %v3312, %v3311
        %v3953 = vpack.c.b16 %v3314, %v3313
        %v3954 = vpack.c.b16 %v3316, %v3315
        %v3955 = vpack.c.b16 %v3318, %v3317
        %v3956 = vpack.c.b16 %v3320, %v3319
        %v3957 = vpack.c.b16 %v3322, %v3321
        %v3958 = vpack.c.b16 %v3324, %v3323
        %v3959 = vpack.c.b16 %v3326, %v3325
        %v3960 = vpack.c.b16 %v3328, %v3327
        %v3961 = vpack.c.b16 %v3330, %v3329
        %v3962 = vpack.c.b16 %v3332, %v3331
        %v3963 = vpack.c.b16 %v3334, %v3333
        %v3964 = vpack.c.b16 %v3336, %v3335
        %v3965 = vpack.c.b16 %v3338, %v3337
        %v3966 = vpack.c.b16 %v3340, %v3339
        %v3967 = vpack.c.b16 %v3342, %v3341
        %v3968 = vpack.c.b16 %v3344, %v3343
        %v3969 = vpack.c.b16 %v3346, %v3345
        %v3970 = vpack.c.b16 %v3348, %v3347
        %v3971 = vpack.c.b16 %v3350, %v3349
        %v3972 = vpack.c.b16 %v3352, %v3351
        %v3973 = vpack.c.b16 %v3354, %v3353
        %v3974 = vpack.c.b16 %v3356, %v3355
        %v3975 = vpack.c.b16 %v3358, %v3357
        %v3976 = vpack.c.b16 %v3360, %v3359
        %v3977 = vpack.c.b16 %v3362, %v3361
        %v3978 = vpack.c.b16 %v3364, %v3363
        %v3979 = vpack.c.b16 %v3366, %v3365
        %v3980 = vpack.c.b16 %v3368, %v3367
        %v3981 = vpack.c.b16 %v3370, %v3369
        %v3982 = vpack.c.b16 %v3372, %v3371
        %v3983 = vpack.c.b16 %v3374, %v3373
        %v3984 = vpack.c.b16 %v3376, %v3375
        %v3985 = vpack.c.b16 %v3378, %v3377
        %v3986 = vpack.c.b16 %v3380, %v3379
        %v3987 = vpack.c.b16 %v3382, %v3381
        %v3988 = vpack.c.b16 %v3384, %v3383
        %v3989 = vpack.c.b16 %v3386, %v3385
        %v3990 = vpack.c.b16 %v3388, %v3387
        %v3991 = vpack.c.b16 %v3390, %v3389
        %v3992 = vpack.c.b16 %v3392, %v3391
        %v3993 = vpack.c.b16 %v3394, %v3393
        %v3994 = vpack.c.b16 %v3396, %v3395
        %v3995 = vpack.c.b16 %v3398, %v3397
        %v3996 = vpack.c.b16 %v3400, %v3399
        %v3997 = vpack.c.b16 %v3402, %v3401
        %v3998 = vpack.c.b16 %v3404, %v3403
        %v3999 = vpack.c.b16 %v3406, %v3405
        %v4000 = vpack.c.b16 %v3408, %v3407
        %v4001 = vpack.c.b16 %v3410, %v3409
        %v4002 = vpack.c.b16 %v3412, %v3411
        %v4003 = vpack.c.b16 %v3414, %v3413
        %v4004 = vpack.c.b16 %v3416, %v3415
        %v4005 = vpack.c.b16 %v3418, %v3417
        %v4006 = vpack.c.b16 %v3420, %v3419
        %v4007 = vpack.c.b16 %v3422, %v3421
        %v4008 = vpack.c.b16 %v3424, %v3423
        %v4009 = vpack.c.b16 %v3426, %v3425
        %v4010 = vpack.c.b16 %v3428, %v3427
        %v4011 = vpack.c.b16 %v3430, %v3429
        %v4012 = vpack.c.b16 %v3432, %v3431
        %v4013 = vpack.c.b16 %v3434, %v3433
        %v4014 = vpack.c.b16 %v3436, %v3435
        %v4015 = vpack.c.b16 %v3438, %v3437
        %v4016 = vpack.c.b16 %v3440, %v3439
        %v4017 = vpack.c.b16 %v3442, %v3441
        %v4018 = vpack.c.b16 %v3444, %v3443
        %v4019 = vpack.c.b16 %v3446, %v3445
        %v4020 = vpack.c.b16 %v3448, %v3447
        %v4021 = vpack.c.b16 %v3450, %v3449
        %v4022 = vpack.c.b16 %v3452, %v3451
        %v4023 = vpack.c.b16 %v3454, %v3453
        %v4024 = vpack.c.b16 %v3456, %v3455
        %v4025 = vpack.c.b16 %v3458, %v3457
        %v4026 = vpack.c.b16 %v3460, %v3459
        %v4027 = vpack.c.b16 %v3462, %v3461
        %v4028 = vpack.c.b16 %v3464, %v3463
        %v4029 = vpack.c.b16 %v3466, %v3465
        %v4030 = vpack.c.b16 %v3468, %v3467
        %v4031 = vpack.c.b16 %v3470, %v3469
        %v4032 = vpack.c.b16 %v3472, %v3471
        %v4033 = vpack.c.b16 %v3474, %v3473
        %v4034 = vpack.c.b16 %v3476, %v3475
        %v4035 = vpack.c.b16 %v3478, %v3477
        %v4036 = vpack.c.b16 %v3480, %v3479
        %v4037 = vpack.c.b16 %v3482, %v3481
        %v4038 = vpack.c.b16 %v3484, %v3483
        %v4039 = vpack.c.b16 %v3486, %v3485
        %v4040 = vpack.c.b16 %v3488, %v3487
        %v4041 = vpack.c.b16 %v3490, %v3489
        %v4042 = vpack.c.b16 %v3492, %v3491
        %v4043 = vpack.c.b16 %v3494, %v3493
        %v4044 = vpack.c.b16 %v3496, %v3495
        %v4045 = vpack.c.b16 %v3498, %v3497
        %v4046 = vpack.c.b16 %v3500, %v3499
        %v4047 = vpack.c.b16 %v3502, %v3501
        %v4048 = vpack.c.b16 %v3504, %v3503
        %v4049 = vpack.c.b16 %v3506, %v3505
        %v4050 = vpack.c.b16 %v3508, %v3507
        %v4051 = vpack.c.b16 %v3510, %v3509
        %v4052 = vpack.c.b16 %v3512, %v3511
        %v4053 = vpack.c.b16 %v3514, %v3513
        %v4054 = vpack.c.b16 %v3516, %v3515
        %v4055 = vpack.c.b16 %v3518, %v3517
        %v4056 = vpack.c.b16 %v3520, %v3519
        %v4057 = vpack.c.b16 %v3522, %v3521
        %v4058 = vpack.c.b16 %v3524, %v3523
        %v4059 = vpack.c.b16 %v3526, %v3525
        %v4060 = vpack.c.b16 %v3528, %v3527
        %v4061 = vpack.c.b16 %v3530, %v3529
        %v4062 = vpack.c.b16 %v3532, %v3531
        %v4063 = vpack.c.b16 %v3534, %v3533
        %v4064 = vpack.c.b16 %v3536, %v3535
        %v4065 = vpack.c.b16 %v3538, %v3537
        %v4066 = vpack.c.b16 %v3540, %v3539
        %v4067 = vpack.c.b16 %v3542, %v3541
        %v4068 = vpack.c.b16 %v3544, %v3543
        %v4069 = vpack.c.b16 %v3546, %v3545
        %v4070 = vpack.c.b16 %v3548, %v3547
        %v4071 = vpack.c.b16 %v3550, %v3549
        %v4072 = vpack.c.b16 %v3552, %v3551
        %v4073 = vpack.c.b16 %v3554, %v3553
        %v4074 = vpack.c.b16 %v3556, %v3555
        %v4075 = vpack.c.b16 %v3558, %v3557
        %v4076 = vpack.c.b16 %v3560, %v3559
        %v4077 = vpack.c.b16 %v3562, %v3561
        %v4078 = vpack.c.b16 %v3564, %v3563
        %v4079 = vpack.c.b16 %v3566, %v3565
        %v4080 = vpack.c.b16 %v3568, %v3567
        %4593 = vmatpush.bf16.msra.mxu0 %v3576
        %4594 = vmatpush.bf16.msra.mxu0 %v3575
        %4595 = vmatpush.bf16.msra.mxu0 %v3574
        %4596 = vmatpush.bf16.msra.mxu0 %v3573
        %4597 = vmatpush.bf16.msra.mxu0 %v3572
        %4598 = vmatpush.bf16.msra.mxu0 %v3571
        %4599 = vmatpush.bf16.msra.mxu0 %v3570
        %4600 = vmatpush.bf16.msra.mxu0 %v3569
        %4601 = vmatmul.bf16.gmra.mxu0 %v1379
        %v4602 = vpop.f32.mrf.mxu0
        %v4603 = vadd.f32 0.0, %v4602
        %v4604 = vpop.f32.mrf.mxu0
        %4605 = vdwg.mxu0
        %4606 = vmatpush.bf16.msra.mxu0 %v3584
        %4607 = vmatpush.bf16.msra.mxu0 %v3583
        %4608 = vmatpush.bf16.msra.mxu0 %v3582
        %4609 = vmatpush.bf16.msra.mxu0 %v3581
        %4610 = vmatpush.bf16.msra.mxu0 %v3580
        %4611 = vmatpush.bf16.msra.mxu0 %v3579
        %4612 = vmatpush.bf16.msra.mxu0 %v3578
        %4613 = vmatpush.bf16.msra.mxu0 %v3577
        %4614 = vmatmul.bf16.gmra.mxu0 %v1380
        %v4615 = vpop.f32.mrf.mxu0
        %v4616 = vadd.f32 %v4603, %v4615
        %v4617 = vpop.f32.mrf.mxu0
        %4618 = vdwg.mxu0
        %4619 = vmatpush.bf16.msra.mxu0 %v3592
        %4620 = vmatpush.bf16.msra.mxu0 %v3591
        %4621 = vmatpush.bf16.msra.mxu0 %v3590
        %4622 = vmatpush.bf16.msra.mxu0 %v3589
        %4623 = vmatpush.bf16.msra.mxu0 %v3588
        %4624 = vmatpush.bf16.msra.mxu0 %v3587
        %4625 = vmatpush.bf16.msra.mxu0 %v3586
        %4626 = vmatpush.bf16.msra.mxu0 %v3585
        %4627 = vmatmul.bf16.gmra.mxu0 %v1381
        %v4628 = vpop.f32.mrf.mxu0
        %v4629 = vadd.f32 %v4616, %v4628
        %v4630 = vpop.f32.mrf.mxu0
        %4631 = vdwg.mxu0
        %4632 = vmatpush.bf16.msra.mxu0 %v3600
        %4633 = vmatpush.bf16.msra.mxu0 %v3599
        %4634 = vmatpush.bf16.msra.mxu0 %v3598
        %4635 = vmatpush.bf16.msra.mxu0 %v3597
        %4636 = vmatpush.bf16.msra.mxu0 %v3596
        %4637 = vmatpush.bf16.msra.mxu0 %v3595
        %4638 = vmatpush.bf16.msra.mxu0 %v3594
        %4639 = vmatpush.bf16.msra.mxu0 %v3593
        %4640 = vmatmul.bf16.gmra.mxu0 %v1382
        %v4641 = vpop.f32.mrf.mxu0
        %v4642 = vadd.f32 %v4629, %v4641
        %v4643 = vpop.f32.mrf.mxu0
        %4644 = vdwg.mxu0
        %4645 = vmatpush.bf16.msra.mxu0 %v3608
        %4646 = vmatpush.bf16.msra.mxu0 %v3607
        %4647 = vmatpush.bf16.msra.mxu0 %v3606
        %4648 = vmatpush.bf16.msra.mxu0 %v3605
        %4649 = vmatpush.bf16.msra.mxu0 %v3604
        %4650 = vmatpush.bf16.msra.mxu0 %v3603
        %4651 = vmatpush.bf16.msra.mxu0 %v3602
        %4652 = vmatpush.bf16.msra.mxu0 %v3601
        %4653 = vmatmul.bf16.gmra.mxu0 %v1383
        %v4654 = vpop.f32.mrf.mxu0
        %v4655 = vadd.f32 %v4642, %v4654
        %v4656 = vpop.f32.mrf.mxu0
        %4657 = vdwg.mxu0
        %4658 = vmatpush.bf16.msra.mxu0 %v3616
        %4659 = vmatpush.bf16.msra.mxu0 %v3615
        %4660 = vmatpush.bf16.msra.mxu0 %v3614
        %4661 = vmatpush.bf16.msra.mxu0 %v3613
        %4662 = vmatpush.bf16.msra.mxu0 %v3612
        %4663 = vmatpush.bf16.msra.mxu0 %v3611
        %4664 = vmatpush.bf16.msra.mxu0 %v3610
        %4665 = vmatpush.bf16.msra.mxu0 %v3609
        %4666 = vmatmul.bf16.gmra.mxu0 %v1384
        %v4667 = vpop.f32.mrf.mxu0
        %v4668 = vadd.f32 %v4655, %v4667
        %v4669 = vpop.f32.mrf.mxu0
        %4670 = vdwg.mxu0
        %4671 = vmatpush.bf16.msra.mxu0 %v3624
        %4672 = vmatpush.bf16.msra.mxu0 %v3623
        %4673 = vmatpush.bf16.msra.mxu0 %v3622
        %4674 = vmatpush.bf16.msra.mxu0 %v3621
        %4675 = vmatpush.bf16.msra.mxu0 %v3620
        %4676 = vmatpush.bf16.msra.mxu0 %v3619
        %4677 = vmatpush.bf16.msra.mxu0 %v3618
        %4678 = vmatpush.bf16.msra.mxu0 %v3617
        %4679 = vmatmul.bf16.gmra.mxu0 %v1385
        %v4680 = vpop.f32.mrf.mxu0
        %v4681 = vadd.f32 %v4668, %v4680
        %v4682 = vpop.f32.mrf.mxu0
        %4683 = vdwg.mxu0
        %4684 = vmatpush.bf16.msra.mxu0 %v3632
        %4685 = vmatpush.bf16.msra.mxu0 %v3631
        %4686 = vmatpush.bf16.msra.mxu0 %v3630
        %4687 = vmatpush.bf16.msra.mxu0 %v3629
        %4688 = vmatpush.bf16.msra.mxu0 %v3628
        %4689 = vmatpush.bf16.msra.mxu0 %v3627
        %4690 = vmatpush.bf16.msra.mxu0 %v3626
        %4691 = vmatpush.bf16.msra.mxu0 %v3625
        %4692 = vmatmul.bf16.gmra.mxu0 %v1386
        %v4693 = vpop.f32.mrf.mxu0
        %v4694 = vadd.f32 %v4681, %v4693
        %v4695 = vpop.f32.mrf.mxu0
        %4696 = vdwg.mxu0
        %4697 = vmatpush.bf16.msra.mxu0 %v3640
        %4698 = vmatpush.bf16.msra.mxu0 %v3639
        %4699 = vmatpush.bf16.msra.mxu0 %v3638
        %4700 = vmatpush.bf16.msra.mxu0 %v3637
        %4701 = vmatpush.bf16.msra.mxu0 %v3636
        %4702 = vmatpush.bf16.msra.mxu0 %v3635
        %4703 = vmatpush.bf16.msra.mxu0 %v3634
        %4704 = vmatpush.bf16.msra.mxu0 %v3633
        %4705 = vmatmul.bf16.gmra.mxu0 %v1389
        %v4706 = vpop.f32.mrf.mxu0
        %v4707 = vadd.f32 %v4694, %v4706
        %v4708 = vpop.f32.mrf.mxu0
        %4709 = vdwg.mxu0
        %4710 = vmatpush.bf16.msra.mxu0 %v3648
        %4711 = vmatpush.bf16.msra.mxu0 %v3647
        %4712 = vmatpush.bf16.msra.mxu0 %v3646
        %4713 = vmatpush.bf16.msra.mxu0 %v3645
        %4714 = vmatpush.bf16.msra.mxu0 %v3644
        %4715 = vmatpush.bf16.msra.mxu0 %v3643
        %4716 = vmatpush.bf16.msra.mxu0 %v3642
        %4717 = vmatpush.bf16.msra.mxu0 %v3641
        %4718 = vmatmul.bf16.gmra.mxu0 %v1390
        %v4719 = vpop.f32.mrf.mxu0
        %v4720 = vadd.f32 %v4707, %v4719
        %v4721 = vpop.f32.mrf.mxu0
        %4722 = vdwg.mxu0
        %4723 = vmatpush.bf16.msra.mxu0 %v3656
        %4724 = vmatpush.bf16.msra.mxu0 %v3655
        %4725 = vmatpush.bf16.msra.mxu0 %v3654
        %4726 = vmatpush.bf16.msra.mxu0 %v3653
        %4727 = vmatpush.bf16.msra.mxu0 %v3652
        %4728 = vmatpush.bf16.msra.mxu0 %v3651
        %4729 = vmatpush.bf16.msra.mxu0 %v3650
        %4730 = vmatpush.bf16.msra.mxu0 %v3649
        %4731 = vmatmul.bf16.gmra.mxu0 %v1391
        %v4732 = vpop.f32.mrf.mxu0
        %v4733 = vadd.f32 %v4720, %v4732
        %v4734 = vpop.f32.mrf.mxu0
        %4735 = vdwg.mxu0
        %4736 = vmatpush.bf16.msra.mxu0 %v3664
        %4737 = vmatpush.bf16.msra.mxu0 %v3663
        %4738 = vmatpush.bf16.msra.mxu0 %v3662
        %4739 = vmatpush.bf16.msra.mxu0 %v3661
        %4740 = vmatpush.bf16.msra.mxu0 %v3660
        %4741 = vmatpush.bf16.msra.mxu0 %v3659
        %4742 = vmatpush.bf16.msra.mxu0 %v3658
        %4743 = vmatpush.bf16.msra.mxu0 %v3657
        %4744 = vmatmul.bf16.gmra.mxu0 %v1392
        %v4745 = vpop.f32.mrf.mxu0
        %v4746 = vadd.f32 %v4733, %v4745
        %v4747 = vpop.f32.mrf.mxu0
        %4748 = vdwg.mxu0
        %4749 = vmatpush.bf16.msra.mxu0 %v3672
        %4750 = vmatpush.bf16.msra.mxu0 %v3671
        %4751 = vmatpush.bf16.msra.mxu0 %v3670
        %4752 = vmatpush.bf16.msra.mxu0 %v3669
        %4753 = vmatpush.bf16.msra.mxu0 %v3668
        %4754 = vmatpush.bf16.msra.mxu0 %v3667
        %4755 = vmatpush.bf16.msra.mxu0 %v3666
        %4756 = vmatpush.bf16.msra.mxu0 %v3665
        %4757 = vmatmul.bf16.gmra.mxu0 %v1393
        %v4758 = vpop.f32.mrf.mxu0
        %v4759 = vadd.f32 %v4746, %v4758
        %v4760 = vpop.f32.mrf.mxu0
        %4761 = vdwg.mxu0
        %4762 = vmatpush.bf16.msra.mxu0 %v3680
        %4763 = vmatpush.bf16.msra.mxu0 %v3679
        %4764 = vmatpush.bf16.msra.mxu0 %v3678
        %4765 = vmatpush.bf16.msra.mxu0 %v3677
        %4766 = vmatpush.bf16.msra.mxu0 %v3676
        %4767 = vmatpush.bf16.msra.mxu0 %v3675
        %4768 = vmatpush.bf16.msra.mxu0 %v3674
        %4769 = vmatpush.bf16.msra.mxu0 %v3673
        %4770 = vmatmul.bf16.gmra.mxu0 %v1394
        %v4771 = vpop.f32.mrf.mxu0
        %v4772 = vadd.f32 %v4759, %v4771
        %v4773 = vpop.f32.mrf.mxu0
        %4774 = vdwg.mxu0
        %4775 = vmatpush.bf16.msra.mxu0 %v3688
        %4776 = vmatpush.bf16.msra.mxu0 %v3687
        %4777 = vmatpush.bf16.msra.mxu0 %v3686
        %4778 = vmatpush.bf16.msra.mxu0 %v3685
        %4779 = vmatpush.bf16.msra.mxu0 %v3684
        %4780 = vmatpush.bf16.msra.mxu0 %v3683
        %4781 = vmatpush.bf16.msra.mxu0 %v3682
        %4782 = vmatpush.bf16.msra.mxu0 %v3681
        %4783 = vmatmul.bf16.gmra.mxu0 %v1395
        %v4784 = vpop.f32.mrf.mxu0
        %v4785 = vadd.f32 %v4772, %v4784
        %v4786 = vpop.f32.mrf.mxu0
        %4787 = vdwg.mxu0
        %4788 = vmatpush.bf16.msra.mxu0 %v3696
        %4789 = vmatpush.bf16.msra.mxu0 %v3695
        %4790 = vmatpush.bf16.msra.mxu0 %v3694
        %4791 = vmatpush.bf16.msra.mxu0 %v3693
        %4792 = vmatpush.bf16.msra.mxu0 %v3692
        %4793 = vmatpush.bf16.msra.mxu0 %v3691
        %4794 = vmatpush.bf16.msra.mxu0 %v3690
        %4795 = vmatpush.bf16.msra.mxu0 %v3689
        %4796 = vmatmul.bf16.gmra.mxu0 %v1396
        %v4797 = vpop.f32.mrf.mxu0
        %v4798 = vadd.f32 %v4785, %v4797
        %v4799 = vpop.f32.mrf.mxu0
        %4800 = vdwg.mxu0
        %4801 = vmatpush.bf16.msra.mxu0 %v3704
        %4802 = vmatpush.bf16.msra.mxu0 %v3703
        %4803 = vmatpush.bf16.msra.mxu0 %v3702
        %4804 = vmatpush.bf16.msra.mxu0 %v3701
        %4805 = vmatpush.bf16.msra.mxu0 %v3700
        %4806 = vmatpush.bf16.msra.mxu0 %v3699
        %4807 = vmatpush.bf16.msra.mxu0 %v3698
        %4808 = vmatpush.bf16.msra.mxu0 %v3697
        %4809 = vmatmul.bf16.gmra.mxu0 %v1399
        %v4810 = vpop.f32.mrf.mxu0
        %v4811 = vadd.f32 %v4798, %v4810
        %v4812 = vpop.f32.mrf.mxu0
        %4813 = vdwg.mxu0
        %4814 = vmatpush.bf16.msra.mxu0 %v3712
        %4815 = vmatpush.bf16.msra.mxu0 %v3711
        %4816 = vmatpush.bf16.msra.mxu0 %v3710
        %4817 = vmatpush.bf16.msra.mxu0 %v3709
        %4818 = vmatpush.bf16.msra.mxu0 %v3708
        %4819 = vmatpush.bf16.msra.mxu0 %v3707
        %4820 = vmatpush.bf16.msra.mxu0 %v3706
        %4821 = vmatpush.bf16.msra.mxu0 %v3705
        %4822 = vmatmul.bf16.gmra.mxu0 %v1400
        %v4823 = vpop.f32.mrf.mxu0
        %v4824 = vadd.f32 %v4811, %v4823
        %v4825 = vpop.f32.mrf.mxu0
        %4826 = vdwg.mxu0
        %4827 = vmatpush.bf16.msra.mxu0 %v3720
        %4828 = vmatpush.bf16.msra.mxu0 %v3719
        %4829 = vmatpush.bf16.msra.mxu0 %v3718
        %4830 = vmatpush.bf16.msra.mxu0 %v3717
        %4831 = vmatpush.bf16.msra.mxu0 %v3716
        %4832 = vmatpush.bf16.msra.mxu0 %v3715
        %4833 = vmatpush.bf16.msra.mxu0 %v3714
        %4834 = vmatpush.bf16.msra.mxu0 %v3713
        %4835 = vmatmul.bf16.gmra.mxu0 %v1401
        %v4836 = vpop.f32.mrf.mxu0
        %v4837 = vadd.f32 %v4824, %v4836
        %v4838 = vpop.f32.mrf.mxu0
        %4839 = vdwg.mxu0
        %4840 = vmatpush.bf16.msra.mxu0 %v3728
        %4841 = vmatpush.bf16.msra.mxu0 %v3727
        %4842 = vmatpush.bf16.msra.mxu0 %v3726
        %4843 = vmatpush.bf16.msra.mxu0 %v3725
        %4844 = vmatpush.bf16.msra.mxu0 %v3724
        %4845 = vmatpush.bf16.msra.mxu0 %v3723
        %4846 = vmatpush.bf16.msra.mxu0 %v3722
        %4847 = vmatpush.bf16.msra.mxu0 %v3721
        %4848 = vmatmul.bf16.gmra.mxu0 %v1402
        %v4849 = vpop.f32.mrf.mxu0
        %v4850 = vadd.f32 %v4837, %v4849
        %v4851 = vpop.f32.mrf.mxu0
        %4852 = vdwg.mxu0
        %4853 = vmatpush.bf16.msra.mxu0 %v3736
        %4854 = vmatpush.bf16.msra.mxu0 %v3735
        %4855 = vmatpush.bf16.msra.mxu0 %v3734
        %4856 = vmatpush.bf16.msra.mxu0 %v3733
        %4857 = vmatpush.bf16.msra.mxu0 %v3732
        %4858 = vmatpush.bf16.msra.mxu0 %v3731
        %4859 = vmatpush.bf16.msra.mxu0 %v3730
        %4860 = vmatpush.bf16.msra.mxu0 %v3729
        %4861 = vmatmul.bf16.gmra.mxu0 %v1403
        %v4862 = vpop.f32.mrf.mxu0
        %v4863 = vadd.f32 %v4850, %v4862
        %v4864 = vpop.f32.mrf.mxu0
        %4865 = vdwg.mxu0
        %4866 = vmatpush.bf16.msra.mxu0 %v3744
        %4867 = vmatpush.bf16.msra.mxu0 %v3743
        %4868 = vmatpush.bf16.msra.mxu0 %v3742
        %4869 = vmatpush.bf16.msra.mxu0 %v3741
        %4870 = vmatpush.bf16.msra.mxu0 %v3740
        %4871 = vmatpush.bf16.msra.mxu0 %v3739
        %4872 = vmatpush.bf16.msra.mxu0 %v3738
        %4873 = vmatpush.bf16.msra.mxu0 %v3737
        %4874 = vmatmul.bf16.gmra.mxu0 %v1404
        %v4875 = vpop.f32.mrf.mxu0
        %v4876 = vadd.f32 %v4863, %v4875
        %v4877 = vpop.f32.mrf.mxu0
        %4878 = vdwg.mxu0
        %4879 = vmatpush.bf16.msra.mxu0 %v3752
        %4880 = vmatpush.bf16.msra.mxu0 %v3751
        %4881 = vmatpush.bf16.msra.mxu0 %v3750
        %4882 = vmatpush.bf16.msra.mxu0 %v3749
        %4883 = vmatpush.bf16.msra.mxu0 %v3748
        %4884 = vmatpush.bf16.msra.mxu0 %v3747
        %4885 = vmatpush.bf16.msra.mxu0 %v3746
        %4886 = vmatpush.bf16.msra.mxu0 %v3745
        %4887 = vmatmul.bf16.gmra.mxu0 %v1405
        %v4888 = vpop.f32.mrf.mxu0
        %v4889 = vadd.f32 %v4876, %v4888
        %v4890 = vpop.f32.mrf.mxu0
        %4891 = vdwg.mxu0
        %4892 = vmatpush.bf16.msra.mxu0 %v3760
        %4893 = vmatpush.bf16.msra.mxu0 %v3759
        %4894 = vmatpush.bf16.msra.mxu0 %v3758
        %4895 = vmatpush.bf16.msra.mxu0 %v3757
        %4896 = vmatpush.bf16.msra.mxu0 %v3756
        %4897 = vmatpush.bf16.msra.mxu0 %v3755
        %4898 = vmatpush.bf16.msra.mxu0 %v3754
        %4899 = vmatpush.bf16.msra.mxu0 %v3753
        %4900 = vmatmul.bf16.gmra.mxu0 %v1406
        %v4901 = vpop.f32.mrf.mxu0
        %v4902 = vadd.f32 %v4889, %v4901
        %v4903 = vpop.f32.mrf.mxu0
        %4904 = vdwg.mxu0
        %4905 = vmatpush.bf16.msra.mxu0 %v3768
        %4906 = vmatpush.bf16.msra.mxu0 %v3767
        %4907 = vmatpush.bf16.msra.mxu0 %v3766
        %4908 = vmatpush.bf16.msra.mxu0 %v3765
        %4909 = vmatpush.bf16.msra.mxu0 %v3764
        %4910 = vmatpush.bf16.msra.mxu0 %v3763
        %4911 = vmatpush.bf16.msra.mxu0 %v3762
        %4912 = vmatpush.bf16.msra.mxu0 %v3761
        %4913 = vmatmul.bf16.gmra.mxu0 %v1409
        %v4914 = vpop.f32.mrf.mxu0
        %v4915 = vadd.f32 %v4902, %v4914
        %v4916 = vpop.f32.mrf.mxu0
        %4917 = vdwg.mxu0
        %4918 = vmatpush.bf16.msra.mxu0 %v3776
        %4919 = vmatpush.bf16.msra.mxu0 %v3775
        %4920 = vmatpush.bf16.msra.mxu0 %v3774
        %4921 = vmatpush.bf16.msra.mxu0 %v3773
        %4922 = vmatpush.bf16.msra.mxu0 %v3772
        %4923 = vmatpush.bf16.msra.mxu0 %v3771
        %4924 = vmatpush.bf16.msra.mxu0 %v3770
        %4925 = vmatpush.bf16.msra.mxu0 %v3769
        %4926 = vmatmul.bf16.gmra.mxu0 %v1410
        %v4927 = vpop.f32.mrf.mxu0
        %v4928 = vadd.f32 %v4915, %v4927
        %v4929 = vpop.f32.mrf.mxu0
        %4930 = vdwg.mxu0
        %4931 = vmatpush.bf16.msra.mxu0 %v3784
        %4932 = vmatpush.bf16.msra.mxu0 %v3783
        %4933 = vmatpush.bf16.msra.mxu0 %v3782
        %4934 = vmatpush.bf16.msra.mxu0 %v3781
        %4935 = vmatpush.bf16.msra.mxu0 %v3780
        %4936 = vmatpush.bf16.msra.mxu0 %v3779
        %4937 = vmatpush.bf16.msra.mxu0 %v3778
        %4938 = vmatpush.bf16.msra.mxu0 %v3777
        %4939 = vmatmul.bf16.gmra.mxu0 %v1411
        %v4940 = vpop.f32.mrf.mxu0
        %v4941 = vadd.f32 %v4928, %v4940
        %v4942 = vpop.f32.mrf.mxu0
        %4943 = vdwg.mxu0
        %4944 = vmatpush.bf16.msra.mxu0 %v3792
        %4945 = vmatpush.bf16.msra.mxu0 %v3791
        %4946 = vmatpush.bf16.msra.mxu0 %v3790
        %4947 = vmatpush.bf16.msra.mxu0 %v3789
        %4948 = vmatpush.bf16.msra.mxu0 %v3788
        %4949 = vmatpush.bf16.msra.mxu0 %v3787
        %4950 = vmatpush.bf16.msra.mxu0 %v3786
        %4951 = vmatpush.bf16.msra.mxu0 %v3785
        %4952 = vmatmul.bf16.gmra.mxu0 %v1412
        %v4953 = vpop.f32.mrf.mxu0
        %v4954 = vadd.f32 %v4941, %v4953
        %v4955 = vpop.f32.mrf.mxu0
        %4956 = vdwg.mxu0
        %4957 = vmatpush.bf16.msra.mxu0 %v3800
        %4958 = vmatpush.bf16.msra.mxu0 %v3799
        %4959 = vmatpush.bf16.msra.mxu0 %v3798
        %4960 = vmatpush.bf16.msra.mxu0 %v3797
        %4961 = vmatpush.bf16.msra.mxu0 %v3796
        %4962 = vmatpush.bf16.msra.mxu0 %v3795
        %4963 = vmatpush.bf16.msra.mxu0 %v3794
        %4964 = vmatpush.bf16.msra.mxu0 %v3793
        %4965 = vmatmul.bf16.gmra.mxu0 %v1413
        %v4966 = vpop.f32.mrf.mxu0
        %v4967 = vadd.f32 %v4954, %v4966
        %v4968 = vpop.f32.mrf.mxu0
        %4969 = vdwg.mxu0
        %4970 = vmatpush.bf16.msra.mxu0 %v3808
        %4971 = vmatpush.bf16.msra.mxu0 %v3807
        %4972 = vmatpush.bf16.msra.mxu0 %v3806
        %4973 = vmatpush.bf16.msra.mxu0 %v3805
        %4974 = vmatpush.bf16.msra.mxu0 %v3804
        %4975 = vmatpush.bf16.msra.mxu0 %v3803
        %4976 = vmatpush.bf16.msra.mxu0 %v3802
        %4977 = vmatpush.bf16.msra.mxu0 %v3801
        %4978 = vmatmul.bf16.gmra.mxu0 %v1414
        %v4979 = vpop.f32.mrf.mxu0
        %v4980 = vadd.f32 %v4967, %v4979
        %v4981 = vpop.f32.mrf.mxu0
        %4982 = vdwg.mxu0
        %4983 = vmatpush.bf16.msra.mxu0 %v3816
        %4984 = vmatpush.bf16.msra.mxu0 %v3815
        %4985 = vmatpush.bf16.msra.mxu0 %v3814
        %4986 = vmatpush.bf16.msra.mxu0 %v3813
        %4987 = vmatpush.bf16.msra.mxu0 %v3812
        %4988 = vmatpush.bf16.msra.mxu0 %v3811
        %4989 = vmatpush.bf16.msra.mxu0 %v3810
        %4990 = vmatpush.bf16.msra.mxu0 %v3809
        %4991 = vmatmul.bf16.gmra.mxu0 %v1415
        %v4992 = vpop.f32.mrf.mxu0
        %v4993 = vadd.f32 %v4980, %v4992
        %v4994 = vpop.f32.mrf.mxu0
        %4995 = vdwg.mxu0
        %4996 = vmatpush.bf16.msra.mxu0 %v3824
        %4997 = vmatpush.bf16.msra.mxu0 %v3823
        %4998 = vmatpush.bf16.msra.mxu0 %v3822
        %4999 = vmatpush.bf16.msra.mxu0 %v3821
        %5000 = vmatpush.bf16.msra.mxu0 %v3820
        %5001 = vmatpush.bf16.msra.mxu0 %v3819
        %5002 = vmatpush.bf16.msra.mxu0 %v3818
        %5003 = vmatpush.bf16.msra.mxu0 %v3817
        %5004 = vmatmul.bf16.gmra.mxu0 %v1416
        %v5005 = vpop.f32.mrf.mxu0
        %v5006 = vadd.f32 %v4993, %v5005
        %v5007 = vpop.f32.mrf.mxu0
        %5008 = vdwg.mxu0
        %5009 = vmatpush.bf16.msra.mxu0 %v3832
        %5010 = vmatpush.bf16.msra.mxu0 %v3831
        %5011 = vmatpush.bf16.msra.mxu0 %v3830
        %5012 = vmatpush.bf16.msra.mxu0 %v3829
        %5013 = vmatpush.bf16.msra.mxu0 %v3828
        %5014 = vmatpush.bf16.msra.mxu0 %v3827
        %5015 = vmatpush.bf16.msra.mxu0 %v3826
        %5016 = vmatpush.bf16.msra.mxu0 %v3825
        %5017 = vmatmul.bf16.gmra.mxu0 %v1419
        %v5018 = vpop.f32.mrf.mxu0
        %v5019 = vadd.f32 %v5006, %v5018
        %v5020 = vpop.f32.mrf.mxu0
        %5021 = vdwg.mxu0
        %5022 = vmatpush.bf16.msra.mxu0 %v3840
        %5023 = vmatpush.bf16.msra.mxu0 %v3839
        %5024 = vmatpush.bf16.msra.mxu0 %v3838
        %5025 = vmatpush.bf16.msra.mxu0 %v3837
        %5026 = vmatpush.bf16.msra.mxu0 %v3836
        %5027 = vmatpush.bf16.msra.mxu0 %v3835
        %5028 = vmatpush.bf16.msra.mxu0 %v3834
        %5029 = vmatpush.bf16.msra.mxu0 %v3833
        %5030 = vmatmul.bf16.gmra.mxu0 %v1420
        %v5031 = vpop.f32.mrf.mxu0
        %v5032 = vadd.f32 %v5019, %v5031
        %v5033 = vpop.f32.mrf.mxu0
        %5034 = vdwg.mxu0
        %5035 = vmatpush.bf16.msra.mxu0 %v3848
        %5036 = vmatpush.bf16.msra.mxu0 %v3847
        %5037 = vmatpush.bf16.msra.mxu0 %v3846
        %5038 = vmatpush.bf16.msra.mxu0 %v3845
        %5039 = vmatpush.bf16.msra.mxu0 %v3844
        %5040 = vmatpush.bf16.msra.mxu0 %v3843
        %5041 = vmatpush.bf16.msra.mxu0 %v3842
        %5042 = vmatpush.bf16.msra.mxu0 %v3841
        %5043 = vmatmul.bf16.gmra.mxu0 %v1421
        %v5044 = vpop.f32.mrf.mxu0
        %v5045 = vadd.f32 %v5032, %v5044
        %v5046 = vpop.f32.mrf.mxu0
        %5047 = vdwg.mxu0
        %5048 = vmatpush.bf16.msra.mxu0 %v3856
        %5049 = vmatpush.bf16.msra.mxu0 %v3855
        %5050 = vmatpush.bf16.msra.mxu0 %v3854
        %5051 = vmatpush.bf16.msra.mxu0 %v3853
        %5052 = vmatpush.bf16.msra.mxu0 %v3852
        %5053 = vmatpush.bf16.msra.mxu0 %v3851
        %5054 = vmatpush.bf16.msra.mxu0 %v3850
        %5055 = vmatpush.bf16.msra.mxu0 %v3849
        %5056 = vmatmul.bf16.gmra.mxu0 %v1422
        %v5057 = vpop.f32.mrf.mxu0
        %v5058 = vadd.f32 %v5045, %v5057
        %v5059 = vpop.f32.mrf.mxu0
        %5060 = vdwg.mxu0
        %5061 = vmatpush.bf16.msra.mxu0 %v3864
        %5062 = vmatpush.bf16.msra.mxu0 %v3863
        %5063 = vmatpush.bf16.msra.mxu0 %v3862
        %5064 = vmatpush.bf16.msra.mxu0 %v3861
        %5065 = vmatpush.bf16.msra.mxu0 %v3860
        %5066 = vmatpush.bf16.msra.mxu0 %v3859
        %5067 = vmatpush.bf16.msra.mxu0 %v3858
        %5068 = vmatpush.bf16.msra.mxu0 %v3857
        %5069 = vmatmul.bf16.gmra.mxu0 %v1423
        %v5070 = vpop.f32.mrf.mxu0
        %v5071 = vadd.f32 %v5058, %v5070
        %v5072 = vpop.f32.mrf.mxu0
        %5073 = vdwg.mxu0
        %5074 = vmatpush.bf16.msra.mxu0 %v3872
        %5075 = vmatpush.bf16.msra.mxu0 %v3871
        %5076 = vmatpush.bf16.msra.mxu0 %v3870
        %5077 = vmatpush.bf16.msra.mxu0 %v3869
        %5078 = vmatpush.bf16.msra.mxu0 %v3868
        %5079 = vmatpush.bf16.msra.mxu0 %v3867
        %5080 = vmatpush.bf16.msra.mxu0 %v3866
        %5081 = vmatpush.bf16.msra.mxu0 %v3865
        %5082 = vmatmul.bf16.gmra.mxu0 %v1424
        %v5083 = vpop.f32.mrf.mxu0
        %v5084 = vadd.f32 %v5071, %v5083
        %v5085 = vpop.f32.mrf.mxu0
        %5086 = vdwg.mxu0
        %5087 = vmatpush.bf16.msra.mxu0 %v3880
        %5088 = vmatpush.bf16.msra.mxu0 %v3879
        %5089 = vmatpush.bf16.msra.mxu0 %v3878
        %5090 = vmatpush.bf16.msra.mxu0 %v3877
        %5091 = vmatpush.bf16.msra.mxu0 %v3876
        %5092 = vmatpush.bf16.msra.mxu0 %v3875
        %5093 = vmatpush.bf16.msra.mxu0 %v3874
        %5094 = vmatpush.bf16.msra.mxu0 %v3873
        %5095 = vmatmul.bf16.gmra.mxu0 %v1425
        %v5096 = vpop.f32.mrf.mxu0
        %v5097 = vadd.f32 %v5084, %v5096
        %v5098 = vpop.f32.mrf.mxu0
        %5099 = vdwg.mxu0
        %5100 = vmatpush.bf16.msra.mxu0 %v3888
        %5101 = vmatpush.bf16.msra.mxu0 %v3887
        %5102 = vmatpush.bf16.msra.mxu0 %v3886
        %5103 = vmatpush.bf16.msra.mxu0 %v3885
        %5104 = vmatpush.bf16.msra.mxu0 %v3884
        %5105 = vmatpush.bf16.msra.mxu0 %v3883
        %5106 = vmatpush.bf16.msra.mxu0 %v3882
        %5107 = vmatpush.bf16.msra.mxu0 %v3881
        %5108 = vmatmul.bf16.gmra.mxu0 %v1426
        %v5109 = vpop.f32.mrf.mxu0
        %v5110 = vadd.f32 %v5097, %v5109
        %v5111 = vpop.f32.mrf.mxu0
        %5112 = vdwg.mxu0
        %5113 = vmatpush.bf16.msra.mxu0 %v3896
        %5114 = vmatpush.bf16.msra.mxu0 %v3895
        %5115 = vmatpush.bf16.msra.mxu0 %v3894
        %5116 = vmatpush.bf16.msra.mxu0 %v3893
        %5117 = vmatpush.bf16.msra.mxu0 %v3892
        %5118 = vmatpush.bf16.msra.mxu0 %v3891
        %5119 = vmatpush.bf16.msra.mxu0 %v3890
        %5120 = vmatpush.bf16.msra.mxu0 %v3889
        %5121 = vmatmul.bf16.gmra.mxu0 %v1429
        %v5122 = vpop.f32.mrf.mxu0
        %v5123 = vadd.f32 %v5110, %v5122
        %v5124 = vpop.f32.mrf.mxu0
        %5125 = vdwg.mxu0
        %5126 = vmatpush.bf16.msra.mxu0 %v3904
        %5127 = vmatpush.bf16.msra.mxu0 %v3903
        %5128 = vmatpush.bf16.msra.mxu0 %v3902
        %5129 = vmatpush.bf16.msra.mxu0 %v3901
        %5130 = vmatpush.bf16.msra.mxu0 %v3900
        %5131 = vmatpush.bf16.msra.mxu0 %v3899
        %5132 = vmatpush.bf16.msra.mxu0 %v3898
        %5133 = vmatpush.bf16.msra.mxu0 %v3897
        %5134 = vmatmul.bf16.gmra.mxu0 %v1430
        %v5135 = vpop.f32.mrf.mxu0
        %v5136 = vadd.f32 %v5123, %v5135
        %v5137 = vpop.f32.mrf.mxu0
        %5138 = vdwg.mxu0
        %5139 = vmatpush.bf16.msra.mxu0 %v3912
        %5140 = vmatpush.bf16.msra.mxu0 %v3911
        %5141 = vmatpush.bf16.msra.mxu0 %v3910
        %5142 = vmatpush.bf16.msra.mxu0 %v3909
        %5143 = vmatpush.bf16.msra.mxu0 %v3908
        %5144 = vmatpush.bf16.msra.mxu0 %v3907
        %5145 = vmatpush.bf16.msra.mxu0 %v3906
        %5146 = vmatpush.bf16.msra.mxu0 %v3905
        %5147 = vmatmul.bf16.gmra.mxu0 %v1431
        %v5148 = vpop.f32.mrf.mxu0
        %v5149 = vadd.f32 %v5136, %v5148
        %v5150 = vpop.f32.mrf.mxu0
        %5151 = vdwg.mxu0
        %5152 = vmatpush.bf16.msra.mxu0 %v3920
        %5153 = vmatpush.bf16.msra.mxu0 %v3919
        %5154 = vmatpush.bf16.msra.mxu0 %v3918
        %5155 = vmatpush.bf16.msra.mxu0 %v3917
        %5156 = vmatpush.bf16.msra.mxu0 %v3916
        %5157 = vmatpush.bf16.msra.mxu0 %v3915
        %5158 = vmatpush.bf16.msra.mxu0 %v3914
        %5159 = vmatpush.bf16.msra.mxu0 %v3913
        %5160 = vmatmul.bf16.gmra.mxu0 %v1432
        %v5161 = vpop.f32.mrf.mxu0
        %v5162 = vadd.f32 %v5149, %v5161
        %v5163 = vpop.f32.mrf.mxu0
        %5164 = vdwg.mxu0
        %5165 = vmatpush.bf16.msra.mxu0 %v3928
        %5166 = vmatpush.bf16.msra.mxu0 %v3927
        %5167 = vmatpush.bf16.msra.mxu0 %v3926
        %5168 = vmatpush.bf16.msra.mxu0 %v3925
        %5169 = vmatpush.bf16.msra.mxu0 %v3924
        %5170 = vmatpush.bf16.msra.mxu0 %v3923
        %5171 = vmatpush.bf16.msra.mxu0 %v3922
        %5172 = vmatpush.bf16.msra.mxu0 %v3921
        %5173 = vmatmul.bf16.gmra.mxu0 %v1433
        %v5174 = vpop.f32.mrf.mxu0
        %v5175 = vadd.f32 %v5162, %v5174
        %v5176 = vpop.f32.mrf.mxu0
        %5177 = vdwg.mxu0
        %5178 = vmatpush.bf16.msra.mxu0 %v3936
        %5179 = vmatpush.bf16.msra.mxu0 %v3935
        %5180 = vmatpush.bf16.msra.mxu0 %v3934
        %5181 = vmatpush.bf16.msra.mxu0 %v3933
        %5182 = vmatpush.bf16.msra.mxu0 %v3932
        %5183 = vmatpush.bf16.msra.mxu0 %v3931
        %5184 = vmatpush.bf16.msra.mxu0 %v3930
        %5185 = vmatpush.bf16.msra.mxu0 %v3929
        %5186 = vmatmul.bf16.gmra.mxu0 %v1434
        %v5187 = vpop.f32.mrf.mxu0
        %v5188 = vadd.f32 %v5175, %v5187
        %v5189 = vpop.f32.mrf.mxu0
        %5190 = vdwg.mxu0
        %5191 = vmatpush.bf16.msra.mxu0 %v3944
        %5192 = vmatpush.bf16.msra.mxu0 %v3943
        %5193 = vmatpush.bf16.msra.mxu0 %v3942
        %5194 = vmatpush.bf16.msra.mxu0 %v3941
        %5195 = vmatpush.bf16.msra.mxu0 %v3940
        %5196 = vmatpush.bf16.msra.mxu0 %v3939
        %5197 = vmatpush.bf16.msra.mxu0 %v3938
        %5198 = vmatpush.bf16.msra.mxu0 %v3937
        %5199 = vmatmul.bf16.gmra.mxu0 %v1435
        %v5200 = vpop.f32.mrf.mxu0
        %v5201 = vadd.f32 %v5188, %v5200
        %v5202 = vpop.f32.mrf.mxu0
        %5203 = vdwg.mxu0
        %5204 = vmatpush.bf16.msra.mxu0 %v3952
        %5205 = vmatpush.bf16.msra.mxu0 %v3951
        %5206 = vmatpush.bf16.msra.mxu0 %v3950
        %5207 = vmatpush.bf16.msra.mxu0 %v3949
        %5208 = vmatpush.bf16.msra.mxu0 %v3948
        %5209 = vmatpush.bf16.msra.mxu0 %v3947
        %5210 = vmatpush.bf16.msra.mxu0 %v3946
        %5211 = vmatpush.bf16.msra.mxu0 %v3945
        %5212 = vmatmul.bf16.gmra.mxu0 %v1436
        %v5213 = vpop.f32.mrf.mxu0
        %v5214 = vadd.f32 %v5201, %v5213
        %v5215 = vpop.f32.mrf.mxu0
        %5216 = vdwg.mxu0
        %5217 = vmatpush.bf16.msra.mxu0 %v3960
        %5218 = vmatpush.bf16.msra.mxu0 %v3959
        %5219 = vmatpush.bf16.msra.mxu0 %v3958
        %5220 = vmatpush.bf16.msra.mxu0 %v3957
        %5221 = vmatpush.bf16.msra.mxu0 %v3956
        %5222 = vmatpush.bf16.msra.mxu0 %v3955
        %5223 = vmatpush.bf16.msra.mxu0 %v3954
        %5224 = vmatpush.bf16.msra.mxu0 %v3953
        %5225 = vmatmul.bf16.gmra.mxu0 %v1439
        %v5226 = vpop.f32.mrf.mxu0
        %v5227 = vadd.f32 %v5214, %v5226
        %v5228 = vpop.f32.mrf.mxu0
        %5229 = vdwg.mxu0
        %5230 = vmatpush.bf16.msra.mxu0 %v3968
        %5231 = vmatpush.bf16.msra.mxu0 %v3967
        %5232 = vmatpush.bf16.msra.mxu0 %v3966
        %5233 = vmatpush.bf16.msra.mxu0 %v3965
        %5234 = vmatpush.bf16.msra.mxu0 %v3964
        %5235 = vmatpush.bf16.msra.mxu0 %v3963
        %5236 = vmatpush.bf16.msra.mxu0 %v3962
        %5237 = vmatpush.bf16.msra.mxu0 %v3961
        %5238 = vmatmul.bf16.gmra.mxu0 %v1440
        %v5239 = vpop.f32.mrf.mxu0
        %v5240 = vadd.f32 %v5227, %v5239
        %v5241 = vpop.f32.mrf.mxu0
        %5242 = vdwg.mxu0
        %5243 = vmatpush.bf16.msra.mxu0 %v3976
        %5244 = vmatpush.bf16.msra.mxu0 %v3975
        %5245 = vmatpush.bf16.msra.mxu0 %v3974
        %5246 = vmatpush.bf16.msra.mxu0 %v3973
        %5247 = vmatpush.bf16.msra.mxu0 %v3972
        %5248 = vmatpush.bf16.msra.mxu0 %v3971
        %5249 = vmatpush.bf16.msra.mxu0 %v3970
        %5250 = vmatpush.bf16.msra.mxu0 %v3969
        %5251 = vmatmul.bf16.gmra.mxu0 %v1441
        %v5252 = vpop.f32.mrf.mxu0
        %v5253 = vadd.f32 %v5240, %v5252
        %v5254 = vpop.f32.mrf.mxu0
        %5255 = vdwg.mxu0
        %5256 = vmatpush.bf16.msra.mxu0 %v3984
        %5257 = vmatpush.bf16.msra.mxu0 %v3983
        %5258 = vmatpush.bf16.msra.mxu0 %v3982
        %5259 = vmatpush.bf16.msra.mxu0 %v3981
        %5260 = vmatpush.bf16.msra.mxu0 %v3980
        %5261 = vmatpush.bf16.msra.mxu0 %v3979
        %5262 = vmatpush.bf16.msra.mxu0 %v3978
        %5263 = vmatpush.bf16.msra.mxu0 %v3977
        %5264 = vmatmul.bf16.gmra.mxu0 %v1442
        %v5265 = vpop.f32.mrf.mxu0
        %v5266 = vadd.f32 %v5253, %v5265
        %v5267 = vpop.f32.mrf.mxu0
        %5268 = vdwg.mxu0
        %5269 = vmatpush.bf16.msra.mxu0 %v3992
        %5270 = vmatpush.bf16.msra.mxu0 %v3991
        %5271 = vmatpush.bf16.msra.mxu0 %v3990
        %5272 = vmatpush.bf16.msra.mxu0 %v3989
        %5273 = vmatpush.bf16.msra.mxu0 %v3988
        %5274 = vmatpush.bf16.msra.mxu0 %v3987
        %5275 = vmatpush.bf16.msra.mxu0 %v3986
        %5276 = vmatpush.bf16.msra.mxu0 %v3985
        %5277 = vmatmul.bf16.gmra.mxu0 %v1443
        %v5278 = vpop.f32.mrf.mxu0
        %v5279 = vadd.f32 %v5266, %v5278
        %v5280 = vpop.f32.mrf.mxu0
        %5281 = vdwg.mxu0
        %5282 = vmatpush.bf16.msra.mxu0 %v4000
        %5283 = vmatpush.bf16.msra.mxu0 %v3999
        %5284 = vmatpush.bf16.msra.mxu0 %v3998
        %5285 = vmatpush.bf16.msra.mxu0 %v3997
        %5286 = vmatpush.bf16.msra.mxu0 %v3996
        %5287 = vmatpush.bf16.msra.mxu0 %v3995
        %5288 = vmatpush.bf16.msra.mxu0 %v3994
        %5289 = vmatpush.bf16.msra.mxu0 %v3993
        %5290 = vmatmul.bf16.gmra.mxu0 %v1444
        %v5291 = vpop.f32.mrf.mxu0
        %v5292 = vadd.f32 %v5279, %v5291
        %v5293 = vpop.f32.mrf.mxu0
        %5294 = vdwg.mxu0
        %5295 = vmatpush.bf16.msra.mxu0 %v4008
        %5296 = vmatpush.bf16.msra.mxu0 %v4007
        %5297 = vmatpush.bf16.msra.mxu0 %v4006
        %5298 = vmatpush.bf16.msra.mxu0 %v4005
        %5299 = vmatpush.bf16.msra.mxu0 %v4004
        %5300 = vmatpush.bf16.msra.mxu0 %v4003
        %5301 = vmatpush.bf16.msra.mxu0 %v4002
        %5302 = vmatpush.bf16.msra.mxu0 %v4001
        %5303 = vmatmul.bf16.gmra.mxu0 %v1445
        %v5304 = vpop.f32.mrf.mxu0
        %v5305 = vadd.f32 %v5292, %v5304
        %v5306 = vpop.f32.mrf.mxu0
        %5307 = vdwg.mxu0
        %5308 = vmatpush.bf16.msra.mxu0 %v4016
        %5309 = vmatpush.bf16.msra.mxu0 %v4015
        %5310 = vmatpush.bf16.msra.mxu0 %v4014
        %5311 = vmatpush.bf16.msra.mxu0 %v4013
        %5312 = vmatpush.bf16.msra.mxu0 %v4012
        %5313 = vmatpush.bf16.msra.mxu0 %v4011
        %5314 = vmatpush.bf16.msra.mxu0 %v4010
        %5315 = vmatpush.bf16.msra.mxu0 %v4009
        %5316 = vmatmul.bf16.gmra.mxu0 %v1446
        %v5317 = vpop.f32.mrf.mxu0
        %v5318 = vadd.f32 %v5305, %v5317
        %v5319 = vpop.f32.mrf.mxu0
        %5320 = vdwg.mxu0
        %5321 = vmatpush.bf16.msra.mxu0 %v4024
        %5322 = vmatpush.bf16.msra.mxu0 %v4023
        %5323 = vmatpush.bf16.msra.mxu0 %v4022
        %5324 = vmatpush.bf16.msra.mxu0 %v4021
        %5325 = vmatpush.bf16.msra.mxu0 %v4020
        %5326 = vmatpush.bf16.msra.mxu0 %v4019
        %5327 = vmatpush.bf16.msra.mxu0 %v4018
        %5328 = vmatpush.bf16.msra.mxu0 %v4017
        %5329 = vmatmul.bf16.gmra.mxu0 %v1449
        %v5330 = vpop.f32.mrf.mxu0
        %v5331 = vadd.f32 %v5318, %v5330
        %v5332 = vpop.f32.mrf.mxu0
        %5333 = vdwg.mxu0
        %5334 = vmatpush.bf16.msra.mxu0 %v4032
        %5335 = vmatpush.bf16.msra.mxu0 %v4031
        %5336 = vmatpush.bf16.msra.mxu0 %v4030
        %5337 = vmatpush.bf16.msra.mxu0 %v4029
        %5338 = vmatpush.bf16.msra.mxu0 %v4028
        %5339 = vmatpush.bf16.msra.mxu0 %v4027
        %5340 = vmatpush.bf16.msra.mxu0 %v4026
        %5341 = vmatpush.bf16.msra.mxu0 %v4025
        %5342 = vmatmul.bf16.gmra.mxu0 %v1450
        %v5343 = vpop.f32.mrf.mxu0
        %v5344 = vadd.f32 %v5331, %v5343
        %v5345 = vpop.f32.mrf.mxu0
        %5346 = vdwg.mxu0
        %5347 = vmatpush.bf16.msra.mxu0 %v4040
        %5348 = vmatpush.bf16.msra.mxu0 %v4039
        %5349 = vmatpush.bf16.msra.mxu0 %v4038
        %5350 = vmatpush.bf16.msra.mxu0 %v4037
        %5351 = vmatpush.bf16.msra.mxu0 %v4036
        %5352 = vmatpush.bf16.msra.mxu0 %v4035
        %5353 = vmatpush.bf16.msra.mxu0 %v4034
        %5354 = vmatpush.bf16.msra.mxu0 %v4033
        %5355 = vmatmul.bf16.gmra.mxu0 %v1451
        %v5356 = vpop.f32.mrf.mxu0
        %v5357 = vadd.f32 %v5344, %v5356
        %v5358 = vpop.f32.mrf.mxu0
        %5359 = vdwg.mxu0
        %5360 = vmatpush.bf16.msra.mxu0 %v4048
        %5361 = vmatpush.bf16.msra.mxu0 %v4047
        %5362 = vmatpush.bf16.msra.mxu0 %v4046
        %5363 = vmatpush.bf16.msra.mxu0 %v4045
        %5364 = vmatpush.bf16.msra.mxu0 %v4044
        %5365 = vmatpush.bf16.msra.mxu0 %v4043
        %5366 = vmatpush.bf16.msra.mxu0 %v4042
        %5367 = vmatpush.bf16.msra.mxu0 %v4041
        %5368 = vmatmul.bf16.gmra.mxu0 %v1452
        %v5369 = vpop.f32.mrf.mxu0
        %v5370 = vadd.f32 %v5357, %v5369
        %v5371 = vpop.f32.mrf.mxu0
        %5372 = vdwg.mxu0
        %5373 = vmatpush.bf16.msra.mxu0 %v4056
        %5374 = vmatpush.bf16.msra.mxu0 %v4055
        %5375 = vmatpush.bf16.msra.mxu0 %v4054
        %5376 = vmatpush.bf16.msra.mxu0 %v4053
        %5377 = vmatpush.bf16.msra.mxu0 %v4052
        %5378 = vmatpush.bf16.msra.mxu0 %v4051
        %5379 = vmatpush.bf16.msra.mxu0 %v4050
        %5380 = vmatpush.bf16.msra.mxu0 %v4049
        %5381 = vmatmul.bf16.gmra.mxu0 %v1453
        %v5382 = vpop.f32.mrf.mxu0
        %v5383 = vadd.f32 %v5370, %v5382
        %v5384 = vpop.f32.mrf.mxu0
        %5385 = vdwg.mxu0
        %5386 = vmatpush.bf16.msra.mxu0 %v4064
        %5387 = vmatpush.bf16.msra.mxu0 %v4063
        %5388 = vmatpush.bf16.msra.mxu0 %v4062
        %5389 = vmatpush.bf16.msra.mxu0 %v4061
        %5390 = vmatpush.bf16.msra.mxu0 %v4060
        %5391 = vmatpush.bf16.msra.mxu0 %v4059
        %5392 = vmatpush.bf16.msra.mxu0 %v4058
        %5393 = vmatpush.bf16.msra.mxu0 %v4057
        %5394 = vmatmul.bf16.gmra.mxu0 %v1454
        %v5395 = vpop.f32.mrf.mxu0
        %v5396 = vadd.f32 %v5383, %v5395
        %v5397 = vpop.f32.mrf.mxu0
        %5398 = vdwg.mxu0
        %5399 = vmatpush.bf16.msra.mxu0 %v4072
        %5400 = vmatpush.bf16.msra.mxu0 %v4071
        %5401 = vmatpush.bf16.msra.mxu0 %v4070
        %5402 = vmatpush.bf16.msra.mxu0 %v4069
        %5403 = vmatpush.bf16.msra.mxu0 %v4068
        %5404 = vmatpush.bf16.msra.mxu0 %v4067
        %5405 = vmatpush.bf16.msra.mxu0 %v4066
        %5406 = vmatpush.bf16.msra.mxu0 %v4065
        %5407 = vmatmul.bf16.gmra.mxu0 %v1455
        %v5408 = vpop.f32.mrf.mxu0
        %v5409 = vadd.f32 %v5396, %v5408
        %v5410 = vpop.f32.mrf.mxu0
        %5411 = vdwg.mxu0
        %5412 = vmatpush.bf16.msra.mxu0 %v4080
        %5413 = vmatpush.bf16.msra.mxu0 %v4079
        %5414 = vmatpush.bf16.msra.mxu0 %v4078
        %5415 = vmatpush.bf16.msra.mxu0 %v4077
        %5416 = vmatpush.bf16.msra.mxu0 %v4076
        %5417 = vmatpush.bf16.msra.mxu0 %v4075
        %5418 = vmatpush.bf16.msra.mxu0 %v4074
        %5419 = vmatpush.bf16.msra.mxu0 %v4073
        %5420 = vmatmul.bf16.gmra.mxu0 %v1456
        %v5421 = vpop.f32.mrf.mxu0
        %v5422 = vadd.f32 %v5409, %v5421
        %v5423 = vpop.f32.mrf.mxu0
        %5424 = vdwg.mxu0
        %v5425 = vadd.f32 %v344, %v5422
        %5426 = vst [vmem:[#allocation2] sm:$0x3] %v5425
        %p5427 = scmp.eq.s32.totalorder %s26, 1
        // Predicated region
        $region61: #{net_forward.3} parent=39 // pred_check
          %p5428 = pneg %p5427
        $region62: #{net_forward.3} parent=39 // pred_check_branch
          %5430 = sbr.rel (%p5428) target = $region64
        $region63: #{net_forward.3} parent=39 // pred_region
          %v5431 = vld [vmem:[#allocation2] sm:$0x3]
          %v5432 = vld [vmem:[#allocation5] sm:$0x1]
          %v5434 = vperm.slane %v5432, 0
          %v5436 = vadd.f32 %v5431, %v5434
          %v5437 = vpack.c.bf16 %v5436, %v5436
          %v5438 = vld [vmem:[#allocation7] sm:$0xff]
          %v5439 = vld [vmem:[#allocation7 + $0x8] sm:$0xff]
          %v5440 = vld [vmem:[#allocation7 + $0x10] sm:$0xff]
          %v5441 = vld [vmem:[#allocation7 + $0x18] sm:$0xff]
          %v5442 = vld [vmem:[#allocation7 + $0x20] sm:$0xff]
          %v5443 = vld [vmem:[#allocation7 + $0x28] sm:$0xff]
          %v5444 = vld [vmem:[#allocation7 + $0x30] sm:$0xff]
          %v5445 = vld [vmem:[#allocation7 + $0x38] sm:$0xff]
          %v5446 = vld [vmem:[#allocation7 + $0x40] sm:$0xff]
          %v5447 = vld [vmem:[#allocation7 + $0x48] sm:$0xff]
          %v5448 = vld [vmem:[#allocation7 + $0x50] sm:$0xff]
          %v5449 = vld [vmem:[#allocation7 + $0x58] sm:$0xff]
          %v5450 = vld [vmem:[#allocation7 + $0x60] sm:$0xff]
          %v5451 = vld [vmem:[#allocation7 + $0x68] sm:$0xff]
          %v5452 = vld [vmem:[#allocation7 + $0x70] sm:$0xff]
          %v5453 = vld [vmem:[#allocation7 + $0x78] sm:$0xff]
          %v5454 = vld [vmem:[#allocation7 + $0x80] sm:$0xff]
          %v5455 = vld [vmem:[#allocation7 + $0x88] sm:$0xff]
          %v5456 = vld [vmem:[#allocation7 + $0x90] sm:$0xff]
          %v5457 = vld [vmem:[#allocation7 + $0x98] sm:$0xff]
          %v5458 = vld [vmem:[#allocation7 + $0xa0] sm:$0xff]
          %v5459 = vld [vmem:[#allocation7 + $0xa8] sm:$0xff]
          %v5460 = vld [vmem:[#allocation7 + $0xb0] sm:$0xff]
          %v5461 = vld [vmem:[#allocation7 + $0xb8] sm:$0xff]
          %v5462 = vld [vmem:[#allocation7 + $0xc0] sm:$0xff]
          %v5463 = vld [vmem:[#allocation7 + $0xc8] sm:$0xff]
          %v5464 = vld [vmem:[#allocation7 + $0xd0] sm:$0xff]
          %v5465 = vld [vmem:[#allocation7 + $0xd8] sm:$0xff]
          %v5466 = vld [vmem:[#allocation7 + $0xe0] sm:$0xff]
          %v5467 = vld [vmem:[#allocation7 + $0xe8] sm:$0xff]
          %v5468 = vld [vmem:[#allocation7 + $0xf0] sm:$0xff]
          %v5469 = vld [vmem:[#allocation7 + $0xf8] sm:$0xff]
          %v5470 = vld [vmem:[#allocation7 + $0x100] sm:$0xff]
          %v5471 = vld [vmem:[#allocation7 + $0x108] sm:$0xff]
          %v5472 = vld [vmem:[#allocation7 + $0x110] sm:$0xff]
          %v5473 = vld [vmem:[#allocation7 + $0x118] sm:$0xff]
          %v5474 = vld [vmem:[#allocation7 + $0x120] sm:$0xff]
          %v5475 = vld [vmem:[#allocation7 + $0x128] sm:$0xff]
          %v5476 = vld [vmem:[#allocation7 + $0x130] sm:$0xff]
          %v5477 = vld [vmem:[#allocation7 + $0x138] sm:$0xff]
          %v5478 = vld [vmem:[#allocation7 + $0x140] sm:$0xff]
          %v5479 = vld [vmem:[#allocation7 + $0x148] sm:$0xff]
          %v5480 = vld [vmem:[#allocation7 + $0x150] sm:$0xff]
          %v5481 = vld [vmem:[#allocation7 + $0x158] sm:$0xff]
          %v5482 = vld [vmem:[#allocation7 + $0x160] sm:$0xff]
          %v5483 = vld [vmem:[#allocation7 + $0x168] sm:$0xff]
          %v5484 = vld [vmem:[#allocation7 + $0x170] sm:$0xff]
          %v5485 = vld [vmem:[#allocation7 + $0x178] sm:$0xff]
          %v5486 = vld [vmem:[#allocation7 + $0x180] sm:$0xff]
          %v5487 = vld [vmem:[#allocation7 + $0x188] sm:$0xff]
          %v5488 = vld [vmem:[#allocation7 + $0x190] sm:$0xff]
          %v5489 = vld [vmem:[#allocation7 + $0x198] sm:$0xff]
          %v5490 = vld [vmem:[#allocation7 + $0x1a0] sm:$0xff]
          %v5491 = vld [vmem:[#allocation7 + $0x1a8] sm:$0xff]
          %v5492 = vld [vmem:[#allocation7 + $0x1b0] sm:$0xff]
          %v5493 = vld [vmem:[#allocation7 + $0x1b8] sm:$0xff]
          %v5494 = vld [vmem:[#allocation7 + $0x1c0] sm:$0xff]
          %v5495 = vld [vmem:[#allocation7 + $0x1c8] sm:$0xff]
          %v5496 = vld [vmem:[#allocation7 + $0x1d0] sm:$0xff]
          %v5497 = vld [vmem:[#allocation7 + $0x1d8] sm:$0xff]
          %v5498 = vld [vmem:[#allocation7 + $0x1e0] sm:$0xff]
          %v5499 = vld [vmem:[#allocation7 + $0x1e8] sm:$0xff]
          %v5500 = vld [vmem:[#allocation7 + $0x1f0] sm:$0xff]
          %v5501 = vld [vmem:[#allocation7 + $0x1f8] sm:$0xff]
          %v5502 = vld [vmem:[#allocation8] sm:$0xff]
          %v5504 = vperm.slane %v5502, 0
          %v5505 = vperm.slane %v5502, 1
          %v5506 = vperm.slane %v5502, 2
          %v5507 = vperm.slane %v5502, 3
          %v5508 = vperm.slane %v5502, 4
          %v5509 = vperm.slane %v5502, 5
          %v5510 = vperm.slane %v5502, 6
          %v5511 = vperm.slane %v5502, 7
          %v5584 = vunpack.c.l.b16 %v5438
          %v5585 = vunpack.c.h.b16 %v5438
          %v5586 = vunpack.c.l.b16 %v5439
          %v5587 = vunpack.c.h.b16 %v5439
          %v5588 = vunpack.c.l.b16 %v5440
          %v5589 = vunpack.c.h.b16 %v5440
          %v5590 = vunpack.c.l.b16 %v5441
          %v5591 = vunpack.c.h.b16 %v5441
          %v5592 = vunpack.c.l.b16 %v5442
          %v5593 = vunpack.c.h.b16 %v5442
          %v5594 = vunpack.c.l.b16 %v5443
          %v5595 = vunpack.c.h.b16 %v5443
          %v5596 = vunpack.c.l.b16 %v5444
          %v5597 = vunpack.c.h.b16 %v5444
          %v5598 = vunpack.c.l.b16 %v5445
          %v5599 = vunpack.c.h.b16 %v5445
          %v5600 = vunpack.c.l.b16 %v5446
          %v5601 = vunpack.c.h.b16 %v5446
          %v5602 = vunpack.c.l.b16 %v5447
          %v5603 = vunpack.c.h.b16 %v5447
          %v5604 = vunpack.c.l.b16 %v5448
          %v5605 = vunpack.c.h.b16 %v5448
          %v5606 = vunpack.c.l.b16 %v5449
          %v5607 = vunpack.c.h.b16 %v5449
          %v5608 = vunpack.c.l.b16 %v5450
          %v5609 = vunpack.c.h.b16 %v5450
          %v5610 = vunpack.c.l.b16 %v5451
          %v5611 = vunpack.c.h.b16 %v5451
          %v5612 = vunpack.c.l.b16 %v5452
          %v5613 = vunpack.c.h.b16 %v5452
          %v5614 = vunpack.c.l.b16 %v5453
          %v5615 = vunpack.c.h.b16 %v5453
          %v5616 = vunpack.c.l.b16 %v5454
          %v5617 = vunpack.c.h.b16 %v5454
          %v5618 = vunpack.c.l.b16 %v5455
          %v5619 = vunpack.c.h.b16 %v5455
          %v5620 = vunpack.c.l.b16 %v5456
          %v5621 = vunpack.c.h.b16 %v5456
          %v5622 = vunpack.c.l.b16 %v5457
          %v5623 = vunpack.c.h.b16 %v5457
          %v5624 = vunpack.c.l.b16 %v5458
          %v5625 = vunpack.c.h.b16 %v5458
          %v5626 = vunpack.c.l.b16 %v5459
          %v5627 = vunpack.c.h.b16 %v5459
          %v5628 = vunpack.c.l.b16 %v5460
          %v5629 = vunpack.c.h.b16 %v5460
          %v5630 = vunpack.c.l.b16 %v5461
          %v5631 = vunpack.c.h.b16 %v5461
          %v5632 = vunpack.c.l.b16 %v5462
          %v5633 = vunpack.c.h.b16 %v5462
          %v5634 = vunpack.c.l.b16 %v5463
          %v5635 = vunpack.c.h.b16 %v5463
          %v5636 = vunpack.c.l.b16 %v5464
          %v5637 = vunpack.c.h.b16 %v5464
          %v5638 = vunpack.c.l.b16 %v5465
          %v5639 = vunpack.c.h.b16 %v5465
          %v5640 = vunpack.c.l.b16 %v5466
          %v5641 = vunpack.c.h.b16 %v5466
          %v5642 = vunpack.c.l.b16 %v5467
          %v5643 = vunpack.c.h.b16 %v5467
          %v5644 = vunpack.c.l.b16 %v5468
          %v5645 = vunpack.c.h.b16 %v5468
          %v5646 = vunpack.c.l.b16 %v5469
          %v5647 = vunpack.c.h.b16 %v5469
          %v5648 = vunpack.c.l.b16 %v5470
          %v5649 = vunpack.c.h.b16 %v5470
          %v5650 = vunpack.c.l.b16 %v5471
          %v5651 = vunpack.c.h.b16 %v5471
          %v5652 = vunpack.c.l.b16 %v5472
          %v5653 = vunpack.c.h.b16 %v5472
          %v5654 = vunpack.c.l.b16 %v5473
          %v5655 = vunpack.c.h.b16 %v5473
          %v5656 = vunpack.c.l.b16 %v5474
          %v5657 = vunpack.c.h.b16 %v5474
          %v5658 = vunpack.c.l.b16 %v5475
          %v5659 = vunpack.c.h.b16 %v5475
          %v5660 = vunpack.c.l.b16 %v5476
          %v5661 = vunpack.c.h.b16 %v5476
          %v5662 = vunpack.c.l.b16 %v5477
          %v5663 = vunpack.c.h.b16 %v5477
          %v5664 = vunpack.c.l.b16 %v5478
          %v5665 = vunpack.c.h.b16 %v5478
          %v5666 = vunpack.c.l.b16 %v5479
          %v5667 = vunpack.c.h.b16 %v5479
          %v5668 = vunpack.c.l.b16 %v5480
          %v5669 = vunpack.c.h.b16 %v5480
          %v5670 = vunpack.c.l.b16 %v5481
          %v5671 = vunpack.c.h.b16 %v5481
          %v5672 = vunpack.c.l.b16 %v5482
          %v5673 = vunpack.c.h.b16 %v5482
          %v5674 = vunpack.c.l.b16 %v5483
          %v5675 = vunpack.c.h.b16 %v5483
          %v5676 = vunpack.c.l.b16 %v5484
          %v5677 = vunpack.c.h.b16 %v5484
          %v5678 = vunpack.c.l.b16 %v5485
          %v5679 = vunpack.c.h.b16 %v5485
          %v5680 = vunpack.c.l.b16 %v5486
          %v5681 = vunpack.c.h.b16 %v5486
          %v5682 = vunpack.c.l.b16 %v5487
          %v5683 = vunpack.c.h.b16 %v5487
          %v5684 = vunpack.c.l.b16 %v5488
          %v5685 = vunpack.c.h.b16 %v5488
          %v5686 = vunpack.c.l.b16 %v5489
          %v5687 = vunpack.c.h.b16 %v5489
          %v5688 = vunpack.c.l.b16 %v5490
          %v5689 = vunpack.c.h.b16 %v5490
          %v5690 = vunpack.c.l.b16 %v5491
          %v5691 = vunpack.c.h.b16 %v5491
          %v5692 = vunpack.c.l.b16 %v5492
          %v5693 = vunpack.c.h.b16 %v5492
          %v5694 = vunpack.c.l.b16 %v5493
          %v5695 = vunpack.c.h.b16 %v5493
          %v5696 = vunpack.c.l.b16 %v5494
          %v5697 = vunpack.c.h.b16 %v5494
          %v5698 = vunpack.c.l.b16 %v5495
          %v5699 = vunpack.c.h.b16 %v5495
          %v5700 = vunpack.c.l.b16 %v5496
          %v5701 = vunpack.c.h.b16 %v5496
          %v5702 = vunpack.c.l.b16 %v5497
          %v5703 = vunpack.c.h.b16 %v5497
          %v5704 = vunpack.c.l.b16 %v5498
          %v5705 = vunpack.c.h.b16 %v5498
          %v5706 = vunpack.c.l.b16 %v5499
          %v5707 = vunpack.c.h.b16 %v5499
          %v5708 = vunpack.c.l.b16 %v5500
          %v5709 = vunpack.c.h.b16 %v5500
          %v5710 = vunpack.c.l.b16 %v5501
          %v5711 = vunpack.c.h.b16 %v5501
          %v5712 = vpack.c.b16 %v5592, %v5584
          %v5713 = vpack.c.b16 %v5593, %v5585
          %v5714 = vpack.c.b16 %v5594, %v5586
          %v5715 = vpack.c.b16 %v5595, %v5587
          %v5716 = vpack.c.b16 %v5596, %v5588
          %v5717 = vpack.c.b16 %v5597, %v5589
          %v5718 = vpack.c.b16 %v5598, %v5590
          %v5719 = vpack.c.b16 %v5599, %v5591
          %v5720 = vpack.c.b16 %v5608, %v5600
          %v5721 = vpack.c.b16 %v5609, %v5601
          %v5722 = vpack.c.b16 %v5610, %v5602
          %v5723 = vpack.c.b16 %v5611, %v5603
          %v5724 = vpack.c.b16 %v5612, %v5604
          %v5725 = vpack.c.b16 %v5613, %v5605
          %v5726 = vpack.c.b16 %v5614, %v5606
          %v5727 = vpack.c.b16 %v5615, %v5607
          %v5728 = vpack.c.b16 %v5624, %v5616
          %v5729 = vpack.c.b16 %v5625, %v5617
          %v5730 = vpack.c.b16 %v5626, %v5618
          %v5731 = vpack.c.b16 %v5627, %v5619
          %v5732 = vpack.c.b16 %v5628, %v5620
          %v5733 = vpack.c.b16 %v5629, %v5621
          %v5734 = vpack.c.b16 %v5630, %v5622
          %v5735 = vpack.c.b16 %v5631, %v5623
          %v5736 = vpack.c.b16 %v5640, %v5632
          %v5737 = vpack.c.b16 %v5641, %v5633
          %v5738 = vpack.c.b16 %v5642, %v5634
          %v5739 = vpack.c.b16 %v5643, %v5635
          %v5740 = vpack.c.b16 %v5644, %v5636
          %v5741 = vpack.c.b16 %v5645, %v5637
          %v5742 = vpack.c.b16 %v5646, %v5638
          %v5743 = vpack.c.b16 %v5647, %v5639
          %v5744 = vpack.c.b16 %v5656, %v5648
          %v5745 = vpack.c.b16 %v5657, %v5649
          %v5746 = vpack.c.b16 %v5658, %v5650
          %v5747 = vpack.c.b16 %v5659, %v5651
          %v5748 = vpack.c.b16 %v5660, %v5652
          %v5749 = vpack.c.b16 %v5661, %v5653
          %v5750 = vpack.c.b16 %v5662, %v5654
          %v5751 = vpack.c.b16 %v5663, %v5655
          %v5752 = vpack.c.b16 %v5672, %v5664
          %v5753 = vpack.c.b16 %v5673, %v5665
          %v5754 = vpack.c.b16 %v5674, %v5666
          %v5755 = vpack.c.b16 %v5675, %v5667
          %v5756 = vpack.c.b16 %v5676, %v5668
          %v5757 = vpack.c.b16 %v5677, %v5669
          %v5758 = vpack.c.b16 %v5678, %v5670
          %v5759 = vpack.c.b16 %v5679, %v5671
          %v5760 = vpack.c.b16 %v5688, %v5680
          %v5761 = vpack.c.b16 %v5689, %v5681
          %v5762 = vpack.c.b16 %v5690, %v5682
          %v5763 = vpack.c.b16 %v5691, %v5683
          %v5764 = vpack.c.b16 %v5692, %v5684
          %v5765 = vpack.c.b16 %v5693, %v5685
          %v5766 = vpack.c.b16 %v5694, %v5686
          %v5767 = vpack.c.b16 %v5695, %v5687
          %v5768 = vpack.c.b16 %v5704, %v5696
          %v5769 = vpack.c.b16 %v5705, %v5697
          %v5770 = vpack.c.b16 %v5706, %v5698
          %v5771 = vpack.c.b16 %v5707, %v5699
          %v5772 = vpack.c.b16 %v5708, %v5700
          %v5773 = vpack.c.b16 %v5709, %v5701
          %v5774 = vpack.c.b16 %v5710, %v5702
          %v5775 = vpack.c.b16 %v5711, %v5703
          %5840 = vmatpush.bf16.msra.mxu0 %v5768
          %5841 = vmatpush.bf16.msra.mxu0 %v5760
          %5842 = vmatpush.bf16.msra.mxu0 %v5752
          %5843 = vmatpush.bf16.msra.mxu0 %v5744
          %5844 = vmatpush.bf16.msra.mxu0 %v5736
          %5845 = vmatpush.bf16.msra.mxu0 %v5728
          %5846 = vmatpush.bf16.msra.mxu0 %v5720
          %5847 = vmatpush.bf16.msra.mxu0 %v5712
          %5848 = vmatmul.bf16.gmra.mxu0 %v5437
          %v5849 = vpop.f32.mrf.mxu0
          %v5850 = vadd.f32 %v5504, %v5849
          %v5851 = vpop.f32.mrf.mxu0
          %5852 = vdwg.mxu0
          %5853 = vmatpush.bf16.msra.mxu0 %v5769
          %5854 = vmatpush.bf16.msra.mxu0 %v5761
          %5855 = vmatpush.bf16.msra.mxu0 %v5753
          %5856 = vmatpush.bf16.msra.mxu0 %v5745
          %5857 = vmatpush.bf16.msra.mxu0 %v5737
          %5858 = vmatpush.bf16.msra.mxu0 %v5729
          %5859 = vmatpush.bf16.msra.mxu0 %v5721
          %5860 = vmatpush.bf16.msra.mxu0 %v5713
          %5861 = vmatmul.bf16.gmra.mxu0 %v5437
          %v5862 = vpop.f32.mrf.mxu0
          %v5863 = vadd.f32 %v5505, %v5862
          %v5864 = vpop.f32.mrf.mxu0
          %5865 = vdwg.mxu0
          %5866 = vmatpush.bf16.msra.mxu0 %v5770
          %5867 = vmatpush.bf16.msra.mxu0 %v5762
          %5868 = vmatpush.bf16.msra.mxu0 %v5754
          %5869 = vmatpush.bf16.msra.mxu0 %v5746
          %5870 = vmatpush.bf16.msra.mxu0 %v5738
          %5871 = vmatpush.bf16.msra.mxu0 %v5730
          %5872 = vmatpush.bf16.msra.mxu0 %v5722
          %5873 = vmatpush.bf16.msra.mxu0 %v5714
          %5874 = vmatmul.bf16.gmra.mxu0 %v5437
          %v5875 = vpop.f32.mrf.mxu0
          %v5876 = vadd.f32 %v5506, %v5875
          %v5877 = vpop.f32.mrf.mxu0
          %5878 = vdwg.mxu0
          %5879 = vmatpush.bf16.msra.mxu0 %v5771
          %5880 = vmatpush.bf16.msra.mxu0 %v5763
          %5881 = vmatpush.bf16.msra.mxu0 %v5755
          %5882 = vmatpush.bf16.msra.mxu0 %v5747
          %5883 = vmatpush.bf16.msra.mxu0 %v5739
          %5884 = vmatpush.bf16.msra.mxu0 %v5731
          %5885 = vmatpush.bf16.msra.mxu0 %v5723
          %5886 = vmatpush.bf16.msra.mxu0 %v5715
          %5887 = vmatmul.bf16.gmra.mxu0 %v5437
          %v5888 = vpop.f32.mrf.mxu0
          %v5889 = vadd.f32 %v5507, %v5888
          %v5890 = vpop.f32.mrf.mxu0
          %5891 = vdwg.mxu0
          %5892 = vmatpush.bf16.msra.mxu0 %v5772
          %5893 = vmatpush.bf16.msra.mxu0 %v5764
          %5894 = vmatpush.bf16.msra.mxu0 %v5756
          %5895 = vmatpush.bf16.msra.mxu0 %v5748
          %5896 = vmatpush.bf16.msra.mxu0 %v5740
          %5897 = vmatpush.bf16.msra.mxu0 %v5732
          %5898 = vmatpush.bf16.msra.mxu0 %v5724
          %5899 = vmatpush.bf16.msra.mxu0 %v5716
          %5900 = vmatmul.bf16.gmra.mxu0 %v5437
          %v5901 = vpop.f32.mrf.mxu0
          %v5902 = vadd.f32 %v5508, %v5901
          %v5903 = vpop.f32.mrf.mxu0
          %5904 = vdwg.mxu0
          %5905 = vmatpush.bf16.msra.mxu0 %v5773
          %5906 = vmatpush.bf16.msra.mxu0 %v5765
          %5907 = vmatpush.bf16.msra.mxu0 %v5757
          %5908 = vmatpush.bf16.msra.mxu0 %v5749
          %5909 = vmatpush.bf16.msra.mxu0 %v5741
          %5910 = vmatpush.bf16.msra.mxu0 %v5733
          %5911 = vmatpush.bf16.msra.mxu0 %v5725
          %5912 = vmatpush.bf16.msra.mxu0 %v5717
          %5913 = vmatmul.bf16.gmra.mxu0 %v5437
          %v5914 = vpop.f32.mrf.mxu0
          %v5915 = vadd.f32 %v5509, %v5914
          %v5916 = vpop.f32.mrf.mxu0
          %5917 = vdwg.mxu0
          %5918 = vmatpush.bf16.msra.mxu0 %v5774
          %5919 = vmatpush.bf16.msra.mxu0 %v5766
          %5920 = vmatpush.bf16.msra.mxu0 %v5758
          %5921 = vmatpush.bf16.msra.mxu0 %v5750
          %5922 = vmatpush.bf16.msra.mxu0 %v5742
          %5923 = vmatpush.bf16.msra.mxu0 %v5734
          %5924 = vmatpush.bf16.msra.mxu0 %v5726
          %5925 = vmatpush.bf16.msra.mxu0 %v5718
          %5926 = vmatmul.bf16.gmra.mxu0 %v5437
          %v5927 = vpop.f32.mrf.mxu0
          %v5928 = vadd.f32 %v5510, %v5927
          %v5929 = vpop.f32.mrf.mxu0
          %5930 = vdwg.mxu0
          %5931 = vmatpush.bf16.msra.mxu0 %v5775
          %5932 = vmatpush.bf16.msra.mxu0 %v5767
          %5933 = vmatpush.bf16.msra.mxu0 %v5759
          %5934 = vmatpush.bf16.msra.mxu0 %v5751
          %5935 = vmatpush.bf16.msra.mxu0 %v5743
          %5936 = vmatpush.bf16.msra.mxu0 %v5735
          %5937 = vmatpush.bf16.msra.mxu0 %v5727
          %5938 = vmatpush.bf16.msra.mxu0 %v5719
          %5939 = vmatmul.bf16.gmra.mxu0 %v5437
          %v5940 = vpop.f32.mrf.mxu0
          %v5941 = vadd.f32 %v5511, %v5940
          %v5942 = vpop.f32.mrf.mxu0
          %5943 = vdwg.mxu0
          %v5952 = vrot.slane %v5863, 6
          %v5953 = vrot.slane %v5876, 4
          %v5954 = vrot.slane %v5889, 2
          %v5955 = vrot.slane %v5915, 6
          %v5956 = vrot.slane %v5928, 4
          %v5957 = vrot.slane %v5941, 2
          %vm5958 = vcmask 1041408
          %v5959 = vsel %vm5958, %v5850, %v5952
          %vm5960 = vcmask 1045508
          %v5961 = vsel %vm5960, %v5953, %v5954
          %vm5962 = vcmask 1043456
          %v5963 = vsel %vm5962, %v5959, %v5961
          %v5964 = vsel %vm5958, %v5902, %v5955
          %v5965 = vsel %vm5960, %v5956, %v5957
          %v5966 = vsel %vm5962, %v5964, %v5965
          %5969 = vst [vmem:[%s338] sm:$0xff] %v5963
          %5970 = vst [vmem:[%s338 + $0x8] sm:$0xff] %v5966
        $region64: #{net_forward.3} parent=39 // pred_fallthru
          _
        %p5971 = scmp.lt.s32.totalorder %s25, 0
        %s5972 = scalar_select %p5971, %s25, 0
        %s5973 = smul.addr %s5972, 8
        %s5974 = smul.addr %s5973, 2
        %s5975 = scalar_lea.vmem %s5, %s5974
        // Predicated region
        $region65: #{net_forward.3} parent=39 // pred_check
          %p5976 = pneg %p168
        $region66: #{net_forward.3} parent=39 // pred_check_branch
          %5978 = sbr.rel (%p5976) target = $region68
        $region67: #{net_forward.3} parent=39 // pred_region
          _
        $region68: #{net_forward.3} parent=39 // pred_fallthru
          _
        // Predicated region
        $region69: #{net_forward.3} parent=39 // pred_check
          %p5979 = pneg %p168
        $region70: #{net_forward.3} parent=39 // pred_check_branch
          %5981 = sbr.rel (%p5979) target = $region72
        $region71: #{net_forward.3} parent=39 // pred_region
          %p5982 = scmp.lt.s32.totalorder %s25, 0
          %s5983 = scalar_select %p5982, %s25, 0
          %s5984 = smul.addr %s5983, 8
          %s5985 = smul.addr %s5984, 2
          %s5986 = scalar_lea.vmem %s5, %s5985
        $region72: #{net_forward.3} parent=39 // pred_fallthru
          _
      $region40: #{net_forward.3} parent=5 // pred_fallthru
        _
      %p5987 = scmp.le.s32.totalorder 2, %s16
      // Predicated region
      $region73: #{net_forward.3} parent=5 // pred_check
        %p5988 = pneg %p5987
      $region74: #{net_forward.3} parent=5 // pred_check_branch
        %5990 = sbr.rel (%p5988) target = $region76
      $region75: #{net_forward.3} parent=5 // pred_region
        %s5991 = ssub.s32 %s16, 2
      $region76: #{net_forward.3} parent=5 // pred_fallthru
        _
    $region6: #{net_forward.3} parent=1 // loop_footer
      %s20 = sadd.s32 1, %s16
    $region7: #{net_forward.3} parent=1 // loop_footer_branch
      %15 = sbr.rel target = $region3
    $region8: #{net_forward.3} parent=1 // loop_exit
      _
    %5992 = vsyncpa [#allocation4], 1
    %s5993 = scalar_lea.sflag [#allocation4], 1
    %5994 = vsyncpa %s5993, 1
    %5995 = vsyncpa [#allocation6], 1
    %5996 = vsyncpa [#allocation9], 1

</llo_original>
